<compile_context>
chip_gen: v5e
topology: v5e:2x2
jax: 0.10.0
libtpu: 0.0.40
codegen_flags: <defaults>
</compile_context>

<pallas_src>
import math

import jax
import jax.numpy as jnp
from jax import lax
from jax.experimental import pallas as pl
from jax.experimental.pallas import tpu as pltpu

# ---------------- configuration (matches GUNet defaults) -------------------
LATENT_DIM = [32, 32, 32, 1]
TOTAL_LATENT = sum(LATENT_DIM)            # 97  == GraphUNet out_channels
PAD_LATENT = 128                          # zero-padded, lane-friendly latent width
K_SORT = 30                               # self.k
CONV1D_CHANNELS = [16, 32]
CONV1D_KW2 = 5                            # conv1d_kws[1]
OUTPUT_DIM = 10
NUM_NODE_FEATS = 8
NUM_EDGE_FEATS = 0
UNET_HIDDEN = 48
POOL_RATIOS = [0.9, 0.7, 0.6, 0.5]
DEPTH = len(POOL_RATIOS)

C1, C2 = CONV1D_CHANNELS
KP = (K_SORT - 2) // 2 + 1                # 15 (after MaxPool1d(2,2))
LOUT = KP - CONV1D_KW2 + 1                # 11 (after Conv1d(k=5, s=1))
DENSE_DIM = LOUT * C2                     # 352 == self.dense_dim


# =========================== Pallas kernels ================================

def unet_sortpool_kernel(a_ref, x_ref, dw0_ref, db0_ref, dw_ref, db_ref,
                         pw_ref, uw_ref, ub_ref, uwl_ref, ubl_ref, o_ref):
    """Whole GraphUNet (depth=4, sum_res=True) + global_sort_pool for ONE graph.

    Output: (2, KP, PAD_LATENT) -- sort-pooled rows split into even / odd ranks
    (zero-padded when the graph has fewer than K_SORT nodes).
    """
    f32 = jnp.float32
    _eyes = {}

    def eye(n):
        if n not in _eyes:
            r = lax.broadcasted_iota(jnp.int32, (n, n), 0)
            c = lax.broadcasted_iota(jnp.int32, (n, n), 1)
            _eyes[n] = jnp.where(r == c, 1.0, 0.0)
        return _eyes[n]

    def row_bcast(v_col, m):
        # (n,1) column vector -> (m,n) matrix whose every row is v^T.
        # Transpose-free: ones(m,n) @ diag(v); exact for the copied values used here.
        n = v_col.shape[0]
        diag = eye(n) * jnp.broadcast_to(v_col, (n, n))
        return jnp.dot(jnp.ones((m, n), f32), diag, preferred_element_type=f32)

    def ranks(score_col):
        # Stable descending ranks: rank[i] = #{j : s_j > s_i, or s_j == s_i and j < i}.
        # TODO(synk): torch.sort tie-breaking order is not bit-reproduced (irrelevant
        # for continuous float scores).
        n = score_col.shape[0]
        s_row = row_bcast(score_col, n)                       # [i, j] = s_j
        s_col = jnp.broadcast_to(score_col, (n, n))           # [i, j] = s_i
        ri = lax.broadcasted_iota(jnp.int32, (n, n), 0)
        ci = lax.broadcasted_iota(jnp.int32, (n, n), 1)
        before = jnp.where((s_row > s_col) | ((s_row == s_col) & (ci < ri)), 1.0, 0.0)
        return jnp.sum(before, axis=1, keepdims=True)         # (n, 1), exact small ints

    def gcn(A, x, W, b, relu):
        # GCNConv(improved=True) on a symmetric dense adjacency:
        #   out = D^-1/2 (A + 2I) D^-1/2 (X W) + b        (deg >= 2 always)
        n = A.shape[0]
        ahat = A + 2.0 * eye(n)
        dr = lax.rsqrt(jnp.sum(ahat, axis=1, keepdims=True))  # (n, 1)
        xw = jnp.dot(x, W, preferred_element_type=f32)
        out = dr * jnp.dot(ahat, dr * xw, preferred_element_type=f32) + b
        return jnp.maximum(out, 0.0) if relu else out

    def augment(A):
        # GraphUNet.augment_adj (dense): zero diag, add I, A @ A, zero diag.
        n = A.shape[0]
        e = eye(n)
        at = A * (1.0 - e) + e
        return jnp.dot(at, at, preferred_element_type=f32) * (1.0 - e)

    def topk(x, A, w_col, k):
        # TopKPooling as selection-matrix matmuls (no argsort / gather needed).
        n = x.shape[0]
        score = jnp.tanh(jnp.dot(x, w_col, preferred_element_type=f32))   # (n,1), w pre-normalized
        rank = ranks(score)                                               # (n,1)
        rank_row = row_bcast(rank, k).astype(jnp.int32)                   # (k,n): [r,i] = rank_i
        rr = lax.broadcasted_iota(jnp.int32, (k, n), 0)
        P = jnp.where(rank_row == rr, 1.0, 0.0)                           # (k,n) row selector
        rank_i = rank.astype(jnp.int32)
        cc = lax.broadcasted_iota(jnp.int32, (n, k), 1)
        PT = jnp.where(jnp.broadcast_to(rank_i, (n, k)) == cc, 1.0, 0.0)  # (n,k) == P^T
        x_new = jnp.dot(P, x * score, preferred_element_type=f32)         # x[perm] * score[perm]
        A_new = jnp.dot(jnp.dot(P, A, preferred_element_type=f32), PT,
                        preferred_element_type=f32)                       # A[perm][:, perm]
        return x_new, A_new, PT

    # ---------------- down pass ----------------
    A = a_ref[...]
    x = gcn(A, x_ref[...], dw0_ref[...], db0_ref[...], relu=True)
    xs, adjs, pts = [x], [A], []
    for i in range(DEPTH):
        A = augment(A)
        k = int(math.ceil(POOL_RATIOS[i] * A.shape[0]))
        x, A, PT = topk(x, A, pw_ref[:, i:i + 1], k)
        x = gcn(A, x, dw_ref[i], db_ref[i], relu=True)
        if i < DEPTH - 1:
            xs.append(x)
            adjs.append(A)
        pts.append(PT)

    # ---------------- up pass (sum_res=True) ----------------
    for i in range(DEPTH):
        j = DEPTH - 1 - i
        up = jnp.dot(pts[j], x, preferred_element_type=f32)   # un-pool scatter
        x = xs[j] + up
        if i < DEPTH - 1:
            x = gcn(adjs[j], x, uw_ref[i], ub_ref[i], relu=True)
        else:
            x = gcn(adjs[j], x, uwl_ref[...], ubl_ref[...], relu=False)   # (n0, 128)

    # -------- global_sort_pool (desc by last real channel), even/odd split --------
    n0 = x.shape[0]
    srt = ranks(x[:, TOTAL_LATENT - 1:TOTAL_LATENT])          # (n0, 1)
    rank_row = row_bcast(srt, KP).astype(jnp.int32)           # (KP, n0): [r,i] = rank_i
    rr = lax.broadcasted_iota(jnp.int32, (KP, n0), 0)
    p_even = jnp.where(rank_row == 2 * rr, 1.0, 0.0)          # sorted rows 0,2,4,...
    p_odd = jnp.where(rank_row == 2 * rr + 1, 1.0, 0.0)       # sorted rows 1,3,5,...
    o_ref[0] = jnp.dot(p_even, x, preferred_element_type=jnp.float32)
    o_ref[1] = jnp.dot(p_odd, x, preferred_element_type=jnp.float32)


def head_kernel(x_ref, w1_ref, b1_ref, w2_ref, b2_ref, wd_ref, bd_ref, o_ref):
    """Fused SortPool head for one graph (grid step = one graph).

    Conv1d(1, C1, kern=97, stride=97) over the flattened (k*97) vector is a per-row
    matmul of the sort-pooled matrix.  The even/odd rank rows arrive pre-split, so
    MaxPool1d(2, 2) is an elementwise max (relu and max commute).  All
    intermediates stay as SSA values (no VMEM scratch).
    """
    f32 = jnp.float32
    xe = x_ref[0]                                             # (KP, 128)
    xo = x_ref[1]                                             # (KP, 128)
    he = jnp.dot(xe, w1_ref[...], preferred_element_type=f32) + b1_ref[...]
    ho = jnp.dot(xo, w1_ref[...], preferred_element_type=f32) + b1_ref[...]
    hp = jnp.maximum(jnp.maximum(he, ho), 0.0)                # ReLU + MaxPool1d -> (KP, C1)

    # Conv1d(C1, C2, kern=5, stride=1) as one im2col matmul: (LOUT, 5*C1) @ (5*C1, C2).
    cols = jnp.concatenate([hp[j:j + LOUT, :] for j in range(CONV1D_KW2)], axis=1)
    h2 = jnp.maximum(
        jnp.dot(cols, w2_ref[...], preferred_element_type=f32) + b2_ref[...], 0.0)

    # Linear(352, OUTPUT_DIM): weight pre-permuted to (t, c, out); the double F.relu
    # in the reference is idempotent.
    out = bd_ref[...]                                         # (1, OUTPUT_DIM)
    for t in range(LOUT):
        out = out + jnp.dot(h2[t:t + 1, :], wd_ref[t], preferred_element_type=f32)
    o_ref[0] = jnp.maximum(out, 0.0)


# ============================ Pallas wrappers ===============================

def unet_sortpool(p, pw_scaled, x, A):
    """Full GraphUNet + sort-pool for one graph -> (2, KP, PAD_LATENT)."""
    return pl.pallas_call(
        unet_sortpool_kernel,
        out_shape=jax.ShapeDtypeStruct((2, KP, PAD_LATENT), jnp.float32),
    )(A, x, p['down_w0'], p['down_b0'], p['down_w'], p['down_b'],
      pw_scaled, p['up_w'], p['up_b'], p['up_w_last'], p['up_b_last'])


def conv_head(p, bx):
    """bx: (2*B, KP, PAD_LATENT) even/odd sort-pooled blocks -> (B, OUTPUT_DIM)."""
    nb = bx.shape[0] // 2
    out = pl.pallas_call(
        head_kernel,
        out_shape=jax.ShapeDtypeStruct((nb, 1, OUTPUT_DIM), jnp.float32),
        grid=(nb,),
        in_specs=[
            pl.BlockSpec((2, KP, PAD_LATENT), lambda b: (b, 0, 0)),
            pl.BlockSpec((PAD_LATENT, C1), lambda b: (0, 0)),
            pl.BlockSpec((1, C1), lambda b: (0, 0)),
            pl.BlockSpec((CONV1D_KW2 * C1, C2), lambda b: (0, 0)),
            pl.BlockSpec((1, C2), lambda b: (0, 0)),
            pl.BlockSpec((LOUT, C2, OUTPUT_DIM), lambda b: (0, 0, 0)),
            pl.BlockSpec((1, OUTPUT_DIM), lambda b: (0, 0)),
        ],
        out_specs=pl.BlockSpec((1, 1, OUTPUT_DIM), lambda b: (b, 0, 0)),
        compiler_params=pltpu.CompilerParams(
            dimension_semantics=("parallel",)),   # shards graphs across v7x's 2 TCs
    )(bx, p['w1'], p['b1'], p['w2'], p['b2'], p['wd'], p['bd'])
    return out[:, 0, :]


# ============================= forward (glue) ===============================

def gunet_forward(params, x0, A0, x1, A1):
    """GUNet.forward for a batch of 2 graphs (GCN / TopK pooling / sort-pool all act
    per graph in PyG, so per-graph processing is equivalent to the batched version)."""
    pw = params['pool_w']                                     # (UNET_HIDDEN, DEPTH)
    pw_scaled = pw / jnp.sqrt(jnp.sum(pw * pw, axis=0, keepdims=True))
    sp0 = unet_sortpool(params, pw_scaled, x0, A0)            # (2, KP, 128)
    sp1 = unet_sortpool(params, pw_scaled, x1, A1)            # (2, KP, 128)
    bx = jnp.concatenate([sp0, sp1], axis=0)                  # (2*B, KP, 128)
    return conv_head(params, bx)                              # (B, OUTPUT_DIM)


# ============================ parameters / data =============================

def _u(key, shape):
    fan_in = shape[0] if len(shape) > 1 else shape[0]
    s = 1.0 / math.sqrt(max(1, fan_in))
    return jax.random.uniform(key, shape, jnp.float32, minval=-s, maxval=s)


def init_params(key):
    keys = iter(jax.random.split(key, 40))
    p = {}
    # GraphUNet: 1 + DEPTH down GCNConvs, DEPTH TopK pools, DEPTH up GCNConvs.
    down_dims = [(NUM_NODE_FEATS, UNET_HIDDEN)] + [(UNET_HIDDEN, UNET_HIDDEN)] * DEPTH
    dw = [_u(next(keys), d) for d in down_dims]
    db = [_u(next(keys), (1, d[1])) for d in down_dims]
    p['down_w0'], p['down_b0'] = dw[0], db[0]
    p['down_w'], p['down_b'] = jnp.stack(dw[1:]), jnp.stack(db[1:])
    pool_w = [_u(next(keys), (UNET_HIDDEN,)) for _ in range(DEPTH)]
    p['pool_w'] = jnp.stack(pool_w, axis=1)                   # (UNET_HIDDEN, DEPTH)
    up_dims = [(UNET_HIDDEN, UNET_HIDDEN)] * (DEPTH - 1) + [(UNET_HIDDEN, TOTAL_LATENT)]
    uw = [_u(next(keys), d) for d in up_dims]
    ub = [_u(next(keys), (1, d[1])) for d in up_dims]
    p['up_w'], p['up_b'] = jnp.stack(uw[:-1]), jnp.stack(ub[:-1])
    # Last up layer zero-padded 97 -> 128 on the output channels (exact).
    pad = PAD_LATENT - TOTAL_LATENT
    p['up_w_last'] = jnp.pad(uw[-1], ((0, 0), (0, pad)))
    p['up_b_last'] = jnp.pad(ub[-1], ((0, 0), (0, pad)))
    # conv1d_params1: torch weight (C1, 1, 97) -> (97, C1) -> zero-pad rows to 128.
    w1 = _u(next(keys), (C1, 1, TOTAL_LATENT))
    p['w1'] = jnp.pad(jnp.transpose(w1[:, 0, :], (1, 0)), ((0, pad), (0, 0)))
    p['b1'] = _u(next(keys), (1, C1))
    # conv1d_params2: torch weight (C2, C1, 5) -> im2col layout (5*C1, C2).
    w2 = _u(next(keys), (C2, C1, CONV1D_KW2))
    p['w2'] = jnp.transpose(w2, (2, 1, 0)).reshape(CONV1D_KW2 * C1, C2)
    p['b2'] = _u(next(keys), (1, C2))
    # out_params: torch Linear(352, out); PyTorch flattens the conv output channel-major
    # (flat[c*LOUT + t]); we iterate time-major -> permute weight rows to (t, c, out).
    wd = _u(next(keys), (DENSE_DIM, OUTPUT_DIM))              # == out_params.weight.T
    p['wd'] = wd.reshape(C2, LOUT, OUTPUT_DIM).transpose(1, 0, 2)
    p['bd'] = _u(next(keys), (1, OUTPUT_DIM))
    # NOTE: self.conv_params and self.w_e2l are unused in the reference forward path.
    return p


def make_graph(key, n, f, p_edge=0.35):
    k1, k2 = jax.random.split(key)
    x = jax.random.normal(k1, (n, f), jnp.float32)
    upper = jnp.triu(jax.random.bernoulli(k2, p_edge, (n, n)).astype(jnp.float32), 1)
    A = upper + upper.T                                       # undirected, no self loops
    return x, A


# =================================== main ===================================

if __name__ == "__main__":
    key = jax.random.PRNGKey(0)
    kparam, kg0, kg1 = jax.random.split(key, 3)
    params = init_params(kparam)
    x0, A0 = make_graph(kg0, 20, NUM_NODE_FEATS)
    x1, A1 = make_graph(kg1, 16, NUM_NODE_FEATS)

    out = jax.jit(gunet_forward)(params, x0, A0, x1, A1)
    out = jax.block_until_ready(out)
    assert out.shape == (2, OUTPUT_DIM) and out.dtype == jnp.float32
    assert bool(jnp.all(jnp.isfinite(out)))
    print("KERNEL_OK")
</pallas_src>

<mosaic_0001>
module attributes {stable_mosaic.version = 11 : i64} {
  func.func @unet_sortpool_kernel(%arg0: memref<20x20xf32, #tpu.memory_space<vmem>>, %arg1: memref<20x8xf32, #tpu.memory_space<vmem>>, %arg2: memref<8x48xf32, #tpu.memory_space<vmem>>, %arg3: memref<1x48xf32, #tpu.memory_space<vmem>>, %arg4: memref<4x48x48xf32, #tpu.memory_space<vmem>>, %arg5: memref<4x1x48xf32, #tpu.memory_space<vmem>>, %arg6: memref<48x4xf32, #tpu.memory_space<vmem>>, %arg7: memref<3x48x48xf32, #tpu.memory_space<vmem>>, %arg8: memref<3x1x48xf32, #tpu.memory_space<vmem>>, %arg9: memref<48x128xf32, #tpu.memory_space<vmem>>, %arg10: memref<1x128xf32, #tpu.memory_space<vmem>>, %arg11: memref<2x15x128xf32, #tpu.memory_space<vmem>>) attributes {dimension_semantics = [], scalar_prefetch = 0 : i64, scratch_operands = 0 : i64, tpu.core_type = #tpu.core_type<tc>} {
    %c0 = arith.constant 0 : index
    %c0_0 = arith.constant 0 : index
    %0 = vector.load %arg0[%c0, %c0_0] : memref<20x20xf32, #tpu.memory_space<vmem>>, vector<20x20xf32>
    %c0_1 = arith.constant 0 : index
    %c0_2 = arith.constant 0 : index
    %1 = vector.load %arg1[%c0_1, %c0_2] : memref<20x8xf32, #tpu.memory_space<vmem>>, vector<20x8xf32>
    %c0_3 = arith.constant 0 : index
    %c0_4 = arith.constant 0 : index
    %2 = vector.load %arg2[%c0_3, %c0_4] : memref<8x48xf32, #tpu.memory_space<vmem>>, vector<8x48xf32>
    %c0_5 = arith.constant 0 : index
    %c0_6 = arith.constant 0 : index
    %3 = vector.load %arg3[%c0_5, %c0_6] : memref<1x48xf32, #tpu.memory_space<vmem>>, vector<1x48xf32>
    %4 = tpu.iota {dimensions = array<i32: 0>} : vector<20x20xi32>
    %5 = tpu.iota {dimensions = array<i32: 1>} : vector<20x20xi32>
    %6 = arith.cmpi eq, %4, %5 : vector<20x20xi32>
    %cst = arith.constant 1.000000e+00 : f32
    %cst_7 = arith.constant 0.000000e+00 : f32
    %7 = vector.broadcast %cst : f32 to vector<20x20xf32>
    %8 = vector.broadcast %cst_7 : f32 to vector<20x20xf32>
    %9 = arith.select %6, %7, %8 : vector<20x20xi1>, vector<20x20xf32>
    %cst_8 = arith.constant 2.000000e+00 : f32
    %10 = vector.broadcast %cst_8 : f32 to vector<20x20xf32>
    %11 = arith.mulf %10, %9 : vector<20x20xf32>
    %12 = arith.addf %0, %11 : vector<20x20xf32>
    %cst_9 = arith.constant dense<0.000000e+00> : vector<20xf32>
    %13 = vector.multi_reduction <add>, %12, %cst_9 [1] : vector<20x20xf32> to vector<20xf32>
    %14 = vector.shape_cast %13 : vector<20xf32> to vector<20x1xf32>
    %15 = math.rsqrt %14 : vector<20x1xf32>
    %cst_10 = arith.constant dense<0.000000e+00> : vector<20x48xf32>
    %16 = tpu.matmul %1, %2, %cst_10 {dimension_numbers = #tpu.dot_dimension_numbers<[1], [0], [0], [1], [0, 0, 1, 1], [], []>} : vector<20x8xf32>, vector<8x48xf32>, vector<20x48xf32> -> vector<20x48xf32>
    %17 = vector.broadcast %15 : vector<20x1xf32> to vector<20x48xf32>
    %18 = arith.mulf %17, %16 : vector<20x48xf32>
    %cst_11 = arith.constant dense<0.000000e+00> : vector<20x48xf32>
    %19 = tpu.matmul %12, %18, %cst_11 {dimension_numbers = #tpu.dot_dimension_numbers<[1], [0], [0], [1], [0, 0, 1, 1], [], []>} : vector<20x20xf32>, vector<20x48xf32>, vector<20x48xf32> -> vector<20x48xf32>
    %20 = vector.broadcast %15 : vector<20x1xf32> to vector<20x48xf32>
    %21 = arith.mulf %20, %19 : vector<20x48xf32>
    %22 = vector.broadcast %3 : vector<1x48xf32> to vector<20x48xf32>
    %23 = arith.addf %21, %22 : vector<20x48xf32>
    %cst_12 = arith.constant 0.000000e+00 : f32
    %24 = vector.broadcast %cst_12 : f32 to vector<20x48xf32>
    %25 = arith.maximumf %23, %24 : vector<20x48xf32>
    %cst_13 = arith.constant 1.000000e+00 : f32
    %26 = vector.broadcast %cst_13 : f32 to vector<20x20xf32>
    %27 = arith.subf %26, %9 : vector<20x20xf32>
    %28 = arith.mulf %0, %27 : vector<20x20xf32>
    %29 = arith.addf %28, %9 : vector<20x20xf32>
    %cst_14 = arith.constant dense<0.000000e+00> : vector<20x20xf32>
    %30 = tpu.matmul %29, %29, %cst_14 {dimension_numbers = #tpu.dot_dimension_numbers<[1], [0], [0], [1], [0, 0, 1, 1], [], []>} : vector<20x20xf32>, vector<20x20xf32>, vector<20x20xf32> -> vector<20x20xf32>
    %cst_15 = arith.constant 1.000000e+00 : f32
    %31 = vector.broadcast %cst_15 : f32 to vector<20x20xf32>
    %32 = arith.subf %31, %9 : vector<20x20xf32>
    %33 = arith.mulf %30, %32 : vector<20x20xf32>
    %c0_16 = arith.constant 0 : index
    %c0_17 = arith.constant 0 : index
    %34 = vector.load %arg6[%c0_16, %c0_17] : memref<48x4xf32, #tpu.memory_space<vmem>>, vector<48x1xf32>
    %cst_18 = arith.constant dense<0.000000e+00> : vector<20x1xf32>
    %35 = tpu.matmul %25, %34, %cst_18 {dimension_numbers = #tpu.dot_dimension_numbers<[1], [0], [0], [1], [0, 0, 1, 1], [], []>} : vector<20x48xf32>, vector<48x1xf32>, vector<20x1xf32> -> vector<20x1xf32>
    %36 = math.tanh %35 : vector<20x1xf32>
    %37 = vector.shape_cast %36 : vector<20x1xf32> to vector<20x1xf32>
    %38 = vector.broadcast %37 : vector<20x1xf32> to vector<20x20xf32>
    %39 = arith.mulf %9, %38 : vector<20x20xf32>
    %cst_19 = arith.constant 1.000000e+00 : f32
    %40 = vector.broadcast %cst_19 : f32 to vector<20x20xf32>
    %cst_20 = arith.constant dense<0.000000e+00> : vector<20x20xf32>
    %41 = tpu.matmul %40, %39, %cst_20 {dimension_numbers = #tpu.dot_dimension_numbers<[1], [0], [0], [1], [0, 0, 1, 1], [], []>} : vector<20x20xf32>, vector<20x20xf32>, vector<20x20xf32> -> vector<20x20xf32>
    %42 = vector.shape_cast %36 : vector<20x1xf32> to vector<20x1xf32>
    %43 = vector.broadcast %42 : vector<20x1xf32> to vector<20x20xf32>
    %44 = tpu.iota {dimensions = array<i32: 0>} : vector<20x20xi32>
    %45 = tpu.iota {dimensions = array<i32: 1>} : vector<20x20xi32>
    %46 = arith.cmpf ogt, %41, %43 : vector<20x20xf32>
    %47 = arith.cmpf oeq, %41, %43 : vector<20x20xf32>
    %48 = arith.cmpi slt, %45, %44 : vector<20x20xi32>
    %49 = arith.andi %47, %48 : vector<20x20xi1>
    %50 = arith.ori %46, %49 : vector<20x20xi1>
    %cst_21 = arith.constant 1.000000e+00 : f32
    %cst_22 = arith.constant 0.000000e+00 : f32
    %51 = vector.broadcast %cst_21 : f32 to vector<20x20xf32>
    %52 = vector.broadcast %cst_22 : f32 to vector<20x20xf32>
    %53 = arith.select %50, %51, %52 : vector<20x20xi1>, vector<20x20xf32>
    %cst_23 = arith.constant dense<0.000000e+00> : vector<20xf32>
    %54 = vector.multi_reduction <add>, %53, %cst_23 [1] : vector<20x20xf32> to vector<20xf32>
    %55 = vector.shape_cast %54 : vector<20xf32> to vector<20x1xf32>
    %56 = vector.shape_cast %55 : vector<20x1xf32> to vector<20x1xf32>
    %57 = vector.broadcast %56 : vector<20x1xf32> to vector<20x20xf32>
    %58 = arith.mulf %9, %57 : vector<20x20xf32>
    %cst_24 = arith.constant 1.000000e+00 : f32
    %59 = vector.broadcast %cst_24 : f32 to vector<18x20xf32>
    %cst_25 = arith.constant dense<0.000000e+00> : vector<18x20xf32>
    %60 = tpu.matmul %59, %58, %cst_25 {dimension_numbers = #tpu.dot_dimension_numbers<[1], [0], [0], [1], [0, 0, 1, 1], [], []>} : vector<18x20xf32>, vector<20x20xf32>, vector<18x20xf32> -> vector<18x20xf32>
    %61 = arith.fptosi %60 : vector<18x20xf32> to vector<18x20xi32>
    %62 = tpu.iota {dimensions = array<i32: 0>} : vector<18x20xi32>
    %63 = arith.cmpi eq, %61, %62 : vector<18x20xi32>
    %cst_26 = arith.constant 1.000000e+00 : f32
    %cst_27 = arith.constant 0.000000e+00 : f32
    %64 = vector.broadcast %cst_26 : f32 to vector<18x20xf32>
    %65 = vector.broadcast %cst_27 : f32 to vector<18x20xf32>
    %66 = arith.select %63, %64, %65 : vector<18x20xi1>, vector<18x20xf32>
    %67 = arith.fptosi %55 : vector<20x1xf32> to vector<20x1xi32>
    %68 = tpu.iota {dimensions = array<i32: 1>} : vector<20x18xi32>
    %69 = vector.shape_cast %67 : vector<20x1xi32> to vector<20x1xi32>
    %70 = vector.broadcast %69 : vector<20x1xi32> to vector<20x18xi32>
    %71 = arith.cmpi eq, %70, %68 : vector<20x18xi32>
    %cst_28 = arith.constant 1.000000e+00 : f32
    %cst_29 = arith.constant 0.000000e+00 : f32
    %72 = vector.broadcast %cst_28 : f32 to vector<20x18xf32>
    %73 = vector.broadcast %cst_29 : f32 to vector<20x18xf32>
    %74 = arith.select %71, %72, %73 : vector<20x18xi1>, vector<20x18xf32>
    %75 = vector.broadcast %36 : vector<20x1xf32> to vector<20x48xf32>
    %76 = arith.mulf %25, %75 : vector<20x48xf32>
    %cst_30 = arith.constant dense<0.000000e+00> : vector<18x48xf32>
    %77 = tpu.matmul %66, %76, %cst_30 {dimension_numbers = #tpu.dot_dimension_numbers<[1], [0], [0], [1], [0, 0, 1, 1], [], []>} : vector<18x20xf32>, vector<20x48xf32>, vector<18x48xf32> -> vector<18x48xf32>
    %cst_31 = arith.constant dense<0.000000e+00> : vector<18x20xf32>
    %78 = tpu.matmul %66, %33, %cst_31 {dimension_numbers = #tpu.dot_dimension_numbers<[1], [0], [0], [1], [0, 0, 1, 1], [], []>} : vector<18x20xf32>, vector<20x20xf32>, vector<18x20xf32> -> vector<18x20xf32>
    %cst_32 = arith.constant dense<0.000000e+00> : vector<18x18xf32>
    %79 = tpu.matmul %78, %74, %cst_32 {dimension_numbers = #tpu.dot_dimension_numbers<[1], [0], [0], [1], [0, 0, 1, 1], [], []>} : vector<18x20xf32>, vector<20x18xf32>, vector<18x18xf32> -> vector<18x18xf32>
    %c0_33 = arith.constant 0 : index
    %c0_34 = arith.constant 0 : index
    %c0_35 = arith.constant 0 : index
    %80 = vector.load %arg4[%c0_33, %c0_34, %c0_35] : memref<4x48x48xf32, #tpu.memory_space<vmem>>, vector<1x48x48xf32>
    %81 = vector.shape_cast %80 : vector<1x48x48xf32> to vector<48x48xf32>
    %c0_36 = arith.constant 0 : index
    %c0_37 = arith.constant 0 : index
    %c0_38 = arith.constant 0 : index
    %82 = vector.load %arg5[%c0_36, %c0_37, %c0_38] : memref<4x1x48xf32, #tpu.memory_space<vmem>>, vector<1x1x48xf32>
    %83 = vector.shape_cast %82 : vector<1x1x48xf32> to vector<1x48xf32>
    %84 = tpu.iota {dimensions = array<i32: 0>} : vector<18x18xi32>
    %85 = tpu.iota {dimensions = array<i32: 1>} : vector<18x18xi32>
    %86 = arith.cmpi eq, %84, %85 : vector<18x18xi32>
    %cst_39 = arith.constant 1.000000e+00 : f32
    %cst_40 = arith.constant 0.000000e+00 : f32
    %87 = vector.broadcast %cst_39 : f32 to vector<18x18xf32>
    %88 = vector.broadcast %cst_40 : f32 to vector<18x18xf32>
    %89 = arith.select %86, %87, %88 : vector<18x18xi1>, vector<18x18xf32>
    %cst_41 = arith.constant 2.000000e+00 : f32
    %90 = vector.broadcast %cst_41 : f32 to vector<18x18xf32>
    %91 = arith.mulf %90, %89 : vector<18x18xf32>
    %92 = arith.addf %79, %91 : vector<18x18xf32>
    %cst_42 = arith.constant dense<0.000000e+00> : vector<18xf32>
    %93 = vector.multi_reduction <add>, %92, %cst_42 [1] : vector<18x18xf32> to vector<18xf32>
    %94 = vector.shape_cast %93 : vector<18xf32> to vector<18x1xf32>
    %95 = math.rsqrt %94 : vector<18x1xf32>
    %cst_43 = arith.constant dense<0.000000e+00> : vector<18x48xf32>
    %96 = tpu.matmul %77, %81, %cst_43 {dimension_numbers = #tpu.dot_dimension_numbers<[1], [0], [0], [1], [0, 0, 1, 1], [], []>} : vector<18x48xf32>, vector<48x48xf32>, vector<18x48xf32> -> vector<18x48xf32>
    %97 = vector.broadcast %95 : vector<18x1xf32> to vector<18x48xf32>
    %98 = arith.mulf %97, %96 : vector<18x48xf32>
    %cst_44 = arith.constant dense<0.000000e+00> : vector<18x48xf32>
    %99 = tpu.matmul %92, %98, %cst_44 {dimension_numbers = #tpu.dot_dimension_numbers<[1], [0], [0], [1], [0, 0, 1, 1], [], []>} : vector<18x18xf32>, vector<18x48xf32>, vector<18x48xf32> -> vector<18x48xf32>
    %100 = vector.broadcast %95 : vector<18x1xf32> to vector<18x48xf32>
    %101 = arith.mulf %100, %99 : vector<18x48xf32>
    %102 = vector.broadcast %83 : vector<1x48xf32> to vector<18x48xf32>
    %103 = arith.addf %101, %102 : vector<18x48xf32>
    %cst_45 = arith.constant 0.000000e+00 : f32
    %104 = vector.broadcast %cst_45 : f32 to vector<18x48xf32>
    %105 = arith.maximumf %103, %104 : vector<18x48xf32>
    %cst_46 = arith.constant 1.000000e+00 : f32
    %106 = vector.broadcast %cst_46 : f32 to vector<18x18xf32>
    %107 = arith.subf %106, %89 : vector<18x18xf32>
    %108 = arith.mulf %79, %107 : vector<18x18xf32>
    %109 = arith.addf %108, %89 : vector<18x18xf32>
    %cst_47 = arith.constant dense<0.000000e+00> : vector<18x18xf32>
    %110 = tpu.matmul %109, %109, %cst_47 {dimension_numbers = #tpu.dot_dimension_numbers<[1], [0], [0], [1], [0, 0, 1, 1], [], []>} : vector<18x18xf32>, vector<18x18xf32>, vector<18x18xf32> -> vector<18x18xf32>
    %cst_48 = arith.constant 1.000000e+00 : f32
    %111 = vector.broadcast %cst_48 : f32 to vector<18x18xf32>
    %112 = arith.subf %111, %89 : vector<18x18xf32>
    %113 = arith.mulf %110, %112 : vector<18x18xf32>
    %c0_49 = arith.constant 0 : index
    %c1 = arith.constant 1 : index
    %114 = vector.load %arg6[%c0_49, %c1] : memref<48x4xf32, #tpu.memory_space<vmem>>, vector<48x1xf32>
    %cst_50 = arith.constant dense<0.000000e+00> : vector<18x1xf32>
    %115 = tpu.matmul %105, %114, %cst_50 {dimension_numbers = #tpu.dot_dimension_numbers<[1], [0], [0], [1], [0, 0, 1, 1], [], []>} : vector<18x48xf32>, vector<48x1xf32>, vector<18x1xf32> -> vector<18x1xf32>
    %116 = math.tanh %115 : vector<18x1xf32>
    %117 = vector.shape_cast %116 : vector<18x1xf32> to vector<18x1xf32>
    %118 = vector.broadcast %117 : vector<18x1xf32> to vector<18x18xf32>
    %119 = arith.mulf %89, %118 : vector<18x18xf32>
    %cst_51 = arith.constant 1.000000e+00 : f32
    %120 = vector.broadcast %cst_51 : f32 to vector<18x18xf32>
    %cst_52 = arith.constant dense<0.000000e+00> : vector<18x18xf32>
    %121 = tpu.matmul %120, %119, %cst_52 {dimension_numbers = #tpu.dot_dimension_numbers<[1], [0], [0], [1], [0, 0, 1, 1], [], []>} : vector<18x18xf32>, vector<18x18xf32>, vector<18x18xf32> -> vector<18x18xf32>
    %122 = vector.shape_cast %116 : vector<18x1xf32> to vector<18x1xf32>
    %123 = vector.broadcast %122 : vector<18x1xf32> to vector<18x18xf32>
    %124 = tpu.iota {dimensions = array<i32: 0>} : vector<18x18xi32>
    %125 = tpu.iota {dimensions = array<i32: 1>} : vector<18x18xi32>
    %126 = arith.cmpf ogt, %121, %123 : vector<18x18xf32>
    %127 = arith.cmpf oeq, %121, %123 : vector<18x18xf32>
    %128 = arith.cmpi slt, %125, %124 : vector<18x18xi32>
    %129 = arith.andi %127, %128 : vector<18x18xi1>
    %130 = arith.ori %126, %129 : vector<18x18xi1>
    %cst_53 = arith.constant 1.000000e+00 : f32
    %cst_54 = arith.constant 0.000000e+00 : f32
    %131 = vector.broadcast %cst_53 : f32 to vector<18x18xf32>
    %132 = vector.broadcast %cst_54 : f32 to vector<18x18xf32>
    %133 = arith.select %130, %131, %132 : vector<18x18xi1>, vector<18x18xf32>
    %cst_55 = arith.constant dense<0.000000e+00> : vector<18xf32>
    %134 = vector.multi_reduction <add>, %133, %cst_55 [1] : vector<18x18xf32> to vector<18xf32>
    %135 = vector.shape_cast %134 : vector<18xf32> to vector<18x1xf32>
    %136 = vector.shape_cast %135 : vector<18x1xf32> to vector<18x1xf32>
    %137 = vector.broadcast %136 : vector<18x1xf32> to vector<18x18xf32>
    %138 = arith.mulf %89, %137 : vector<18x18xf32>
    %cst_56 = arith.constant 1.000000e+00 : f32
    %139 = vector.broadcast %cst_56 : f32 to vector<13x18xf32>
    %cst_57 = arith.constant dense<0.000000e+00> : vector<13x18xf32>
    %140 = tpu.matmul %139, %138, %cst_57 {dimension_numbers = #tpu.dot_dimension_numbers<[1], [0], [0], [1], [0, 0, 1, 1], [], []>} : vector<13x18xf32>, vector<18x18xf32>, vector<13x18xf32> -> vector<13x18xf32>
    %141 = arith.fptosi %140 : vector<13x18xf32> to vector<13x18xi32>
    %142 = tpu.iota {dimensions = array<i32: 0>} : vector<13x18xi32>
    %143 = arith.cmpi eq, %141, %142 : vector<13x18xi32>
    %cst_58 = arith.constant 1.000000e+00 : f32
    %cst_59 = arith.constant 0.000000e+00 : f32
    %144 = vector.broadcast %cst_58 : f32 to vector<13x18xf32>
    %145 = vector.broadcast %cst_59 : f32 to vector<13x18xf32>
    %146 = arith.select %143, %144, %145 : vector<13x18xi1>, vector<13x18xf32>
    %147 = arith.fptosi %135 : vector<18x1xf32> to vector<18x1xi32>
    %148 = tpu.iota {dimensions = array<i32: 1>} : vector<18x13xi32>
    %149 = vector.shape_cast %147 : vector<18x1xi32> to vector<18x1xi32>
    %150 = vector.broadcast %149 : vector<18x1xi32> to vector<18x13xi32>
    %151 = arith.cmpi eq, %150, %148 : vector<18x13xi32>
    %cst_60 = arith.constant 1.000000e+00 : f32
    %cst_61 = arith.constant 0.000000e+00 : f32
    %152 = vector.broadcast %cst_60 : f32 to vector<18x13xf32>
    %153 = vector.broadcast %cst_61 : f32 to vector<18x13xf32>
    %154 = arith.select %151, %152, %153 : vector<18x13xi1>, vector<18x13xf32>
    %155 = vector.broadcast %116 : vector<18x1xf32> to vector<18x48xf32>
    %156 = arith.mulf %105, %155 : vector<18x48xf32>
    %cst_62 = arith.constant dense<0.000000e+00> : vector<13x48xf32>
    %157 = tpu.matmul %146, %156, %cst_62 {dimension_numbers = #tpu.dot_dimension_numbers<[1], [0], [0], [1], [0, 0, 1, 1], [], []>} : vector<13x18xf32>, vector<18x48xf32>, vector<13x48xf32> -> vector<13x48xf32>
    %cst_63 = arith.constant dense<0.000000e+00> : vector<13x18xf32>
    %158 = tpu.matmul %146, %113, %cst_63 {dimension_numbers = #tpu.dot_dimension_numbers<[1], [0], [0], [1], [0, 0, 1, 1], [], []>} : vector<13x18xf32>, vector<18x18xf32>, vector<13x18xf32> -> vector<13x18xf32>
    %cst_64 = arith.constant dense<0.000000e+00> : vector<13x13xf32>
    %159 = tpu.matmul %158, %154, %cst_64 {dimension_numbers = #tpu.dot_dimension_numbers<[1], [0], [0], [1], [0, 0, 1, 1], [], []>} : vector<13x18xf32>, vector<18x13xf32>, vector<13x13xf32> -> vector<13x13xf32>
    %c1_65 = arith.constant 1 : index
    %c0_66 = arith.constant 0 : index
    %c0_67 = arith.constant 0 : index
    %160 = vector.load %arg4[%c1_65, %c0_66, %c0_67] : memref<4x48x48xf32, #tpu.memory_space<vmem>>, vector<1x48x48xf32>
    %161 = vector.shape_cast %160 : vector<1x48x48xf32> to vector<48x48xf32>
    %c1_68 = arith.constant 1 : index
    %c0_69 = arith.constant 0 : index
    %c0_70 = arith.constant 0 : index
    %162 = vector.load %arg5[%c1_68, %c0_69, %c0_70] : memref<4x1x48xf32, #tpu.memory_space<vmem>>, vector<1x1x48xf32>
    %163 = vector.shape_cast %162 : vector<1x1x48xf32> to vector<1x48xf32>
    %164 = tpu.iota {dimensions = array<i32: 0>} : vector<13x13xi32>
    %165 = tpu.iota {dimensions = array<i32: 1>} : vector<13x13xi32>
    %166 = arith.cmpi eq, %164, %165 : vector<13x13xi32>
    %cst_71 = arith.constant 1.000000e+00 : f32
    %cst_72 = arith.constant 0.000000e+00 : f32
    %167 = vector.broadcast %cst_71 : f32 to vector<13x13xf32>
    %168 = vector.broadcast %cst_72 : f32 to vector<13x13xf32>
    %169 = arith.select %166, %167, %168 : vector<13x13xi1>, vector<13x13xf32>
    %cst_73 = arith.constant 2.000000e+00 : f32
    %170 = vector.broadcast %cst_73 : f32 to vector<13x13xf32>
    %171 = arith.mulf %170, %169 : vector<13x13xf32>
    %172 = arith.addf %159, %171 : vector<13x13xf32>
    %cst_74 = arith.constant dense<0.000000e+00> : vector<13xf32>
    %173 = vector.multi_reduction <add>, %172, %cst_74 [1] : vector<13x13xf32> to vector<13xf32>
    %174 = vector.shape_cast %173 : vector<13xf32> to vector<13x1xf32>
    %175 = math.rsqrt %174 : vector<13x1xf32>
    %cst_75 = arith.constant dense<0.000000e+00> : vector<13x48xf32>
    %176 = tpu.matmul %157, %161, %cst_75 {dimension_numbers = #tpu.dot_dimension_numbers<[1], [0], [0], [1], [0, 0, 1, 1], [], []>} : vector<13x48xf32>, vector<48x48xf32>, vector<13x48xf32> -> vector<13x48xf32>
    %177 = vector.broadcast %175 : vector<13x1xf32> to vector<13x48xf32>
    %178 = arith.mulf %177, %176 : vector<13x48xf32>
    %cst_76 = arith.constant dense<0.000000e+00> : vector<13x48xf32>
    %179 = tpu.matmul %172, %178, %cst_76 {dimension_numbers = #tpu.dot_dimension_numbers<[1], [0], [0], [1], [0, 0, 1, 1], [], []>} : vector<13x13xf32>, vector<13x48xf32>, vector<13x48xf32> -> vector<13x48xf32>
    %180 = vector.broadcast %175 : vector<13x1xf32> to vector<13x48xf32>
    %181 = arith.mulf %180, %179 : vector<13x48xf32>
    %182 = vector.broadcast %163 : vector<1x48xf32> to vector<13x48xf32>
    %183 = arith.addf %181, %182 : vector<13x48xf32>
    %cst_77 = arith.constant 0.000000e+00 : f32
    %184 = vector.broadcast %cst_77 : f32 to vector<13x48xf32>
    %185 = arith.maximumf %183, %184 : vector<13x48xf32>
    %cst_78 = arith.constant 1.000000e+00 : f32
    %186 = vector.broadcast %cst_78 : f32 to vector<13x13xf32>
    %187 = arith.subf %186, %169 : vector<13x13xf32>
    %188 = arith.mulf %159, %187 : vector<13x13xf32>
    %189 = arith.addf %188, %169 : vector<13x13xf32>
    %cst_79 = arith.constant dense<0.000000e+00> : vector<13x13xf32>
    %190 = tpu.matmul %189, %189, %cst_79 {dimension_numbers = #tpu.dot_dimension_numbers<[1], [0], [0], [1], [0, 0, 1, 1], [], []>} : vector<13x13xf32>, vector<13x13xf32>, vector<13x13xf32> -> vector<13x13xf32>
    %cst_80 = arith.constant 1.000000e+00 : f32
    %191 = vector.broadcast %cst_80 : f32 to vector<13x13xf32>
    %192 = arith.subf %191, %169 : vector<13x13xf32>
    %193 = arith.mulf %190, %192 : vector<13x13xf32>
    %c0_81 = arith.constant 0 : index
    %c2 = arith.constant 2 : index
    %194 = vector.load %arg6[%c0_81, %c2] : memref<48x4xf32, #tpu.memory_space<vmem>>, vector<48x1xf32>
    %cst_82 = arith.constant dense<0.000000e+00> : vector<13x1xf32>
    %195 = tpu.matmul %185, %194, %cst_82 {dimension_numbers = #tpu.dot_dimension_numbers<[1], [0], [0], [1], [0, 0, 1, 1], [], []>} : vector<13x48xf32>, vector<48x1xf32>, vector<13x1xf32> -> vector<13x1xf32>
    %196 = math.tanh %195 : vector<13x1xf32>
    %197 = vector.shape_cast %196 : vector<13x1xf32> to vector<13x1xf32>
    %198 = vector.broadcast %197 : vector<13x1xf32> to vector<13x13xf32>
    %199 = arith.mulf %169, %198 : vector<13x13xf32>
    %cst_83 = arith.constant 1.000000e+00 : f32
    %200 = vector.broadcast %cst_83 : f32 to vector<13x13xf32>
    %cst_84 = arith.constant dense<0.000000e+00> : vector<13x13xf32>
    %201 = tpu.matmul %200, %199, %cst_84 {dimension_numbers = #tpu.dot_dimension_numbers<[1], [0], [0], [1], [0, 0, 1, 1], [], []>} : vector<13x13xf32>, vector<13x13xf32>, vector<13x13xf32> -> vector<13x13xf32>
    %202 = vector.shape_cast %196 : vector<13x1xf32> to vector<13x1xf32>
    %203 = vector.broadcast %202 : vector<13x1xf32> to vector<13x13xf32>
    %204 = tpu.iota {dimensions = array<i32: 0>} : vector<13x13xi32>
    %205 = tpu.iota {dimensions = array<i32: 1>} : vector<13x13xi32>
    %206 = arith.cmpf ogt, %201, %203 : vector<13x13xf32>
    %207 = arith.cmpf oeq, %201, %203 : vector<13x13xf32>
    %208 = arith.cmpi slt, %205, %204 : vector<13x13xi32>
    %209 = arith.andi %207, %208 : vector<13x13xi1>
    %210 = arith.ori %206, %209 : vector<13x13xi1>
    %cst_85 = arith.constant 1.000000e+00 : f32
    %cst_86 = arith.constant 0.000000e+00 : f32
    %211 = vector.broadcast %cst_85 : f32 to vector<13x13xf32>
    %212 = vector.broadcast %cst_86 : f32 to vector<13x13xf32>
    %213 = arith.select %210, %211, %212 : vector<13x13xi1>, vector<13x13xf32>
    %cst_87 = arith.constant dense<0.000000e+00> : vector<13xf32>
    %214 = vector.multi_reduction <add>, %213, %cst_87 [1] : vector<13x13xf32> to vector<13xf32>
    %215 = vector.shape_cast %214 : vector<13xf32> to vector<13x1xf32>
    %216 = vector.shape_cast %215 : vector<13x1xf32> to vector<13x1xf32>
    %217 = vector.broadcast %216 : vector<13x1xf32> to vector<13x13xf32>
    %218 = arith.mulf %169, %217 : vector<13x13xf32>
    %cst_88 = arith.constant 1.000000e+00 : f32
    %219 = vector.broadcast %cst_88 : f32 to vector<8x13xf32>
    %cst_89 = arith.constant dense<0.000000e+00> : vector<8x13xf32>
    %220 = tpu.matmul %219, %218, %cst_89 {dimension_numbers = #tpu.dot_dimension_numbers<[1], [0], [0], [1], [0, 0, 1, 1], [], []>} : vector<8x13xf32>, vector<13x13xf32>, vector<8x13xf32> -> vector<8x13xf32>
    %221 = arith.fptosi %220 : vector<8x13xf32> to vector<8x13xi32>
    %222 = tpu.iota {dimensions = array<i32: 0>} : vector<8x13xi32>
    %223 = arith.cmpi eq, %221, %222 : vector<8x13xi32>
    %cst_90 = arith.constant 1.000000e+00 : f32
    %cst_91 = arith.constant 0.000000e+00 : f32
    %224 = vector.broadcast %cst_90 : f32 to vector<8x13xf32>
    %225 = vector.broadcast %cst_91 : f32 to vector<8x13xf32>
    %226 = arith.select %223, %224, %225 : vector<8x13xi1>, vector<8x13xf32>
    %227 = arith.fptosi %215 : vector<13x1xf32> to vector<13x1xi32>
    %228 = tpu.iota {dimensions = array<i32: 1>} : vector<13x8xi32>
    %229 = vector.shape_cast %227 : vector<13x1xi32> to vector<13x1xi32>
    %230 = vector.broadcast %229 : vector<13x1xi32> to vector<13x8xi32>
    %231 = arith.cmpi eq, %230, %228 : vector<13x8xi32>
    %cst_92 = arith.constant 1.000000e+00 : f32
    %cst_93 = arith.constant 0.000000e+00 : f32
    %232 = vector.broadcast %cst_92 : f32 to vector<13x8xf32>
    %233 = vector.broadcast %cst_93 : f32 to vector<13x8xf32>
    %234 = arith.select %231, %232, %233 : vector<13x8xi1>, vector<13x8xf32>
    %235 = vector.broadcast %196 : vector<13x1xf32> to vector<13x48xf32>
    %236 = arith.mulf %185, %235 : vector<13x48xf32>
    %cst_94 = arith.constant dense<0.000000e+00> : vector<8x48xf32>
    %237 = tpu.matmul %226, %236, %cst_94 {dimension_numbers = #tpu.dot_dimension_numbers<[1], [0], [0], [1], [0, 0, 1, 1], [], []>} : vector<8x13xf32>, vector<13x48xf32>, vector<8x48xf32> -> vector<8x48xf32>
    %cst_95 = arith.constant dense<0.000000e+00> : vector<8x13xf32>
    %238 = tpu.matmul %226, %193, %cst_95 {dimension_numbers = #tpu.dot_dimension_numbers<[1], [0], [0], [1], [0, 0, 1, 1], [], []>} : vector<8x13xf32>, vector<13x13xf32>, vector<8x13xf32> -> vector<8x13xf32>
    %cst_96 = arith.constant dense<0.000000e+00> : vector<8x8xf32>
    %239 = tpu.matmul %238, %234, %cst_96 {dimension_numbers = #tpu.dot_dimension_numbers<[1], [0], [0], [1], [0, 0, 1, 1], [], []>} : vector<8x13xf32>, vector<13x8xf32>, vector<8x8xf32> -> vector<8x8xf32>
    %c2_97 = arith.constant 2 : index
    %c0_98 = arith.constant 0 : index
    %c0_99 = arith.constant 0 : index
    %240 = vector.load %arg4[%c2_97, %c0_98, %c0_99] : memref<4x48x48xf32, #tpu.memory_space<vmem>>, vector<1x48x48xf32>
    %241 = vector.shape_cast %240 : vector<1x48x48xf32> to vector<48x48xf32>
    %c2_100 = arith.constant 2 : index
    %c0_101 = arith.constant 0 : index
    %c0_102 = arith.constant 0 : index
    %242 = vector.load %arg5[%c2_100, %c0_101, %c0_102] : memref<4x1x48xf32, #tpu.memory_space<vmem>>, vector<1x1x48xf32>
    %243 = vector.shape_cast %242 : vector<1x1x48xf32> to vector<1x48xf32>
    %244 = tpu.iota {dimensions = array<i32: 0>} : vector<8x8xi32>
    %245 = tpu.iota {dimensions = array<i32: 1>} : vector<8x8xi32>
    %246 = arith.cmpi eq, %244, %245 : vector<8x8xi32>
    %cst_103 = arith.constant 1.000000e+00 : f32
    %cst_104 = arith.constant 0.000000e+00 : f32
    %247 = vector.broadcast %cst_103 : f32 to vector<8x8xf32>
    %248 = vector.broadcast %cst_104 : f32 to vector<8x8xf32>
    %249 = arith.select %246, %247, %248 : vector<8x8xi1>, vector<8x8xf32>
    %cst_105 = arith.constant 2.000000e+00 : f32
    %250 = vector.broadcast %cst_105 : f32 to vector<8x8xf32>
    %251 = arith.mulf %250, %249 : vector<8x8xf32>
    %252 = arith.addf %239, %251 : vector<8x8xf32>
    %cst_106 = arith.constant dense<0.000000e+00> : vector<8xf32>
    %253 = vector.multi_reduction <add>, %252, %cst_106 [1] : vector<8x8xf32> to vector<8xf32>
    %254 = vector.shape_cast %253 : vector<8xf32> to vector<8x1xf32>
    %255 = math.rsqrt %254 : vector<8x1xf32>
    %cst_107 = arith.constant dense<0.000000e+00> : vector<8x48xf32>
    %256 = tpu.matmul %237, %241, %cst_107 {dimension_numbers = #tpu.dot_dimension_numbers<[1], [0], [0], [1], [0, 0, 1, 1], [], []>} : vector<8x48xf32>, vector<48x48xf32>, vector<8x48xf32> -> vector<8x48xf32>
    %257 = vector.broadcast %255 : vector<8x1xf32> to vector<8x48xf32>
    %258 = arith.mulf %257, %256 : vector<8x48xf32>
    %cst_108 = arith.constant dense<0.000000e+00> : vector<8x48xf32>
    %259 = tpu.matmul %252, %258, %cst_108 {dimension_numbers = #tpu.dot_dimension_numbers<[1], [0], [0], [1], [0, 0, 1, 1], [], []>} : vector<8x8xf32>, vector<8x48xf32>, vector<8x48xf32> -> vector<8x48xf32>
    %260 = vector.broadcast %255 : vector<8x1xf32> to vector<8x48xf32>
    %261 = arith.mulf %260, %259 : vector<8x48xf32>
    %262 = vector.broadcast %243 : vector<1x48xf32> to vector<8x48xf32>
    %263 = arith.addf %261, %262 : vector<8x48xf32>
    %cst_109 = arith.constant 0.000000e+00 : f32
    %264 = vector.broadcast %cst_109 : f32 to vector<8x48xf32>
    %265 = arith.maximumf %263, %264 : vector<8x48xf32>
    %cst_110 = arith.constant 1.000000e+00 : f32
    %266 = vector.broadcast %cst_110 : f32 to vector<8x8xf32>
    %267 = arith.subf %266, %249 : vector<8x8xf32>
    %268 = arith.mulf %239, %267 : vector<8x8xf32>
    %269 = arith.addf %268, %249 : vector<8x8xf32>
    %cst_111 = arith.constant dense<0.000000e+00> : vector<8x8xf32>
    %270 = tpu.matmul %269, %269, %cst_111 {dimension_numbers = #tpu.dot_dimension_numbers<[1], [0], [0], [1], [0, 0, 1, 1], [], []>} : vector<8x8xf32>, vector<8x8xf32>, vector<8x8xf32> -> vector<8x8xf32>
    %cst_112 = arith.constant 1.000000e+00 : f32
    %271 = vector.broadcast %cst_112 : f32 to vector<8x8xf32>
    %272 = arith.subf %271, %249 : vector<8x8xf32>
    %273 = arith.mulf %270, %272 : vector<8x8xf32>
    %c0_113 = arith.constant 0 : index
    %c3 = arith.constant 3 : index
    %274 = vector.load %arg6[%c0_113, %c3] : memref<48x4xf32, #tpu.memory_space<vmem>>, vector<48x1xf32>
    %cst_114 = arith.constant dense<0.000000e+00> : vector<8x1xf32>
    %275 = tpu.matmul %265, %274, %cst_114 {dimension_numbers = #tpu.dot_dimension_numbers<[1], [0], [0], [1], [0, 0, 1, 1], [], []>} : vector<8x48xf32>, vector<48x1xf32>, vector<8x1xf32> -> vector<8x1xf32>
    %276 = math.tanh %275 : vector<8x1xf32>
    %277 = vector.shape_cast %276 : vector<8x1xf32> to vector<8x1xf32>
    %278 = vector.broadcast %277 : vector<8x1xf32> to vector<8x8xf32>
    %279 = arith.mulf %249, %278 : vector<8x8xf32>
    %cst_115 = arith.constant 1.000000e+00 : f32
    %280 = vector.broadcast %cst_115 : f32 to vector<8x8xf32>
    %cst_116 = arith.constant dense<0.000000e+00> : vector<8x8xf32>
    %281 = tpu.matmul %280, %279, %cst_116 {dimension_numbers = #tpu.dot_dimension_numbers<[1], [0], [0], [1], [0, 0, 1, 1], [], []>} : vector<8x8xf32>, vector<8x8xf32>, vector<8x8xf32> -> vector<8x8xf32>
    %282 = vector.shape_cast %276 : vector<8x1xf32> to vector<8x1xf32>
    %283 = vector.broadcast %282 : vector<8x1xf32> to vector<8x8xf32>
    %284 = tpu.iota {dimensions = array<i32: 0>} : vector<8x8xi32>
    %285 = tpu.iota {dimensions = array<i32: 1>} : vector<8x8xi32>
    %286 = arith.cmpf ogt, %281, %283 : vector<8x8xf32>
    %287 = arith.cmpf oeq, %281, %283 : vector<8x8xf32>
    %288 = arith.cmpi slt, %285, %284 : vector<8x8xi32>
    %289 = arith.andi %287, %288 : vector<8x8xi1>
    %290 = arith.ori %286, %289 : vector<8x8xi1>
    %cst_117 = arith.constant 1.000000e+00 : f32
    %cst_118 = arith.constant 0.000000e+00 : f32
    %291 = vector.broadcast %cst_117 : f32 to vector<8x8xf32>
    %292 = vector.broadcast %cst_118 : f32 to vector<8x8xf32>
    %293 = arith.select %290, %291, %292 : vector<8x8xi1>, vector<8x8xf32>
    %cst_119 = arith.constant dense<0.000000e+00> : vector<8xf32>
    %294 = vector.multi_reduction <add>, %293, %cst_119 [1] : vector<8x8xf32> to vector<8xf32>
    %295 = vector.shape_cast %294 : vector<8xf32> to vector<8x1xf32>
    %296 = vector.shape_cast %295 : vector<8x1xf32> to vector<8x1xf32>
    %297 = vector.broadcast %296 : vector<8x1xf32> to vector<8x8xf32>
    %298 = arith.mulf %249, %297 : vector<8x8xf32>
    %cst_120 = arith.constant 1.000000e+00 : f32
    %299 = vector.broadcast %cst_120 : f32 to vector<4x8xf32>
    %cst_121 = arith.constant dense<0.000000e+00> : vector<4x8xf32>
    %300 = tpu.matmul %299, %298, %cst_121 {dimension_numbers = #tpu.dot_dimension_numbers<[1], [0], [0], [1], [0, 0, 1, 1], [], []>} : vector<4x8xf32>, vector<8x8xf32>, vector<4x8xf32> -> vector<4x8xf32>
    %301 = arith.fptosi %300 : vector<4x8xf32> to vector<4x8xi32>
    %302 = tpu.iota {dimensions = array<i32: 0>} : vector<4x8xi32>
    %303 = arith.cmpi eq, %301, %302 : vector<4x8xi32>
    %cst_122 = arith.constant 1.000000e+00 : f32
    %cst_123 = arith.constant 0.000000e+00 : f32
    %304 = vector.broadcast %cst_122 : f32 to vector<4x8xf32>
    %305 = vector.broadcast %cst_123 : f32 to vector<4x8xf32>
    %306 = arith.select %303, %304, %305 : vector<4x8xi1>, vector<4x8xf32>
    %307 = arith.fptosi %295 : vector<8x1xf32> to vector<8x1xi32>
    %308 = tpu.iota {dimensions = array<i32: 1>} : vector<8x4xi32>
    %309 = vector.shape_cast %307 : vector<8x1xi32> to vector<8x1xi32>
    %310 = vector.broadcast %309 : vector<8x1xi32> to vector<8x4xi32>
    %311 = arith.cmpi eq, %310, %308 : vector<8x4xi32>
    %cst_124 = arith.constant 1.000000e+00 : f32
    %cst_125 = arith.constant 0.000000e+00 : f32
    %312 = vector.broadcast %cst_124 : f32 to vector<8x4xf32>
    %313 = vector.broadcast %cst_125 : f32 to vector<8x4xf32>
    %314 = arith.select %311, %312, %313 : vector<8x4xi1>, vector<8x4xf32>
    %315 = vector.broadcast %276 : vector<8x1xf32> to vector<8x48xf32>
    %316 = arith.mulf %265, %315 : vector<8x48xf32>
    %cst_126 = arith.constant dense<0.000000e+00> : vector<4x48xf32>
    %317 = tpu.matmul %306, %316, %cst_126 {dimension_numbers = #tpu.dot_dimension_numbers<[1], [0], [0], [1], [0, 0, 1, 1], [], []>} : vector<4x8xf32>, vector<8x48xf32>, vector<4x48xf32> -> vector<4x48xf32>
    %cst_127 = arith.constant dense<0.000000e+00> : vector<4x8xf32>
    %318 = tpu.matmul %306, %273, %cst_127 {dimension_numbers = #tpu.dot_dimension_numbers<[1], [0], [0], [1], [0, 0, 1, 1], [], []>} : vector<4x8xf32>, vector<8x8xf32>, vector<4x8xf32> -> vector<4x8xf32>
    %cst_128 = arith.constant dense<0.000000e+00> : vector<4x4xf32>
    %319 = tpu.matmul %318, %314, %cst_128 {dimension_numbers = #tpu.dot_dimension_numbers<[1], [0], [0], [1], [0, 0, 1, 1], [], []>} : vector<4x8xf32>, vector<8x4xf32>, vector<4x4xf32> -> vector<4x4xf32>
    %c3_129 = arith.constant 3 : index
    %c0_130 = arith.constant 0 : index
    %c0_131 = arith.constant 0 : index
    %320 = vector.load %arg4[%c3_129, %c0_130, %c0_131] : memref<4x48x48xf32, #tpu.memory_space<vmem>>, vector<1x48x48xf32>
    %321 = vector.shape_cast %320 : vector<1x48x48xf32> to vector<48x48xf32>
    %c3_132 = arith.constant 3 : index
    %c0_133 = arith.constant 0 : index
    %c0_134 = arith.constant 0 : index
    %322 = vector.load %arg5[%c3_132, %c0_133, %c0_134] : memref<4x1x48xf32, #tpu.memory_space<vmem>>, vector<1x1x48xf32>
    %323 = vector.shape_cast %322 : vector<1x1x48xf32> to vector<1x48xf32>
    %324 = tpu.iota {dimensions = array<i32: 0>} : vector<4x4xi32>
    %325 = tpu.iota {dimensions = array<i32: 1>} : vector<4x4xi32>
    %326 = arith.cmpi eq, %324, %325 : vector<4x4xi32>
    %cst_135 = arith.constant 1.000000e+00 : f32
    %cst_136 = arith.constant 0.000000e+00 : f32
    %327 = vector.broadcast %cst_135 : f32 to vector<4x4xf32>
    %328 = vector.broadcast %cst_136 : f32 to vector<4x4xf32>
    %329 = arith.select %326, %327, %328 : vector<4x4xi1>, vector<4x4xf32>
    %cst_137 = arith.constant 2.000000e+00 : f32
    %330 = vector.broadcast %cst_137 : f32 to vector<4x4xf32>
    %331 = arith.mulf %330, %329 : vector<4x4xf32>
    %332 = arith.addf %319, %331 : vector<4x4xf32>
    %cst_138 = arith.constant dense<0.000000e+00> : vector<4xf32>
    %333 = vector.multi_reduction <add>, %332, %cst_138 [1] : vector<4x4xf32> to vector<4xf32>
    %334 = vector.shape_cast %333 : vector<4xf32> to vector<4x1xf32>
    %335 = math.rsqrt %334 : vector<4x1xf32>
    %cst_139 = arith.constant dense<0.000000e+00> : vector<4x48xf32>
    %336 = tpu.matmul %317, %321, %cst_139 {dimension_numbers = #tpu.dot_dimension_numbers<[1], [0], [0], [1], [0, 0, 1, 1], [], []>} : vector<4x48xf32>, vector<48x48xf32>, vector<4x48xf32> -> vector<4x48xf32>
    %337 = vector.broadcast %335 : vector<4x1xf32> to vector<4x48xf32>
    %338 = arith.mulf %337, %336 : vector<4x48xf32>
    %cst_140 = arith.constant dense<0.000000e+00> : vector<4x48xf32>
    %339 = tpu.matmul %332, %338, %cst_140 {dimension_numbers = #tpu.dot_dimension_numbers<[1], [0], [0], [1], [0, 0, 1, 1], [], []>} : vector<4x4xf32>, vector<4x48xf32>, vector<4x48xf32> -> vector<4x48xf32>
    %340 = vector.broadcast %335 : vector<4x1xf32> to vector<4x48xf32>
    %341 = arith.mulf %340, %339 : vector<4x48xf32>
    %342 = vector.broadcast %323 : vector<1x48xf32> to vector<4x48xf32>
    %343 = arith.addf %341, %342 : vector<4x48xf32>
    %cst_141 = arith.constant 0.000000e+00 : f32
    %344 = vector.broadcast %cst_141 : f32 to vector<4x48xf32>
    %345 = arith.maximumf %343, %344 : vector<4x48xf32>
    %cst_142 = arith.constant dense<0.000000e+00> : vector<8x48xf32>
    %346 = tpu.matmul %314, %345, %cst_142 {dimension_numbers = #tpu.dot_dimension_numbers<[1], [0], [0], [1], [0, 0, 1, 1], [], []>} : vector<8x4xf32>, vector<4x48xf32>, vector<8x48xf32> -> vector<8x48xf32>
    %347 = arith.addf %265, %346 : vector<8x48xf32>
    %c0_143 = arith.constant 0 : index
    %c0_144 = arith.constant 0 : index
    %c0_145 = arith.constant 0 : index
    %348 = vector.load %arg7[%c0_143, %c0_144, %c0_145] : memref<3x48x48xf32, #tpu.memory_space<vmem>>, vector<1x48x48xf32>
    %349 = vector.shape_cast %348 : vector<1x48x48xf32> to vector<48x48xf32>
    %c0_146 = arith.constant 0 : index
    %c0_147 = arith.constant 0 : index
    %c0_148 = arith.constant 0 : index
    %350 = vector.load %arg8[%c0_146, %c0_147, %c0_148] : memref<3x1x48xf32, #tpu.memory_space<vmem>>, vector<1x1x48xf32>
    %351 = vector.shape_cast %350 : vector<1x1x48xf32> to vector<1x48xf32>
    %cst_149 = arith.constant 2.000000e+00 : f32
    %352 = vector.broadcast %cst_149 : f32 to vector<8x8xf32>
    %353 = arith.mulf %352, %249 : vector<8x8xf32>
    %354 = arith.addf %239, %353 : vector<8x8xf32>
    %cst_150 = arith.constant dense<0.000000e+00> : vector<8xf32>
    %355 = vector.multi_reduction <add>, %354, %cst_150 [1] : vector<8x8xf32> to vector<8xf32>
    %356 = vector.shape_cast %355 : vector<8xf32> to vector<8x1xf32>
    %357 = math.rsqrt %356 : vector<8x1xf32>
    %cst_151 = arith.constant dense<0.000000e+00> : vector<8x48xf32>
    %358 = tpu.matmul %347, %349, %cst_151 {dimension_numbers = #tpu.dot_dimension_numbers<[1], [0], [0], [1], [0, 0, 1, 1], [], []>} : vector<8x48xf32>, vector<48x48xf32>, vector<8x48xf32> -> vector<8x48xf32>
    %359 = vector.broadcast %357 : vector<8x1xf32> to vector<8x48xf32>
    %360 = arith.mulf %359, %358 : vector<8x48xf32>
    %cst_152 = arith.constant dense<0.000000e+00> : vector<8x48xf32>
    %361 = tpu.matmul %354, %360, %cst_152 {dimension_numbers = #tpu.dot_dimension_numbers<[1], [0], [0], [1], [0, 0, 1, 1], [], []>} : vector<8x8xf32>, vector<8x48xf32>, vector<8x48xf32> -> vector<8x48xf32>
    %362 = vector.broadcast %357 : vector<8x1xf32> to vector<8x48xf32>
    %363 = arith.mulf %362, %361 : vector<8x48xf32>
    %364 = vector.broadcast %351 : vector<1x48xf32> to vector<8x48xf32>
    %365 = arith.addf %363, %364 : vector<8x48xf32>
    %cst_153 = arith.constant 0.000000e+00 : f32
    %366 = vector.broadcast %cst_153 : f32 to vector<8x48xf32>
    %367 = arith.maximumf %365, %366 : vector<8x48xf32>
    %cst_154 = arith.constant dense<0.000000e+00> : vector<13x48xf32>
    %368 = tpu.matmul %234, %367, %cst_154 {dimension_numbers = #tpu.dot_dimension_numbers<[1], [0], [0], [1], [0, 0, 1, 1], [], []>} : vector<13x8xf32>, vector<8x48xf32>, vector<13x48xf32> -> vector<13x48xf32>
    %369 = arith.addf %185, %368 : vector<13x48xf32>
    %c1_155 = arith.constant 1 : index
    %c0_156 = arith.constant 0 : index
    %c0_157 = arith.constant 0 : index
    %370 = vector.load %arg7[%c1_155, %c0_156, %c0_157] : memref<3x48x48xf32, #tpu.memory_space<vmem>>, vector<1x48x48xf32>
    %371 = vector.shape_cast %370 : vector<1x48x48xf32> to vector<48x48xf32>
    %c1_158 = arith.constant 1 : index
    %c0_159 = arith.constant 0 : index
    %c0_160 = arith.constant 0 : index
    %372 = vector.load %arg8[%c1_158, %c0_159, %c0_160] : memref<3x1x48xf32, #tpu.memory_space<vmem>>, vector<1x1x48xf32>
    %373 = vector.shape_cast %372 : vector<1x1x48xf32> to vector<1x48xf32>
    %cst_161 = arith.constant 2.000000e+00 : f32
    %374 = vector.broadcast %cst_161 : f32 to vector<13x13xf32>
    %375 = arith.mulf %374, %169 : vector<13x13xf32>
    %376 = arith.addf %159, %375 : vector<13x13xf32>
    %cst_162 = arith.constant dense<0.000000e+00> : vector<13xf32>
    %377 = vector.multi_reduction <add>, %376, %cst_162 [1] : vector<13x13xf32> to vector<13xf32>
    %378 = vector.shape_cast %377 : vector<13xf32> to vector<13x1xf32>
    %379 = math.rsqrt %378 : vector<13x1xf32>
    %cst_163 = arith.constant dense<0.000000e+00> : vector<13x48xf32>
    %380 = tpu.matmul %369, %371, %cst_163 {dimension_numbers = #tpu.dot_dimension_numbers<[1], [0], [0], [1], [0, 0, 1, 1], [], []>} : vector<13x48xf32>, vector<48x48xf32>, vector<13x48xf32> -> vector<13x48xf32>
    %381 = vector.broadcast %379 : vector<13x1xf32> to vector<13x48xf32>
    %382 = arith.mulf %381, %380 : vector<13x48xf32>
    %cst_164 = arith.constant dense<0.000000e+00> : vector<13x48xf32>
    %383 = tpu.matmul %376, %382, %cst_164 {dimension_numbers = #tpu.dot_dimension_numbers<[1], [0], [0], [1], [0, 0, 1, 1], [], []>} : vector<13x13xf32>, vector<13x48xf32>, vector<13x48xf32> -> vector<13x48xf32>
    %384 = vector.broadcast %379 : vector<13x1xf32> to vector<13x48xf32>
    %385 = arith.mulf %384, %383 : vector<13x48xf32>
    %386 = vector.broadcast %373 : vector<1x48xf32> to vector<13x48xf32>
    %387 = arith.addf %385, %386 : vector<13x48xf32>
    %cst_165 = arith.constant 0.000000e+00 : f32
    %388 = vector.broadcast %cst_165 : f32 to vector<13x48xf32>
    %389 = arith.maximumf %387, %388 : vector<13x48xf32>
    %cst_166 = arith.constant dense<0.000000e+00> : vector<18x48xf32>
    %390 = tpu.matmul %154, %389, %cst_166 {dimension_numbers = #tpu.dot_dimension_numbers<[1], [0], [0], [1], [0, 0, 1, 1], [], []>} : vector<18x13xf32>, vector<13x48xf32>, vector<18x48xf32> -> vector<18x48xf32>
    %391 = arith.addf %105, %390 : vector<18x48xf32>
    %c2_167 = arith.constant 2 : index
    %c0_168 = arith.constant 0 : index
    %c0_169 = arith.constant 0 : index
    %392 = vector.load %arg7[%c2_167, %c0_168, %c0_169] : memref<3x48x48xf32, #tpu.memory_space<vmem>>, vector<1x48x48xf32>
    %393 = vector.shape_cast %392 : vector<1x48x48xf32> to vector<48x48xf32>
    %c2_170 = arith.constant 2 : index
    %c0_171 = arith.constant 0 : index
    %c0_172 = arith.constant 0 : index
    %394 = vector.load %arg8[%c2_170, %c0_171, %c0_172] : memref<3x1x48xf32, #tpu.memory_space<vmem>>, vector<1x1x48xf32>
    %395 = vector.shape_cast %394 : vector<1x1x48xf32> to vector<1x48xf32>
    %cst_173 = arith.constant 2.000000e+00 : f32
    %396 = vector.broadcast %cst_173 : f32 to vector<18x18xf32>
    %397 = arith.mulf %396, %89 : vector<18x18xf32>
    %398 = arith.addf %79, %397 : vector<18x18xf32>
    %cst_174 = arith.constant dense<0.000000e+00> : vector<18xf32>
    %399 = vector.multi_reduction <add>, %398, %cst_174 [1] : vector<18x18xf32> to vector<18xf32>
    %400 = vector.shape_cast %399 : vector<18xf32> to vector<18x1xf32>
    %401 = math.rsqrt %400 : vector<18x1xf32>
    %cst_175 = arith.constant dense<0.000000e+00> : vector<18x48xf32>
    %402 = tpu.matmul %391, %393, %cst_175 {dimension_numbers = #tpu.dot_dimension_numbers<[1], [0], [0], [1], [0, 0, 1, 1], [], []>} : vector<18x48xf32>, vector<48x48xf32>, vector<18x48xf32> -> vector<18x48xf32>
    %403 = vector.broadcast %401 : vector<18x1xf32> to vector<18x48xf32>
    %404 = arith.mulf %403, %402 : vector<18x48xf32>
    %cst_176 = arith.constant dense<0.000000e+00> : vector<18x48xf32>
    %405 = tpu.matmul %398, %404, %cst_176 {dimension_numbers = #tpu.dot_dimension_numbers<[1], [0], [0], [1], [0, 0, 1, 1], [], []>} : vector<18x18xf32>, vector<18x48xf32>, vector<18x48xf32> -> vector<18x48xf32>
    %406 = vector.broadcast %401 : vector<18x1xf32> to vector<18x48xf32>
    %407 = arith.mulf %406, %405 : vector<18x48xf32>
    %408 = vector.broadcast %395 : vector<1x48xf32> to vector<18x48xf32>
    %409 = arith.addf %407, %408 : vector<18x48xf32>
    %cst_177 = arith.constant 0.000000e+00 : f32
    %410 = vector.broadcast %cst_177 : f32 to vector<18x48xf32>
    %411 = arith.maximumf %409, %410 : vector<18x48xf32>
    %cst_178 = arith.constant dense<0.000000e+00> : vector<20x48xf32>
    %412 = tpu.matmul %74, %411, %cst_178 {dimension_numbers = #tpu.dot_dimension_numbers<[1], [0], [0], [1], [0, 0, 1, 1], [], []>} : vector<20x18xf32>, vector<18x48xf32>, vector<20x48xf32> -> vector<20x48xf32>
    %413 = arith.addf %25, %412 : vector<20x48xf32>
    %c0_179 = arith.constant 0 : index
    %c0_180 = arith.constant 0 : index
    %414 = vector.load %arg9[%c0_179, %c0_180] : memref<48x128xf32, #tpu.memory_space<vmem>>, vector<48x128xf32>
    %c0_181 = arith.constant 0 : index
    %c0_182 = arith.constant 0 : index
    %415 = vector.load %arg10[%c0_181, %c0_182] : memref<1x128xf32, #tpu.memory_space<vmem>>, vector<1x128xf32>
    %cst_183 = arith.constant 2.000000e+00 : f32
    %416 = vector.broadcast %cst_183 : f32 to vector<20x20xf32>
    %417 = arith.mulf %416, %9 : vector<20x20xf32>
    %418 = arith.addf %0, %417 : vector<20x20xf32>
    %cst_184 = arith.constant dense<0.000000e+00> : vector<20xf32>
    %419 = vector.multi_reduction <add>, %418, %cst_184 [1] : vector<20x20xf32> to vector<20xf32>
    %420 = vector.shape_cast %419 : vector<20xf32> to vector<20x1xf32>
    %421 = math.rsqrt %420 : vector<20x1xf32>
    %cst_185 = arith.constant dense<0.000000e+00> : vector<20x128xf32>
    %422 = tpu.matmul %413, %414, %cst_185 {dimension_numbers = #tpu.dot_dimension_numbers<[1], [0], [0], [1], [0, 0, 1, 1], [], []>} : vector<20x48xf32>, vector<48x128xf32>, vector<20x128xf32> -> vector<20x128xf32>
    %423 = vector.broadcast %421 : vector<20x1xf32> to vector<20x128xf32>
    %424 = arith.mulf %423, %422 : vector<20x128xf32>
    %cst_186 = arith.constant dense<0.000000e+00> : vector<20x128xf32>
    %425 = tpu.matmul %418, %424, %cst_186 {dimension_numbers = #tpu.dot_dimension_numbers<[1], [0], [0], [1], [0, 0, 1, 1], [], []>} : vector<20x20xf32>, vector<20x128xf32>, vector<20x128xf32> -> vector<20x128xf32>
    %426 = vector.broadcast %421 : vector<20x1xf32> to vector<20x128xf32>
    %427 = arith.mulf %426, %425 : vector<20x128xf32>
    %428 = vector.broadcast %415 : vector<1x128xf32> to vector<20x128xf32>
    %429 = arith.addf %427, %428 : vector<20x128xf32>
    %430 = vector.extract_strided_slice %429 {offsets = [0, 96], sizes = [20, 1], strides = [1, 1]} : vector<20x128xf32> to vector<20x1xf32>
    %431 = vector.shape_cast %430 : vector<20x1xf32> to vector<20x1xf32>
    %432 = vector.broadcast %431 : vector<20x1xf32> to vector<20x20xf32>
    %433 = arith.mulf %9, %432 : vector<20x20xf32>
    %cst_187 = arith.constant 1.000000e+00 : f32
    %434 = vector.broadcast %cst_187 : f32 to vector<20x20xf32>
    %cst_188 = arith.constant dense<0.000000e+00> : vector<20x20xf32>
    %435 = tpu.matmul %434, %433, %cst_188 {dimension_numbers = #tpu.dot_dimension_numbers<[1], [0], [0], [1], [0, 0, 1, 1], [], []>} : vector<20x20xf32>, vector<20x20xf32>, vector<20x20xf32> -> vector<20x20xf32>
    %436 = vector.shape_cast %430 : vector<20x1xf32> to vector<20x1xf32>
    %437 = vector.broadcast %436 : vector<20x1xf32> to vector<20x20xf32>
    %438 = tpu.iota {dimensions = array<i32: 0>} : vector<20x20xi32>
    %439 = tpu.iota {dimensions = array<i32: 1>} : vector<20x20xi32>
    %440 = arith.cmpf ogt, %435, %437 : vector<20x20xf32>
    %441 = arith.cmpf oeq, %435, %437 : vector<20x20xf32>
    %442 = arith.cmpi slt, %439, %438 : vector<20x20xi32>
    %443 = arith.andi %441, %442 : vector<20x20xi1>
    %444 = arith.ori %440, %443 : vector<20x20xi1>
    %cst_189 = arith.constant 1.000000e+00 : f32
    %cst_190 = arith.constant 0.000000e+00 : f32
    %445 = vector.broadcast %cst_189 : f32 to vector<20x20xf32>
    %446 = vector.broadcast %cst_190 : f32 to vector<20x20xf32>
    %447 = arith.select %444, %445, %446 : vector<20x20xi1>, vector<20x20xf32>
    %cst_191 = arith.constant dense<0.000000e+00> : vector<20xf32>
    %448 = vector.multi_reduction <add>, %447, %cst_191 [1] : vector<20x20xf32> to vector<20xf32>
    %449 = vector.shape_cast %448 : vector<20xf32> to vector<20x1xf32>
    %450 = vector.shape_cast %449 : vector<20x1xf32> to vector<20x1xf32>
    %451 = vector.broadcast %450 : vector<20x1xf32> to vector<20x20xf32>
    %452 = arith.mulf %9, %451 : vector<20x20xf32>
    %cst_192 = arith.constant 1.000000e+00 : f32
    %453 = vector.broadcast %cst_192 : f32 to vector<15x20xf32>
    %cst_193 = arith.constant dense<0.000000e+00> : vector<15x20xf32>
    %454 = tpu.matmul %453, %452, %cst_193 {dimension_numbers = #tpu.dot_dimension_numbers<[1], [0], [0], [1], [0, 0, 1, 1], [], []>} : vector<15x20xf32>, vector<20x20xf32>, vector<15x20xf32> -> vector<15x20xf32>
    %455 = arith.fptosi %454 : vector<15x20xf32> to vector<15x20xi32>
    %456 = tpu.iota {dimensions = array<i32: 0>} : vector<15x20xi32>
    %c2_i32 = arith.constant 2 : i32
    %457 = vector.broadcast %c2_i32 : i32 to vector<15x20xi32>
    %458 = arith.muli %457, %456 : vector<15x20xi32>
    %459 = arith.cmpi eq, %455, %458 : vector<15x20xi32>
    %cst_194 = arith.constant 1.000000e+00 : f32
    %cst_195 = arith.constant 0.000000e+00 : f32
    %460 = vector.broadcast %cst_194 : f32 to vector<15x20xf32>
    %461 = vector.broadcast %cst_195 : f32 to vector<15x20xf32>
    %462 = arith.select %459, %460, %461 : vector<15x20xi1>, vector<15x20xf32>
    %c2_i32_196 = arith.constant 2 : i32
    %463 = vector.broadcast %c2_i32_196 : i32 to vector<15x20xi32>
    %464 = arith.muli %463, %456 : vector<15x20xi32>
    %c1_i32 = arith.constant 1 : i32
    %465 = vector.broadcast %c1_i32 : i32 to vector<15x20xi32>
    %466 = arith.addi %464, %465 : vector<15x20xi32>
    %467 = arith.cmpi eq, %455, %466 : vector<15x20xi32>
    %cst_197 = arith.constant 1.000000e+00 : f32
    %cst_198 = arith.constant 0.000000e+00 : f32
    %468 = vector.broadcast %cst_197 : f32 to vector<15x20xf32>
    %469 = vector.broadcast %cst_198 : f32 to vector<15x20xf32>
    %470 = arith.select %467, %468, %469 : vector<15x20xi1>, vector<15x20xf32>
    %cst_199 = arith.constant dense<0.000000e+00> : vector<15x128xf32>
    %471 = tpu.matmul %462, %429, %cst_199 {dimension_numbers = #tpu.dot_dimension_numbers<[1], [0], [0], [1], [0, 0, 1, 1], [], []>} : vector<15x20xf32>, vector<20x128xf32>, vector<15x128xf32> -> vector<15x128xf32>
    %c0_200 = arith.constant 0 : index
    %c0_201 = arith.constant 0 : index
    %c0_202 = arith.constant 0 : index
    %472 = vector.load %arg11[%c0_200, %c0_201, %c0_202] : memref<2x15x128xf32, #tpu.memory_space<vmem>>, vector<1x15x128xf32>
    %473 = vector.shape_cast %472 : vector<1x15x128xf32> to vector<15x128xf32>
    %474 = vector.shape_cast %471 : vector<15x128xf32> to vector<1x15x128xf32>
    tpu.vector_store %arg11[%c0_200, %c0_201, %c0_202], %474 {strides = array<i32>} : memref<2x15x128xf32, #tpu.memory_space<vmem>>, vector<1x15x128xf32>,
    %cst_203 = arith.constant dense<0.000000e+00> : vector<15x128xf32>
    %475 = tpu.matmul %470, %429, %cst_203 {dimension_numbers = #tpu.dot_dimension_numbers<[1], [0], [0], [1], [0, 0, 1, 1], [], []>} : vector<15x20xf32>, vector<20x128xf32>, vector<15x128xf32> -> vector<15x128xf32>
    %c1_204 = arith.constant 1 : index
    %c0_205 = arith.constant 0 : index
    %c0_206 = arith.constant 0 : index
    %476 = vector.load %arg11[%c1_204, %c0_205, %c0_206] : memref<2x15x128xf32, #tpu.memory_space<vmem>>, vector<1x15x128xf32>
    %477 = vector.shape_cast %476 : vector<1x15x128xf32> to vector<15x128xf32>
    %478 = vector.shape_cast %475 : vector<15x128xf32> to vector<1x15x128xf32>
    tpu.vector_store %arg11[%c1_204, %c0_205, %c0_206], %478 {strides = array<i32>} : memref<2x15x128xf32, #tpu.memory_space<vmem>>, vector<1x15x128xf32>,
    return
  }
}

module attributes {stable_mosaic.version = 11 : i64} {
  func.func @unet_sortpool_kernel(%arg0: memref<16x16xf32, #tpu.memory_space<vmem>>, %arg1: memref<16x8xf32, #tpu.memory_space<vmem>>, %arg2: memref<8x48xf32, #tpu.memory_space<vmem>>, %arg3: memref<1x48xf32, #tpu.memory_space<vmem>>, %arg4: memref<4x48x48xf32, #tpu.memory_space<vmem>>, %arg5: memref<4x1x48xf32, #tpu.memory_space<vmem>>, %arg6: memref<48x4xf32, #tpu.memory_space<vmem>>, %arg7: memref<3x48x48xf32, #tpu.memory_space<vmem>>, %arg8: memref<3x1x48xf32, #tpu.memory_space<vmem>>, %arg9: memref<48x128xf32, #tpu.memory_space<vmem>>, %arg10: memref<1x128xf32, #tpu.memory_space<vmem>>, %arg11: memref<2x15x128xf32, #tpu.memory_space<vmem>>) attributes {dimension_semantics = [], scalar_prefetch = 0 : i64, scratch_operands = 0 : i64, tpu.core_type = #tpu.core_type<tc>} {
    %c0 = arith.constant 0 : index
    %c0_0 = arith.constant 0 : index
    %0 = vector.load %arg0[%c0, %c0_0] : memref<16x16xf32, #tpu.memory_space<vmem>>, vector<16x16xf32>
    %c0_1 = arith.constant 0 : index
    %c0_2 = arith.constant 0 : index
    %1 = vector.load %arg1[%c0_1, %c0_2] : memref<16x8xf32, #tpu.memory_space<vmem>>, vector<16x8xf32>
    %c0_3 = arith.constant 0 : index
    %c0_4 = arith.constant 0 : index
    %2 = vector.load %arg2[%c0_3, %c0_4] : memref<8x48xf32, #tpu.memory_space<vmem>>, vector<8x48xf32>
    %c0_5 = arith.constant 0 : index
    %c0_6 = arith.constant 0 : index
    %3 = vector.load %arg3[%c0_5, %c0_6] : memref<1x48xf32, #tpu.memory_space<vmem>>, vector<1x48xf32>
    %4 = tpu.iota {dimensions = array<i32: 0>} : vector<16x16xi32>
    %5 = tpu.iota {dimensions = array<i32: 1>} : vector<16x16xi32>
    %6 = arith.cmpi eq, %4, %5 : vector<16x16xi32>
    %cst = arith.constant 1.000000e+00 : f32
    %cst_7 = arith.constant 0.000000e+00 : f32
    %7 = vector.broadcast %cst : f32 to vector<16x16xf32>
    %8 = vector.broadcast %cst_7 : f32 to vector<16x16xf32>
    %9 = arith.select %6, %7, %8 : vector<16x16xi1>, vector<16x16xf32>
    %cst_8 = arith.constant 2.000000e+00 : f32
    %10 = vector.broadcast %cst_8 : f32 to vector<16x16xf32>
    %11 = arith.mulf %10, %9 : vector<16x16xf32>
    %12 = arith.addf %0, %11 : vector<16x16xf32>
    %cst_9 = arith.constant dense<0.000000e+00> : vector<16xf32>
    %13 = vector.multi_reduction <add>, %12, %cst_9 [1] : vector<16x16xf32> to vector<16xf32>
    %14 = vector.shape_cast %13 : vector<16xf32> to vector<16x1xf32>
    %15 = math.rsqrt %14 : vector<16x1xf32>
    %cst_10 = arith.constant dense<0.000000e+00> : vector<16x48xf32>
    %16 = tpu.matmul %1, %2, %cst_10 {dimension_numbers = #tpu.dot_dimension_numbers<[1], [0], [0], [1], [0, 0, 1, 1], [], []>} : vector<16x8xf32>, vector<8x48xf32>, vector<16x48xf32> -> vector<16x48xf32>
    %17 = vector.broadcast %15 : vector<16x1xf32> to vector<16x48xf32>
    %18 = arith.mulf %17, %16 : vector<16x48xf32>
    %cst_11 = arith.constant dense<0.000000e+00> : vector<16x48xf32>
    %19 = tpu.matmul %12, %18, %cst_11 {dimension_numbers = #tpu.dot_dimension_numbers<[1], [0], [0], [1], [0, 0, 1, 1], [], []>} : vector<16x16xf32>, vector<16x48xf32>, vector<16x48xf32> -> vector<16x48xf32>
    %20 = vector.broadcast %15 : vector<16x1xf32> to vector<16x48xf32>
    %21 = arith.mulf %20, %19 : vector<16x48xf32>
    %22 = vector.broadcast %3 : vector<1x48xf32> to vector<16x48xf32>
    %23 = arith.addf %21, %22 : vector<16x48xf32>
    %cst_12 = arith.constant 0.000000e+00 : f32
    %24 = vector.broadcast %cst_12 : f32 to vector<16x48xf32>
    %25 = arith.maximumf %23, %24 : vector<16x48xf32>
    %cst_13 = arith.constant 1.000000e+00 : f32
    %26 = vector.broadcast %cst_13 : f32 to vector<16x16xf32>
    %27 = arith.subf %26, %9 : vector<16x16xf32>
    %28 = arith.mulf %0, %27 : vector<16x16xf32>
    %29 = arith.addf %28, %9 : vector<16x16xf32>
    %cst_14 = arith.constant dense<0.000000e+00> : vector<16x16xf32>
    %30 = tpu.matmul %29, %29, %cst_14 {dimension_numbers = #tpu.dot_dimension_numbers<[1], [0], [0], [1], [0, 0, 1, 1], [], []>} : vector<16x16xf32>, vector<16x16xf32>, vector<16x16xf32> -> vector<16x16xf32>
    %cst_15 = arith.constant 1.000000e+00 : f32
    %31 = vector.broadcast %cst_15 : f32 to vector<16x16xf32>
    %32 = arith.subf %31, %9 : vector<16x16xf32>
    %33 = arith.mulf %30, %32 : vector<16x16xf32>
    %c0_16 = arith.constant 0 : index
    %c0_17 = arith.constant 0 : index
    %34 = vector.load %arg6[%c0_16, %c0_17] : memref<48x4xf32, #tpu.memory_space<vmem>>, vector<48x1xf32>
    %cst_18 = arith.constant dense<0.000000e+00> : vector<16x1xf32>
    %35 = tpu.matmul %25, %34, %cst_18 {dimension_numbers = #tpu.dot_dimension_numbers<[1], [0], [0], [1], [0, 0, 1, 1], [], []>} : vector<16x48xf32>, vector<48x1xf32>, vector<16x1xf32> -> vector<16x1xf32>
    %36 = math.tanh %35 : vector<16x1xf32>
    %37 = vector.shape_cast %36 : vector<16x1xf32> to vector<16x1xf32>
    %38 = vector.broadcast %37 : vector<16x1xf32> to vector<16x16xf32>
    %39 = arith.mulf %9, %38 : vector<16x16xf32>
    %cst_19 = arith.constant 1.000000e+00 : f32
    %40 = vector.broadcast %cst_19 : f32 to vector<16x16xf32>
    %cst_20 = arith.constant dense<0.000000e+00> : vector<16x16xf32>
    %41 = tpu.matmul %40, %39, %cst_20 {dimension_numbers = #tpu.dot_dimension_numbers<[1], [0], [0], [1], [0, 0, 1, 1], [], []>} : vector<16x16xf32>, vector<16x16xf32>, vector<16x16xf32> -> vector<16x16xf32>
    %42 = vector.shape_cast %36 : vector<16x1xf32> to vector<16x1xf32>
    %43 = vector.broadcast %42 : vector<16x1xf32> to vector<16x16xf32>
    %44 = tpu.iota {dimensions = array<i32: 0>} : vector<16x16xi32>
    %45 = tpu.iota {dimensions = array<i32: 1>} : vector<16x16xi32>
    %46 = arith.cmpf ogt, %41, %43 : vector<16x16xf32>
    %47 = arith.cmpf oeq, %41, %43 : vector<16x16xf32>
    %48 = arith.cmpi slt, %45, %44 : vector<16x16xi32>
    %49 = arith.andi %47, %48 : vector<16x16xi1>
    %50 = arith.ori %46, %49 : vector<16x16xi1>
    %cst_21 = arith.constant 1.000000e+00 : f32
    %cst_22 = arith.constant 0.000000e+00 : f32
    %51 = vector.broadcast %cst_21 : f32 to vector<16x16xf32>
    %52 = vector.broadcast %cst_22 : f32 to vector<16x16xf32>
    %53 = arith.select %50, %51, %52 : vector<16x16xi1>, vector<16x16xf32>
    %cst_23 = arith.constant dense<0.000000e+00> : vector<16xf32>
    %54 = vector.multi_reduction <add>, %53, %cst_23 [1] : vector<16x16xf32> to vector<16xf32>
    %55 = vector.shape_cast %54 : vector<16xf32> to vector<16x1xf32>
    %56 = vector.shape_cast %55 : vector<16x1xf32> to vector<16x1xf32>
    %57 = vector.broadcast %56 : vector<16x1xf32> to vector<16x16xf32>
    %58 = arith.mulf %9, %57 : vector<16x16xf32>
    %cst_24 = arith.constant 1.000000e+00 : f32
    %59 = vector.broadcast %cst_24 : f32 to vector<15x16xf32>
    %cst_25 = arith.constant dense<0.000000e+00> : vector<15x16xf32>
    %60 = tpu.matmul %59, %58, %cst_25 {dimension_numbers = #tpu.dot_dimension_numbers<[1], [0], [0], [1], [0, 0, 1, 1], [], []>} : vector<15x16xf32>, vector<16x16xf32>, vector<15x16xf32> -> vector<15x16xf32>
    %61 = arith.fptosi %60 : vector<15x16xf32> to vector<15x16xi32>
    %62 = tpu.iota {dimensions = array<i32: 0>} : vector<15x16xi32>
    %63 = arith.cmpi eq, %61, %62 : vector<15x16xi32>
    %cst_26 = arith.constant 1.000000e+00 : f32
    %cst_27 = arith.constant 0.000000e+00 : f32
    %64 = vector.broadcast %cst_26 : f32 to vector<15x16xf32>
    %65 = vector.broadcast %cst_27 : f32 to vector<15x16xf32>
    %66 = arith.select %63, %64, %65 : vector<15x16xi1>, vector<15x16xf32>
    %67 = arith.fptosi %55 : vector<16x1xf32> to vector<16x1xi32>
    %68 = tpu.iota {dimensions = array<i32: 1>} : vector<16x15xi32>
    %69 = vector.shape_cast %67 : vector<16x1xi32> to vector<16x1xi32>
    %70 = vector.broadcast %69 : vector<16x1xi32> to vector<16x15xi32>
    %71 = arith.cmpi eq, %70, %68 : vector<16x15xi32>
    %cst_28 = arith.constant 1.000000e+00 : f32
    %cst_29 = arith.constant 0.000000e+00 : f32
    %72 = vector.broadcast %cst_28 : f32 to vector<16x15xf32>
    %73 = vector.broadcast %cst_29 : f32 to vector<16x15xf32>
    %74 = arith.select %71, %72, %73 : vector<16x15xi1>, vector<16x15xf32>
    %75 = vector.broadcast %36 : vector<16x1xf32> to vector<16x48xf32>
    %76 = arith.mulf %25, %75 : vector<16x48xf32>
    %cst_30 = arith.constant dense<0.000000e+00> : vector<15x48xf32>
    %77 = tpu.matmul %66, %76, %cst_30 {dimension_numbers = #tpu.dot_dimension_numbers<[1], [0], [0], [1], [0, 0, 1, 1], [], []>} : vector<15x16xf32>, vector<16x48xf32>, vector<15x48xf32> -> vector<15x48xf32>
    %cst_31 = arith.constant dense<0.000000e+00> : vector<15x16xf32>
    %78 = tpu.matmul %66, %33, %cst_31 {dimension_numbers = #tpu.dot_dimension_numbers<[1], [0], [0], [1], [0, 0, 1, 1], [], []>} : vector<15x16xf32>, vector<16x16xf32>, vector<15x16xf32> -> vector<15x16xf32>
    %cst_32 = arith.constant dense<0.000000e+00> : vector<15x15xf32>
    %79 = tpu.matmul %78, %74, %cst_32 {dimension_numbers = #tpu.dot_dimension_numbers<[1], [0], [0], [1], [0, 0, 1, 1], [], []>} : vector<15x16xf32>, vector<16x15xf32>, vector<15x15xf32> -> vector<15x15xf32>
    %c0_33 = arith.constant 0 : index
    %c0_34 = arith.constant 0 : index
    %c0_35 = arith.constant 0 : index
    %80 = vector.load %arg4[%c0_33, %c0_34, %c0_35] : memref<4x48x48xf32, #tpu.memory_space<vmem>>, vector<1x48x48xf32>
    %81 = vector.shape_cast %80 : vector<1x48x48xf32> to vector<48x48xf32>
    %c0_36 = arith.constant 0 : index
    %c0_37 = arith.constant 0 : index
    %c0_38 = arith.constant 0 : index
    %82 = vector.load %arg5[%c0_36, %c0_37, %c0_38] : memref<4x1x48xf32, #tpu.memory_space<vmem>>, vector<1x1x48xf32>
    %83 = vector.shape_cast %82 : vector<1x1x48xf32> to vector<1x48xf32>
    %84 = tpu.iota {dimensions = array<i32: 0>} : vector<15x15xi32>
    %85 = tpu.iota {dimensions = array<i32: 1>} : vector<15x15xi32>
    %86 = arith.cmpi eq, %84, %85 : vector<15x15xi32>
    %cst_39 = arith.constant 1.000000e+00 : f32
    %cst_40 = arith.constant 0.000000e+00 : f32
    %87 = vector.broadcast %cst_39 : f32 to vector<15x15xf32>
    %88 = vector.broadcast %cst_40 : f32 to vector<15x15xf32>
    %89 = arith.select %86, %87, %88 : vector<15x15xi1>, vector<15x15xf32>
    %cst_41 = arith.constant 2.000000e+00 : f32
    %90 = vector.broadcast %cst_41 : f32 to vector<15x15xf32>
    %91 = arith.mulf %90, %89 : vector<15x15xf32>
    %92 = arith.addf %79, %91 : vector<15x15xf32>
    %cst_42 = arith.constant dense<0.000000e+00> : vector<15xf32>
    %93 = vector.multi_reduction <add>, %92, %cst_42 [1] : vector<15x15xf32> to vector<15xf32>
    %94 = vector.shape_cast %93 : vector<15xf32> to vector<15x1xf32>
    %95 = math.rsqrt %94 : vector<15x1xf32>
    %cst_43 = arith.constant dense<0.000000e+00> : vector<15x48xf32>
    %96 = tpu.matmul %77, %81, %cst_43 {dimension_numbers = #tpu.dot_dimension_numbers<[1], [0], [0], [1], [0, 0, 1, 1], [], []>} : vector<15x48xf32>, vector<48x48xf32>, vector<15x48xf32> -> vector<15x48xf32>
    %97 = vector.broadcast %95 : vector<15x1xf32> to vector<15x48xf32>
    %98 = arith.mulf %97, %96 : vector<15x48xf32>
    %cst_44 = arith.constant dense<0.000000e+00> : vector<15x48xf32>
    %99 = tpu.matmul %92, %98, %cst_44 {dimension_numbers = #tpu.dot_dimension_numbers<[1], [0], [0], [1], [0, 0, 1, 1], [], []>} : vector<15x15xf32>, vector<15x48xf32>, vector<15x48xf32> -> vector<15x48xf32>
    %100 = vector.broadcast %95 : vector<15x1xf32> to vector<15x48xf32>
    %101 = arith.mulf %100, %99 : vector<15x48xf32>
    %102 = vector.broadcast %83 : vector<1x48xf32> to vector<15x48xf32>
    %103 = arith.addf %101, %102 : vector<15x48xf32>
    %cst_45 = arith.constant 0.000000e+00 : f32
    %104 = vector.broadcast %cst_45 : f32 to vector<15x48xf32>
    %105 = arith.maximumf %103, %104 : vector<15x48xf32>
    %cst_46 = arith.constant 1.000000e+00 : f32
    %106 = vector.broadcast %cst_46 : f32 to vector<15x15xf32>
    %107 = arith.subf %106, %89 : vector<15x15xf32>
    %108 = arith.mulf %79, %107 : vector<15x15xf32>
    %109 = arith.addf %108, %89 : vector<15x15xf32>
    %cst_47 = arith.constant dense<0.000000e+00> : vector<15x15xf32>
    %110 = tpu.matmul %109, %109, %cst_47 {dimension_numbers = #tpu.dot_dimension_numbers<[1], [0], [0], [1], [0, 0, 1, 1], [], []>} : vector<15x15xf32>, vector<15x15xf32>, vector<15x15xf32> -> vector<15x15xf32>
    %cst_48 = arith.constant 1.000000e+00 : f32
    %111 = vector.broadcast %cst_48 : f32 to vector<15x15xf32>
    %112 = arith.subf %111, %89 : vector<15x15xf32>
    %113 = arith.mulf %110, %112 : vector<15x15xf32>
    %c0_49 = arith.constant 0 : index
    %c1 = arith.constant 1 : index
    %114 = vector.load %arg6[%c0_49, %c1] : memref<48x4xf32, #tpu.memory_space<vmem>>, vector<48x1xf32>
    %cst_50 = arith.constant dense<0.000000e+00> : vector<15x1xf32>
    %115 = tpu.matmul %105, %114, %cst_50 {dimension_numbers = #tpu.dot_dimension_numbers<[1], [0], [0], [1], [0, 0, 1, 1], [], []>} : vector<15x48xf32>, vector<48x1xf32>, vector<15x1xf32> -> vector<15x1xf32>
    %116 = math.tanh %115 : vector<15x1xf32>
    %117 = vector.shape_cast %116 : vector<15x1xf32> to vector<15x1xf32>
    %118 = vector.broadcast %117 : vector<15x1xf32> to vector<15x15xf32>
    %119 = arith.mulf %89, %118 : vector<15x15xf32>
    %cst_51 = arith.constant 1.000000e+00 : f32
    %120 = vector.broadcast %cst_51 : f32 to vector<15x15xf32>
    %cst_52 = arith.constant dense<0.000000e+00> : vector<15x15xf32>
    %121 = tpu.matmul %120, %119, %cst_52 {dimension_numbers = #tpu.dot_dimension_numbers<[1], [0], [0], [1], [0, 0, 1, 1], [], []>} : vector<15x15xf32>, vector<15x15xf32>, vector<15x15xf32> -> vector<15x15xf32>
    %122 = vector.shape_cast %116 : vector<15x1xf32> to vector<15x1xf32>
    %123 = vector.broadcast %122 : vector<15x1xf32> to vector<15x15xf32>
    %124 = tpu.iota {dimensions = array<i32: 0>} : vector<15x15xi32>
    %125 = tpu.iota {dimensions = array<i32: 1>} : vector<15x15xi32>
    %126 = arith.cmpf ogt, %121, %123 : vector<15x15xf32>
    %127 = arith.cmpf oeq, %121, %123 : vector<15x15xf32>
    %128 = arith.cmpi slt, %125, %124 : vector<15x15xi32>
    %129 = arith.andi %127, %128 : vector<15x15xi1>
    %130 = arith.ori %126, %129 : vector<15x15xi1>
    %cst_53 = arith.constant 1.000000e+00 : f32
    %cst_54 = arith.constant 0.000000e+00 : f32
    %131 = vector.broadcast %cst_53 : f32 to vector<15x15xf32>
    %132 = vector.broadcast %cst_54 : f32 to vector<15x15xf32>
    %133 = arith.select %130, %131, %132 : vector<15x15xi1>, vector<15x15xf32>
    %cst_55 = arith.constant dense<0.000000e+00> : vector<15xf32>
    %134 = vector.multi_reduction <add>, %133, %cst_55 [1] : vector<15x15xf32> to vector<15xf32>
    %135 = vector.shape_cast %134 : vector<15xf32> to vector<15x1xf32>
    %136 = vector.shape_cast %135 : vector<15x1xf32> to vector<15x1xf32>
    %137 = vector.broadcast %136 : vector<15x1xf32> to vector<15x15xf32>
    %138 = arith.mulf %89, %137 : vector<15x15xf32>
    %cst_56 = arith.constant 1.000000e+00 : f32
    %139 = vector.broadcast %cst_56 : f32 to vector<11x15xf32>
    %cst_57 = arith.constant dense<0.000000e+00> : vector<11x15xf32>
    %140 = tpu.matmul %139, %138, %cst_57 {dimension_numbers = #tpu.dot_dimension_numbers<[1], [0], [0], [1], [0, 0, 1, 1], [], []>} : vector<11x15xf32>, vector<15x15xf32>, vector<11x15xf32> -> vector<11x15xf32>
    %141 = arith.fptosi %140 : vector<11x15xf32> to vector<11x15xi32>
    %142 = tpu.iota {dimensions = array<i32: 0>} : vector<11x15xi32>
    %143 = arith.cmpi eq, %141, %142 : vector<11x15xi32>
    %cst_58 = arith.constant 1.000000e+00 : f32
    %cst_59 = arith.constant 0.000000e+00 : f32
    %144 = vector.broadcast %cst_58 : f32 to vector<11x15xf32>
    %145 = vector.broadcast %cst_59 : f32 to vector<11x15xf32>
    %146 = arith.select %143, %144, %145 : vector<11x15xi1>, vector<11x15xf32>
    %147 = arith.fptosi %135 : vector<15x1xf32> to vector<15x1xi32>
    %148 = tpu.iota {dimensions = array<i32: 1>} : vector<15x11xi32>
    %149 = vector.shape_cast %147 : vector<15x1xi32> to vector<15x1xi32>
    %150 = vector.broadcast %149 : vector<15x1xi32> to vector<15x11xi32>
    %151 = arith.cmpi eq, %150, %148 : vector<15x11xi32>
    %cst_60 = arith.constant 1.000000e+00 : f32
    %cst_61 = arith.constant 0.000000e+00 : f32
    %152 = vector.broadcast %cst_60 : f32 to vector<15x11xf32>
    %153 = vector.broadcast %cst_61 : f32 to vector<15x11xf32>
    %154 = arith.select %151, %152, %153 : vector<15x11xi1>, vector<15x11xf32>
    %155 = vector.broadcast %116 : vector<15x1xf32> to vector<15x48xf32>
    %156 = arith.mulf %105, %155 : vector<15x48xf32>
    %cst_62 = arith.constant dense<0.000000e+00> : vector<11x48xf32>
    %157 = tpu.matmul %146, %156, %cst_62 {dimension_numbers = #tpu.dot_dimension_numbers<[1], [0], [0], [1], [0, 0, 1, 1], [], []>} : vector<11x15xf32>, vector<15x48xf32>, vector<11x48xf32> -> vector<11x48xf32>
    %cst_63 = arith.constant dense<0.000000e+00> : vector<11x15xf32>
    %158 = tpu.matmul %146, %113, %cst_63 {dimension_numbers = #tpu.dot_dimension_numbers<[1], [0], [0], [1], [0, 0, 1, 1], [], []>} : vector<11x15xf32>, vector<15x15xf32>, vector<11x15xf32> -> vector<11x15xf32>
    %cst_64 = arith.constant dense<0.000000e+00> : vector<11x11xf32>
    %159 = tpu.matmul %158, %154, %cst_64 {dimension_numbers = #tpu.dot_dimension_numbers<[1], [0], [0], [1], [0, 0, 1, 1], [], []>} : vector<11x15xf32>, vector<15x11xf32>, vector<11x11xf32> -> vector<11x11xf32>
    %c1_65 = arith.constant 1 : index
    %c0_66 = arith.constant 0 : index
    %c0_67 = arith.constant 0 : index
    %160 = vector.load %arg4[%c1_65, %c0_66, %c0_67] : memref<4x48x48xf32, #tpu.memory_space<vmem>>, vector<1x48x48xf32>
    %161 = vector.shape_cast %160 : vector<1x48x48xf32> to vector<48x48xf32>
    %c1_68 = arith.constant 1 : index
    %c0_69 = arith.constant 0 : index
    %c0_70 = arith.constant 0 : index
    %162 = vector.load %arg5[%c1_68, %c0_69, %c0_70] : memref<4x1x48xf32, #tpu.memory_space<vmem>>, vector<1x1x48xf32>
    %163 = vector.shape_cast %162 : vector<1x1x48xf32> to vector<1x48xf32>
    %164 = tpu.iota {dimensions = array<i32: 0>} : vector<11x11xi32>
    %165 = tpu.iota {dimensions = array<i32: 1>} : vector<11x11xi32>
    %166 = arith.cmpi eq, %164, %165 : vector<11x11xi32>
    %cst_71 = arith.constant 1.000000e+00 : f32
    %cst_72 = arith.constant 0.000000e+00 : f32
    %167 = vector.broadcast %cst_71 : f32 to vector<11x11xf32>
    %168 = vector.broadcast %cst_72 : f32 to vector<11x11xf32>
    %169 = arith.select %166, %167, %168 : vector<11x11xi1>, vector<11x11xf32>
    %cst_73 = arith.constant 2.000000e+00 : f32
    %170 = vector.broadcast %cst_73 : f32 to vector<11x11xf32>
    %171 = arith.mulf %170, %169 : vector<11x11xf32>
    %172 = arith.addf %159, %171 : vector<11x11xf32>
    %cst_74 = arith.constant dense<0.000000e+00> : vector<11xf32>
    %173 = vector.multi_reduction <add>, %172, %cst_74 [1] : vector<11x11xf32> to vector<11xf32>
    %174 = vector.shape_cast %173 : vector<11xf32> to vector<11x1xf32>
    %175 = math.rsqrt %174 : vector<11x1xf32>
    %cst_75 = arith.constant dense<0.000000e+00> : vector<11x48xf32>
    %176 = tpu.matmul %157, %161, %cst_75 {dimension_numbers = #tpu.dot_dimension_numbers<[1], [0], [0], [1], [0, 0, 1, 1], [], []>} : vector<11x48xf32>, vector<48x48xf32>, vector<11x48xf32> -> vector<11x48xf32>
    %177 = vector.broadcast %175 : vector<11x1xf32> to vector<11x48xf32>
    %178 = arith.mulf %177, %176 : vector<11x48xf32>
    %cst_76 = arith.constant dense<0.000000e+00> : vector<11x48xf32>
    %179 = tpu.matmul %172, %178, %cst_76 {dimension_numbers = #tpu.dot_dimension_numbers<[1], [0], [0], [1], [0, 0, 1, 1], [], []>} : vector<11x11xf32>, vector<11x48xf32>, vector<11x48xf32> -> vector<11x48xf32>
    %180 = vector.broadcast %175 : vector<11x1xf32> to vector<11x48xf32>
    %181 = arith.mulf %180, %179 : vector<11x48xf32>
    %182 = vector.broadcast %163 : vector<1x48xf32> to vector<11x48xf32>
    %183 = arith.addf %181, %182 : vector<11x48xf32>
    %cst_77 = arith.constant 0.000000e+00 : f32
    %184 = vector.broadcast %cst_77 : f32 to vector<11x48xf32>
    %185 = arith.maximumf %183, %184 : vector<11x48xf32>
    %cst_78 = arith.constant 1.000000e+00 : f32
    %186 = vector.broadcast %cst_78 : f32 to vector<11x11xf32>
    %187 = arith.subf %186, %169 : vector<11x11xf32>
    %188 = arith.mulf %159, %187 : vector<11x11xf32>
    %189 = arith.addf %188, %169 : vector<11x11xf32>
    %cst_79 = arith.constant dense<0.000000e+00> : vector<11x11xf32>
    %190 = tpu.matmul %189, %189, %cst_79 {dimension_numbers = #tpu.dot_dimension_numbers<[1], [0], [0], [1], [0, 0, 1, 1], [], []>} : vector<11x11xf32>, vector<11x11xf32>, vector<11x11xf32> -> vector<11x11xf32>
    %cst_80 = arith.constant 1.000000e+00 : f32
    %191 = vector.broadcast %cst_80 : f32 to vector<11x11xf32>
    %192 = arith.subf %191, %169 : vector<11x11xf32>
    %193 = arith.mulf %190, %192 : vector<11x11xf32>
    %c0_81 = arith.constant 0 : index
    %c2 = arith.constant 2 : index
    %194 = vector.load %arg6[%c0_81, %c2] : memref<48x4xf32, #tpu.memory_space<vmem>>, vector<48x1xf32>
    %cst_82 = arith.constant dense<0.000000e+00> : vector<11x1xf32>
    %195 = tpu.matmul %185, %194, %cst_82 {dimension_numbers = #tpu.dot_dimension_numbers<[1], [0], [0], [1], [0, 0, 1, 1], [], []>} : vector<11x48xf32>, vector<48x1xf32>, vector<11x1xf32> -> vector<11x1xf32>
    %196 = math.tanh %195 : vector<11x1xf32>
    %197 = vector.shape_cast %196 : vector<11x1xf32> to vector<11x1xf32>
    %198 = vector.broadcast %197 : vector<11x1xf32> to vector<11x11xf32>
    %199 = arith.mulf %169, %198 : vector<11x11xf32>
    %cst_83 = arith.constant 1.000000e+00 : f32
    %200 = vector.broadcast %cst_83 : f32 to vector<11x11xf32>
    %cst_84 = arith.constant dense<0.000000e+00> : vector<11x11xf32>
    %201 = tpu.matmul %200, %199, %cst_84 {dimension_numbers = #tpu.dot_dimension_numbers<[1], [0], [0], [1], [0, 0, 1, 1], [], []>} : vector<11x11xf32>, vector<11x11xf32>, vector<11x11xf32> -> vector<11x11xf32>
    %202 = vector.shape_cast %196 : vector<11x1xf32> to vector<11x1xf32>
    %203 = vector.broadcast %202 : vector<11x1xf32> to vector<11x11xf32>
    %204 = tpu.iota {dimensions = array<i32: 0>} : vector<11x11xi32>
    %205 = tpu.iota {dimensions = array<i32: 1>} : vector<11x11xi32>
    %206 = arith.cmpf ogt, %201, %203 : vector<11x11xf32>
    %207 = arith.cmpf oeq, %201, %203 : vector<11x11xf32>
    %208 = arith.cmpi slt, %205, %204 : vector<11x11xi32>
    %209 = arith.andi %207, %208 : vector<11x11xi1>
    %210 = arith.ori %206, %209 : vector<11x11xi1>
    %cst_85 = arith.constant 1.000000e+00 : f32
    %cst_86 = arith.constant 0.000000e+00 : f32
    %211 = vector.broadcast %cst_85 : f32 to vector<11x11xf32>
    %212 = vector.broadcast %cst_86 : f32 to vector<11x11xf32>
    %213 = arith.select %210, %211, %212 : vector<11x11xi1>, vector<11x11xf32>
    %cst_87 = arith.constant dense<0.000000e+00> : vector<11xf32>
    %214 = vector.multi_reduction <add>, %213, %cst_87 [1] : vector<11x11xf32> to vector<11xf32>
    %215 = vector.shape_cast %214 : vector<11xf32> to vector<11x1xf32>
    %216 = vector.shape_cast %215 : vector<11x1xf32> to vector<11x1xf32>
    %217 = vector.broadcast %216 : vector<11x1xf32> to vector<11x11xf32>
    %218 = arith.mulf %169, %217 : vector<11x11xf32>
    %cst_88 = arith.constant 1.000000e+00 : f32
    %219 = vector.broadcast %cst_88 : f32 to vector<7x11xf32>
    %cst_89 = arith.constant dense<0.000000e+00> : vector<7x11xf32>
    %220 = tpu.matmul %219, %218, %cst_89 {dimension_numbers = #tpu.dot_dimension_numbers<[1], [0], [0], [1], [0, 0, 1, 1], [], []>} : vector<7x11xf32>, vector<11x11xf32>, vector<7x11xf32> -> vector<7x11xf32>
    %221 = arith.fptosi %220 : vector<7x11xf32> to vector<7x11xi32>
    %222 = tpu.iota {dimensions = array<i32: 0>} : vector<7x11xi32>
    %223 = arith.cmpi eq, %221, %222 : vector<7x11xi32>
    %cst_90 = arith.constant 1.000000e+00 : f32
    %cst_91 = arith.constant 0.000000e+00 : f32
    %224 = vector.broadcast %cst_90 : f32 to vector<7x11xf32>
    %225 = vector.broadcast %cst_91 : f32 to vector<7x11xf32>
    %226 = arith.select %223, %224, %225 : vector<7x11xi1>, vector<7x11xf32>
    %227 = arith.fptosi %215 : vector<11x1xf32> to vector<11x1xi32>
    %228 = tpu.iota {dimensions = array<i32: 1>} : vector<11x7xi32>
    %229 = vector.shape_cast %227 : vector<11x1xi32> to vector<11x1xi32>
    %230 = vector.broadcast %229 : vector<11x1xi32> to vector<11x7xi32>
    %231 = arith.cmpi eq, %230, %228 : vector<11x7xi32>
    %cst_92 = arith.constant 1.000000e+00 : f32
    %cst_93 = arith.constant 0.000000e+00 : f32
    %232 = vector.broadcast %cst_92 : f32 to vector<11x7xf32>
    %233 = vector.broadcast %cst_93 : f32 to vector<11x7xf32>
    %234 = arith.select %231, %232, %233 : vector<11x7xi1>, vector<11x7xf32>
    %235 = vector.broadcast %196 : vector<11x1xf32> to vector<11x48xf32>
    %236 = arith.mulf %185, %235 : vector<11x48xf32>
    %cst_94 = arith.constant dense<0.000000e+00> : vector<7x48xf32>
    %237 = tpu.matmul %226, %236, %cst_94 {dimension_numbers = #tpu.dot_dimension_numbers<[1], [0], [0], [1], [0, 0, 1, 1], [], []>} : vector<7x11xf32>, vector<11x48xf32>, vector<7x48xf32> -> vector<7x48xf32>
    %cst_95 = arith.constant dense<0.000000e+00> : vector<7x11xf32>
    %238 = tpu.matmul %226, %193, %cst_95 {dimension_numbers = #tpu.dot_dimension_numbers<[1], [0], [0], [1], [0, 0, 1, 1], [], []>} : vector<7x11xf32>, vector<11x11xf32>, vector<7x11xf32> -> vector<7x11xf32>
    %cst_96 = arith.constant dense<0.000000e+00> : vector<7x7xf32>
    %239 = tpu.matmul %238, %234, %cst_96 {dimension_numbers = #tpu.dot_dimension_numbers<[1], [0], [0], [1], [0, 0, 1, 1], [], []>} : vector<7x11xf32>, vector<11x7xf32>, vector<7x7xf32> -> vector<7x7xf32>
    %c2_97 = arith.constant 2 : index
    %c0_98 = arith.constant 0 : index
    %c0_99 = arith.constant 0 : index
    %240 = vector.load %arg4[%c2_97, %c0_98, %c0_99] : memref<4x48x48xf32, #tpu.memory_space<vmem>>, vector<1x48x48xf32>
    %241 = vector.shape_cast %240 : vector<1x48x48xf32> to vector<48x48xf32>
    %c2_100 = arith.constant 2 : index
    %c0_101 = arith.constant 0 : index
    %c0_102 = arith.constant 0 : index
    %242 = vector.load %arg5[%c2_100, %c0_101, %c0_102] : memref<4x1x48xf32, #tpu.memory_space<vmem>>, vector<1x1x48xf32>
    %243 = vector.shape_cast %242 : vector<1x1x48xf32> to vector<1x48xf32>
    %244 = tpu.iota {dimensions = array<i32: 0>} : vector<7x7xi32>
    %245 = tpu.iota {dimensions = array<i32: 1>} : vector<7x7xi32>
    %246 = arith.cmpi eq, %244, %245 : vector<7x7xi32>
    %cst_103 = arith.constant 1.000000e+00 : f32
    %cst_104 = arith.constant 0.000000e+00 : f32
    %247 = vector.broadcast %cst_103 : f32 to vector<7x7xf32>
    %248 = vector.broadcast %cst_104 : f32 to vector<7x7xf32>
    %249 = arith.select %246, %247, %248 : vector<7x7xi1>, vector<7x7xf32>
    %cst_105 = arith.constant 2.000000e+00 : f32
    %250 = vector.broadcast %cst_105 : f32 to vector<7x7xf32>
    %251 = arith.mulf %250, %249 : vector<7x7xf32>
    %252 = arith.addf %239, %251 : vector<7x7xf32>
    %cst_106 = arith.constant dense<0.000000e+00> : vector<7xf32>
    %253 = vector.multi_reduction <add>, %252, %cst_106 [1] : vector<7x7xf32> to vector<7xf32>
    %254 = vector.shape_cast %253 : vector<7xf32> to vector<7x1xf32>
    %255 = math.rsqrt %254 : vector<7x1xf32>
    %cst_107 = arith.constant dense<0.000000e+00> : vector<7x48xf32>
    %256 = tpu.matmul %237, %241, %cst_107 {dimension_numbers = #tpu.dot_dimension_numbers<[1], [0], [0], [1], [0, 0, 1, 1], [], []>} : vector<7x48xf32>, vector<48x48xf32>, vector<7x48xf32> -> vector<7x48xf32>
    %257 = vector.broadcast %255 : vector<7x1xf32> to vector<7x48xf32>
    %258 = arith.mulf %257, %256 : vector<7x48xf32>
    %cst_108 = arith.constant dense<0.000000e+00> : vector<7x48xf32>
    %259 = tpu.matmul %252, %258, %cst_108 {dimension_numbers = #tpu.dot_dimension_numbers<[1], [0], [0], [1], [0, 0, 1, 1], [], []>} : vector<7x7xf32>, vector<7x48xf32>, vector<7x48xf32> -> vector<7x48xf32>
    %260 = vector.broadcast %255 : vector<7x1xf32> to vector<7x48xf32>
    %261 = arith.mulf %260, %259 : vector<7x48xf32>
    %262 = vector.broadcast %243 : vector<1x48xf32> to vector<7x48xf32>
    %263 = arith.addf %261, %262 : vector<7x48xf32>
    %cst_109 = arith.constant 0.000000e+00 : f32
    %264 = vector.broadcast %cst_109 : f32 to vector<7x48xf32>
    %265 = arith.maximumf %263, %264 : vector<7x48xf32>
    %cst_110 = arith.constant 1.000000e+00 : f32
    %266 = vector.broadcast %cst_110 : f32 to vector<7x7xf32>
    %267 = arith.subf %266, %249 : vector<7x7xf32>
    %268 = arith.mulf %239, %267 : vector<7x7xf32>
    %269 = arith.addf %268, %249 : vector<7x7xf32>
    %cst_111 = arith.constant dense<0.000000e+00> : vector<7x7xf32>
    %270 = tpu.matmul %269, %269, %cst_111 {dimension_numbers = #tpu.dot_dimension_numbers<[1], [0], [0], [1], [0, 0, 1, 1], [], []>} : vector<7x7xf32>, vector<7x7xf32>, vector<7x7xf32> -> vector<7x7xf32>
    %cst_112 = arith.constant 1.000000e+00 : f32
    %271 = vector.broadcast %cst_112 : f32 to vector<7x7xf32>
    %272 = arith.subf %271, %249 : vector<7x7xf32>
    %273 = arith.mulf %270, %272 : vector<7x7xf32>
    %c0_113 = arith.constant 0 : index
    %c3 = arith.constant 3 : index
    %274 = vector.load %arg6[%c0_113, %c3] : memref<48x4xf32, #tpu.memory_space<vmem>>, vector<48x1xf32>
    %cst_114 = arith.constant dense<0.000000e+00> : vector<7x1xf32>
    %275 = tpu.matmul %265, %274, %cst_114 {dimension_numbers = #tpu.dot_dimension_numbers<[1], [0], [0], [1], [0, 0, 1, 1], [], []>} : vector<7x48xf32>, vector<48x1xf32>, vector<7x1xf32> -> vector<7x1xf32>
    %276 = math.tanh %275 : vector<7x1xf32>
    %277 = vector.shape_cast %276 : vector<7x1xf32> to vector<7x1xf32>
    %278 = vector.broadcast %277 : vector<7x1xf32> to vector<7x7xf32>
    %279 = arith.mulf %249, %278 : vector<7x7xf32>
    %cst_115 = arith.constant 1.000000e+00 : f32
    %280 = vector.broadcast %cst_115 : f32 to vector<7x7xf32>
    %cst_116 = arith.constant dense<0.000000e+00> : vector<7x7xf32>
    %281 = tpu.matmul %280, %279, %cst_116 {dimension_numbers = #tpu.dot_dimension_numbers<[1], [0], [0], [1], [0, 0, 1, 1], [], []>} : vector<7x7xf32>, vector<7x7xf32>, vector<7x7xf32> -> vector<7x7xf32>
    %282 = vector.shape_cast %276 : vector<7x1xf32> to vector<7x1xf32>
    %283 = vector.broadcast %282 : vector<7x1xf32> to vector<7x7xf32>
    %284 = tpu.iota {dimensions = array<i32: 0>} : vector<7x7xi32>
    %285 = tpu.iota {dimensions = array<i32: 1>} : vector<7x7xi32>
    %286 = arith.cmpf ogt, %281, %283 : vector<7x7xf32>
    %287 = arith.cmpf oeq, %281, %283 : vector<7x7xf32>
    %288 = arith.cmpi slt, %285, %284 : vector<7x7xi32>
    %289 = arith.andi %287, %288 : vector<7x7xi1>
    %290 = arith.ori %286, %289 : vector<7x7xi1>
    %cst_117 = arith.constant 1.000000e+00 : f32
    %cst_118 = arith.constant 0.000000e+00 : f32
    %291 = vector.broadcast %cst_117 : f32 to vector<7x7xf32>
    %292 = vector.broadcast %cst_118 : f32 to vector<7x7xf32>
    %293 = arith.select %290, %291, %292 : vector<7x7xi1>, vector<7x7xf32>
    %cst_119 = arith.constant dense<0.000000e+00> : vector<7xf32>
    %294 = vector.multi_reduction <add>, %293, %cst_119 [1] : vector<7x7xf32> to vector<7xf32>
    %295 = vector.shape_cast %294 : vector<7xf32> to vector<7x1xf32>
    %296 = vector.shape_cast %295 : vector<7x1xf32> to vector<7x1xf32>
    %297 = vector.broadcast %296 : vector<7x1xf32> to vector<7x7xf32>
    %298 = arith.mulf %249, %297 : vector<7x7xf32>
    %cst_120 = arith.constant 1.000000e+00 : f32
    %299 = vector.broadcast %cst_120 : f32 to vector<4x7xf32>
    %cst_121 = arith.constant dense<0.000000e+00> : vector<4x7xf32>
    %300 = tpu.matmul %299, %298, %cst_121 {dimension_numbers = #tpu.dot_dimension_numbers<[1], [0], [0], [1], [0, 0, 1, 1], [], []>} : vector<4x7xf32>, vector<7x7xf32>, vector<4x7xf32> -> vector<4x7xf32>
    %301 = arith.fptosi %300 : vector<4x7xf32> to vector<4x7xi32>
    %302 = tpu.iota {dimensions = array<i32: 0>} : vector<4x7xi32>
    %303 = arith.cmpi eq, %301, %302 : vector<4x7xi32>
    %cst_122 = arith.constant 1.000000e+00 : f32
    %cst_123 = arith.constant 0.000000e+00 : f32
    %304 = vector.broadcast %cst_122 : f32 to vector<4x7xf32>
    %305 = vector.broadcast %cst_123 : f32 to vector<4x7xf32>
    %306 = arith.select %303, %304, %305 : vector<4x7xi1>, vector<4x7xf32>
    %307 = arith.fptosi %295 : vector<7x1xf32> to vector<7x1xi32>
    %308 = tpu.iota {dimensions = array<i32: 1>} : vector<7x4xi32>
    %309 = vector.shape_cast %307 : vector<7x1xi32> to vector<7x1xi32>
    %310 = vector.broadcast %309 : vector<7x1xi32> to vector<7x4xi32>
    %311 = arith.cmpi eq, %310, %308 : vector<7x4xi32>
    %cst_124 = arith.constant 1.000000e+00 : f32
    %cst_125 = arith.constant 0.000000e+00 : f32
    %312 = vector.broadcast %cst_124 : f32 to vector<7x4xf32>
    %313 = vector.broadcast %cst_125 : f32 to vector<7x4xf32>
    %314 = arith.select %311, %312, %313 : vector<7x4xi1>, vector<7x4xf32>
    %315 = vector.broadcast %276 : vector<7x1xf32> to vector<7x48xf32>
    %316 = arith.mulf %265, %315 : vector<7x48xf32>
    %cst_126 = arith.constant dense<0.000000e+00> : vector<4x48xf32>
    %317 = tpu.matmul %306, %316, %cst_126 {dimension_numbers = #tpu.dot_dimension_numbers<[1], [0], [0], [1], [0, 0, 1, 1], [], []>} : vector<4x7xf32>, vector<7x48xf32>, vector<4x48xf32> -> vector<4x48xf32>
    %cst_127 = arith.constant dense<0.000000e+00> : vector<4x7xf32>
    %318 = tpu.matmul %306, %273, %cst_127 {dimension_numbers = #tpu.dot_dimension_numbers<[1], [0], [0], [1], [0, 0, 1, 1], [], []>} : vector<4x7xf32>, vector<7x7xf32>, vector<4x7xf32> -> vector<4x7xf32>
    %cst_128 = arith.constant dense<0.000000e+00> : vector<4x4xf32>
    %319 = tpu.matmul %318, %314, %cst_128 {dimension_numbers = #tpu.dot_dimension_numbers<[1], [0], [0], [1], [0, 0, 1, 1], [], []>} : vector<4x7xf32>, vector<7x4xf32>, vector<4x4xf32> -> vector<4x4xf32>
    %c3_129 = arith.constant 3 : index
    %c0_130 = arith.constant 0 : index
    %c0_131 = arith.constant 0 : index
    %320 = vector.load %arg4[%c3_129, %c0_130, %c0_131] : memref<4x48x48xf32, #tpu.memory_space<vmem>>, vector<1x48x48xf32>
    %321 = vector.shape_cast %320 : vector<1x48x48xf32> to vector<48x48xf32>
    %c3_132 = arith.constant 3 : index
    %c0_133 = arith.constant 0 : index
    %c0_134 = arith.constant 0 : index
    %322 = vector.load %arg5[%c3_132, %c0_133, %c0_134] : memref<4x1x48xf32, #tpu.memory_space<vmem>>, vector<1x1x48xf32>
    %323 = vector.shape_cast %322 : vector<1x1x48xf32> to vector<1x48xf32>
    %324 = tpu.iota {dimensions = array<i32: 0>} : vector<4x4xi32>
    %325 = tpu.iota {dimensions = array<i32: 1>} : vector<4x4xi32>
    %326 = arith.cmpi eq, %324, %325 : vector<4x4xi32>
    %cst_135 = arith.constant 1.000000e+00 : f32
    %cst_136 = arith.constant 0.000000e+00 : f32
    %327 = vector.broadcast %cst_135 : f32 to vector<4x4xf32>
    %328 = vector.broadcast %cst_136 : f32 to vector<4x4xf32>
    %329 = arith.select %326, %327, %328 : vector<4x4xi1>, vector<4x4xf32>
    %cst_137 = arith.constant 2.000000e+00 : f32
    %330 = vector.broadcast %cst_137 : f32 to vector<4x4xf32>
    %331 = arith.mulf %330, %329 : vector<4x4xf32>
    %332 = arith.addf %319, %331 : vector<4x4xf32>
    %cst_138 = arith.constant dense<0.000000e+00> : vector<4xf32>
    %333 = vector.multi_reduction <add>, %332, %cst_138 [1] : vector<4x4xf32> to vector<4xf32>
    %334 = vector.shape_cast %333 : vector<4xf32> to vector<4x1xf32>
    %335 = math.rsqrt %334 : vector<4x1xf32>
    %cst_139 = arith.constant dense<0.000000e+00> : vector<4x48xf32>
    %336 = tpu.matmul %317, %321, %cst_139 {dimension_numbers = #tpu.dot_dimension_numbers<[1], [0], [0], [1], [0, 0, 1, 1], [], []>} : vector<4x48xf32>, vector<48x48xf32>, vector<4x48xf32> -> vector<4x48xf32>
    %337 = vector.broadcast %335 : vector<4x1xf32> to vector<4x48xf32>
    %338 = arith.mulf %337, %336 : vector<4x48xf32>
    %cst_140 = arith.constant dense<0.000000e+00> : vector<4x48xf32>
    %339 = tpu.matmul %332, %338, %cst_140 {dimension_numbers = #tpu.dot_dimension_numbers<[1], [0], [0], [1], [0, 0, 1, 1], [], []>} : vector<4x4xf32>, vector<4x48xf32>, vector<4x48xf32> -> vector<4x48xf32>
    %340 = vector.broadcast %335 : vector<4x1xf32> to vector<4x48xf32>
    %341 = arith.mulf %340, %339 : vector<4x48xf32>
    %342 = vector.broadcast %323 : vector<1x48xf32> to vector<4x48xf32>
    %343 = arith.addf %341, %342 : vector<4x48xf32>
    %cst_141 = arith.constant 0.000000e+00 : f32
    %344 = vector.broadcast %cst_141 : f32 to vector<4x48xf32>
    %345 = arith.maximumf %343, %344 : vector<4x48xf32>
    %cst_142 = arith.constant dense<0.000000e+00> : vector<7x48xf32>
    %346 = tpu.matmul %314, %345, %cst_142 {dimension_numbers = #tpu.dot_dimension_numbers<[1], [0], [0], [1], [0, 0, 1, 1], [], []>} : vector<7x4xf32>, vector<4x48xf32>, vector<7x48xf32> -> vector<7x48xf32>
    %347 = arith.addf %265, %346 : vector<7x48xf32>
    %c0_143 = arith.constant 0 : index
    %c0_144 = arith.constant 0 : index
    %c0_145 = arith.constant 0 : index
    %348 = vector.load %arg7[%c0_143, %c0_144, %c0_145] : memref<3x48x48xf32, #tpu.memory_space<vmem>>, vector<1x48x48xf32>
    %349 = vector.shape_cast %348 : vector<1x48x48xf32> to vector<48x48xf32>
    %c0_146 = arith.constant 0 : index
    %c0_147 = arith.constant 0 : index
    %c0_148 = arith.constant 0 : index
    %350 = vector.load %arg8[%c0_146, %c0_147, %c0_148] : memref<3x1x48xf32, #tpu.memory_space<vmem>>, vector<1x1x48xf32>
    %351 = vector.shape_cast %350 : vector<1x1x48xf32> to vector<1x48xf32>
    %cst_149 = arith.constant 2.000000e+00 : f32
    %352 = vector.broadcast %cst_149 : f32 to vector<7x7xf32>
    %353 = arith.mulf %352, %249 : vector<7x7xf32>
    %354 = arith.addf %239, %353 : vector<7x7xf32>
    %cst_150 = arith.constant dense<0.000000e+00> : vector<7xf32>
    %355 = vector.multi_reduction <add>, %354, %cst_150 [1] : vector<7x7xf32> to vector<7xf32>
    %356 = vector.shape_cast %355 : vector<7xf32> to vector<7x1xf32>
    %357 = math.rsqrt %356 : vector<7x1xf32>
    %cst_151 = arith.constant dense<0.000000e+00> : vector<7x48xf32>
    %358 = tpu.matmul %347, %349, %cst_151 {dimension_numbers = #tpu.dot_dimension_numbers<[1], [0], [0], [1], [0, 0, 1, 1], [], []>} : vector<7x48xf32>, vector<48x48xf32>, vector<7x48xf32> -> vector<7x48xf32>
    %359 = vector.broadcast %357 : vector<7x1xf32> to vector<7x48xf32>
    %360 = arith.mulf %359, %358 : vector<7x48xf32>
    %cst_152 = arith.constant dense<0.000000e+00> : vector<7x48xf32>
    %361 = tpu.matmul %354, %360, %cst_152 {dimension_numbers = #tpu.dot_dimension_numbers<[1], [0], [0], [1], [0, 0, 1, 1], [], []>} : vector<7x7xf32>, vector<7x48xf32>, vector<7x48xf32> -> vector<7x48xf32>
    %362 = vector.broadcast %357 : vector<7x1xf32> to vector<7x48xf32>
    %363 = arith.mulf %362, %361 : vector<7x48xf32>
    %364 = vector.broadcast %351 : vector<1x48xf32> to vector<7x48xf32>
    %365 = arith.addf %363, %364 : vector<7x48xf32>
    %cst_153 = arith.constant 0.000000e+00 : f32
    %366 = vector.broadcast %cst_153 : f32 to vector<7x48xf32>
    %367 = arith.maximumf %365, %366 : vector<7x48xf32>
    %cst_154 = arith.constant dense<0.000000e+00> : vector<11x48xf32>
    %368 = tpu.matmul %234, %367, %cst_154 {dimension_numbers = #tpu.dot_dimension_numbers<[1], [0], [0], [1], [0, 0, 1, 1], [], []>} : vector<11x7xf32>, vector<7x48xf32>, vector<11x48xf32> -> vector<11x48xf32>
    %369 = arith.addf %185, %368 : vector<11x48xf32>
    %c1_155 = arith.constant 1 : index
    %c0_156 = arith.constant 0 : index
    %c0_157 = arith.constant 0 : index
    %370 = vector.load %arg7[%c1_155, %c0_156, %c0_157] : memref<3x48x48xf32, #tpu.memory_space<vmem>>, vector<1x48x48xf32>
    %371 = vector.shape_cast %370 : vector<1x48x48xf32> to vector<48x48xf32>
    %c1_158 = arith.constant 1 : index
    %c0_159 = arith.constant 0 : index
    %c0_160 = arith.constant 0 : index
    %372 = vector.load %arg8[%c1_158, %c0_159, %c0_160] : memref<3x1x48xf32, #tpu.memory_space<vmem>>, vector<1x1x48xf32>
    %373 = vector.shape_cast %372 : vector<1x1x48xf32> to vector<1x48xf32>
    %cst_161 = arith.constant 2.000000e+00 : f32
    %374 = vector.broadcast %cst_161 : f32 to vector<11x11xf32>
    %375 = arith.mulf %374, %169 : vector<11x11xf32>
    %376 = arith.addf %159, %375 : vector<11x11xf32>
    %cst_162 = arith.constant dense<0.000000e+00> : vector<11xf32>
    %377 = vector.multi_reduction <add>, %376, %cst_162 [1] : vector<11x11xf32> to vector<11xf32>
    %378 = vector.shape_cast %377 : vector<11xf32> to vector<11x1xf32>
    %379 = math.rsqrt %378 : vector<11x1xf32>
    %cst_163 = arith.constant dense<0.000000e+00> : vector<11x48xf32>
    %380 = tpu.matmul %369, %371, %cst_163 {dimension_numbers = #tpu.dot_dimension_numbers<[1], [0], [0], [1], [0, 0, 1, 1], [], []>} : vector<11x48xf32>, vector<48x48xf32>, vector<11x48xf32> -> vector<11x48xf32>
    %381 = vector.broadcast %379 : vector<11x1xf32> to vector<11x48xf32>
    %382 = arith.mulf %381, %380 : vector<11x48xf32>
    %cst_164 = arith.constant dense<0.000000e+00> : vector<11x48xf32>
    %383 = tpu.matmul %376, %382, %cst_164 {dimension_numbers = #tpu.dot_dimension_numbers<[1], [0], [0], [1], [0, 0, 1, 1], [], []>} : vector<11x11xf32>, vector<11x48xf32>, vector<11x48xf32> -> vector<11x48xf32>
    %384 = vector.broadcast %379 : vector<11x1xf32> to vector<11x48xf32>
    %385 = arith.mulf %384, %383 : vector<11x48xf32>
    %386 = vector.broadcast %373 : vector<1x48xf32> to vector<11x48xf32>
    %387 = arith.addf %385, %386 : vector<11x48xf32>
    %cst_165 = arith.constant 0.000000e+00 : f32
    %388 = vector.broadcast %cst_165 : f32 to vector<11x48xf32>
    %389 = arith.maximumf %387, %388 : vector<11x48xf32>
    %cst_166 = arith.constant dense<0.000000e+00> : vector<15x48xf32>
    %390 = tpu.matmul %154, %389, %cst_166 {dimension_numbers = #tpu.dot_dimension_numbers<[1], [0], [0], [1], [0, 0, 1, 1], [], []>} : vector<15x11xf32>, vector<11x48xf32>, vector<15x48xf32> -> vector<15x48xf32>
    %391 = arith.addf %105, %390 : vector<15x48xf32>
    %c2_167 = arith.constant 2 : index
    %c0_168 = arith.constant 0 : index
    %c0_169 = arith.constant 0 : index
    %392 = vector.load %arg7[%c2_167, %c0_168, %c0_169] : memref<3x48x48xf32, #tpu.memory_space<vmem>>, vector<1x48x48xf32>
    %393 = vector.shape_cast %392 : vector<1x48x48xf32> to vector<48x48xf32>
    %c2_170 = arith.constant 2 : index
    %c0_171 = arith.constant 0 : index
    %c0_172 = arith.constant 0 : index
    %394 = vector.load %arg8[%c2_170, %c0_171, %c0_172] : memref<3x1x48xf32, #tpu.memory_space<vmem>>, vector<1x1x48xf32>
    %395 = vector.shape_cast %394 : vector<1x1x48xf32> to vector<1x48xf32>
    %cst_173 = arith.constant 2.000000e+00 : f32
    %396 = vector.broadcast %cst_173 : f32 to vector<15x15xf32>
    %397 = arith.mulf %396, %89 : vector<15x15xf32>
    %398 = arith.addf %79, %397 : vector<15x15xf32>
    %cst_174 = arith.constant dense<0.000000e+00> : vector<15xf32>
    %399 = vector.multi_reduction <add>, %398, %cst_174 [1] : vector<15x15xf32> to vector<15xf32>
    %400 = vector.shape_cast %399 : vector<15xf32> to vector<15x1xf32>
    %401 = math.rsqrt %400 : vector<15x1xf32>
    %cst_175 = arith.constant dense<0.000000e+00> : vector<15x48xf32>
    %402 = tpu.matmul %391, %393, %cst_175 {dimension_numbers = #tpu.dot_dimension_numbers<[1], [0], [0], [1], [0, 0, 1, 1], [], []>} : vector<15x48xf32>, vector<48x48xf32>, vector<15x48xf32> -> vector<15x48xf32>
    %403 = vector.broadcast %401 : vector<15x1xf32> to vector<15x48xf32>
    %404 = arith.mulf %403, %402 : vector<15x48xf32>
    %cst_176 = arith.constant dense<0.000000e+00> : vector<15x48xf32>
    %405 = tpu.matmul %398, %404, %cst_176 {dimension_numbers = #tpu.dot_dimension_numbers<[1], [0], [0], [1], [0, 0, 1, 1], [], []>} : vector<15x15xf32>, vector<15x48xf32>, vector<15x48xf32> -> vector<15x48xf32>
    %406 = vector.broadcast %401 : vector<15x1xf32> to vector<15x48xf32>
    %407 = arith.mulf %406, %405 : vector<15x48xf32>
    %408 = vector.broadcast %395 : vector<1x48xf32> to vector<15x48xf32>
    %409 = arith.addf %407, %408 : vector<15x48xf32>
    %cst_177 = arith.constant 0.000000e+00 : f32
    %410 = vector.broadcast %cst_177 : f32 to vector<15x48xf32>
    %411 = arith.maximumf %409, %410 : vector<15x48xf32>
    %cst_178 = arith.constant dense<0.000000e+00> : vector<16x48xf32>
    %412 = tpu.matmul %74, %411, %cst_178 {dimension_numbers = #tpu.dot_dimension_numbers<[1], [0], [0], [1], [0, 0, 1, 1], [], []>} : vector<16x15xf32>, vector<15x48xf32>, vector<16x48xf32> -> vector<16x48xf32>
    %413 = arith.addf %25, %412 : vector<16x48xf32>
    %c0_179 = arith.constant 0 : index
    %c0_180 = arith.constant 0 : index
    %414 = vector.load %arg9[%c0_179, %c0_180] : memref<48x128xf32, #tpu.memory_space<vmem>>, vector<48x128xf32>
    %c0_181 = arith.constant 0 : index
    %c0_182 = arith.constant 0 : index
    %415 = vector.load %arg10[%c0_181, %c0_182] : memref<1x128xf32, #tpu.memory_space<vmem>>, vector<1x128xf32>
    %cst_183 = arith.constant 2.000000e+00 : f32
    %416 = vector.broadcast %cst_183 : f32 to vector<16x16xf32>
    %417 = arith.mulf %416, %9 : vector<16x16xf32>
    %418 = arith.addf %0, %417 : vector<16x16xf32>
    %cst_184 = arith.constant dense<0.000000e+00> : vector<16xf32>
    %419 = vector.multi_reduction <add>, %418, %cst_184 [1] : vector<16x16xf32> to vector<16xf32>
    %420 = vector.shape_cast %419 : vector<16xf32> to vector<16x1xf32>
    %421 = math.rsqrt %420 : vector<16x1xf32>
    %cst_185 = arith.constant dense<0.000000e+00> : vector<16x128xf32>
    %422 = tpu.matmul %413, %414, %cst_185 {dimension_numbers = #tpu.dot_dimension_numbers<[1], [0], [0], [1], [0, 0, 1, 1], [], []>} : vector<16x48xf32>, vector<48x128xf32>, vector<16x128xf32> -> vector<16x128xf32>
    %423 = vector.broadcast %421 : vector<16x1xf32> to vector<16x128xf32>
    %424 = arith.mulf %423, %422 : vector<16x128xf32>
    %cst_186 = arith.constant dense<0.000000e+00> : vector<16x128xf32>
    %425 = tpu.matmul %418, %424, %cst_186 {dimension_numbers = #tpu.dot_dimension_numbers<[1], [0], [0], [1], [0, 0, 1, 1], [], []>} : vector<16x16xf32>, vector<16x128xf32>, vector<16x128xf32> -> vector<16x128xf32>
    %426 = vector.broadcast %421 : vector<16x1xf32> to vector<16x128xf32>
    %427 = arith.mulf %426, %425 : vector<16x128xf32>
    %428 = vector.broadcast %415 : vector<1x128xf32> to vector<16x128xf32>
    %429 = arith.addf %427, %428 : vector<16x128xf32>
    %430 = vector.extract_strided_slice %429 {offsets = [0, 96], sizes = [16, 1], strides = [1, 1]} : vector<16x128xf32> to vector<16x1xf32>
    %431 = vector.shape_cast %430 : vector<16x1xf32> to vector<16x1xf32>
    %432 = vector.broadcast %431 : vector<16x1xf32> to vector<16x16xf32>
    %433 = arith.mulf %9, %432 : vector<16x16xf32>
    %cst_187 = arith.constant 1.000000e+00 : f32
    %434 = vector.broadcast %cst_187 : f32 to vector<16x16xf32>
    %cst_188 = arith.constant dense<0.000000e+00> : vector<16x16xf32>
    %435 = tpu.matmul %434, %433, %cst_188 {dimension_numbers = #tpu.dot_dimension_numbers<[1], [0], [0], [1], [0, 0, 1, 1], [], []>} : vector<16x16xf32>, vector<16x16xf32>, vector<16x16xf32> -> vector<16x16xf32>
    %436 = vector.shape_cast %430 : vector<16x1xf32> to vector<16x1xf32>
    %437 = vector.broadcast %436 : vector<16x1xf32> to vector<16x16xf32>
    %438 = tpu.iota {dimensions = array<i32: 0>} : vector<16x16xi32>
    %439 = tpu.iota {dimensions = array<i32: 1>} : vector<16x16xi32>
    %440 = arith.cmpf ogt, %435, %437 : vector<16x16xf32>
    %441 = arith.cmpf oeq, %435, %437 : vector<16x16xf32>
    %442 = arith.cmpi slt, %439, %438 : vector<16x16xi32>
    %443 = arith.andi %441, %442 : vector<16x16xi1>
    %444 = arith.ori %440, %443 : vector<16x16xi1>
    %cst_189 = arith.constant 1.000000e+00 : f32
    %cst_190 = arith.constant 0.000000e+00 : f32
    %445 = vector.broadcast %cst_189 : f32 to vector<16x16xf32>
    %446 = vector.broadcast %cst_190 : f32 to vector<16x16xf32>
    %447 = arith.select %444, %445, %446 : vector<16x16xi1>, vector<16x16xf32>
    %cst_191 = arith.constant dense<0.000000e+00> : vector<16xf32>
    %448 = vector.multi_reduction <add>, %447, %cst_191 [1] : vector<16x16xf32> to vector<16xf32>
    %449 = vector.shape_cast %448 : vector<16xf32> to vector<16x1xf32>
    %450 = vector.shape_cast %449 : vector<16x1xf32> to vector<16x1xf32>
    %451 = vector.broadcast %450 : vector<16x1xf32> to vector<16x16xf32>
    %452 = arith.mulf %9, %451 : vector<16x16xf32>
    %cst_192 = arith.constant 1.000000e+00 : f32
    %453 = vector.broadcast %cst_192 : f32 to vector<15x16xf32>
    %cst_193 = arith.constant dense<0.000000e+00> : vector<15x16xf32>
    %454 = tpu.matmul %453, %452, %cst_193 {dimension_numbers = #tpu.dot_dimension_numbers<[1], [0], [0], [1], [0, 0, 1, 1], [], []>} : vector<15x16xf32>, vector<16x16xf32>, vector<15x16xf32> -> vector<15x16xf32>
    %455 = arith.fptosi %454 : vector<15x16xf32> to vector<15x16xi32>
    %456 = tpu.iota {dimensions = array<i32: 0>} : vector<15x16xi32>
    %c2_i32 = arith.constant 2 : i32
    %457 = vector.broadcast %c2_i32 : i32 to vector<15x16xi32>
    %458 = arith.muli %457, %456 : vector<15x16xi32>
    %459 = arith.cmpi eq, %455, %458 : vector<15x16xi32>
    %cst_194 = arith.constant 1.000000e+00 : f32
    %cst_195 = arith.constant 0.000000e+00 : f32
    %460 = vector.broadcast %cst_194 : f32 to vector<15x16xf32>
    %461 = vector.broadcast %cst_195 : f32 to vector<15x16xf32>
    %462 = arith.select %459, %460, %461 : vector<15x16xi1>, vector<15x16xf32>
    %c2_i32_196 = arith.constant 2 : i32
    %463 = vector.broadcast %c2_i32_196 : i32 to vector<15x16xi32>
    %464 = arith.muli %463, %456 : vector<15x16xi32>
    %c1_i32 = arith.constant 1 : i32
    %465 = vector.broadcast %c1_i32 : i32 to vector<15x16xi32>
    %466 = arith.addi %464, %465 : vector<15x16xi32>
    %467 = arith.cmpi eq, %455, %466 : vector<15x16xi32>
    %cst_197 = arith.constant 1.000000e+00 : f32
    %cst_198 = arith.constant 0.000000e+00 : f32
    %468 = vector.broadcast %cst_197 : f32 to vector<15x16xf32>
    %469 = vector.broadcast %cst_198 : f32 to vector<15x16xf32>
    %470 = arith.select %467, %468, %469 : vector<15x16xi1>, vector<15x16xf32>
    %cst_199 = arith.constant dense<0.000000e+00> : vector<15x128xf32>
    %471 = tpu.matmul %462, %429, %cst_199 {dimension_numbers = #tpu.dot_dimension_numbers<[1], [0], [0], [1], [0, 0, 1, 1], [], []>} : vector<15x16xf32>, vector<16x128xf32>, vector<15x128xf32> -> vector<15x128xf32>
    %c0_200 = arith.constant 0 : index
    %c0_201 = arith.constant 0 : index
    %c0_202 = arith.constant 0 : index
    %472 = vector.load %arg11[%c0_200, %c0_201, %c0_202] : memref<2x15x128xf32, #tpu.memory_space<vmem>>, vector<1x15x128xf32>
    %473 = vector.shape_cast %472 : vector<1x15x128xf32> to vector<15x128xf32>
    %474 = vector.shape_cast %471 : vector<15x128xf32> to vector<1x15x128xf32>
    tpu.vector_store %arg11[%c0_200, %c0_201, %c0_202], %474 {strides = array<i32>} : memref<2x15x128xf32, #tpu.memory_space<vmem>>, vector<1x15x128xf32>,
    %cst_203 = arith.constant dense<0.000000e+00> : vector<15x128xf32>
    %475 = tpu.matmul %470, %429, %cst_203 {dimension_numbers = #tpu.dot_dimension_numbers<[1], [0], [0], [1], [0, 0, 1, 1], [], []>} : vector<15x16xf32>, vector<16x128xf32>, vector<15x128xf32> -> vector<15x128xf32>
    %c1_204 = arith.constant 1 : index
    %c0_205 = arith.constant 0 : index
    %c0_206 = arith.constant 0 : index
    %476 = vector.load %arg11[%c1_204, %c0_205, %c0_206] : memref<2x15x128xf32, #tpu.memory_space<vmem>>, vector<1x15x128xf32>
    %477 = vector.shape_cast %476 : vector<1x15x128xf32> to vector<15x128xf32>
    %478 = vector.shape_cast %475 : vector<15x128xf32> to vector<1x15x128xf32>
    tpu.vector_store %arg11[%c1_204, %c0_205, %c0_206], %478 {strides = array<i32>} : memref<2x15x128xf32, #tpu.memory_space<vmem>>, vector<1x15x128xf32>,
    return
  }
}

module attributes {stable_mosaic.version = 11 : i64} {
  func.func @head_kernel(%arg0: i32, %arg1: memref<2x15x128xf32, #tpu.memory_space<vmem>>, %arg2: memref<128x16xf32, #tpu.memory_space<vmem>>, %arg3: memref<1x16xf32, #tpu.memory_space<vmem>>, %arg4: memref<80x32xf32, #tpu.memory_space<vmem>>, %arg5: memref<1x32xf32, #tpu.memory_space<vmem>>, %arg6: memref<11x32x10xf32, #tpu.memory_space<vmem>>, %arg7: memref<1x10xf32, #tpu.memory_space<vmem>>, %arg8: memref<1x1x10xf32, #tpu.memory_space<vmem>>) attributes {dimension_semantics = [#tpu.dimension_semantics<parallel>], iteration_bounds = array<i64: 2>, scalar_prefetch = 0 : i64, scratch_operands = 0 : i64, tpu.core_type = #tpu.core_type<tc>, window_params = [{transform_indices = @transform_0, window_bounds = array<i64: 2, 15, 128>}, {pipeline_mode = #tpu.pipeline_mode<synchronous>, transform_indices = @transform_1, window_bounds = array<i64: 128, 16>}, {pipeline_mode = #tpu.pipeline_mode<synchronous>, transform_indices = @transform_2, window_bounds = array<i64: 1, 16>}, {pipeline_mode = #tpu.pipeline_mode<synchronous>, transform_indices = @transform_3, window_bounds = array<i64: 80, 32>}, {pipeline_mode = #tpu.pipeline_mode<synchronous>, transform_indices = @transform_4, window_bounds = array<i64: 1, 32>}, {pipeline_mode = #tpu.pipeline_mode<synchronous>, transform_indices = @transform_5, window_bounds = array<i64: 11, 32, 10>}, {pipeline_mode = #tpu.pipeline_mode<synchronous>, transform_indices = @transform_6, window_bounds = array<i64: 1, 10>}, {transform_indices = @transform_7, window_bounds = array<i64: 1, 1, 10>}]} {
    %c0 = arith.constant 0 : index
    %c0_0 = arith.constant 0 : index
    %c0_1 = arith.constant 0 : index
    %0 = vector.load %arg1[%c0, %c0_0, %c0_1] : memref<2x15x128xf32, #tpu.memory_space<vmem>>, vector<1x15x128xf32>
    %1 = vector.shape_cast %0 : vector<1x15x128xf32> to vector<15x128xf32>
    %c1 = arith.constant 1 : index
    %c0_2 = arith.constant 0 : index
    %c0_3 = arith.constant 0 : index
    %2 = vector.load %arg1[%c1, %c0_2, %c0_3] : memref<2x15x128xf32, #tpu.memory_space<vmem>>, vector<1x15x128xf32>
    %3 = vector.shape_cast %2 : vector<1x15x128xf32> to vector<15x128xf32>
    %c0_4 = arith.constant 0 : index
    %c0_5 = arith.constant 0 : index
    %4 = vector.load %arg2[%c0_4, %c0_5] : memref<128x16xf32, #tpu.memory_space<vmem>>, vector<128x16xf32>
    %cst = arith.constant dense<0.000000e+00> : vector<15x16xf32>
    %5 = tpu.matmul %1, %4, %cst {dimension_numbers = #tpu.dot_dimension_numbers<[1], [0], [0], [1], [0, 0, 1, 1], [], []>} : vector<15x128xf32>, vector<128x16xf32>, vector<15x16xf32> -> vector<15x16xf32>
    %c0_6 = arith.constant 0 : index
    %c0_7 = arith.constant 0 : index
    %6 = vector.load %arg3[%c0_6, %c0_7] : memref<1x16xf32, #tpu.memory_space<vmem>>, vector<1x16xf32>
    %7 = vector.broadcast %6 : vector<1x16xf32> to vector<15x16xf32>
    %8 = arith.addf %5, %7 : vector<15x16xf32>
    %c0_8 = arith.constant 0 : index
    %c0_9 = arith.constant 0 : index
    %9 = vector.load %arg2[%c0_8, %c0_9] : memref<128x16xf32, #tpu.memory_space<vmem>>, vector<128x16xf32>
    %cst_10 = arith.constant dense<0.000000e+00> : vector<15x16xf32>
    %10 = tpu.matmul %3, %9, %cst_10 {dimension_numbers = #tpu.dot_dimension_numbers<[1], [0], [0], [1], [0, 0, 1, 1], [], []>} : vector<15x128xf32>, vector<128x16xf32>, vector<15x16xf32> -> vector<15x16xf32>
    %c0_11 = arith.constant 0 : index
    %c0_12 = arith.constant 0 : index
    %11 = vector.load %arg3[%c0_11, %c0_12] : memref<1x16xf32, #tpu.memory_space<vmem>>, vector<1x16xf32>
    %12 = vector.broadcast %11 : vector<1x16xf32> to vector<15x16xf32>
    %13 = arith.addf %10, %12 : vector<15x16xf32>
    %14 = arith.maximumf %8, %13 : vector<15x16xf32>
    %cst_13 = arith.constant 0.000000e+00 : f32
    %15 = vector.broadcast %cst_13 : f32 to vector<15x16xf32>
    %16 = arith.maximumf %14, %15 : vector<15x16xf32>
    %17 = vector.extract_strided_slice %16 {offsets = [0, 0], sizes = [11, 16], strides = [1, 1]} : vector<15x16xf32> to vector<11x16xf32>
    %18 = vector.extract_strided_slice %16 {offsets = [1, 0], sizes = [11, 16], strides = [1, 1]} : vector<15x16xf32> to vector<11x16xf32>
    %19 = vector.extract_strided_slice %16 {offsets = [2, 0], sizes = [11, 16], strides = [1, 1]} : vector<15x16xf32> to vector<11x16xf32>
    %20 = vector.extract_strided_slice %16 {offsets = [3, 0], sizes = [11, 16], strides = [1, 1]} : vector<15x16xf32> to vector<11x16xf32>
    %21 = vector.extract_strided_slice %16 {offsets = [4, 0], sizes = [11, 16], strides = [1, 1]} : vector<15x16xf32> to vector<11x16xf32>
    %22 = tpu.concatenate %17, %18, %19, %20, %21 in 1 : vector<11x16xf32>, vector<11x16xf32>, vector<11x16xf32>, vector<11x16xf32>, vector<11x16xf32> -> vector<11x80xf32>
    %c0_14 = arith.constant 0 : index
    %c0_15 = arith.constant 0 : index
    %23 = vector.load %arg4[%c0_14, %c0_15] : memref<80x32xf32, #tpu.memory_space<vmem>>, vector<80x32xf32>
    %cst_16 = arith.constant dense<0.000000e+00> : vector<11x32xf32>
    %24 = tpu.matmul %22, %23, %cst_16 {dimension_numbers = #tpu.dot_dimension_numbers<[1], [0], [0], [1], [0, 0, 1, 1], [], []>} : vector<11x80xf32>, vector<80x32xf32>, vector<11x32xf32> -> vector<11x32xf32>
    %c0_17 = arith.constant 0 : index
    %c0_18 = arith.constant 0 : index
    %25 = vector.load %arg5[%c0_17, %c0_18] : memref<1x32xf32, #tpu.memory_space<vmem>>, vector<1x32xf32>
    %26 = vector.broadcast %25 : vector<1x32xf32> to vector<11x32xf32>
    %27 = arith.addf %24, %26 : vector<11x32xf32>
    %cst_19 = arith.constant 0.000000e+00 : f32
    %28 = vector.broadcast %cst_19 : f32 to vector<11x32xf32>
    %29 = arith.maximumf %27, %28 : vector<11x32xf32>
    %c0_20 = arith.constant 0 : index
    %c0_21 = arith.constant 0 : index
    %30 = vector.load %arg7[%c0_20, %c0_21] : memref<1x10xf32, #tpu.memory_space<vmem>>, vector<1x10xf32>
    %31 = vector.extract_strided_slice %29 {offsets = [0, 0], sizes = [1, 32], strides = [1, 1]} : vector<11x32xf32> to vector<1x32xf32>
    %c0_22 = arith.constant 0 : index
    %c0_23 = arith.constant 0 : index
    %c0_24 = arith.constant 0 : index
    %32 = vector.load %arg6[%c0_22, %c0_23, %c0_24] : memref<11x32x10xf32, #tpu.memory_space<vmem>>, vector<1x32x10xf32>
    %33 = vector.shape_cast %32 : vector<1x32x10xf32> to vector<32x10xf32>
    %cst_25 = arith.constant dense<0.000000e+00> : vector<1x10xf32>
    %34 = tpu.matmul %31, %33, %cst_25 {dimension_numbers = #tpu.dot_dimension_numbers<[1], [0], [0], [1], [0, 0, 1, 1], [], []>} : vector<1x32xf32>, vector<32x10xf32>, vector<1x10xf32> -> vector<1x10xf32>
    %35 = arith.addf %30, %34 : vector<1x10xf32>
    %36 = vector.extract_strided_slice %29 {offsets = [1, 0], sizes = [1, 32], strides = [1, 1]} : vector<11x32xf32> to vector<1x32xf32>
    %c1_26 = arith.constant 1 : index
    %c0_27 = arith.constant 0 : index
    %c0_28 = arith.constant 0 : index
    %37 = vector.load %arg6[%c1_26, %c0_27, %c0_28] : memref<11x32x10xf32, #tpu.memory_space<vmem>>, vector<1x32x10xf32>
    %38 = vector.shape_cast %37 : vector<1x32x10xf32> to vector<32x10xf32>
    %cst_29 = arith.constant dense<0.000000e+00> : vector<1x10xf32>
    %39 = tpu.matmul %36, %38, %cst_29 {dimension_numbers = #tpu.dot_dimension_numbers<[1], [0], [0], [1], [0, 0, 1, 1], [], []>} : vector<1x32xf32>, vector<32x10xf32>, vector<1x10xf32> -> vector<1x10xf32>
    %40 = arith.addf %35, %39 : vector<1x10xf32>
    %41 = vector.extract_strided_slice %29 {offsets = [2, 0], sizes = [1, 32], strides = [1, 1]} : vector<11x32xf32> to vector<1x32xf32>
    %c2 = arith.constant 2 : index
    %c0_30 = arith.constant 0 : index
    %c0_31 = arith.constant 0 : index
    %42 = vector.load %arg6[%c2, %c0_30, %c0_31] : memref<11x32x10xf32, #tpu.memory_space<vmem>>, vector<1x32x10xf32>
    %43 = vector.shape_cast %42 : vector<1x32x10xf32> to vector<32x10xf32>
    %cst_32 = arith.constant dense<0.000000e+00> : vector<1x10xf32>
    %44 = tpu.matmul %41, %43, %cst_32 {dimension_numbers = #tpu.dot_dimension_numbers<[1], [0], [0], [1], [0, 0, 1, 1], [], []>} : vector<1x32xf32>, vector<32x10xf32>, vector<1x10xf32> -> vector<1x10xf32>
    %45 = arith.addf %40, %44 : vector<1x10xf32>
    %46 = vector.extract_strided_slice %29 {offsets = [3, 0], sizes = [1, 32], strides = [1, 1]} : vector<11x32xf32> to vector<1x32xf32>
    %c3 = arith.constant 3 : index
    %c0_33 = arith.constant 0 : index
    %c0_34 = arith.constant 0 : index
    %47 = vector.load %arg6[%c3, %c0_33, %c0_34] : memref<11x32x10xf32, #tpu.memory_space<vmem>>, vector<1x32x10xf32>
    %48 = vector.shape_cast %47 : vector<1x32x10xf32> to vector<32x10xf32>
    %cst_35 = arith.constant dense<0.000000e+00> : vector<1x10xf32>
    %49 = tpu.matmul %46, %48, %cst_35 {dimension_numbers = #tpu.dot_dimension_numbers<[1], [0], [0], [1], [0, 0, 1, 1], [], []>} : vector<1x32xf32>, vector<32x10xf32>, vector<1x10xf32> -> vector<1x10xf32>
    %50 = arith.addf %45, %49 : vector<1x10xf32>
    %51 = vector.extract_strided_slice %29 {offsets = [4, 0], sizes = [1, 32], strides = [1, 1]} : vector<11x32xf32> to vector<1x32xf32>
    %c4 = arith.constant 4 : index
    %c0_36 = arith.constant 0 : index
    %c0_37 = arith.constant 0 : index
    %52 = vector.load %arg6[%c4, %c0_36, %c0_37] : memref<11x32x10xf32, #tpu.memory_space<vmem>>, vector<1x32x10xf32>
    %53 = vector.shape_cast %52 : vector<1x32x10xf32> to vector<32x10xf32>
    %cst_38 = arith.constant dense<0.000000e+00> : vector<1x10xf32>
    %54 = tpu.matmul %51, %53, %cst_38 {dimension_numbers = #tpu.dot_dimension_numbers<[1], [0], [0], [1], [0, 0, 1, 1], [], []>} : vector<1x32xf32>, vector<32x10xf32>, vector<1x10xf32> -> vector<1x10xf32>
    %55 = arith.addf %50, %54 : vector<1x10xf32>
    %56 = vector.extract_strided_slice %29 {offsets = [5, 0], sizes = [1, 32], strides = [1, 1]} : vector<11x32xf32> to vector<1x32xf32>
    %c5 = arith.constant 5 : index
    %c0_39 = arith.constant 0 : index
    %c0_40 = arith.constant 0 : index
    %57 = vector.load %arg6[%c5, %c0_39, %c0_40] : memref<11x32x10xf32, #tpu.memory_space<vmem>>, vector<1x32x10xf32>
    %58 = vector.shape_cast %57 : vector<1x32x10xf32> to vector<32x10xf32>
    %cst_41 = arith.constant dense<0.000000e+00> : vector<1x10xf32>
    %59 = tpu.matmul %56, %58, %cst_41 {dimension_numbers = #tpu.dot_dimension_numbers<[1], [0], [0], [1], [0, 0, 1, 1], [], []>} : vector<1x32xf32>, vector<32x10xf32>, vector<1x10xf32> -> vector<1x10xf32>
    %60 = arith.addf %55, %59 : vector<1x10xf32>
    %61 = vector.extract_strided_slice %29 {offsets = [6, 0], sizes = [1, 32], strides = [1, 1]} : vector<11x32xf32> to vector<1x32xf32>
    %c6 = arith.constant 6 : index
    %c0_42 = arith.constant 0 : index
    %c0_43 = arith.constant 0 : index
    %62 = vector.load %arg6[%c6, %c0_42, %c0_43] : memref<11x32x10xf32, #tpu.memory_space<vmem>>, vector<1x32x10xf32>
    %63 = vector.shape_cast %62 : vector<1x32x10xf32> to vector<32x10xf32>
    %cst_44 = arith.constant dense<0.000000e+00> : vector<1x10xf32>
    %64 = tpu.matmul %61, %63, %cst_44 {dimension_numbers = #tpu.dot_dimension_numbers<[1], [0], [0], [1], [0, 0, 1, 1], [], []>} : vector<1x32xf32>, vector<32x10xf32>, vector<1x10xf32> -> vector<1x10xf32>
    %65 = arith.addf %60, %64 : vector<1x10xf32>
    %66 = vector.extract_strided_slice %29 {offsets = [7, 0], sizes = [1, 32], strides = [1, 1]} : vector<11x32xf32> to vector<1x32xf32>
    %c7 = arith.constant 7 : index
    %c0_45 = arith.constant 0 : index
    %c0_46 = arith.constant 0 : index
    %67 = vector.load %arg6[%c7, %c0_45, %c0_46] : memref<11x32x10xf32, #tpu.memory_space<vmem>>, vector<1x32x10xf32>
    %68 = vector.shape_cast %67 : vector<1x32x10xf32> to vector<32x10xf32>
    %cst_47 = arith.constant dense<0.000000e+00> : vector<1x10xf32>
    %69 = tpu.matmul %66, %68, %cst_47 {dimension_numbers = #tpu.dot_dimension_numbers<[1], [0], [0], [1], [0, 0, 1, 1], [], []>} : vector<1x32xf32>, vector<32x10xf32>, vector<1x10xf32> -> vector<1x10xf32>
    %70 = arith.addf %65, %69 : vector<1x10xf32>
    %71 = vector.extract_strided_slice %29 {offsets = [8, 0], sizes = [1, 32], strides = [1, 1]} : vector<11x32xf32> to vector<1x32xf32>
    %c8 = arith.constant 8 : index
    %c0_48 = arith.constant 0 : index
    %c0_49 = arith.constant 0 : index
    %72 = vector.load %arg6[%c8, %c0_48, %c0_49] : memref<11x32x10xf32, #tpu.memory_space<vmem>>, vector<1x32x10xf32>
    %73 = vector.shape_cast %72 : vector<1x32x10xf32> to vector<32x10xf32>
    %cst_50 = arith.constant dense<0.000000e+00> : vector<1x10xf32>
    %74 = tpu.matmul %71, %73, %cst_50 {dimension_numbers = #tpu.dot_dimension_numbers<[1], [0], [0], [1], [0, 0, 1, 1], [], []>} : vector<1x32xf32>, vector<32x10xf32>, vector<1x10xf32> -> vector<1x10xf32>
    %75 = arith.addf %70, %74 : vector<1x10xf32>
    %76 = vector.extract_strided_slice %29 {offsets = [9, 0], sizes = [1, 32], strides = [1, 1]} : vector<11x32xf32> to vector<1x32xf32>
    %c9 = arith.constant 9 : index
    %c0_51 = arith.constant 0 : index
    %c0_52 = arith.constant 0 : index
    %77 = vector.load %arg6[%c9, %c0_51, %c0_52] : memref<11x32x10xf32, #tpu.memory_space<vmem>>, vector<1x32x10xf32>
    %78 = vector.shape_cast %77 : vector<1x32x10xf32> to vector<32x10xf32>
    %cst_53 = arith.constant dense<0.000000e+00> : vector<1x10xf32>
    %79 = tpu.matmul %76, %78, %cst_53 {dimension_numbers = #tpu.dot_dimension_numbers<[1], [0], [0], [1], [0, 0, 1, 1], [], []>} : vector<1x32xf32>, vector<32x10xf32>, vector<1x10xf32> -> vector<1x10xf32>
    %80 = arith.addf %75, %79 : vector<1x10xf32>
    %81 = vector.extract_strided_slice %29 {offsets = [10, 0], sizes = [1, 32], strides = [1, 1]} : vector<11x32xf32> to vector<1x32xf32>
    %c10 = arith.constant 10 : index
    %c0_54 = arith.constant 0 : index
    %c0_55 = arith.constant 0 : index
    %82 = vector.load %arg6[%c10, %c0_54, %c0_55] : memref<11x32x10xf32, #tpu.memory_space<vmem>>, vector<1x32x10xf32>
    %83 = vector.shape_cast %82 : vector<1x32x10xf32> to vector<32x10xf32>
    %cst_56 = arith.constant dense<0.000000e+00> : vector<1x10xf32>
    %84 = tpu.matmul %81, %83, %cst_56 {dimension_numbers = #tpu.dot_dimension_numbers<[1], [0], [0], [1], [0, 0, 1, 1], [], []>} : vector<1x32xf32>, vector<32x10xf32>, vector<1x10xf32> -> vector<1x10xf32>
    %85 = arith.addf %80, %84 : vector<1x10xf32>
    %cst_57 = arith.constant 0.000000e+00 : f32
    %86 = vector.broadcast %cst_57 : f32 to vector<1x10xf32>
    %87 = arith.maximumf %85, %86 : vector<1x10xf32>
    %c0_58 = arith.constant 0 : index
    %c0_59 = arith.constant 0 : index
    %c0_60 = arith.constant 0 : index
    %88 = vector.load %arg8[%c0_58, %c0_59, %c0_60] : memref<1x1x10xf32, #tpu.memory_space<vmem>>, vector<1x1x10xf32>
    %89 = vector.shape_cast %88 : vector<1x1x10xf32> to vector<1x10xf32>
    %90 = vector.shape_cast %87 : vector<1x10xf32> to vector<1x1x10xf32>
    tpu.vector_store %arg8[%c0_58, %c0_59, %c0_60], %90 {strides = array<i32>} : memref<1x1x10xf32, #tpu.memory_space<vmem>>, vector<1x1x10xf32>,
    return
  }
  func.func @transform_0(%arg0: i32) -> (i32, i32, i32) {
    %c0_i32 = arith.constant 0 : i32
    %c0_i32_0 = arith.constant 0 : i32
    %c0_i32_1 = arith.constant 0 : i32
    return %arg0, %c0_i32, %c0_i32_0 : i32, i32, i32
  }
  func.func @transform_1(%arg0: i32) -> (i32, i32) {
    %c0_i32 = arith.constant 0 : i32
    %c0_i32_0 = arith.constant 0 : i32
    %c0_i32_1 = arith.constant 0 : i32
    return %c0_i32, %c0_i32_0 : i32, i32
  }
  func.func @transform_2(%arg0: i32) -> (i32, i32) {
    %c0_i32 = arith.constant 0 : i32
    %c0_i32_0 = arith.constant 0 : i32
    %c0_i32_1 = arith.constant 0 : i32
    return %c0_i32, %c0_i32_0 : i32, i32
  }
  func.func @transform_3(%arg0: i32) -> (i32, i32) {
    %c0_i32 = arith.constant 0 : i32
    %c0_i32_0 = arith.constant 0 : i32
    %c0_i32_1 = arith.constant 0 : i32
    return %c0_i32, %c0_i32_0 : i32, i32
  }
  func.func @transform_4(%arg0: i32) -> (i32, i32) {
    %c0_i32 = arith.constant 0 : i32
    %c0_i32_0 = arith.constant 0 : i32
    %c0_i32_1 = arith.constant 0 : i32
    return %c0_i32, %c0_i32_0 : i32, i32
  }
  func.func @transform_5(%arg0: i32) -> (i32, i32, i32) {
    %c0_i32 = arith.constant 0 : i32
    %c0_i32_0 = arith.constant 0 : i32
    %c0_i32_1 = arith.constant 0 : i32
    %c0_i32_2 = arith.constant 0 : i32
    return %c0_i32, %c0_i32_0, %c0_i32_1 : i32, i32, i32
  }
  func.func @transform_6(%arg0: i32) -> (i32, i32) {
    %c0_i32 = arith.constant 0 : i32
    %c0_i32_0 = arith.constant 0 : i32
    %c0_i32_1 = arith.constant 0 : i32
    return %c0_i32, %c0_i32_0 : i32, i32
  }
  func.func @transform_7(%arg0: i32) -> (i32, i32, i32) {
    %c0_i32 = arith.constant 0 : i32
    %c0_i32_0 = arith.constant 0 : i32
    %c0_i32_1 = arith.constant 0 : i32
    return %arg0, %c0_i32, %c0_i32_0 : i32, i32, i32
  }
}

</mosaic_0001>

<llo_original>
// kernel: gunet_forward.5
$region0: #{gunet_forward.5}
  #allocation0 [shape = 'u32[]', space=smem, size = 0x4, offset = 0x4, fixed_abs, tag = 'smem constant byte address 0x4 - core index']
  #allocation1 [shape = 'u32[72,128]{1,0:T(1,128)}', space=vmem, size = 0x9000, scoped, tag = 'internal scratch']
  %s0 = inlined_call_operand.vmem [shape: f32[4,15,128], index: 0, kind: input, shape index: {}]
  %s1 = inlined_call_operand.vmem [shape: f32[128,16], index: 1, kind: input, shape index: {}]
  %s2 = inlined_call_operand.vmem [shape: f32[1,16], index: 2, kind: input, shape index: {}]
  %s3 = inlined_call_operand.vmem [shape: f32[80,32], index: 3, kind: input, shape index: {}]
  %s4 = inlined_call_operand.vmem [shape: f32[1,32], index: 4, kind: input, shape index: {}]
  %s5 = inlined_call_operand.vmem [shape: f32[11,32,10], index: 5, kind: input, shape index: {}]
  %s6 = inlined_call_operand.vmem [shape: f32[1,10], index: 6, kind: input, shape index: {}]
  %s7 = inlined_call_operand.hbm [shape: f32[2,1,10], index: 7, kind: output, shape index: {}]
  %s8 = sld [smem:[#allocation0]]
  $region61: #{gunet_forward.5} parent=0
    _
  %s10 = ssub.s32 1, %s8
  %s11 = scalar_select 0, %s10, %s8
  $region1: #{gunet_forward.5} parent=0
    #allocation2 [shape = 'u8[1024]{0}', space=vmem, size = 0x400, scoped, tag = 'output window, operand 0']
    #allocation3 [shape = 's32[2]{0}', space=sflag, size = 0x8, scoped, tag = 'scoped memory for gunet_forward.5']
    %12 = vsyncpa [#allocation3], 0
    %s13 = scalar_lea.sflag [#allocation3], 1
    %14 = vsyncpa %s13, 0
    loop: start=0, step=1, limit=4
    $region2: #{gunet_forward.5} parent=1 // loop_pre_header
      _
    $region3: #{gunet_forward.5} parent=1 // loop_header
      %s16 = sphi 0, %s20
      %p17 = scmp.ge.s32.totalorder %s16, 4
      %s26 = sphi 0, %s28
      %s29 = sphi 0, %s26
      %s30 = sphi 0, %s29
      %s46 = sphi 0, %s30
      %s50 = sphi 0, %s50
      %s52 = sphi 0, %s50
      %s53 = sphi 0, %s52
      %s67 = sphi 0, %s53
      %s71 = sphi 0, %s71
      %s73 = sphi 0, %s71
      %s74 = sphi 0, %s73
      %s88 = sphi 0, %s74
      %s92 = sphi 0, %s92
      %s94 = sphi 0, %s92
      %s95 = sphi 0, %s94
      %s109 = sphi 0, %s95
      %s113 = sphi 0, %s113
      %s115 = sphi 0, %s113
      %s116 = sphi 0, %s115
      %s130 = sphi 0, %s116
      %s134 = sphi 0, %s134
      %s136 = sphi 0, %s134
      %s137 = sphi 0, %s136
      %s151 = sphi 0, %s137
      %s155 = sphi 0, %s155
      %s157 = sphi 0, %s155
      %s158 = sphi 0, %s157
      %s172 = sphi 0, %s158
      %s178 = sphi 0, %s180
      %s181 = sphi 0, %s178
      %s182 = sphi 0, %s181
      %s198 = sphi 0, %s182
    $region4: #{gunet_forward.5} parent=1 // loop_header_branch
      %19 = sbr.rel (%p17) target = $region8
    $region5: #{gunet_forward.5} parent=1 // loop_body
      %s21 = ssub.s32 %s16, 1
      %s22 = ssub.s32 %s16, 2
      %s23 = sadd.s32 %s16, 1
      %s24 = ssub.s32 %s16, %s23
      %p25 = scmp.eq.s32.totalorder %s24, 0
      %s27 = sadd.s32 %s26, 1
      %s28 = scalar_select %p25, %s26, %s27
      %p31 = pneg %p25
      %p32 = scmp.eq.s32.totalorder %s16, 1
      %p33 = por %p31, %p32
      %p34 = scmp.ne.s32.totalorder %s26, %s29
      %p35 = scmp.eq.s32.totalorder %s16, 0
      %p36 = por %p34, %p35
      %p37 = scmp.ne.s32.totalorder %s26, %s29
      %p38 = scmp.eq.s32.totalorder %s21, 1
      %p39 = por %p37, %p38
      %p40 = scmp.ne.s32.totalorder %s29, %s30
      %p41 = scmp.eq.s32.totalorder %s21, 0
      %p42 = por %p40, %p41
      %p43 = scmp.ne.s32.totalorder %s29, %s30
      %p44 = scmp.eq.s32.totalorder %s22, 1
      %p45 = por %p43, %p44
      %p47 = scmp.ne.s32.totalorder %s30, %s46
      %p48 = scmp.eq.s32.totalorder %s22, 0
      %p49 = por %p47, %p48
      %s51 = sadd.s32 %s50, 1
      %p54 = scmp.eq.s32.totalorder %s16, 1
      %p55 = scmp.ne.s32.totalorder %s50, %s52
      %p56 = scmp.eq.s32.totalorder %s16, 0
      %p57 = por %p55, %p56
      %p58 = scmp.ne.s32.totalorder %s50, %s52
      %p59 = scmp.eq.s32.totalorder %s21, 1
      %p60 = por %p58, %p59
      %p61 = scmp.ne.s32.totalorder %s52, %s53
      %p62 = scmp.eq.s32.totalorder %s21, 0
      %p63 = por %p61, %p62
      %p64 = scmp.ne.s32.totalorder %s52, %s53
      %p65 = scmp.eq.s32.totalorder %s22, 1
      %p66 = por %p64, %p65
      %p68 = scmp.ne.s32.totalorder %s53, %s67
      %p69 = scmp.eq.s32.totalorder %s22, 0
      %p70 = por %p68, %p69
      %s72 = sadd.s32 %s71, 1
      %p75 = scmp.eq.s32.totalorder %s16, 1
      %p76 = scmp.ne.s32.totalorder %s71, %s73
      %p77 = scmp.eq.s32.totalorder %s16, 0
      %p78 = por %p76, %p77
      %p79 = scmp.ne.s32.totalorder %s71, %s73
      %p80 = scmp.eq.s32.totalorder %s21, 1
      %p81 = por %p79, %p80
      %p82 = scmp.ne.s32.totalorder %s73, %s74
      %p83 = scmp.eq.s32.totalorder %s21, 0
      %p84 = por %p82, %p83
      %p85 = scmp.ne.s32.totalorder %s73, %s74
      %p86 = scmp.eq.s32.totalorder %s22, 1
      %p87 = por %p85, %p86
      %p89 = scmp.ne.s32.totalorder %s74, %s88
      %p90 = scmp.eq.s32.totalorder %s22, 0
      %p91 = por %p89, %p90
      %s93 = sadd.s32 %s92, 1
      %p96 = scmp.eq.s32.totalorder %s16, 1
      %p97 = scmp.ne.s32.totalorder %s92, %s94
      %p98 = scmp.eq.s32.totalorder %s16, 0
      %p99 = por %p97, %p98
      %p100 = scmp.ne.s32.totalorder %s92, %s94
      %p101 = scmp.eq.s32.totalorder %s21, 1
      %p102 = por %p100, %p101
      %p103 = scmp.ne.s32.totalorder %s94, %s95
      %p104 = scmp.eq.s32.totalorder %s21, 0
      %p105 = por %p103, %p104
      %p106 = scmp.ne.s32.totalorder %s94, %s95
      %p107 = scmp.eq.s32.totalorder %s22, 1
      %p108 = por %p106, %p107
      %p110 = scmp.ne.s32.totalorder %s95, %s109
      %p111 = scmp.eq.s32.totalorder %s22, 0
      %p112 = por %p110, %p111
      %s114 = sadd.s32 %s113, 1
      %p117 = scmp.eq.s32.totalorder %s16, 1
      %p118 = scmp.ne.s32.totalorder %s113, %s115
      %p119 = scmp.eq.s32.totalorder %s16, 0
      %p120 = por %p118, %p119
      %p121 = scmp.ne.s32.totalorder %s113, %s115
      %p122 = scmp.eq.s32.totalorder %s21, 1
      %p123 = por %p121, %p122
      %p124 = scmp.ne.s32.totalorder %s115, %s116
      %p125 = scmp.eq.s32.totalorder %s21, 0
      %p126 = por %p124, %p125
      %p127 = scmp.ne.s32.totalorder %s115, %s116
      %p128 = scmp.eq.s32.totalorder %s22, 1
      %p129 = por %p127, %p128
      %p131 = scmp.ne.s32.totalorder %s116, %s130
      %p132 = scmp.eq.s32.totalorder %s22, 0
      %p133 = por %p131, %p132
      %s135 = sadd.s32 %s134, 1
      %p138 = scmp.eq.s32.totalorder %s16, 1
      %p139 = scmp.ne.s32.totalorder %s134, %s136
      %p140 = scmp.eq.s32.totalorder %s16, 0
      %p141 = por %p139, %p140
      %p142 = scmp.ne.s32.totalorder %s134, %s136
      %p143 = scmp.eq.s32.totalorder %s21, 1
      %p144 = por %p142, %p143
      %p145 = scmp.ne.s32.totalorder %s136, %s137
      %p146 = scmp.eq.s32.totalorder %s21, 0
      %p147 = por %p145, %p146
      %p148 = scmp.ne.s32.totalorder %s136, %s137
      %p149 = scmp.eq.s32.totalorder %s22, 1
      %p150 = por %p148, %p149
      %p152 = scmp.ne.s32.totalorder %s137, %s151
      %p153 = scmp.eq.s32.totalorder %s22, 0
      %p154 = por %p152, %p153
      %s156 = sadd.s32 %s155, 1
      %p159 = scmp.eq.s32.totalorder %s16, 1
      %p160 = scmp.ne.s32.totalorder %s155, %s157
      %p161 = scmp.eq.s32.totalorder %s16, 0
      %p162 = por %p160, %p161
      %p163 = scmp.ne.s32.totalorder %s155, %s157
      %p164 = scmp.eq.s32.totalorder %s21, 1
      %p165 = por %p163, %p164
      %p166 = scmp.ne.s32.totalorder %s157, %s158
      %p167 = scmp.eq.s32.totalorder %s21, 0
      %p168 = por %p166, %p167
      %p169 = scmp.ne.s32.totalorder %s157, %s158
      %p170 = scmp.eq.s32.totalorder %s22, 1
      %p171 = por %p169, %p170
      %p173 = scmp.ne.s32.totalorder %s158, %s172
      %p174 = scmp.eq.s32.totalorder %s22, 0
      %p175 = por %p173, %p174
      %s176 = ssub.s32 %s16, %s23
      %p177 = scmp.eq.s32.totalorder %s176, 0
      %s179 = sadd.s32 %s178, 1
      %s180 = scalar_select %p177, %s178, %s179
      %p183 = pneg %p177
      %p184 = scmp.eq.s32.totalorder %s16, 1
      %p185 = por %p183, %p184
      %p186 = scmp.ne.s32.totalorder %s178, %s181
      %p187 = scmp.eq.s32.totalorder %s16, 0
      %p188 = por %p186, %p187
      %p189 = scmp.ne.s32.totalorder %s178, %s181
      %p190 = scmp.eq.s32.totalorder %s21, 1
      %p191 = por %p189, %p190
      %p192 = scmp.ne.s32.totalorder %s181, %s182
      %p193 = scmp.eq.s32.totalorder %s21, 0
      %p194 = por %p192, %p193
      %p195 = scmp.ne.s32.totalorder %s181, %s182
      %p196 = scmp.eq.s32.totalorder %s22, 1
      %p197 = por %p195, %p196
      %p199 = scmp.ne.s32.totalorder %s182, %s198
      %p200 = scmp.eq.s32.totalorder %s22, 0
      %p201 = por %p199, %p200
      %p202 = scmp.le.s32.totalorder 1, %s16
      %p203 = scmp.lt.s32.totalorder %s16, 3
      %p204 = pnand %p202, %p203
      %p205 = pneg %p204
      // Predicated region
      $region9: #{gunet_forward.5} parent=5 // pred_check
        _
      $region10: #{gunet_forward.5} parent=5 // pred_check_branch
        %207 = sbr.rel (%p204) target = $region12
      $region11: #{gunet_forward.5} parent=5 // pred_region
        %s208 = ssub.s32 %s16, 1
        // Predicated region
        $region13: #{gunet_forward.5} parent=11 // pred_check
          %p209 = pneg %p63
        $region14: #{gunet_forward.5} parent=11 // pred_check_branch
          %211 = sbr.rel (%p209) target = $region16
        $region15: #{gunet_forward.5} parent=11 // pred_region
          _
        $region16: #{gunet_forward.5} parent=11 // pred_fallthru
          _
        // Predicated region
        $region17: #{gunet_forward.5} parent=11 // pred_check
          %p212 = pneg %p84
        $region18: #{gunet_forward.5} parent=11 // pred_check_branch
          %214 = sbr.rel (%p212) target = $region20
        $region19: #{gunet_forward.5} parent=11 // pred_region
          _
        $region20: #{gunet_forward.5} parent=11 // pred_fallthru
          _
        // Predicated region
        $region21: #{gunet_forward.5} parent=11 // pred_check
          %p215 = pneg %p105
        $region22: #{gunet_forward.5} parent=11 // pred_check_branch
          %217 = sbr.rel (%p215) target = $region24
        $region23: #{gunet_forward.5} parent=11 // pred_region
          _
        $region24: #{gunet_forward.5} parent=11 // pred_fallthru
          _
        // Predicated region
        $region25: #{gunet_forward.5} parent=11 // pred_check
          %p218 = pneg %p126
        $region26: #{gunet_forward.5} parent=11 // pred_check_branch
          %220 = sbr.rel (%p218) target = $region28
        $region27: #{gunet_forward.5} parent=11 // pred_region
          _
        $region28: #{gunet_forward.5} parent=11 // pred_fallthru
          _
        // Predicated region
        $region29: #{gunet_forward.5} parent=11 // pred_check
          %p221 = pneg %p147
        $region30: #{gunet_forward.5} parent=11 // pred_check_branch
          %223 = sbr.rel (%p221) target = $region32
        $region31: #{gunet_forward.5} parent=11 // pred_region
          _
        $region32: #{gunet_forward.5} parent=11 // pred_fallthru
          _
        // Predicated region
        $region33: #{gunet_forward.5} parent=11 // pred_check
          %p224 = pneg %p168
        $region34: #{gunet_forward.5} parent=11 // pred_check_branch
          %226 = sbr.rel (%p224) target = $region36
        $region35: #{gunet_forward.5} parent=11 // pred_region
          _
        $region36: #{gunet_forward.5} parent=11 // pred_fallthru
          _
      $region12: #{gunet_forward.5} parent=5 // pred_fallthru
        _
      %p227 = scmp.lt.s32.totalorder %s16, 2
      // Predicated region
      $region37: #{gunet_forward.5} parent=5 // pred_check
        %p228 = pneg %p227
      $region38: #{gunet_forward.5} parent=5 // pred_check_branch
        %230 = sbr.rel (%p228) target = $region40
      $region39: #{gunet_forward.5} parent=5 // pred_region
        // Predicated region
        $region41: #{gunet_forward.5} parent=39 // pred_check
          %p231 = pneg %p36
        $region42: #{gunet_forward.5} parent=39 // pred_check_branch
          %233 = sbr.rel (%p231) target = $region44
        $region43: #{gunet_forward.5} parent=39 // pred_region
          %s234 = smul.u32 2, %s16
          %p235 = scmp.lt.s32.totalorder %s234, 3
          %s236 = scalar_select %p235, %s234, 3
          %s237 = smul.addr %s236, 2
          %s238 = smul.addr %s237, 8
          %s239 = scalar_lea.vmem %s0, %s238
          %s240 = smul.u32 2, %s16
        $region44: #{gunet_forward.5} parent=39 // pred_fallthru
          _
      $region40: #{gunet_forward.5} parent=5 // pred_fallthru
        _
      %p241 = scmp.le.s32.totalorder 1, %s16
      %p242 = scmp.lt.s32.totalorder %s16, 3
      %p243 = pnand %p241, %p242
      %p244 = pneg %p243
      // Predicated region
      $region45: #{gunet_forward.5} parent=5 // pred_check
        _
      $region46: #{gunet_forward.5} parent=5 // pred_check_branch
        %246 = sbr.rel (%p243) target = $region48
      $region47: #{gunet_forward.5} parent=5 // pred_region
        %s247 = ssub.s32 %s16, 1
        %s248 = smul.u32 2, %s21
        %p249 = scmp.lt.s32.totalorder %s248, 3
        %s250 = scalar_select %p249, %s248, 3
        %s251 = smul.addr %s250, 2
        %s252 = smul.addr %s251, 8
        %s253 = scalar_lea.vmem %s0, %s252
        %p254 = pneg %p42
        %p255 = pneg %p39
        %p256 = pneg %p63
        %p257 = pneg %p60
        %p258 = pneg %p84
        %p259 = pneg %p81
        %p260 = pneg %p105
        %p261 = pneg %p102
        %p262 = pneg %p126
        %p263 = pneg %p123
        %p264 = pneg %p147
        %p265 = pneg %p144
        %p266 = pneg %p168
        %p267 = pneg %p165
        %p268 = pneg %p194
        %p269 = pneg %p191
        %s270 = sand.u32 %s181, 1
        %s271 = scalar_lea.sflag [#allocation3], %s270
        %s272 = sand.u32 %s181, 1
        %s273 = scalar_lea.vmem [#allocation2], %s272
        %s274 = smul.u32 2, %s21
        %p275 = scmp.lt.s32.totalorder %s274, 3
        %s276 = scalar_select %p275, %s274, 3
        %s277 = smul.addr %s276, 2
        %s278 = smul.addr %s277, 8
        %s279 = scalar_lea.vmem %s0, %s278
        %s280 = smul.u32 2, %s21
        %v281 = vld [vmem:[%s279] sm:$0xff]
        %v282 = vld [vmem:[%s279 + $0x8] sm:$0x7f]
        %s283 = scalar_lea.vmem %s279, 16
        %v284 = vld [vmem:[%s283] sm:$0xff]
        %v285 = vld [vmem:[%s283 + $0x8] sm:$0x7f]
        %v286 = vld [vmem:[%s1] sm:$0xff]
        %v287 = vld [vmem:[%s1 + $0x8] sm:$0xff]
        %v288 = vld [vmem:[%s1 + $0x10] sm:$0xff]
        %v289 = vld [vmem:[%s1 + $0x18] sm:$0xff]
        %v290 = vld [vmem:[%s1 + $0x20] sm:$0xff]
        %v291 = vld [vmem:[%s1 + $0x28] sm:$0xff]
        %v292 = vld [vmem:[%s1 + $0x30] sm:$0xff]
        %v293 = vld [vmem:[%s1 + $0x38] sm:$0xff]
        %v294 = vld [vmem:[%s1 + $0x40] sm:$0xff]
        %v295 = vld [vmem:[%s1 + $0x48] sm:$0xff]
        %v296 = vld [vmem:[%s1 + $0x50] sm:$0xff]
        %v297 = vld [vmem:[%s1 + $0x58] sm:$0xff]
        %v298 = vld [vmem:[%s1 + $0x60] sm:$0xff]
        %v299 = vld [vmem:[%s1 + $0x68] sm:$0xff]
        %v300 = vld [vmem:[%s1 + $0x70] sm:$0xff]
        %v301 = vld [vmem:[%s1 + $0x78] sm:$0xff]
        %v302 = vld [vmem:[%s2] sm:$0x1]
        %v304 = vperm.slane %v302, 0
        %306 = vmatpush.msra.mxu0 %v301
        %307 = vmatpush.msra.mxu0 %v300
        %308 = vmatpush.msra.mxu0 %v299
        %309 = vmatpush.msra.mxu0 %v298
        %310 = vmatpush.msra.mxu0 %v297
        %311 = vmatpush.msra.mxu0 %v296
        %312 = vmatpush.msra.mxu0 %v295
        %313 = vmatpush.msra.mxu0 %v294
        %314 = vmatpush.msra.mxu0 %v293
        %315 = vmatpush.msra.mxu0 %v292
        %316 = vmatpush.msra.mxu0 %v291
        %317 = vmatpush.msra.mxu0 %v290
        %318 = vmatpush.msra.mxu0 %v289
        %319 = vmatpush.msra.mxu0 %v288
        %320 = vmatpush.msra.mxu0 %v287
        %321 = vmatpush.msra.mxu0 %v286
        %322 = vmatmul.f32.gmra.mxu0 %v281
        %v323 = vpop.f32.mrf.mxu0
        %v324 = vadd.f32 %v304, %v323
        %325 = vmatmul.f32.gmra.mxu0 %v282
        %v326 = vpop.f32.mrf.mxu0
        %v327 = vadd.f32 %v304, %v326
        %328 = vdwg.mxu0
        %329 = vmatpush.msra.mxu0 %v301
        %330 = vmatpush.msra.mxu0 %v300
        %331 = vmatpush.msra.mxu0 %v299
        %332 = vmatpush.msra.mxu0 %v298
        %333 = vmatpush.msra.mxu0 %v297
        %334 = vmatpush.msra.mxu0 %v296
        %335 = vmatpush.msra.mxu0 %v295
        %336 = vmatpush.msra.mxu0 %v294
        %337 = vmatpush.msra.mxu0 %v293
        %338 = vmatpush.msra.mxu0 %v292
        %339 = vmatpush.msra.mxu0 %v291
        %340 = vmatpush.msra.mxu0 %v290
        %341 = vmatpush.msra.mxu0 %v289
        %342 = vmatpush.msra.mxu0 %v288
        %343 = vmatpush.msra.mxu0 %v287
        %344 = vmatpush.msra.mxu0 %v286
        %345 = vmatmul.f32.gmra.mxu0 %v284
        %v346 = vpop.f32.mrf.mxu0
        %v347 = vadd.f32 %v304, %v346
        %348 = vmatmul.f32.gmra.mxu0 %v285
        %v349 = vpop.f32.mrf.mxu0
        %v350 = vadd.f32 %v304, %v349
        %351 = vdwg.mxu0
        %v352 = vmax.f32 %v324, %v347
        %v353 = vmax.f32 %v327, %v350
        %v354 = vmax.f32 %v352, 0.0
        %v355 = vmax.f32 %v353, 0.0
        %vm358 = vcmask 1046528
        %v359 = vrot.slane %v354, 1
        %v360 = vrot.slane %v355, 1
        %v361 = vsel %vm358, %v359, %v360
        %362 = vrot.lane.b32.xlu0 %v361, 16
        %v363 = vpop.permute.xlu0 %362
        %364 = vrot.lane.b32.xlu0 %v360, 16
        %v365 = vpop.permute.xlu0 %364
        %vm368 = vcmask 1045504
        %v369 = vrot.slane %v354, 2
        %v370 = vrot.slane %v355, 2
        %v371 = vsel %vm368, %v369, %v370
        %372 = vrot.lane.b32.xlu0 %v371, 32
        %v373 = vpop.permute.xlu0 %372
        %374 = vrot.lane.b32.xlu0 %v370, 32
        %v375 = vpop.permute.xlu0 %374
        %vm378 = vcmask 1044480
        %v379 = vrot.slane %v354, 3
        %v380 = vrot.slane %v355, 3
        %v381 = vsel %vm378, %v379, %v380
        %382 = vrot.lane.b32.xlu0 %v381, 48
        %v383 = vpop.permute.xlu0 %382
        %384 = vrot.lane.b32.xlu0 %v380, 48
        %v385 = vpop.permute.xlu0 %384
        %vm388 = vcmask 1043456
        %v389 = vrot.slane %v354, 4
        %v390 = vrot.slane %v355, 4
        %v391 = vsel %vm388, %v389, %v390
        %392 = vrot.lane.b32.xlu0 %v391, 64
        %v393 = vpop.permute.xlu0 %392
        %394 = vrot.lane.b32.xlu0 %v390, 64
        %v395 = vpop.permute.xlu0 %394
        %vm398 = vcmask 130048
        %v399 = vsel %vm398, %v354, %v363
        %v400 = vsel %vm398, %v355, %v365
        %vm401 = vcmask 261120
        %v402 = vsel %vm401, %v399, %v373
        %v403 = vsel %vm401, %v400, %v375
        %vm404 = vcmask 392192
        %v405 = vsel %vm404, %v402, %v383
        %v406 = vsel %vm404, %v403, %v385
        %vm407 = vcmask 523264
        %v408 = vsel %vm407, %v405, %v393
        %v409 = vsel %vm407, %v406, %v395
        %v410 = vld [vmem:[%s3] sm:$0xff]
        %v411 = vld [vmem:[%s3 + $0x8] sm:$0xff]
        %v412 = vld [vmem:[%s3 + $0x10] sm:$0xff]
        %v413 = vld [vmem:[%s3 + $0x18] sm:$0xff]
        %v414 = vld [vmem:[%s3 + $0x20] sm:$0xff]
        %v415 = vld [vmem:[%s3 + $0x28] sm:$0xff]
        %v416 = vld [vmem:[%s3 + $0x30] sm:$0xff]
        %v417 = vld [vmem:[%s3 + $0x38] sm:$0xff]
        %v418 = vld [vmem:[%s3 + $0x40] sm:$0xff]
        %v419 = vld [vmem:[%s3 + $0x48] sm:$0xff]
        %v420 = vld [vmem:[%s4] sm:$0x1]
        %v422 = vperm.slane %v420, 0
        %vm424 = vcmask 654336
        %v426 = vsel %vm424, %v408, 0
        %v429 = vsel %vm424, %v409, 0
        %431 = vmatpush.msra.mxu0 0.0
        %432 = vmatpush.msra.mxu0 0.0
        %433 = vmatpush.msra.mxu0 0.0
        %434 = vmatpush.msra.mxu0 0.0
        %435 = vmatpush.msra.mxu0 0.0
        %436 = vmatpush.msra.mxu0 0.0
        %437 = vmatpush.msra.mxu0 %v419
        %438 = vmatpush.msra.mxu0 %v418
        %439 = vmatpush.msra.mxu0 %v417
        %440 = vmatpush.msra.mxu0 %v416
        %441 = vmatpush.msra.mxu0 %v415
        %442 = vmatpush.msra.mxu0 %v414
        %443 = vmatpush.msra.mxu0 %v413
        %444 = vmatpush.msra.mxu0 %v412
        %445 = vmatpush.msra.mxu0 %v411
        %446 = vmatpush.msra.mxu0 %v410
        %447 = vmatmul.f32.gmra.mxu0 %v426
        %v448 = vpop.f32.mrf.mxu0
        %v449 = vadd.f32 %v422, %v448
        %450 = vmatmul.f32.gmra.mxu0 %v429
        %v451 = vpop.f32.mrf.mxu0
        %v452 = vadd.f32 %v422, %v451
        %453 = vdwg.mxu0
        %v454 = vmax.f32 %v449, 0.0
        %v455 = vmax.f32 %v452, 0.0
        %v456 = vld [vmem:[%s6] sm:$0x1]
        %v457 = vld [vmem:[%s5] sm:$0xff]
        %v458 = vld [vmem:[%s5 + $0x8] sm:$0xff]
        %v459 = vld [vmem:[%s5 + $0x10] sm:$0xff]
        %v460 = vld [vmem:[%s5 + $0x18] sm:$0xff]
        %v462 = vsel %vm401, %v454, 0
        %464 = vmatpush.msra.mxu0 0.0
        %465 = vmatpush.msra.mxu0 0.0
        %466 = vmatpush.msra.mxu0 0.0
        %467 = vmatpush.msra.mxu0 0.0
        %468 = vmatpush.msra.mxu0 0.0
        %469 = vmatpush.msra.mxu0 0.0
        %470 = vmatpush.msra.mxu0 0.0
        %471 = vmatpush.msra.mxu0 0.0
        %472 = vmatpush.msra.mxu0 0.0
        %473 = vmatpush.msra.mxu0 0.0
        %474 = vmatpush.msra.mxu0 0.0
        %475 = vmatpush.msra.mxu0 0.0
        %476 = vmatpush.msra.mxu0 %v460
        %477 = vmatpush.msra.mxu0 %v459
        %478 = vmatpush.msra.mxu0 %v458
        %479 = vmatpush.msra.mxu0 %v457
        %480 = vmatmul.f32.gmra.mxu0 %v462
        %v481 = vpop.f32.mrf.mxu0
        %v482 = vadd.f32 0.0, %v481
        %483 = vdwg.mxu0
        %v484 = vadd.f32 %v456, %v482
        %s485 = scalar_lea.vmem %s5, 32
        %v486 = vld [vmem:[%s485] sm:$0xff]
        %v487 = vld [vmem:[%s485 + $0x8] sm:$0xff]
        %v488 = vld [vmem:[%s485 + $0x10] sm:$0xff]
        %v489 = vld [vmem:[%s485 + $0x18] sm:$0xff]
        %v490 = vrot.slane %v454, 1
        %v491 = vsel %vm401, %v490, 0
        %493 = vmatpush.msra.mxu0 0.0
        %494 = vmatpush.msra.mxu0 0.0
        %495 = vmatpush.msra.mxu0 0.0
        %496 = vmatpush.msra.mxu0 0.0
        %497 = vmatpush.msra.mxu0 0.0
        %498 = vmatpush.msra.mxu0 0.0
        %499 = vmatpush.msra.mxu0 0.0
        %500 = vmatpush.msra.mxu0 0.0
        %501 = vmatpush.msra.mxu0 0.0
        %502 = vmatpush.msra.mxu0 0.0
        %503 = vmatpush.msra.mxu0 0.0
        %504 = vmatpush.msra.mxu0 0.0
        %505 = vmatpush.msra.mxu0 %v489
        %506 = vmatpush.msra.mxu0 %v488
        %507 = vmatpush.msra.mxu0 %v487
        %508 = vmatpush.msra.mxu0 %v486
        %509 = vmatmul.f32.gmra.mxu0 %v491
        %v510 = vpop.f32.mrf.mxu0
        %v511 = vadd.f32 0.0, %v510
        %512 = vdwg.mxu0
        %v513 = vadd.f32 %v484, %v511
        %s514 = scalar_lea.vmem %s5, 64
        %v515 = vld [vmem:[%s514] sm:$0xff]
        %v516 = vld [vmem:[%s514 + $0x8] sm:$0xff]
        %v517 = vld [vmem:[%s514 + $0x10] sm:$0xff]
        %v518 = vld [vmem:[%s514 + $0x18] sm:$0xff]
        %v519 = vrot.slane %v454, 2
        %v520 = vsel %vm401, %v519, 0
        %522 = vmatpush.msra.mxu0 0.0
        %523 = vmatpush.msra.mxu0 0.0
        %524 = vmatpush.msra.mxu0 0.0
        %525 = vmatpush.msra.mxu0 0.0
        %526 = vmatpush.msra.mxu0 0.0
        %527 = vmatpush.msra.mxu0 0.0
        %528 = vmatpush.msra.mxu0 0.0
        %529 = vmatpush.msra.mxu0 0.0
        %530 = vmatpush.msra.mxu0 0.0
        %531 = vmatpush.msra.mxu0 0.0
        %532 = vmatpush.msra.mxu0 0.0
        %533 = vmatpush.msra.mxu0 0.0
        %534 = vmatpush.msra.mxu0 %v518
        %535 = vmatpush.msra.mxu0 %v517
        %536 = vmatpush.msra.mxu0 %v516
        %537 = vmatpush.msra.mxu0 %v515
        %538 = vmatmul.f32.gmra.mxu0 %v520
        %v539 = vpop.f32.mrf.mxu0
        %v540 = vadd.f32 0.0, %v539
        %541 = vdwg.mxu0
        %v542 = vadd.f32 %v513, %v540
        %s543 = scalar_lea.vmem %s5, 96
        %v544 = vld [vmem:[%s543] sm:$0xff]
        %v545 = vld [vmem:[%s543 + $0x8] sm:$0xff]
        %v546 = vld [vmem:[%s543 + $0x10] sm:$0xff]
        %v547 = vld [vmem:[%s543 + $0x18] sm:$0xff]
        %v548 = vrot.slane %v454, 3
        %v549 = vsel %vm401, %v548, 0
        %551 = vmatpush.msra.mxu0 0.0
        %552 = vmatpush.msra.mxu0 0.0
        %553 = vmatpush.msra.mxu0 0.0
        %554 = vmatpush.msra.mxu0 0.0
        %555 = vmatpush.msra.mxu0 0.0
        %556 = vmatpush.msra.mxu0 0.0
        %557 = vmatpush.msra.mxu0 0.0
        %558 = vmatpush.msra.mxu0 0.0
        %559 = vmatpush.msra.mxu0 0.0
        %560 = vmatpush.msra.mxu0 0.0
        %561 = vmatpush.msra.mxu0 0.0
        %562 = vmatpush.msra.mxu0 0.0
        %563 = vmatpush.msra.mxu0 %v547
        %564 = vmatpush.msra.mxu0 %v546
        %565 = vmatpush.msra.mxu0 %v545
        %566 = vmatpush.msra.mxu0 %v544
        %567 = vmatmul.f32.gmra.mxu0 %v549
        %v568 = vpop.f32.mrf.mxu0
        %v569 = vadd.f32 0.0, %v568
        %570 = vdwg.mxu0
        %v571 = vadd.f32 %v542, %v569
        %s572 = scalar_lea.vmem %s5, 128
        %v573 = vld [vmem:[%s572] sm:$0xff]
        %v574 = vld [vmem:[%s572 + $0x8] sm:$0xff]
        %v575 = vld [vmem:[%s572 + $0x10] sm:$0xff]
        %v576 = vld [vmem:[%s572 + $0x18] sm:$0xff]
        %v577 = vrot.slane %v454, 4
        %v578 = vsel %vm401, %v577, 0
        %580 = vmatpush.msra.mxu0 0.0
        %581 = vmatpush.msra.mxu0 0.0
        %582 = vmatpush.msra.mxu0 0.0
        %583 = vmatpush.msra.mxu0 0.0
        %584 = vmatpush.msra.mxu0 0.0
        %585 = vmatpush.msra.mxu0 0.0
        %586 = vmatpush.msra.mxu0 0.0
        %587 = vmatpush.msra.mxu0 0.0
        %588 = vmatpush.msra.mxu0 0.0
        %589 = vmatpush.msra.mxu0 0.0
        %590 = vmatpush.msra.mxu0 0.0
        %591 = vmatpush.msra.mxu0 0.0
        %592 = vmatpush.msra.mxu0 %v576
        %593 = vmatpush.msra.mxu0 %v575
        %594 = vmatpush.msra.mxu0 %v574
        %595 = vmatpush.msra.mxu0 %v573
        %596 = vmatmul.f32.gmra.mxu0 %v578
        %v597 = vpop.f32.mrf.mxu0
        %v598 = vadd.f32 0.0, %v597
        %599 = vdwg.mxu0
        %v600 = vadd.f32 %v571, %v598
        %s601 = scalar_lea.vmem %s5, 160
        %v602 = vld [vmem:[%s601] sm:$0xff]
        %v603 = vld [vmem:[%s601 + $0x8] sm:$0xff]
        %v604 = vld [vmem:[%s601 + $0x10] sm:$0xff]
        %v605 = vld [vmem:[%s601 + $0x18] sm:$0xff]
        %v606 = vrot.slane %v454, 5
        %v607 = vsel %vm401, %v606, 0
        %609 = vmatpush.msra.mxu0 0.0
        %610 = vmatpush.msra.mxu0 0.0
        %611 = vmatpush.msra.mxu0 0.0
        %612 = vmatpush.msra.mxu0 0.0
        %613 = vmatpush.msra.mxu0 0.0
        %614 = vmatpush.msra.mxu0 0.0
        %615 = vmatpush.msra.mxu0 0.0
        %616 = vmatpush.msra.mxu0 0.0
        %617 = vmatpush.msra.mxu0 0.0
        %618 = vmatpush.msra.mxu0 0.0
        %619 = vmatpush.msra.mxu0 0.0
        %620 = vmatpush.msra.mxu0 0.0
        %621 = vmatpush.msra.mxu0 %v605
        %622 = vmatpush.msra.mxu0 %v604
        %623 = vmatpush.msra.mxu0 %v603
        %624 = vmatpush.msra.mxu0 %v602
        %625 = vmatmul.f32.gmra.mxu0 %v607
        %v626 = vpop.f32.mrf.mxu0
        %v627 = vadd.f32 0.0, %v626
        %628 = vdwg.mxu0
        %v629 = vadd.f32 %v600, %v627
        %s630 = scalar_lea.vmem %s5, 192
        %v631 = vld [vmem:[%s630] sm:$0xff]
        %v632 = vld [vmem:[%s630 + $0x8] sm:$0xff]
        %v633 = vld [vmem:[%s630 + $0x10] sm:$0xff]
        %v634 = vld [vmem:[%s630 + $0x18] sm:$0xff]
        %v635 = vrot.slane %v454, 6
        %v636 = vsel %vm401, %v635, 0
        %638 = vmatpush.msra.mxu0 0.0
        %639 = vmatpush.msra.mxu0 0.0
        %640 = vmatpush.msra.mxu0 0.0
        %641 = vmatpush.msra.mxu0 0.0
        %642 = vmatpush.msra.mxu0 0.0
        %643 = vmatpush.msra.mxu0 0.0
        %644 = vmatpush.msra.mxu0 0.0
        %645 = vmatpush.msra.mxu0 0.0
        %646 = vmatpush.msra.mxu0 0.0
        %647 = vmatpush.msra.mxu0 0.0
        %648 = vmatpush.msra.mxu0 0.0
        %649 = vmatpush.msra.mxu0 0.0
        %650 = vmatpush.msra.mxu0 %v634
        %651 = vmatpush.msra.mxu0 %v633
        %652 = vmatpush.msra.mxu0 %v632
        %653 = vmatpush.msra.mxu0 %v631
        %654 = vmatmul.f32.gmra.mxu0 %v636
        %v655 = vpop.f32.mrf.mxu0
        %v656 = vadd.f32 0.0, %v655
        %657 = vdwg.mxu0
        %v658 = vadd.f32 %v629, %v656
        %s659 = scalar_lea.vmem %s5, 224
        %v660 = vld [vmem:[%s659] sm:$0xff]
        %v661 = vld [vmem:[%s659 + $0x8] sm:$0xff]
        %v662 = vld [vmem:[%s659 + $0x10] sm:$0xff]
        %v663 = vld [vmem:[%s659 + $0x18] sm:$0xff]
        %v664 = vrot.slane %v454, 7
        %v665 = vsel %vm401, %v664, 0
        %667 = vmatpush.msra.mxu0 0.0
        %668 = vmatpush.msra.mxu0 0.0
        %669 = vmatpush.msra.mxu0 0.0
        %670 = vmatpush.msra.mxu0 0.0
        %671 = vmatpush.msra.mxu0 0.0
        %672 = vmatpush.msra.mxu0 0.0
        %673 = vmatpush.msra.mxu0 0.0
        %674 = vmatpush.msra.mxu0 0.0
        %675 = vmatpush.msra.mxu0 0.0
        %676 = vmatpush.msra.mxu0 0.0
        %677 = vmatpush.msra.mxu0 0.0
        %678 = vmatpush.msra.mxu0 0.0
        %679 = vmatpush.msra.mxu0 %v663
        %680 = vmatpush.msra.mxu0 %v662
        %681 = vmatpush.msra.mxu0 %v661
        %682 = vmatpush.msra.mxu0 %v660
        %683 = vmatmul.f32.gmra.mxu0 %v665
        %v684 = vpop.f32.mrf.mxu0
        %v685 = vadd.f32 0.0, %v684
        %686 = vdwg.mxu0
        %v687 = vadd.f32 %v658, %v685
        %s688 = scalar_lea.vmem %s5, 256
        %v689 = vld [vmem:[%s688] sm:$0xff]
        %v690 = vld [vmem:[%s688 + $0x8] sm:$0xff]
        %v691 = vld [vmem:[%s688 + $0x10] sm:$0xff]
        %v692 = vld [vmem:[%s688 + $0x18] sm:$0xff]
        %v694 = vsel %vm401, %v455, 0
        %696 = vmatpush.msra.mxu0 0.0
        %697 = vmatpush.msra.mxu0 0.0
        %698 = vmatpush.msra.mxu0 0.0
        %699 = vmatpush.msra.mxu0 0.0
        %700 = vmatpush.msra.mxu0 0.0
        %701 = vmatpush.msra.mxu0 0.0
        %702 = vmatpush.msra.mxu0 0.0
        %703 = vmatpush.msra.mxu0 0.0
        %704 = vmatpush.msra.mxu0 0.0
        %705 = vmatpush.msra.mxu0 0.0
        %706 = vmatpush.msra.mxu0 0.0
        %707 = vmatpush.msra.mxu0 0.0
        %708 = vmatpush.msra.mxu0 %v692
        %709 = vmatpush.msra.mxu0 %v691
        %710 = vmatpush.msra.mxu0 %v690
        %711 = vmatpush.msra.mxu0 %v689
        %712 = vmatmul.f32.gmra.mxu0 %v694
        %v713 = vpop.f32.mrf.mxu0
        %v714 = vadd.f32 0.0, %v713
        %715 = vdwg.mxu0
        %v716 = vadd.f32 %v687, %v714
        %s717 = scalar_lea.vmem %s5, 288
        %v718 = vld [vmem:[%s717] sm:$0xff]
        %v719 = vld [vmem:[%s717 + $0x8] sm:$0xff]
        %v720 = vld [vmem:[%s717 + $0x10] sm:$0xff]
        %v721 = vld [vmem:[%s717 + $0x18] sm:$0xff]
        %v722 = vrot.slane %v455, 1
        %v723 = vsel %vm401, %v722, 0
        %725 = vmatpush.msra.mxu0 0.0
        %726 = vmatpush.msra.mxu0 0.0
        %727 = vmatpush.msra.mxu0 0.0
        %728 = vmatpush.msra.mxu0 0.0
        %729 = vmatpush.msra.mxu0 0.0
        %730 = vmatpush.msra.mxu0 0.0
        %731 = vmatpush.msra.mxu0 0.0
        %732 = vmatpush.msra.mxu0 0.0
        %733 = vmatpush.msra.mxu0 0.0
        %734 = vmatpush.msra.mxu0 0.0
        %735 = vmatpush.msra.mxu0 0.0
        %736 = vmatpush.msra.mxu0 0.0
        %737 = vmatpush.msra.mxu0 %v721
        %738 = vmatpush.msra.mxu0 %v720
        %739 = vmatpush.msra.mxu0 %v719
        %740 = vmatpush.msra.mxu0 %v718
        %741 = vmatmul.f32.gmra.mxu0 %v723
        %v742 = vpop.f32.mrf.mxu0
        %v743 = vadd.f32 0.0, %v742
        %744 = vdwg.mxu0
        %v745 = vadd.f32 %v716, %v743
        %s746 = scalar_lea.vmem %s5, 320
        %v747 = vld [vmem:[%s746] sm:$0xff]
        %v748 = vld [vmem:[%s746 + $0x8] sm:$0xff]
        %v749 = vld [vmem:[%s746 + $0x10] sm:$0xff]
        %v750 = vld [vmem:[%s746 + $0x18] sm:$0xff]
        %v751 = vrot.slane %v455, 2
        %v752 = vsel %vm401, %v751, 0
        %754 = vmatpush.msra.mxu0 0.0
        %755 = vmatpush.msra.mxu0 0.0
        %756 = vmatpush.msra.mxu0 0.0
        %757 = vmatpush.msra.mxu0 0.0
        %758 = vmatpush.msra.mxu0 0.0
        %759 = vmatpush.msra.mxu0 0.0
        %760 = vmatpush.msra.mxu0 0.0
        %761 = vmatpush.msra.mxu0 0.0
        %762 = vmatpush.msra.mxu0 0.0
        %763 = vmatpush.msra.mxu0 0.0
        %764 = vmatpush.msra.mxu0 0.0
        %765 = vmatpush.msra.mxu0 0.0
        %766 = vmatpush.msra.mxu0 %v750
        %767 = vmatpush.msra.mxu0 %v749
        %768 = vmatpush.msra.mxu0 %v748
        %769 = vmatpush.msra.mxu0 %v747
        %770 = vmatmul.f32.gmra.mxu0 %v752
        %v771 = vpop.f32.mrf.mxu0
        %v772 = vadd.f32 0.0, %v771
        %773 = vdwg.mxu0
        %v774 = vadd.f32 %v745, %v772
        %v775 = vmax.f32 %v774, 0.0
        %vm776 = vcmask 73728
        %777 = vst.msk [vmem:[%s273] sm:$0x1] %vm776, %v775
        %s778 = sand.u32 %s181, 1
        %s779 = scalar_lea.sflag [#allocation3], %s778
        %s780 = sand.u32 %s181, 1
        %s781 = scalar_lea.vmem [#allocation2], %s780
        // Predicated region
        $region49: #{gunet_forward.5} parent=47 // pred_check
          %p782 = pneg %p191
        $region50: #{gunet_forward.5} parent=47 // pred_check_branch
          %784 = sbr.rel (%p782) target = $region52
        $region51: #{gunet_forward.5} parent=47 // pred_region
          %786 = vsyncadd %s779, 0
          %s787 = scalar_lea.hbm %s7, %s21
          %s789 = sshll.u32 %s781, 4
          %s790 = int_to_ptr.vmem [resolvable:$true] %s789
          %s791 = sshll.u32 %s787, 4
          %s792 = int_to_ptr.hbm [resolvable:$true] %s791
          %794 = dma.vmem_to_hbm [thread:$0]  %s790, 16, %s792, %s779
        $region52: #{gunet_forward.5} parent=47 // pred_fallthru
          _
      $region48: #{gunet_forward.5} parent=5 // pred_fallthru
        _
      %p795 = scmp.le.s32.totalorder 2, %s16
      // Predicated region
      $region53: #{gunet_forward.5} parent=5 // pred_check
        %p796 = pneg %p795
      $region54: #{gunet_forward.5} parent=5 // pred_check_branch
        %798 = sbr.rel (%p796) target = $region56
      $region55: #{gunet_forward.5} parent=5 // pred_region
        %s799 = ssub.s32 %s16, 2
        // Predicated region
        $region57: #{gunet_forward.5} parent=55 // pred_check
          %p800 = pneg %p197
        $region58: #{gunet_forward.5} parent=55 // pred_check_branch
          %802 = sbr.rel (%p800) target = $region60
        $region59: #{gunet_forward.5} parent=55 // pred_region
          %s803 = sand.u32 %s182, 1
          %s804 = scalar_lea.sflag [#allocation3], %s803
          %s805 = sand.u32 %s182, 1
          %s806 = scalar_lea.vmem [#allocation2], %s805
          %808 = dma.done %s804, 16
        $region60: #{gunet_forward.5} parent=55 // pred_fallthru
          _
      $region56: #{gunet_forward.5} parent=5 // pred_fallthru
        _
    $region6: #{gunet_forward.5} parent=1 // loop_footer
      %s20 = sadd.s32 1, %s16
    $region7: #{gunet_forward.5} parent=1 // loop_footer_branch
      %15 = sbr.rel target = $region3
    $region8: #{gunet_forward.5} parent=1 // loop_exit
      _
    %809 = vsyncpa [#allocation3], 1
    %s810 = scalar_lea.sflag [#allocation3], 1
    %811 = vsyncpa %s810, 1

// kernel: gunet_forward.4
$region0: #{gunet_forward.4}
  #allocation0 [shape = 'u32[]', space=smem, size = 0x4, offset = 0x4, fixed_abs, tag = 'smem constant byte address 0x4 - core index']
  #allocation1 [shape = 'u32[72,128]{1,0:T(1,128)}', space=vmem, size = 0x9000, scoped, tag = 'internal scratch']
  %s0 = inlined_call_operand.hbm [shape: f32[16,16], index: 0, kind: input, shape index: {}]
  %s1 = inlined_call_operand.vmem [shape: f32[16,8], index: 1, kind: input, shape index: {}]
  %s2 = inlined_call_operand.hbm [shape: f32[8,48], index: 2, kind: input, shape index: {}]
  %s3 = inlined_call_operand.vmem [shape: f32[1,48], index: 3, kind: input, shape index: {}]
  %s4 = inlined_call_operand.vmem [shape: f32[4,48,48], index: 4, kind: input, shape index: {}]
  %s5 = inlined_call_operand.vmem [shape: f32[4,1,48], index: 5, kind: input, shape index: {}]
  %s6 = inlined_call_operand.vmem [shape: f32[48,4], index: 6, kind: input, shape index: {}]
  %s7 = inlined_call_operand.hbm [shape: f32[3,48,48], index: 7, kind: input, shape index: {}]
  %s8 = inlined_call_operand.vmem [shape: f32[3,1,48], index: 8, kind: input, shape index: {}]
  %s9 = inlined_call_operand.hbm [shape: f32[48,128], index: 9, kind: input, shape index: {}]
  %s10 = inlined_call_operand.vmem [shape: f32[1,128], index: 10, kind: input, shape index: {}]
  %s11 = inlined_call_operand.vmem [shape: f32[2,15,128], index: 11, kind: output, shape index: {}]
  %s12 = sld [smem:[#allocation0]]
  $region70: #{gunet_forward.4} parent=0
    _
  %s14 = ssub.s32 1, %s12
  %s15 = scalar_select 0, %s14, %s12
  $region1: #{gunet_forward.4} parent=0
    #allocation2 [shape = 'u8[8192]{0}', space=vmem, size = 0x2000, scoped, tag = 'input window, operand 0, single buffered']
    #allocation3 [shape = 's32[1]{0}', space=sflag, size = 0x4, scoped, tag = 'scoped memory for gunet_forward.4']
    #allocation4 [shape = 'u8[4096]{0}', space=vmem, size = 0x1000, scoped, tag = 'input window, operand 2, single buffered']
    #allocation5 [shape = 's32[1]{0}', space=sflag, size = 0x4, scoped, tag = 'scoped memory for gunet_forward.4']
    #allocation6 [shape = 'u8[73728]{0}', space=vmem, size = 0x12000, scoped, tag = 'input window, operand 7, single buffered']
    #allocation7 [shape = 'u8[24576]{0}', space=vmem, size = 0x6000, scoped, tag = 'input window, operand 9, single buffered']
    #allocation8 [shape = 's32[1]{0}', space=sflag, size = 0x4, scoped, tag = 'scoped memory for gunet_forward.4']
    %16 = vsyncpa [#allocation3], 0
    %17 = vsyncpa [#allocation5], 0
    %18 = vsyncpa [#allocation8], 0
    // Predicated region
    $region2: #{gunet_forward.4} parent=1 // pred_check
      _
    $region3: #{gunet_forward.4} parent=1 // pred_check_branch
      %20 = sbr.rel (0) target = $region5
    $region4: #{gunet_forward.4} parent=1 // pred_region
      %22 = vsyncadd [#allocation3], 0
      %s23 = sshll.u32 %s0, 4
      %s24 = int_to_ptr.hbm [resolvable:$true] %s23
      %s25 = sshll.u32 [#allocation2], 4
      %s26 = int_to_ptr.vmem [resolvable:$true] %s25
      %31 = dma.hbm_to_vmem [thread:$0]  %s24, 256, %s26, [#allocation3], 128, 128, 8
    $region5: #{gunet_forward.4} parent=1 // pred_fallthru
      _
    // Predicated region
    $region6: #{gunet_forward.4} parent=1 // pred_check
      _
    $region7: #{gunet_forward.4} parent=1 // pred_check_branch
      %33 = sbr.rel (0) target = $region9
    $region8: #{gunet_forward.4} parent=1 // pred_region
      _
    $region9: #{gunet_forward.4} parent=1 // pred_fallthru
      _
    // Predicated region
    $region10: #{gunet_forward.4} parent=1 // pred_check
      _
    $region11: #{gunet_forward.4} parent=1 // pred_check_branch
      %35 = sbr.rel (0) target = $region13
    $region12: #{gunet_forward.4} parent=1 // pred_region
      %37 = vsyncadd [#allocation5], 0
      %s39 = sshll.u32 %s2, 4
      %s40 = int_to_ptr.hbm [resolvable:$true] %s39
      %s41 = sshll.u32 [#allocation4], 4
      %s42 = int_to_ptr.vmem [resolvable:$true] %s41
      %44 = dma.hbm_to_vmem [thread:$0]  %s40, 128, %s42, [#allocation5]
    $region13: #{gunet_forward.4} parent=1 // pred_fallthru
      _
    // Predicated region
    $region14: #{gunet_forward.4} parent=1 // pred_check
      _
    $region15: #{gunet_forward.4} parent=1 // pred_check_branch
      %46 = sbr.rel (0) target = $region17
    $region16: #{gunet_forward.4} parent=1 // pred_region
      _
    $region17: #{gunet_forward.4} parent=1 // pred_fallthru
      _
    // Predicated region
    $region18: #{gunet_forward.4} parent=1 // pred_check
      _
    $region19: #{gunet_forward.4} parent=1 // pred_check_branch
      %48 = sbr.rel (0) target = $region21
    $region20: #{gunet_forward.4} parent=1 // pred_region
      _
    $region21: #{gunet_forward.4} parent=1 // pred_fallthru
      _
    // Predicated region
    $region22: #{gunet_forward.4} parent=1 // pred_check
      _
    $region23: #{gunet_forward.4} parent=1 // pred_check_branch
      %50 = sbr.rel (0) target = $region25
    $region24: #{gunet_forward.4} parent=1 // pred_region
      _
    $region25: #{gunet_forward.4} parent=1 // pred_fallthru
      _
    // Predicated region
    $region26: #{gunet_forward.4} parent=1 // pred_check
      _
    $region27: #{gunet_forward.4} parent=1 // pred_check_branch
      %52 = sbr.rel (0) target = $region29
    $region28: #{gunet_forward.4} parent=1 // pred_region
      _
    $region29: #{gunet_forward.4} parent=1 // pred_fallthru
      _
    // Predicated region
    $region30: #{gunet_forward.4} parent=1 // pred_check
      _
    $region31: #{gunet_forward.4} parent=1 // pred_check_branch
      %54 = sbr.rel (0) target = $region33
    $region32: #{gunet_forward.4} parent=1 // pred_region
      %56 = vsyncadd [#allocation5], 0
      %s57 = sshll.u32 %s7, 4
      %s58 = int_to_ptr.hbm [resolvable:$true] %s57
      %s59 = sshll.u32 [#allocation6], 4
      %s60 = int_to_ptr.vmem [resolvable:$true] %s59
      %65 = dma.hbm_to_vmem [thread:$0]  %s58, 2304, %s60, [#allocation5], 128, 128, 8
    $region33: #{gunet_forward.4} parent=1 // pred_fallthru
      _
    // Predicated region
    $region34: #{gunet_forward.4} parent=1 // pred_check
      _
    $region35: #{gunet_forward.4} parent=1 // pred_check_branch
      %67 = sbr.rel (0) target = $region37
    $region36: #{gunet_forward.4} parent=1 // pred_region
      _
    $region37: #{gunet_forward.4} parent=1 // pred_fallthru
      _
    // Predicated region
    $region38: #{gunet_forward.4} parent=1 // pred_check
      _
    $region39: #{gunet_forward.4} parent=1 // pred_check_branch
      %69 = sbr.rel (0) target = $region41
    $region40: #{gunet_forward.4} parent=1 // pred_region
      %71 = vsyncadd [#allocation8], 0
      %s72 = sshll.u32 %s9, 4
      %s73 = int_to_ptr.hbm [resolvable:$true] %s72
      %s74 = sshll.u32 [#allocation7], 4
      %s75 = int_to_ptr.vmem [resolvable:$true] %s74
      %80 = dma.hbm_to_vmem [thread:$0]  %s73, 768, %s75, [#allocation8], 128, 128, 8
    $region41: #{gunet_forward.4} parent=1 // pred_fallthru
      _
    // Predicated region
    $region42: #{gunet_forward.4} parent=1 // pred_check
      _
    $region43: #{gunet_forward.4} parent=1 // pred_check_branch
      %82 = sbr.rel (0) target = $region45
    $region44: #{gunet_forward.4} parent=1 // pred_region
      _
    $region45: #{gunet_forward.4} parent=1 // pred_fallthru
      _
    // Predicated region
    $region46: #{gunet_forward.4} parent=1 // pred_check
      _
    $region47: #{gunet_forward.4} parent=1 // pred_check_branch
      %84 = sbr.rel (0) target = $region49
    $region48: #{gunet_forward.4} parent=1 // pred_region
      %86 = dma.done [#allocation3], 256
    $region49: #{gunet_forward.4} parent=1 // pred_fallthru
      _
    // Predicated region
    $region50: #{gunet_forward.4} parent=1 // pred_check
      _
    $region51: #{gunet_forward.4} parent=1 // pred_check_branch
      %88 = sbr.rel (0) target = $region53
    $region52: #{gunet_forward.4} parent=1 // pred_region
      %90 = dma.done [#allocation5], 128
    $region53: #{gunet_forward.4} parent=1 // pred_fallthru
      _
    // Predicated region
    $region54: #{gunet_forward.4} parent=1 // pred_check
      _
    $region55: #{gunet_forward.4} parent=1 // pred_check_branch
      %92 = sbr.rel (0) target = $region57
    $region56: #{gunet_forward.4} parent=1 // pred_region
      %94 = dma.done [#allocation5], 2304
    $region57: #{gunet_forward.4} parent=1 // pred_fallthru
      _
    // Predicated region
    $region58: #{gunet_forward.4} parent=1 // pred_check
      _
    $region59: #{gunet_forward.4} parent=1 // pred_check_branch
      %96 = sbr.rel (0) target = $region61
    $region60: #{gunet_forward.4} parent=1 // pred_region
      %98 = dma.done [#allocation8], 768
    $region61: #{gunet_forward.4} parent=1 // pred_fallthru
      _
    %v99 = vld [vmem:[#allocation2] sm:$0xff]
    %v100 = vld [vmem:[#allocation2 + $0x8] sm:$0xff]
    %v101 = vld [vmem:[%s1] sm:$0xff]
    %v102 = vld [vmem:[%s1 + $0x8] sm:$0xff]
    %v103 = vld [vmem:[#allocation4] sm:$0xff]
    %v104 = vld [vmem:[%s3] sm:$0x1]
    %v105 = vlaneseq
    %v106 = vshrl.u32 %v105, 7
    %v107 = vadd.s32 %v106, 8
    %v108 = vlaneseq
    %v109 = vand.u32 %v108, 127
    %vm110 = vcmp.eq.s32.totalorder %v106, %v109
    %vm111 = vcmp.eq.s32.totalorder %v107, %v109
    %v112 = vsel %vm110, 1.0, 0.0
    %v113 = vsel %vm111, 1.0, 0.0
    %v114 = vmul.f32 %v112, 2.0
    %v115 = vmul.f32 %v113, 2.0
    %v116 = vadd.f32 %v99, %v114
    %v117 = vadd.f32 %v100, %v115
    %vm118 = vcmask 130048
    %v119 = vsel %vm118, %v116, 0.0
    %120 = vadd.xlane.f32.xlu0 %v119
    %v121 = vpop.xlane.xlu0 %120
    %v122 = vsel %vm118, %v117, 0.0
    %123 = vadd.xlane.f32.xlu0 %v122
    %v124 = vpop.xlane.xlu0 %123
    %v125 = vrsqrt.pop %v121
    %v126 = vmul.f32 %v125, %v121
    %v127 = vmul.f32 %v126, %v125
    %v128 = vmul.f32 0.5, %v127
    %v129 = vsub.f32 1.5, %v128
    %v130 = vmul.f32 %v125, %v129
    %vm131 = vweird.f32 %v121
    %vm132 = vweird.f32 %v125
    %vm133 = vmor %vm131, %vm132
    %v134 = vsel %vm133, %v125, %v130
    %v135 = vrsqrt.pop %v124
    %v136 = vmul.f32 %v135, %v124
    %v137 = vmul.f32 %v136, %v135
    %v138 = vmul.f32 0.5, %v137
    %v139 = vsub.f32 1.5, %v138
    %v140 = vmul.f32 %v135, %v139
    %vm141 = vweird.f32 %v124
    %vm142 = vweird.f32 %v135
    %vm143 = vmor %vm141, %vm142
    %v144 = vsel %vm143, %v135, %v140
    %vm145 = vcmask 64512
    %v147 = vsel %vm145, %v101, 0
    %v150 = vsel %vm145, %v102, 0
    %152 = vmatpush.msra.mxu0 0.0
    %153 = vmatpush.msra.mxu0 0.0
    %154 = vmatpush.msra.mxu0 0.0
    %155 = vmatpush.msra.mxu0 0.0
    %156 = vmatpush.msra.mxu0 0.0
    %157 = vmatpush.msra.mxu0 0.0
    %158 = vmatpush.msra.mxu0 0.0
    %159 = vmatpush.msra.mxu0 0.0
    %160 = vmatpush.msra.mxu0 0.0
    %161 = vmatpush.msra.mxu0 0.0
    %162 = vmatpush.msra.mxu0 0.0
    %163 = vmatpush.msra.mxu0 0.0
    %164 = vmatpush.msra.mxu0 0.0
    %165 = vmatpush.msra.mxu0 0.0
    %166 = vmatpush.msra.mxu0 0.0
    %167 = vmatpush.msra.mxu0 %v103
    %168 = vmatmul.f32.gmra.mxu0 %v147
    %v169 = vpop.f32.mrf.mxu0
    %v170 = vadd.f32 0.0, %v169
    %171 = vmatmul.f32.gmra.mxu0 %v150
    %v172 = vpop.f32.mrf.mxu0
    %v173 = vadd.f32 0.0, %v172
    %174 = vdwg.mxu0
    %v175 = vmul.f32 %v134, %v170
    %v176 = vmul.f32 %v144, %v173
    %v178 = vsel %vm118, %v116, 0
    %v181 = vsel %vm118, %v117, 0
    %183 = vmatpush.msra.mxu0 0.0
    %184 = vmatpush.msra.mxu0 0.0
    %185 = vmatpush.msra.mxu0 0.0
    %186 = vmatpush.msra.mxu0 0.0
    %187 = vmatpush.msra.mxu0 0.0
    %188 = vmatpush.msra.mxu0 0.0
    %189 = vmatpush.msra.mxu0 0.0
    %190 = vmatpush.msra.mxu0 0.0
    %191 = vmatpush.msra.mxu0 0.0
    %192 = vmatpush.msra.mxu0 0.0
    %193 = vmatpush.msra.mxu0 0.0
    %194 = vmatpush.msra.mxu0 0.0
    %195 = vmatpush.msra.mxu0 0.0
    %196 = vmatpush.msra.mxu0 0.0
    %197 = vmatpush.msra.mxu0 %v176
    %198 = vmatpush.msra.mxu0 %v175
    %199 = vmatmul.f32.gmra.mxu0 %v178
    %v200 = vpop.f32.mrf.mxu0
    %v201 = vadd.f32 0.0, %v200
    %202 = vmatmul.f32.gmra.mxu0 %v181
    %v203 = vpop.f32.mrf.mxu0
    %v204 = vadd.f32 0.0, %v203
    %205 = vdwg.mxu0
    %v206 = vmul.f32 %v134, %v201
    %v207 = vmul.f32 %v144, %v204
    %v209 = vperm.slane %v104, 0
    %v211 = vadd.f32 %v206, %v209
    %v212 = vadd.f32 %v207, %v209
    %v213 = vmax.f32 %v211, 0.0
    %v214 = vmax.f32 %v212, 0.0
    %v215 = vsub.f32 1.0, %v112
    %v216 = vsub.f32 1.0, %v113
    %v217 = vmul.f32 %v99, %v215
    %v218 = vmul.f32 %v100, %v216
    %v219 = vadd.f32 %v217, %v112
    %v220 = vadd.f32 %v218, %v113
    %v222 = vsel %vm118, %v219, 0
    %v225 = vsel %vm118, %v220, 0
    %227 = vmatpush.msra.mxu0 0.0
    %228 = vmatpush.msra.mxu0 0.0
    %229 = vmatpush.msra.mxu0 0.0
    %230 = vmatpush.msra.mxu0 0.0
    %231 = vmatpush.msra.mxu0 0.0
    %232 = vmatpush.msra.mxu0 0.0
    %233 = vmatpush.msra.mxu0 0.0
    %234 = vmatpush.msra.mxu0 0.0
    %235 = vmatpush.msra.mxu0 0.0
    %236 = vmatpush.msra.mxu0 0.0
    %237 = vmatpush.msra.mxu0 0.0
    %238 = vmatpush.msra.mxu0 0.0
    %239 = vmatpush.msra.mxu0 0.0
    %240 = vmatpush.msra.mxu0 0.0
    %241 = vmatpush.msra.mxu0 %v220
    %242 = vmatpush.msra.mxu0 %v219
    %243 = vmatmul.f32.gmra.mxu0 %v222
    %v244 = vpop.f32.mrf.mxu0
    %v245 = vadd.f32 0.0, %v244
    %246 = vmatmul.f32.gmra.mxu0 %v225
    %v247 = vpop.f32.mrf.mxu0
    %v248 = vadd.f32 0.0, %v247
    %249 = vdwg.mxu0
    %v250 = vmul.f32 %v245, %v215
    %v251 = vmul.f32 %v248, %v216
    %v252 = vld [vmem:[%s6] sm:$0xff]
    %v253 = vld [vmem:[%s6 + $0x8] sm:$0xff]
    %v254 = vld [vmem:[%s6 + $0x10] sm:$0xff]
    %v255 = vld [vmem:[%s6 + $0x18] sm:$0xff]
    %v256 = vld [vmem:[%s6 + $0x20] sm:$0xff]
    %v257 = vld [vmem:[%s6 + $0x28] sm:$0xff]
    %vm258 = vcmask 392192
    %v260 = vsel %vm258, %v213, 0
    %v263 = vsel %vm258, %v214, 0
    %265 = vmatpush.msra.mxu0 0.0
    %266 = vmatpush.msra.mxu0 0.0
    %267 = vmatpush.msra.mxu0 0.0
    %268 = vmatpush.msra.mxu0 0.0
    %269 = vmatpush.msra.mxu0 0.0
    %270 = vmatpush.msra.mxu0 0.0
    %271 = vmatpush.msra.mxu0 0.0
    %272 = vmatpush.msra.mxu0 0.0
    %273 = vmatpush.msra.mxu0 0.0
    %274 = vmatpush.msra.mxu0 0.0
    %275 = vmatpush.msra.mxu0 %v257
    %276 = vmatpush.msra.mxu0 %v256
    %277 = vmatpush.msra.mxu0 %v255
    %278 = vmatpush.msra.mxu0 %v254
    %279 = vmatpush.msra.mxu0 %v253
    %280 = vmatpush.msra.mxu0 %v252
    %281 = vmatmul.f32.gmra.mxu0 %v260
    %v282 = vpop.f32.mrf.mxu0
    %v283 = vadd.f32 0.0, %v282
    %284 = vmatmul.f32.gmra.mxu0 %v263
    %v285 = vpop.f32.mrf.mxu0
    %v286 = vadd.f32 0.0, %v285
    %287 = vdwg.mxu0
    %v288 = vtanh.pop %v283
    %v289 = vtanh.pop %v286
    %291 = vset.pattern.permute.xlu0 0
    %292 = vperm.xlu0 %291, %v288
    %v293 = vpop.permute.xlu0 %292
    %296 = vset.pattern.permute.xlu0 0
    %297 = vperm.xlu0 %296, %v289
    %v298 = vpop.permute.xlu0 %297
    %v300 = vmul.f32 %v112, %v293
    %v301 = vmul.f32 %v113, %v298
    %v303 = vsel %vm118, 1.0, 0
    %305 = vmatpush.msra.mxu0 0.0
    %306 = vmatpush.msra.mxu0 0.0
    %307 = vmatpush.msra.mxu0 0.0
    %308 = vmatpush.msra.mxu0 0.0
    %309 = vmatpush.msra.mxu0 0.0
    %310 = vmatpush.msra.mxu0 0.0
    %311 = vmatpush.msra.mxu0 0.0
    %312 = vmatpush.msra.mxu0 0.0
    %313 = vmatpush.msra.mxu0 0.0
    %314 = vmatpush.msra.mxu0 0.0
    %315 = vmatpush.msra.mxu0 0.0
    %316 = vmatpush.msra.mxu0 0.0
    %317 = vmatpush.msra.mxu0 0.0
    %318 = vmatpush.msra.mxu0 0.0
    %319 = vmatpush.msra.mxu0 %v301
    %320 = vmatpush.msra.mxu0 %v300
    %321 = vmatmul.f32.gmra.mxu0 %v303
    %v322 = vpop.f32.mrf.mxu0
    %v323 = vadd.f32 0.0, %v322
    %324 = vmatmul.f32.gmra.mxu0 %v303
    %v325 = vpop.f32.mrf.mxu0
    %v326 = vadd.f32 0.0, %v325
    %327 = vdwg.mxu0
    %vm328 = vcmp.gt.f32.partialorder %v323, %v293
    %vm329 = vcmp.gt.f32.partialorder %v326, %v298
    %vm330 = vcmp.eq.f32.partialorder %v323, %v293
    %vm331 = vcmp.eq.f32.partialorder %v326, %v298
    %vm332 = vcmp.lt.s32.totalorder %v109, %v106
    %vm333 = vcmp.lt.s32.totalorder %v109, %v107
    %vm334 = vmand %vm330, %vm332
    %vm335 = vmand %vm331, %vm333
    %vm336 = vmor %vm328, %vm334
    %vm337 = vmor %vm329, %vm335
    %v338 = vsel %vm336, 1.0, 0.0
    %v339 = vsel %vm337, 1.0, 0.0
    %v340 = vsel %vm118, %v338, 0.0
    %341 = vadd.xlane.f32.xlu0 %v340
    %v342 = vpop.xlane.xlu0 %341
    %v343 = vsel %vm118, %v339, 0.0
    %344 = vadd.xlane.f32.xlu0 %v343
    %v345 = vpop.xlane.xlu0 %344
    %v346 = vmul.f32 %v112, %v342
    %v347 = vmul.f32 %v113, %v345
    %348 = vmatpush.msra.mxu0 0.0
    %349 = vmatpush.msra.mxu0 0.0
    %350 = vmatpush.msra.mxu0 0.0
    %351 = vmatpush.msra.mxu0 0.0
    %352 = vmatpush.msra.mxu0 0.0
    %353 = vmatpush.msra.mxu0 0.0
    %354 = vmatpush.msra.mxu0 0.0
    %355 = vmatpush.msra.mxu0 0.0
    %356 = vmatpush.msra.mxu0 0.0
    %357 = vmatpush.msra.mxu0 0.0
    %358 = vmatpush.msra.mxu0 0.0
    %359 = vmatpush.msra.mxu0 0.0
    %360 = vmatpush.msra.mxu0 0.0
    %361 = vmatpush.msra.mxu0 0.0
    %362 = vmatpush.msra.mxu0 %v347
    %363 = vmatpush.msra.mxu0 %v346
    %364 = vmatmul.f32.gmra.mxu0 %v303
    %v365 = vpop.f32.mrf.mxu0
    %v366 = vadd.f32 0.0, %v365
    %367 = vmatmul.f32.gmra.mxu0 %v303
    %v368 = vpop.f32.mrf.mxu0
    %v369 = vadd.f32 0.0, %v368
    %370 = vdwg.mxu0
    %v371 = vcvt.f32.s32.to.zero.pseudo %v366
    %v372 = vcvt.f32.s32.to.zero.pseudo %v369
    %vm373 = vcmp.eq.s32.totalorder %v371, %v106
    %vm374 = vcmp.eq.s32.totalorder %v372, %v107
    %v375 = vsel %vm373, 1.0, 0.0
    %v376 = vsel %vm374, 1.0, 0.0
    %v377 = vcvt.f32.s32.to.zero.pseudo %v342
    %v378 = vcvt.f32.s32.to.zero.pseudo %v345
    %vm379 = vcmp.eq.s32.totalorder %v377, %v109
    %vm380 = vcmp.eq.s32.totalorder %v378, %v109
    %v381 = vsel %vm379, 1.0, 0.0
    %v382 = vsel %vm380, 1.0, 0.0
    %v383 = vmul.f32 %v213, %v293
    %v384 = vmul.f32 %v214, %v298
    %v386 = vsel %vm118, %v375, 0
    %v389 = vsel %vm118, %v376, 0
    %391 = vmatpush.msra.mxu0 0.0
    %392 = vmatpush.msra.mxu0 0.0
    %393 = vmatpush.msra.mxu0 0.0
    %394 = vmatpush.msra.mxu0 0.0
    %395 = vmatpush.msra.mxu0 0.0
    %396 = vmatpush.msra.mxu0 0.0
    %397 = vmatpush.msra.mxu0 0.0
    %398 = vmatpush.msra.mxu0 0.0
    %399 = vmatpush.msra.mxu0 0.0
    %400 = vmatpush.msra.mxu0 0.0
    %401 = vmatpush.msra.mxu0 0.0
    %402 = vmatpush.msra.mxu0 0.0
    %403 = vmatpush.msra.mxu0 0.0
    %404 = vmatpush.msra.mxu0 0.0
    %405 = vmatpush.msra.mxu0 %v384
    %406 = vmatpush.msra.mxu0 %v383
    %407 = vmatmul.f32.gmra.mxu0 %v386
    %v408 = vpop.f32.mrf.mxu0
    %v409 = vadd.f32 0.0, %v408
    %410 = vmatmul.f32.gmra.mxu0 %v389
    %v411 = vpop.f32.mrf.mxu0
    %v412 = vadd.f32 0.0, %v411
    %413 = vdwg.mxu0
    %414 = vmatpush.msra.mxu0 0.0
    %415 = vmatpush.msra.mxu0 0.0
    %416 = vmatpush.msra.mxu0 0.0
    %417 = vmatpush.msra.mxu0 0.0
    %418 = vmatpush.msra.mxu0 0.0
    %419 = vmatpush.msra.mxu0 0.0
    %420 = vmatpush.msra.mxu0 0.0
    %421 = vmatpush.msra.mxu0 0.0
    %422 = vmatpush.msra.mxu0 0.0
    %423 = vmatpush.msra.mxu0 0.0
    %424 = vmatpush.msra.mxu0 0.0
    %425 = vmatpush.msra.mxu0 0.0
    %426 = vmatpush.msra.mxu0 0.0
    %427 = vmatpush.msra.mxu0 0.0
    %428 = vmatpush.msra.mxu0 %v251
    %429 = vmatpush.msra.mxu0 %v250
    %430 = vmatmul.f32.gmra.mxu0 %v386
    %v431 = vpop.f32.mrf.mxu0
    %v432 = vadd.f32 0.0, %v431
    %433 = vmatmul.f32.gmra.mxu0 %v389
    %v434 = vpop.f32.mrf.mxu0
    %v435 = vadd.f32 0.0, %v434
    %436 = vdwg.mxu0
    %v438 = vsel %vm118, %v432, 0
    %v441 = vsel %vm118, %v435, 0
    %443 = vmatpush.msra.mxu0 0.0
    %444 = vmatpush.msra.mxu0 0.0
    %445 = vmatpush.msra.mxu0 0.0
    %446 = vmatpush.msra.mxu0 0.0
    %447 = vmatpush.msra.mxu0 0.0
    %448 = vmatpush.msra.mxu0 0.0
    %449 = vmatpush.msra.mxu0 0.0
    %450 = vmatpush.msra.mxu0 0.0
    %451 = vmatpush.msra.mxu0 0.0
    %452 = vmatpush.msra.mxu0 0.0
    %453 = vmatpush.msra.mxu0 0.0
    %454 = vmatpush.msra.mxu0 0.0
    %455 = vmatpush.msra.mxu0 0.0
    %456 = vmatpush.msra.mxu0 0.0
    %457 = vmatpush.msra.mxu0 %v382
    %458 = vmatpush.msra.mxu0 %v381
    %459 = vmatmul.f32.gmra.mxu0 %v438
    %v460 = vpop.f32.mrf.mxu0
    %v461 = vadd.f32 0.0, %v460
    %462 = vmatmul.f32.gmra.mxu0 %v441
    %v463 = vpop.f32.mrf.mxu0
    %v464 = vadd.f32 0.0, %v463
    %465 = vdwg.mxu0
    %v466 = vld [vmem:[%s4] sm:$0xff]
    %v467 = vld [vmem:[%s4 + $0x8] sm:$0xff]
    %v468 = vld [vmem:[%s4 + $0x10] sm:$0xff]
    %v469 = vld [vmem:[%s4 + $0x18] sm:$0xff]
    %v470 = vld [vmem:[%s4 + $0x20] sm:$0xff]
    %v471 = vld [vmem:[%s4 + $0x28] sm:$0xff]
    %v472 = vld [vmem:[%s5] sm:$0x1]
    %v473 = vadd.f32 %v461, %v114
    %v474 = vadd.f32 %v464, %v115
    %vm475 = vcmask 121856
    %v476 = vsel %vm475, %v473, 0.0
    %477 = vadd.xlane.f32.xlu0 %v476
    %v478 = vpop.xlane.xlu0 %477
    %vm479 = vcmask 120832
    %v480 = vsel %vm479, %v474, 0.0
    %481 = vadd.xlane.f32.xlu0 %v480
    %v482 = vpop.xlane.xlu0 %481
    %v483 = vrsqrt.pop %v478
    %v484 = vmul.f32 %v483, %v478
    %v485 = vmul.f32 %v484, %v483
    %v486 = vmul.f32 0.5, %v485
    %v487 = vsub.f32 1.5, %v486
    %v488 = vmul.f32 %v483, %v487
    %vm489 = vweird.f32 %v478
    %vm490 = vweird.f32 %v483
    %vm491 = vmor %vm489, %vm490
    %v492 = vsel %vm491, %v483, %v488
    %v493 = vrsqrt.pop %v482
    %v494 = vmul.f32 %v493, %v482
    %v495 = vmul.f32 %v494, %v493
    %v496 = vmul.f32 0.5, %v495
    %v497 = vsub.f32 1.5, %v496
    %v498 = vmul.f32 %v493, %v497
    %vm499 = vweird.f32 %v482
    %vm500 = vweird.f32 %v493
    %vm501 = vmor %vm499, %vm500
    %v502 = vsel %vm501, %v493, %v498
    %v504 = vsel %vm258, %v409, 0
    %v507 = vsel %vm258, %v412, 0
    %509 = vmatpush.msra.mxu0 0.0
    %510 = vmatpush.msra.mxu0 0.0
    %511 = vmatpush.msra.mxu0 0.0
    %512 = vmatpush.msra.mxu0 0.0
    %513 = vmatpush.msra.mxu0 0.0
    %514 = vmatpush.msra.mxu0 0.0
    %515 = vmatpush.msra.mxu0 0.0
    %516 = vmatpush.msra.mxu0 0.0
    %517 = vmatpush.msra.mxu0 0.0
    %518 = vmatpush.msra.mxu0 0.0
    %519 = vmatpush.msra.mxu0 %v471
    %520 = vmatpush.msra.mxu0 %v470
    %521 = vmatpush.msra.mxu0 %v469
    %522 = vmatpush.msra.mxu0 %v468
    %523 = vmatpush.msra.mxu0 %v467
    %524 = vmatpush.msra.mxu0 %v466
    %525 = vmatmul.f32.gmra.mxu0 %v504
    %v526 = vpop.f32.mrf.mxu0
    %v527 = vadd.f32 0.0, %v526
    %528 = vmatmul.f32.gmra.mxu0 %v507
    %v529 = vpop.f32.mrf.mxu0
    %v530 = vadd.f32 0.0, %v529
    %531 = vdwg.mxu0
    %v532 = vmul.f32 %v492, %v527
    %v533 = vmul.f32 %v502, %v530
    %v535 = vsel %vm475, %v473, 0
    %v538 = vsel %vm475, %v474, 0
    %vm540 = vcmask 1046528
    %v542 = vsel %vm540, %v533, 0
    %544 = vmatpush.msra.mxu0 0.0
    %545 = vmatpush.msra.mxu0 0.0
    %546 = vmatpush.msra.mxu0 0.0
    %547 = vmatpush.msra.mxu0 0.0
    %548 = vmatpush.msra.mxu0 0.0
    %549 = vmatpush.msra.mxu0 0.0
    %550 = vmatpush.msra.mxu0 0.0
    %551 = vmatpush.msra.mxu0 0.0
    %552 = vmatpush.msra.mxu0 0.0
    %553 = vmatpush.msra.mxu0 0.0
    %554 = vmatpush.msra.mxu0 0.0
    %555 = vmatpush.msra.mxu0 0.0
    %556 = vmatpush.msra.mxu0 0.0
    %557 = vmatpush.msra.mxu0 0.0
    %558 = vmatpush.msra.mxu0 %v542
    %559 = vmatpush.msra.mxu0 %v532
    %560 = vmatmul.f32.gmra.mxu0 %v535
    %v561 = vpop.f32.mrf.mxu0
    %v562 = vadd.f32 0.0, %v561
    %563 = vmatmul.f32.gmra.mxu0 %v538
    %v564 = vpop.f32.mrf.mxu0
    %v565 = vadd.f32 0.0, %v564
    %566 = vdwg.mxu0
    %v567 = vmul.f32 %v492, %v562
    %v568 = vmul.f32 %v502, %v565
    %v570 = vperm.slane %v472, 0
    %v572 = vadd.f32 %v567, %v570
    %v573 = vadd.f32 %v568, %v570
    %v574 = vmax.f32 %v572, 0.0
    %v575 = vmax.f32 %v573, 0.0
    %v576 = vmul.f32 %v461, %v215
    %v577 = vmul.f32 %v464, %v216
    %v578 = vadd.f32 %v576, %v112
    %v579 = vadd.f32 %v577, %v113
    %v581 = vsel %vm475, %v578, 0
    %v584 = vsel %vm475, %v579, 0
    %v586 = vsel %vm540, %v579, 0
    %588 = vmatpush.msra.mxu0 0.0
    %589 = vmatpush.msra.mxu0 0.0
    %590 = vmatpush.msra.mxu0 0.0
    %591 = vmatpush.msra.mxu0 0.0
    %592 = vmatpush.msra.mxu0 0.0
    %593 = vmatpush.msra.mxu0 0.0
    %594 = vmatpush.msra.mxu0 0.0
    %595 = vmatpush.msra.mxu0 0.0
    %596 = vmatpush.msra.mxu0 0.0
    %597 = vmatpush.msra.mxu0 0.0
    %598 = vmatpush.msra.mxu0 0.0
    %599 = vmatpush.msra.mxu0 0.0
    %600 = vmatpush.msra.mxu0 0.0
    %601 = vmatpush.msra.mxu0 0.0
    %602 = vmatpush.msra.mxu0 %v586
    %603 = vmatpush.msra.mxu0 %v578
    %604 = vmatmul.f32.gmra.mxu0 %v581
    %v605 = vpop.f32.mrf.mxu0
    %v606 = vadd.f32 0.0, %v605
    %607 = vmatmul.f32.gmra.mxu0 %v584
    %v608 = vpop.f32.mrf.mxu0
    %v609 = vadd.f32 0.0, %v608
    %610 = vdwg.mxu0
    %v611 = vmul.f32 %v606, %v215
    %v612 = vmul.f32 %v609, %v216
    %619 = vrot.lane.b32.xlu0 %v252, 127
    %v620 = vpop.permute.xlu0 %619
    %621 = vrot.lane.b32.xlu0 %v253, 127
    %v622 = vpop.permute.xlu0 %621
    %623 = vrot.lane.b32.xlu0 %v254, 127
    %v624 = vpop.permute.xlu0 %623
    %625 = vrot.lane.b32.xlu0 %v255, 127
    %v626 = vpop.permute.xlu0 %625
    %627 = vrot.lane.b32.xlu0 %v256, 127
    %v628 = vpop.permute.xlu0 %627
    %629 = vrot.lane.b32.xlu0 %v257, 127
    %v630 = vpop.permute.xlu0 %629
    %v638 = vsel %vm258, %v574, 0
    %v641 = vsel %vm258, %v575, 0
    %643 = vmatpush.msra.mxu0 0.0
    %644 = vmatpush.msra.mxu0 0.0
    %645 = vmatpush.msra.mxu0 0.0
    %646 = vmatpush.msra.mxu0 0.0
    %647 = vmatpush.msra.mxu0 0.0
    %648 = vmatpush.msra.mxu0 0.0
    %649 = vmatpush.msra.mxu0 0.0
    %650 = vmatpush.msra.mxu0 0.0
    %651 = vmatpush.msra.mxu0 0.0
    %652 = vmatpush.msra.mxu0 0.0
    %653 = vmatpush.msra.mxu0 %v630
    %654 = vmatpush.msra.mxu0 %v628
    %655 = vmatpush.msra.mxu0 %v626
    %656 = vmatpush.msra.mxu0 %v624
    %657 = vmatpush.msra.mxu0 %v622
    %658 = vmatpush.msra.mxu0 %v620
    %659 = vmatmul.f32.gmra.mxu0 %v638
    %v660 = vpop.f32.mrf.mxu0
    %v661 = vadd.f32 0.0, %v660
    %662 = vmatmul.f32.gmra.mxu0 %v641
    %v663 = vpop.f32.mrf.mxu0
    %v664 = vadd.f32 0.0, %v663
    %665 = vdwg.mxu0
    %v666 = vtanh.pop %v661
    %v667 = vtanh.pop %v664
    %669 = vset.pattern.permute.xlu0 0
    %670 = vperm.xlu0 %669, %v666
    %v671 = vpop.permute.xlu0 %670
    %674 = vset.pattern.permute.xlu0 0
    %675 = vperm.xlu0 %674, %v667
    %v676 = vpop.permute.xlu0 %675
    %v678 = vmul.f32 %v112, %v671
    %v679 = vmul.f32 %v113, %v676
    %v680 = vsel %vm475, 1.0, 0
    %v683 = vsel %vm540, %v679, 0
    %685 = vmatpush.msra.mxu0 0.0
    %686 = vmatpush.msra.mxu0 0.0
    %687 = vmatpush.msra.mxu0 0.0
    %688 = vmatpush.msra.mxu0 0.0
    %689 = vmatpush.msra.mxu0 0.0
    %690 = vmatpush.msra.mxu0 0.0
    %691 = vmatpush.msra.mxu0 0.0
    %692 = vmatpush.msra.mxu0 0.0
    %693 = vmatpush.msra.mxu0 0.0
    %694 = vmatpush.msra.mxu0 0.0
    %695 = vmatpush.msra.mxu0 0.0
    %696 = vmatpush.msra.mxu0 0.0
    %697 = vmatpush.msra.mxu0 0.0
    %698 = vmatpush.msra.mxu0 0.0
    %699 = vmatpush.msra.mxu0 %v683
    %700 = vmatpush.msra.mxu0 %v678
    %701 = vmatmul.f32.gmra.mxu0 %v680
    %v702 = vpop.f32.mrf.mxu0
    %v703 = vadd.f32 0.0, %v702
    %704 = vmatmul.f32.gmra.mxu0 %v680
    %v705 = vpop.f32.mrf.mxu0
    %v706 = vadd.f32 0.0, %v705
    %707 = vdwg.mxu0
    %vm708 = vcmp.gt.f32.partialorder %v703, %v671
    %vm709 = vcmp.gt.f32.partialorder %v706, %v676
    %vm710 = vcmp.eq.f32.partialorder %v703, %v671
    %vm711 = vcmp.eq.f32.partialorder %v706, %v676
    %vm712 = vmand %vm710, %vm332
    %vm713 = vmand %vm711, %vm333
    %vm714 = vmor %vm708, %vm712
    %vm715 = vmor %vm709, %vm713
    %v716 = vsel %vm714, 1.0, 0.0
    %v717 = vsel %vm715, 1.0, 0.0
    %v718 = vsel %vm475, %v716, 0.0
    %719 = vadd.xlane.f32.xlu0 %v718
    %v720 = vpop.xlane.xlu0 %719
    %v721 = vsel %vm479, %v717, 0.0
    %722 = vadd.xlane.f32.xlu0 %v721
    %v723 = vpop.xlane.xlu0 %722
    %v724 = vmul.f32 %v112, %v720
    %v725 = vmul.f32 %v113, %v723
    %v727 = vsel %vm540, %v725, 0
    %729 = vmatpush.msra.mxu0 0.0
    %730 = vmatpush.msra.mxu0 0.0
    %731 = vmatpush.msra.mxu0 0.0
    %732 = vmatpush.msra.mxu0 0.0
    %733 = vmatpush.msra.mxu0 0.0
    %734 = vmatpush.msra.mxu0 0.0
    %735 = vmatpush.msra.mxu0 0.0
    %736 = vmatpush.msra.mxu0 0.0
    %737 = vmatpush.msra.mxu0 0.0
    %738 = vmatpush.msra.mxu0 0.0
    %739 = vmatpush.msra.mxu0 0.0
    %740 = vmatpush.msra.mxu0 0.0
    %741 = vmatpush.msra.mxu0 0.0
    %742 = vmatpush.msra.mxu0 0.0
    %743 = vmatpush.msra.mxu0 %v727
    %744 = vmatpush.msra.mxu0 %v724
    %745 = vmatmul.f32.gmra.mxu0 %v680
    %v746 = vpop.f32.mrf.mxu0
    %v747 = vadd.f32 0.0, %v746
    %748 = vmatmul.f32.gmra.mxu0 %v680
    %v749 = vpop.f32.mrf.mxu0
    %v750 = vadd.f32 0.0, %v749
    %751 = vdwg.mxu0
    %v752 = vcvt.f32.s32.to.zero.pseudo %v747
    %v753 = vcvt.f32.s32.to.zero.pseudo %v750
    %vm754 = vcmp.eq.s32.totalorder %v752, %v106
    %vm755 = vcmp.eq.s32.totalorder %v753, %v107
    %v756 = vsel %vm754, 1.0, 0.0
    %v757 = vsel %vm755, 1.0, 0.0
    %v758 = vcvt.f32.s32.to.zero.pseudo %v720
    %v759 = vcvt.f32.s32.to.zero.pseudo %v723
    %vm760 = vcmp.eq.s32.totalorder %v758, %v109
    %vm761 = vcmp.eq.s32.totalorder %v759, %v109
    %v762 = vsel %vm760, 1.0, 0.0
    %v763 = vsel %vm761, 1.0, 0.0
    %v764 = vmul.f32 %v574, %v671
    %v765 = vmul.f32 %v575, %v676
    %v767 = vsel %vm475, %v756, 0
    %v770 = vsel %vm475, %v757, 0
    %v773 = vsel %vm540, %v765, 0
    %775 = vmatpush.msra.mxu0 0.0
    %776 = vmatpush.msra.mxu0 0.0
    %777 = vmatpush.msra.mxu0 0.0
    %778 = vmatpush.msra.mxu0 0.0
    %779 = vmatpush.msra.mxu0 0.0
    %780 = vmatpush.msra.mxu0 0.0
    %781 = vmatpush.msra.mxu0 0.0
    %782 = vmatpush.msra.mxu0 0.0
    %783 = vmatpush.msra.mxu0 0.0
    %784 = vmatpush.msra.mxu0 0.0
    %785 = vmatpush.msra.mxu0 0.0
    %786 = vmatpush.msra.mxu0 0.0
    %787 = vmatpush.msra.mxu0 0.0
    %788 = vmatpush.msra.mxu0 0.0
    %789 = vmatpush.msra.mxu0 %v773
    %790 = vmatpush.msra.mxu0 %v764
    %791 = vmatmul.f32.gmra.mxu0 %v767
    %v792 = vpop.f32.mrf.mxu0
    %v793 = vadd.f32 0.0, %v792
    %794 = vmatmul.f32.gmra.mxu0 %v770
    %v795 = vpop.f32.mrf.mxu0
    %v796 = vadd.f32 0.0, %v795
    %797 = vdwg.mxu0
    %v799 = vsel %vm540, %v612, 0
    %801 = vmatpush.msra.mxu0 0.0
    %802 = vmatpush.msra.mxu0 0.0
    %803 = vmatpush.msra.mxu0 0.0
    %804 = vmatpush.msra.mxu0 0.0
    %805 = vmatpush.msra.mxu0 0.0
    %806 = vmatpush.msra.mxu0 0.0
    %807 = vmatpush.msra.mxu0 0.0
    %808 = vmatpush.msra.mxu0 0.0
    %809 = vmatpush.msra.mxu0 0.0
    %810 = vmatpush.msra.mxu0 0.0
    %811 = vmatpush.msra.mxu0 0.0
    %812 = vmatpush.msra.mxu0 0.0
    %813 = vmatpush.msra.mxu0 0.0
    %814 = vmatpush.msra.mxu0 0.0
    %815 = vmatpush.msra.mxu0 %v799
    %816 = vmatpush.msra.mxu0 %v611
    %817 = vmatmul.f32.gmra.mxu0 %v767
    %v818 = vpop.f32.mrf.mxu0
    %v819 = vadd.f32 0.0, %v818
    %820 = vmatmul.f32.gmra.mxu0 %v770
    %v821 = vpop.f32.mrf.mxu0
    %v822 = vadd.f32 0.0, %v821
    %823 = vdwg.mxu0
    %v825 = vsel %vm475, %v819, 0
    %v828 = vsel %vm475, %v822, 0
    %v831 = vsel %vm540, %v763, 0
    %833 = vmatpush.msra.mxu0 0.0
    %834 = vmatpush.msra.mxu0 0.0
    %835 = vmatpush.msra.mxu0 0.0
    %836 = vmatpush.msra.mxu0 0.0
    %837 = vmatpush.msra.mxu0 0.0
    %838 = vmatpush.msra.mxu0 0.0
    %839 = vmatpush.msra.mxu0 0.0
    %840 = vmatpush.msra.mxu0 0.0
    %841 = vmatpush.msra.mxu0 0.0
    %842 = vmatpush.msra.mxu0 0.0
    %843 = vmatpush.msra.mxu0 0.0
    %844 = vmatpush.msra.mxu0 0.0
    %845 = vmatpush.msra.mxu0 0.0
    %846 = vmatpush.msra.mxu0 0.0
    %847 = vmatpush.msra.mxu0 %v831
    %848 = vmatpush.msra.mxu0 %v762
    %849 = vmatmul.f32.gmra.mxu0 %v825
    %v850 = vpop.f32.mrf.mxu0
    %v851 = vadd.f32 0.0, %v850
    %852 = vmatmul.f32.gmra.mxu0 %v828
    %v853 = vpop.f32.mrf.mxu0
    %v854 = vadd.f32 0.0, %v853
    %855 = vdwg.mxu0
    %s856 = scalar_lea.vmem %s4, 48
    %v857 = vld [vmem:[%s856] sm:$0xff]
    %v858 = vld [vmem:[%s856 + $0x8] sm:$0xff]
    %v859 = vld [vmem:[%s856 + $0x10] sm:$0xff]
    %v860 = vld [vmem:[%s856 + $0x18] sm:$0xff]
    %v861 = vld [vmem:[%s856 + $0x20] sm:$0xff]
    %v862 = vld [vmem:[%s856 + $0x28] sm:$0xff]
    %s863 = scalar_lea.vmem %s5, 1
    %v864 = vld [vmem:[%s863] sm:$0x1]
    %v865 = vadd.f32 %v851, %v114
    %v866 = vadd.f32 %v854, %v115
    %vm867 = vcmask 89088
    %v868 = vsel %vm867, %v865, 0.0
    %869 = vadd.xlane.f32.xlu0 %v868
    %v870 = vpop.xlane.xlu0 %869
    %vm871 = vcmask 83968
    %v872 = vsel %vm871, %v866, 0.0
    %873 = vadd.xlane.f32.xlu0 %v872
    %v874 = vpop.xlane.xlu0 %873
    %v875 = vrsqrt.pop %v870
    %v876 = vmul.f32 %v875, %v870
    %v877 = vmul.f32 %v876, %v875
    %v878 = vmul.f32 0.5, %v877
    %v879 = vsub.f32 1.5, %v878
    %v880 = vmul.f32 %v875, %v879
    %vm881 = vweird.f32 %v870
    %vm882 = vweird.f32 %v875
    %vm883 = vmor %vm881, %vm882
    %v884 = vsel %vm883, %v875, %v880
    %v885 = vrsqrt.pop %v874
    %v886 = vmul.f32 %v885, %v874
    %v887 = vmul.f32 %v886, %v885
    %v888 = vmul.f32 0.5, %v887
    %v889 = vsub.f32 1.5, %v888
    %v890 = vmul.f32 %v885, %v889
    %vm891 = vweird.f32 %v874
    %vm892 = vweird.f32 %v885
    %vm893 = vmor %vm891, %vm892
    %v894 = vsel %vm893, %v885, %v890
    %v896 = vsel %vm258, %v793, 0
    %v899 = vsel %vm258, %v796, 0
    %901 = vmatpush.msra.mxu0 0.0
    %902 = vmatpush.msra.mxu0 0.0
    %903 = vmatpush.msra.mxu0 0.0
    %904 = vmatpush.msra.mxu0 0.0
    %905 = vmatpush.msra.mxu0 0.0
    %906 = vmatpush.msra.mxu0 0.0
    %907 = vmatpush.msra.mxu0 0.0
    %908 = vmatpush.msra.mxu0 0.0
    %909 = vmatpush.msra.mxu0 0.0
    %910 = vmatpush.msra.mxu0 0.0
    %911 = vmatpush.msra.mxu0 %v862
    %912 = vmatpush.msra.mxu0 %v861
    %913 = vmatpush.msra.mxu0 %v860
    %914 = vmatpush.msra.mxu0 %v859
    %915 = vmatpush.msra.mxu0 %v858
    %916 = vmatpush.msra.mxu0 %v857
    %917 = vmatmul.f32.gmra.mxu0 %v896
    %v918 = vpop.f32.mrf.mxu0
    %v919 = vadd.f32 0.0, %v918
    %920 = vmatmul.f32.gmra.mxu0 %v899
    %v921 = vpop.f32.mrf.mxu0
    %v922 = vadd.f32 0.0, %v921
    %923 = vdwg.mxu0
    %v924 = vmul.f32 %v884, %v919
    %v925 = vmul.f32 %v894, %v922
    %v927 = vsel %vm867, %v865, 0
    %v930 = vsel %vm867, %v866, 0
    %vm932 = vcmask 1042432
    %v934 = vsel %vm932, %v925, 0
    %936 = vmatpush.msra.mxu0 0.0
    %937 = vmatpush.msra.mxu0 0.0
    %938 = vmatpush.msra.mxu0 0.0
    %939 = vmatpush.msra.mxu0 0.0
    %940 = vmatpush.msra.mxu0 0.0
    %941 = vmatpush.msra.mxu0 0.0
    %942 = vmatpush.msra.mxu0 0.0
    %943 = vmatpush.msra.mxu0 0.0
    %944 = vmatpush.msra.mxu0 0.0
    %945 = vmatpush.msra.mxu0 0.0
    %946 = vmatpush.msra.mxu0 0.0
    %947 = vmatpush.msra.mxu0 0.0
    %948 = vmatpush.msra.mxu0 0.0
    %949 = vmatpush.msra.mxu0 0.0
    %950 = vmatpush.msra.mxu0 %v934
    %951 = vmatpush.msra.mxu0 %v924
    %952 = vmatmul.f32.gmra.mxu0 %v927
    %v953 = vpop.f32.mrf.mxu0
    %v954 = vadd.f32 0.0, %v953
    %955 = vmatmul.f32.gmra.mxu0 %v930
    %v956 = vpop.f32.mrf.mxu0
    %v957 = vadd.f32 0.0, %v956
    %958 = vdwg.mxu0
    %v959 = vmul.f32 %v884, %v954
    %v960 = vmul.f32 %v894, %v957
    %v962 = vperm.slane %v864, 0
    %v964 = vadd.f32 %v959, %v962
    %v965 = vadd.f32 %v960, %v962
    %v966 = vmax.f32 %v964, 0.0
    %v967 = vmax.f32 %v965, 0.0
    %v968 = vmul.f32 %v851, %v215
    %v969 = vmul.f32 %v854, %v216
    %v970 = vadd.f32 %v968, %v112
    %v971 = vadd.f32 %v969, %v113
    %v973 = vsel %vm867, %v970, 0
    %v976 = vsel %vm867, %v971, 0
    %v978 = vsel %vm932, %v971, 0
    %980 = vmatpush.msra.mxu0 0.0
    %981 = vmatpush.msra.mxu0 0.0
    %982 = vmatpush.msra.mxu0 0.0
    %983 = vmatpush.msra.mxu0 0.0
    %984 = vmatpush.msra.mxu0 0.0
    %985 = vmatpush.msra.mxu0 0.0
    %986 = vmatpush.msra.mxu0 0.0
    %987 = vmatpush.msra.mxu0 0.0
    %988 = vmatpush.msra.mxu0 0.0
    %989 = vmatpush.msra.mxu0 0.0
    %990 = vmatpush.msra.mxu0 0.0
    %991 = vmatpush.msra.mxu0 0.0
    %992 = vmatpush.msra.mxu0 0.0
    %993 = vmatpush.msra.mxu0 0.0
    %994 = vmatpush.msra.mxu0 %v978
    %995 = vmatpush.msra.mxu0 %v970
    %996 = vmatmul.f32.gmra.mxu0 %v973
    %v997 = vpop.f32.mrf.mxu0
    %v998 = vadd.f32 0.0, %v997
    %999 = vmatmul.f32.gmra.mxu0 %v976
    %v1000 = vpop.f32.mrf.mxu0
    %v1001 = vadd.f32 0.0, %v1000
    %1002 = vdwg.mxu0
    %v1003 = vmul.f32 %v998, %v215
    %v1004 = vmul.f32 %v1001, %v216
    %1005 = vrot.lane.b32.xlu0 %v252, 126
    %v1006 = vpop.permute.xlu0 %1005
    %1007 = vrot.lane.b32.xlu0 %v253, 126
    %v1008 = vpop.permute.xlu0 %1007
    %1009 = vrot.lane.b32.xlu0 %v254, 126
    %v1010 = vpop.permute.xlu0 %1009
    %1011 = vrot.lane.b32.xlu0 %v255, 126
    %v1012 = vpop.permute.xlu0 %1011
    %1013 = vrot.lane.b32.xlu0 %v256, 126
    %v1014 = vpop.permute.xlu0 %1013
    %1015 = vrot.lane.b32.xlu0 %v257, 126
    %v1016 = vpop.permute.xlu0 %1015
    %v1024 = vsel %vm258, %v966, 0
    %v1027 = vsel %vm258, %v967, 0
    %1029 = vmatpush.msra.mxu0 0.0
    %1030 = vmatpush.msra.mxu0 0.0
    %1031 = vmatpush.msra.mxu0 0.0
    %1032 = vmatpush.msra.mxu0 0.0
    %1033 = vmatpush.msra.mxu0 0.0
    %1034 = vmatpush.msra.mxu0 0.0
    %1035 = vmatpush.msra.mxu0 0.0
    %1036 = vmatpush.msra.mxu0 0.0
    %1037 = vmatpush.msra.mxu0 0.0
    %1038 = vmatpush.msra.mxu0 0.0
    %1039 = vmatpush.msra.mxu0 %v1016
    %1040 = vmatpush.msra.mxu0 %v1014
    %1041 = vmatpush.msra.mxu0 %v1012
    %1042 = vmatpush.msra.mxu0 %v1010
    %1043 = vmatpush.msra.mxu0 %v1008
    %1044 = vmatpush.msra.mxu0 %v1006
    %1045 = vmatmul.f32.gmra.mxu0 %v1024
    %v1046 = vpop.f32.mrf.mxu0
    %v1047 = vadd.f32 0.0, %v1046
    %1048 = vmatmul.f32.gmra.mxu0 %v1027
    %v1049 = vpop.f32.mrf.mxu0
    %v1050 = vadd.f32 0.0, %v1049
    %1051 = vdwg.mxu0
    %v1052 = vtanh.pop %v1047
    %v1053 = vtanh.pop %v1050
    %1055 = vset.pattern.permute.xlu0 0
    %1056 = vperm.xlu0 %1055, %v1052
    %v1057 = vpop.permute.xlu0 %1056
    %1060 = vset.pattern.permute.xlu0 0
    %1061 = vperm.xlu0 %1060, %v1053
    %v1062 = vpop.permute.xlu0 %1061
    %v1064 = vmul.f32 %v112, %v1057
    %v1065 = vmul.f32 %v113, %v1062
    %v1066 = vsel %vm867, 1.0, 0
    %v1069 = vsel %vm932, %v1065, 0
    %1071 = vmatpush.msra.mxu0 0.0
    %1072 = vmatpush.msra.mxu0 0.0
    %1073 = vmatpush.msra.mxu0 0.0
    %1074 = vmatpush.msra.mxu0 0.0
    %1075 = vmatpush.msra.mxu0 0.0
    %1076 = vmatpush.msra.mxu0 0.0
    %1077 = vmatpush.msra.mxu0 0.0
    %1078 = vmatpush.msra.mxu0 0.0
    %1079 = vmatpush.msra.mxu0 0.0
    %1080 = vmatpush.msra.mxu0 0.0
    %1081 = vmatpush.msra.mxu0 0.0
    %1082 = vmatpush.msra.mxu0 0.0
    %1083 = vmatpush.msra.mxu0 0.0
    %1084 = vmatpush.msra.mxu0 0.0
    %1085 = vmatpush.msra.mxu0 %v1069
    %1086 = vmatpush.msra.mxu0 %v1064
    %1087 = vmatmul.f32.gmra.mxu0 %v1066
    %v1088 = vpop.f32.mrf.mxu0
    %v1089 = vadd.f32 0.0, %v1088
    %1090 = vmatmul.f32.gmra.mxu0 %v1066
    %v1091 = vpop.f32.mrf.mxu0
    %v1092 = vadd.f32 0.0, %v1091
    %1093 = vdwg.mxu0
    %vm1094 = vcmp.gt.f32.partialorder %v1089, %v1057
    %vm1095 = vcmp.gt.f32.partialorder %v1092, %v1062
    %vm1096 = vcmp.eq.f32.partialorder %v1089, %v1057
    %vm1097 = vcmp.eq.f32.partialorder %v1092, %v1062
    %vm1098 = vmand %vm1096, %vm332
    %vm1099 = vmand %vm1097, %vm333
    %vm1100 = vmor %vm1094, %vm1098
    %vm1101 = vmor %vm1095, %vm1099
    %v1102 = vsel %vm1100, 1.0, 0.0
    %v1103 = vsel %vm1101, 1.0, 0.0
    %v1104 = vsel %vm867, %v1102, 0.0
    %1105 = vadd.xlane.f32.xlu0 %v1104
    %v1106 = vpop.xlane.xlu0 %1105
    %v1107 = vsel %vm871, %v1103, 0.0
    %1108 = vadd.xlane.f32.xlu0 %v1107
    %v1109 = vpop.xlane.xlu0 %1108
    %v1110 = vmul.f32 %v112, %v1106
    %v1111 = vmul.f32 %v113, %v1109
    %v1113 = vsel %vm932, %v1111, 0
    %1115 = vmatpush.msra.mxu0 0.0
    %1116 = vmatpush.msra.mxu0 0.0
    %1117 = vmatpush.msra.mxu0 0.0
    %1118 = vmatpush.msra.mxu0 0.0
    %1119 = vmatpush.msra.mxu0 0.0
    %1120 = vmatpush.msra.mxu0 0.0
    %1121 = vmatpush.msra.mxu0 0.0
    %1122 = vmatpush.msra.mxu0 0.0
    %1123 = vmatpush.msra.mxu0 0.0
    %1124 = vmatpush.msra.mxu0 0.0
    %1125 = vmatpush.msra.mxu0 0.0
    %1126 = vmatpush.msra.mxu0 0.0
    %1127 = vmatpush.msra.mxu0 0.0
    %1128 = vmatpush.msra.mxu0 0.0
    %1129 = vmatpush.msra.mxu0 %v1113
    %1130 = vmatpush.msra.mxu0 %v1110
    %1131 = vmatmul.f32.gmra.mxu0 %v1066
    %v1132 = vpop.f32.mrf.mxu0
    %v1133 = vadd.f32 0.0, %v1132
    %1134 = vdwg.mxu0
    %v1135 = vcvt.f32.s32.to.zero.pseudo %v1133
    %vm1136 = vcmp.eq.s32.totalorder %v1135, %v106
    %v1137 = vsel %vm1136, 1.0, 0.0
    %v1138 = vcvt.f32.s32.to.zero.pseudo %v1106
    %v1139 = vcvt.f32.s32.to.zero.pseudo %v1109
    %vm1140 = vcmp.eq.s32.totalorder %v1138, %v109
    %vm1141 = vcmp.eq.s32.totalorder %v1139, %v109
    %v1142 = vsel %vm1140, 1.0, 0.0
    %v1143 = vsel %vm1141, 1.0, 0.0
    %v1144 = vmul.f32 %v966, %v1057
    %v1145 = vmul.f32 %v967, %v1062
    %v1147 = vsel %vm867, %v1137, 0
    %v1150 = vsel %vm932, %v1145, 0
    %1152 = vmatpush.msra.mxu0 0.0
    %1153 = vmatpush.msra.mxu0 0.0
    %1154 = vmatpush.msra.mxu0 0.0
    %1155 = vmatpush.msra.mxu0 0.0
    %1156 = vmatpush.msra.mxu0 0.0
    %1157 = vmatpush.msra.mxu0 0.0
    %1158 = vmatpush.msra.mxu0 0.0
    %1159 = vmatpush.msra.mxu0 0.0
    %1160 = vmatpush.msra.mxu0 0.0
    %1161 = vmatpush.msra.mxu0 0.0
    %1162 = vmatpush.msra.mxu0 0.0
    %1163 = vmatpush.msra.mxu0 0.0
    %1164 = vmatpush.msra.mxu0 0.0
    %1165 = vmatpush.msra.mxu0 0.0
    %1166 = vmatpush.msra.mxu0 %v1150
    %1167 = vmatpush.msra.mxu0 %v1144
    %1168 = vmatmul.f32.gmra.mxu0 %v1147
    %v1169 = vpop.f32.mrf.mxu0
    %v1170 = vadd.f32 0.0, %v1169
    %1171 = vdwg.mxu0
    %v1173 = vsel %vm932, %v1004, 0
    %1175 = vmatpush.msra.mxu0 0.0
    %1176 = vmatpush.msra.mxu0 0.0
    %1177 = vmatpush.msra.mxu0 0.0
    %1178 = vmatpush.msra.mxu0 0.0
    %1179 = vmatpush.msra.mxu0 0.0
    %1180 = vmatpush.msra.mxu0 0.0
    %1181 = vmatpush.msra.mxu0 0.0
    %1182 = vmatpush.msra.mxu0 0.0
    %1183 = vmatpush.msra.mxu0 0.0
    %1184 = vmatpush.msra.mxu0 0.0
    %1185 = vmatpush.msra.mxu0 0.0
    %1186 = vmatpush.msra.mxu0 0.0
    %1187 = vmatpush.msra.mxu0 0.0
    %1188 = vmatpush.msra.mxu0 0.0
    %1189 = vmatpush.msra.mxu0 %v1173
    %1190 = vmatpush.msra.mxu0 %v1003
    %1191 = vmatmul.f32.gmra.mxu0 %v1147
    %v1192 = vpop.f32.mrf.mxu0
    %v1193 = vadd.f32 0.0, %v1192
    %1194 = vdwg.mxu0
    %v1196 = vsel %vm867, %v1193, 0
    %v1199 = vsel %vm932, %v1143, 0
    %1201 = vmatpush.msra.mxu0 0.0
    %1202 = vmatpush.msra.mxu0 0.0
    %1203 = vmatpush.msra.mxu0 0.0
    %1204 = vmatpush.msra.mxu0 0.0
    %1205 = vmatpush.msra.mxu0 0.0
    %1206 = vmatpush.msra.mxu0 0.0
    %1207 = vmatpush.msra.mxu0 0.0
    %1208 = vmatpush.msra.mxu0 0.0
    %1209 = vmatpush.msra.mxu0 0.0
    %1210 = vmatpush.msra.mxu0 0.0
    %1211 = vmatpush.msra.mxu0 0.0
    %1212 = vmatpush.msra.mxu0 0.0
    %1213 = vmatpush.msra.mxu0 0.0
    %1214 = vmatpush.msra.mxu0 0.0
    %1215 = vmatpush.msra.mxu0 %v1199
    %1216 = vmatpush.msra.mxu0 %v1142
    %1217 = vmatmul.f32.gmra.mxu0 %v1196
    %v1218 = vpop.f32.mrf.mxu0
    %v1219 = vadd.f32 0.0, %v1218
    %1220 = vdwg.mxu0
    %s1221 = scalar_lea.vmem %s4, 96
    %v1222 = vld [vmem:[%s1221] sm:$0xff]
    %v1223 = vld [vmem:[%s1221 + $0x8] sm:$0xff]
    %v1224 = vld [vmem:[%s1221 + $0x10] sm:$0xff]
    %v1225 = vld [vmem:[%s1221 + $0x18] sm:$0xff]
    %v1226 = vld [vmem:[%s1221 + $0x20] sm:$0xff]
    %v1227 = vld [vmem:[%s1221 + $0x28] sm:$0xff]
    %s1228 = scalar_lea.vmem %s5, 2
    %v1229 = vld [vmem:[%s1228] sm:$0x1]
    %v1230 = vadd.f32 %v1219, %v114
    %vm1231 = vcmask 55296
    %v1232 = vsel %vm1231, %v1230, 0.0
    %1233 = vadd.xlane.f32.xlu0 %v1232
    %v1234 = vpop.xlane.xlu0 %1233
    %v1235 = vrsqrt.pop %v1234
    %v1236 = vmul.f32 %v1235, %v1234
    %v1237 = vmul.f32 %v1236, %v1235
    %v1238 = vmul.f32 0.5, %v1237
    %v1239 = vsub.f32 1.5, %v1238
    %v1240 = vmul.f32 %v1235, %v1239
    %vm1241 = vweird.f32 %v1234
    %vm1242 = vweird.f32 %v1235
    %vm1243 = vmor %vm1241, %vm1242
    %v1244 = vsel %vm1243, %v1235, %v1240
    %v1246 = vsel %vm258, %v1170, 0
    %1248 = vmatpush.msra.mxu0 0.0
    %1249 = vmatpush.msra.mxu0 0.0
    %1250 = vmatpush.msra.mxu0 0.0
    %1251 = vmatpush.msra.mxu0 0.0
    %1252 = vmatpush.msra.mxu0 0.0
    %1253 = vmatpush.msra.mxu0 0.0
    %1254 = vmatpush.msra.mxu0 0.0
    %1255 = vmatpush.msra.mxu0 0.0
    %1256 = vmatpush.msra.mxu0 0.0
    %1257 = vmatpush.msra.mxu0 0.0
    %1258 = vmatpush.msra.mxu0 %v1227
    %1259 = vmatpush.msra.mxu0 %v1226
    %1260 = vmatpush.msra.mxu0 %v1225
    %1261 = vmatpush.msra.mxu0 %v1224
    %1262 = vmatpush.msra.mxu0 %v1223
    %1263 = vmatpush.msra.mxu0 %v1222
    %1264 = vmatmul.f32.gmra.mxu0 %v1246
    %v1265 = vpop.f32.mrf.mxu0
    %v1266 = vadd.f32 0.0, %v1265
    %1267 = vdwg.mxu0
    %v1268 = vmul.f32 %v1244, %v1266
    %vm1269 = vcmask 56320
    %v1271 = vsel %vm1269, %v1230, 0
    %v1274 = vsel %vm540, %v1268, 0
    %1276 = vmatpush.msra.mxu0 0.0
    %1277 = vmatpush.msra.mxu0 0.0
    %1278 = vmatpush.msra.mxu0 0.0
    %1279 = vmatpush.msra.mxu0 0.0
    %1280 = vmatpush.msra.mxu0 0.0
    %1281 = vmatpush.msra.mxu0 0.0
    %1282 = vmatpush.msra.mxu0 0.0
    %1283 = vmatpush.msra.mxu0 0.0
    %1284 = vmatpush.msra.mxu0 0.0
    %1285 = vmatpush.msra.mxu0 0.0
    %1286 = vmatpush.msra.mxu0 0.0
    %1287 = vmatpush.msra.mxu0 0.0
    %1288 = vmatpush.msra.mxu0 0.0
    %1289 = vmatpush.msra.mxu0 0.0
    %1290 = vmatpush.msra.mxu0 0.0
    %1291 = vmatpush.msra.mxu0 %v1274
    %1292 = vmatmul.f32.gmra.mxu0 %v1271
    %v1293 = vpop.f32.mrf.mxu0
    %v1294 = vadd.f32 0.0, %v1293
    %1295 = vdwg.mxu0
    %v1296 = vmul.f32 %v1244, %v1294
    %v1298 = vperm.slane %v1229, 0
    %v1300 = vadd.f32 %v1296, %v1298
    %v1301 = vmax.f32 %v1300, 0.0
    %v1302 = vmul.f32 %v1219, %v215
    %v1303 = vadd.f32 %v1302, %v112
    %v1305 = vsel %vm1269, %v1303, 0
    %v1307 = vsel %vm540, %v1303, 0
    %1309 = vmatpush.msra.mxu0 0.0
    %1310 = vmatpush.msra.mxu0 0.0
    %1311 = vmatpush.msra.mxu0 0.0
    %1312 = vmatpush.msra.mxu0 0.0
    %1313 = vmatpush.msra.mxu0 0.0
    %1314 = vmatpush.msra.mxu0 0.0
    %1315 = vmatpush.msra.mxu0 0.0
    %1316 = vmatpush.msra.mxu0 0.0
    %1317 = vmatpush.msra.mxu0 0.0
    %1318 = vmatpush.msra.mxu0 0.0
    %1319 = vmatpush.msra.mxu0 0.0
    %1320 = vmatpush.msra.mxu0 0.0
    %1321 = vmatpush.msra.mxu0 0.0
    %1322 = vmatpush.msra.mxu0 0.0
    %1323 = vmatpush.msra.mxu0 0.0
    %1324 = vmatpush.msra.mxu0 %v1307
    %1325 = vmatmul.f32.gmra.mxu0 %v1305
    %v1326 = vpop.f32.mrf.mxu0
    %v1327 = vadd.f32 0.0, %v1326
    %1328 = vdwg.mxu0
    %v1329 = vmul.f32 %v1327, %v215
    %1330 = vrot.lane.b32.xlu0 %v252, 125
    %v1331 = vpop.permute.xlu0 %1330
    %1332 = vrot.lane.b32.xlu0 %v253, 125
    %v1333 = vpop.permute.xlu0 %1332
    %1334 = vrot.lane.b32.xlu0 %v254, 125
    %v1335 = vpop.permute.xlu0 %1334
    %1336 = vrot.lane.b32.xlu0 %v255, 125
    %v1337 = vpop.permute.xlu0 %1336
    %1338 = vrot.lane.b32.xlu0 %v256, 125
    %v1339 = vpop.permute.xlu0 %1338
    %1340 = vrot.lane.b32.xlu0 %v257, 125
    %v1341 = vpop.permute.xlu0 %1340
    %v1349 = vsel %vm258, %v1301, 0
    %1351 = vmatpush.msra.mxu0 0.0
    %1352 = vmatpush.msra.mxu0 0.0
    %1353 = vmatpush.msra.mxu0 0.0
    %1354 = vmatpush.msra.mxu0 0.0
    %1355 = vmatpush.msra.mxu0 0.0
    %1356 = vmatpush.msra.mxu0 0.0
    %1357 = vmatpush.msra.mxu0 0.0
    %1358 = vmatpush.msra.mxu0 0.0
    %1359 = vmatpush.msra.mxu0 0.0
    %1360 = vmatpush.msra.mxu0 0.0
    %1361 = vmatpush.msra.mxu0 %v1341
    %1362 = vmatpush.msra.mxu0 %v1339
    %1363 = vmatpush.msra.mxu0 %v1337
    %1364 = vmatpush.msra.mxu0 %v1335
    %1365 = vmatpush.msra.mxu0 %v1333
    %1366 = vmatpush.msra.mxu0 %v1331
    %1367 = vmatmul.f32.gmra.mxu0 %v1349
    %v1368 = vpop.f32.mrf.mxu0
    %v1369 = vadd.f32 0.0, %v1368
    %1370 = vdwg.mxu0
    %v1371 = vtanh.pop %v1369
    %1373 = vset.pattern.permute.xlu0 0
    %1374 = vperm.xlu0 %1373, %v1371
    %v1375 = vpop.permute.xlu0 %1374
    %v1377 = vmul.f32 %v112, %v1375
    %v1378 = vsel %vm1269, 1.0, 0
    %v1381 = vsel %vm540, %v1377, 0
    %1383 = vmatpush.msra.mxu0 0.0
    %1384 = vmatpush.msra.mxu0 0.0
    %1385 = vmatpush.msra.mxu0 0.0
    %1386 = vmatpush.msra.mxu0 0.0
    %1387 = vmatpush.msra.mxu0 0.0
    %1388 = vmatpush.msra.mxu0 0.0
    %1389 = vmatpush.msra.mxu0 0.0
    %1390 = vmatpush.msra.mxu0 0.0
    %1391 = vmatpush.msra.mxu0 0.0
    %1392 = vmatpush.msra.mxu0 0.0
    %1393 = vmatpush.msra.mxu0 0.0
    %1394 = vmatpush.msra.mxu0 0.0
    %1395 = vmatpush.msra.mxu0 0.0
    %1396 = vmatpush.msra.mxu0 0.0
    %1397 = vmatpush.msra.mxu0 0.0
    %1398 = vmatpush.msra.mxu0 %v1381
    %1399 = vmatmul.f32.gmra.mxu0 %v1378
    %v1400 = vpop.f32.mrf.mxu0
    %v1401 = vadd.f32 0.0, %v1400
    %1402 = vdwg.mxu0
    %vm1403 = vcmp.gt.f32.partialorder %v1401, %v1375
    %vm1404 = vcmp.eq.f32.partialorder %v1401, %v1375
    %vm1405 = vmand %vm1404, %vm332
    %vm1406 = vmor %vm1403, %vm1405
    %v1407 = vsel %vm1406, 1.0, 0.0
    %v1408 = vsel %vm1231, %v1407, 0.0
    %1409 = vadd.xlane.f32.xlu0 %v1408
    %v1410 = vpop.xlane.xlu0 %1409
    %v1411 = vmul.f32 %v112, %v1410
    %v1413 = vsel %vm540, %v1411, 0
    %1415 = vmatpush.msra.mxu0 0.0
    %1416 = vmatpush.msra.mxu0 0.0
    %1417 = vmatpush.msra.mxu0 0.0
    %1418 = vmatpush.msra.mxu0 0.0
    %1419 = vmatpush.msra.mxu0 0.0
    %1420 = vmatpush.msra.mxu0 0.0
    %1421 = vmatpush.msra.mxu0 0.0
    %1422 = vmatpush.msra.mxu0 0.0
    %1423 = vmatpush.msra.mxu0 0.0
    %1424 = vmatpush.msra.mxu0 0.0
    %1425 = vmatpush.msra.mxu0 0.0
    %1426 = vmatpush.msra.mxu0 0.0
    %1427 = vmatpush.msra.mxu0 0.0
    %1428 = vmatpush.msra.mxu0 0.0
    %1429 = vmatpush.msra.mxu0 0.0
    %1430 = vmatpush.msra.mxu0 %v1413
    %1431 = vmatmul.f32.gmra.mxu0 %v1378
    %v1432 = vpop.f32.mrf.mxu0
    %v1433 = vadd.f32 0.0, %v1432
    %1434 = vdwg.mxu0
    %v1435 = vcvt.f32.s32.to.zero.pseudo %v1433
    %vm1436 = vcmp.eq.s32.totalorder %v1435, %v106
    %v1437 = vsel %vm1436, 1.0, 0.0
    %v1438 = vcvt.f32.s32.to.zero.pseudo %v1410
    %vm1439 = vcmp.eq.s32.totalorder %v1438, %v109
    %v1440 = vsel %vm1439, 1.0, 0.0
    %v1441 = vmul.f32 %v1301, %v1375
    %v1443 = vsel %vm1269, %v1437, 0
    %v1446 = vsel %vm540, %v1441, 0
    %1448 = vmatpush.msra.mxu0 0.0
    %1449 = vmatpush.msra.mxu0 0.0
    %1450 = vmatpush.msra.mxu0 0.0
    %1451 = vmatpush.msra.mxu0 0.0
    %1452 = vmatpush.msra.mxu0 0.0
    %1453 = vmatpush.msra.mxu0 0.0
    %1454 = vmatpush.msra.mxu0 0.0
    %1455 = vmatpush.msra.mxu0 0.0
    %1456 = vmatpush.msra.mxu0 0.0
    %1457 = vmatpush.msra.mxu0 0.0
    %1458 = vmatpush.msra.mxu0 0.0
    %1459 = vmatpush.msra.mxu0 0.0
    %1460 = vmatpush.msra.mxu0 0.0
    %1461 = vmatpush.msra.mxu0 0.0
    %1462 = vmatpush.msra.mxu0 0.0
    %1463 = vmatpush.msra.mxu0 %v1446
    %1464 = vmatmul.f32.gmra.mxu0 %v1443
    %v1465 = vpop.f32.mrf.mxu0
    %v1466 = vadd.f32 0.0, %v1465
    %1467 = vdwg.mxu0
    %v1469 = vsel %vm540, %v1329, 0
    %1471 = vmatpush.msra.mxu0 0.0
    %1472 = vmatpush.msra.mxu0 0.0
    %1473 = vmatpush.msra.mxu0 0.0
    %1474 = vmatpush.msra.mxu0 0.0
    %1475 = vmatpush.msra.mxu0 0.0
    %1476 = vmatpush.msra.mxu0 0.0
    %1477 = vmatpush.msra.mxu0 0.0
    %1478 = vmatpush.msra.mxu0 0.0
    %1479 = vmatpush.msra.mxu0 0.0
    %1480 = vmatpush.msra.mxu0 0.0
    %1481 = vmatpush.msra.mxu0 0.0
    %1482 = vmatpush.msra.mxu0 0.0
    %1483 = vmatpush.msra.mxu0 0.0
    %1484 = vmatpush.msra.mxu0 0.0
    %1485 = vmatpush.msra.mxu0 0.0
    %1486 = vmatpush.msra.mxu0 %v1469
    %1487 = vmatmul.f32.gmra.mxu0 %v1443
    %v1488 = vpop.f32.mrf.mxu0
    %v1489 = vadd.f32 0.0, %v1488
    %1490 = vdwg.mxu0
    %s1491 = scalar_lea.vmem %s4, 144
    %v1492 = vld [vmem:[%s1491] sm:$0xff]
    %v1493 = vld [vmem:[%s1491 + $0x8] sm:$0xff]
    %v1494 = vld [vmem:[%s1491 + $0x10] sm:$0xff]
    %v1495 = vld [vmem:[%s1491 + $0x18] sm:$0xff]
    %v1496 = vld [vmem:[%s1491 + $0x20] sm:$0xff]
    %v1497 = vld [vmem:[%s1491 + $0x28] sm:$0xff]
    %s1498 = scalar_lea.vmem %s5, 3
    %v1499 = vld [vmem:[%s1498] sm:$0x1]
    %v1501 = vsel %vm1269, %v1489, 0
    %v1504 = vsel %vm540, %v1440, 0
    %1506 = vmatpush.msra.mxu0 0.0
    %1507 = vmatpush.msra.mxu0 0.0
    %1508 = vmatpush.msra.mxu0 0.0
    %1509 = vmatpush.msra.mxu0 0.0
    %1510 = vmatpush.msra.mxu0 0.0
    %1511 = vmatpush.msra.mxu0 0.0
    %1512 = vmatpush.msra.mxu0 0.0
    %1513 = vmatpush.msra.mxu0 0.0
    %1514 = vmatpush.msra.mxu0 0.0
    %1515 = vmatpush.msra.mxu0 0.0
    %1516 = vmatpush.msra.mxu0 0.0
    %1517 = vmatpush.msra.mxu0 0.0
    %1518 = vmatpush.msra.mxu0 0.0
    %1519 = vmatpush.msra.mxu0 0.0
    %1520 = vmatpush.msra.mxu0 0.0
    %1521 = vmatpush.msra.mxu0 %v1504
    %1522 = vmatmul.f32.gmra.mxu0 %v1501
    %v1523 = vpop.f32.mrf.mxu0
    %v1524 = vadd.f32 %v114, %v1523
    %1525 = vdwg.mxu0
    %vm1526 = vcmask 27648
    %v1527 = vsel %vm1526, %v1524, 0.0
    %1528 = vadd.xlane.f32.xlu0 %v1527
    %v1529 = vpop.xlane.xlu0 %1528
    %v1530 = vrsqrt.pop %v1529
    %v1531 = vmul.f32 %v1530, %v1529
    %v1532 = vmul.f32 %v1531, %v1530
    %v1533 = vmul.f32 0.5, %v1532
    %v1534 = vsub.f32 1.5, %v1533
    %v1535 = vmul.f32 %v1530, %v1534
    %vm1536 = vweird.f32 %v1529
    %vm1537 = vweird.f32 %v1530
    %vm1538 = vmor %vm1536, %vm1537
    %v1539 = vsel %vm1538, %v1530, %v1535
    %v1541 = vsel %vm258, %v1466, 0
    %1543 = vmatpush.msra.mxu0 0.0
    %1544 = vmatpush.msra.mxu0 0.0
    %1545 = vmatpush.msra.mxu0 0.0
    %1546 = vmatpush.msra.mxu0 0.0
    %1547 = vmatpush.msra.mxu0 0.0
    %1548 = vmatpush.msra.mxu0 0.0
    %1549 = vmatpush.msra.mxu0 0.0
    %1550 = vmatpush.msra.mxu0 0.0
    %1551 = vmatpush.msra.mxu0 0.0
    %1552 = vmatpush.msra.mxu0 0.0
    %1553 = vmatpush.msra.mxu0 %v1497
    %1554 = vmatpush.msra.mxu0 %v1496
    %1555 = vmatpush.msra.mxu0 %v1495
    %1556 = vmatpush.msra.mxu0 %v1494
    %1557 = vmatpush.msra.mxu0 %v1493
    %1558 = vmatpush.msra.mxu0 %v1492
    %1559 = vmatmul.f32.gmra.mxu0 %v1541
    %v1560 = vpop.f32.mrf.mxu0
    %v1561 = vadd.f32 0.0, %v1560
    %1562 = vdwg.mxu0
    %v1563 = vmul.f32 %v1539, %v1561
    %vm1564 = vcmask 31744
    %v1566 = vsel %vm1564, %v1524, 0
    %vm1568 = vcmask 1043456
    %v1570 = vsel %vm1568, %v1563, 0
    %1572 = vmatpush.msra.mxu0 0.0
    %1573 = vmatpush.msra.mxu0 0.0
    %1574 = vmatpush.msra.mxu0 0.0
    %1575 = vmatpush.msra.mxu0 0.0
    %1576 = vmatpush.msra.mxu0 0.0
    %1577 = vmatpush.msra.mxu0 0.0
    %1578 = vmatpush.msra.mxu0 0.0
    %1579 = vmatpush.msra.mxu0 0.0
    %1580 = vmatpush.msra.mxu0 0.0
    %1581 = vmatpush.msra.mxu0 0.0
    %1582 = vmatpush.msra.mxu0 0.0
    %1583 = vmatpush.msra.mxu0 0.0
    %1584 = vmatpush.msra.mxu0 0.0
    %1585 = vmatpush.msra.mxu0 0.0
    %1586 = vmatpush.msra.mxu0 0.0
    %1587 = vmatpush.msra.mxu0 %v1570
    %1588 = vmatmul.f32.gmra.mxu0 %v1566
    %v1589 = vpop.f32.mrf.mxu0
    %v1590 = vadd.f32 0.0, %v1589
    %1591 = vdwg.mxu0
    %v1592 = vmul.f32 %v1539, %v1590
    %v1594 = vperm.slane %v1499, 0
    %v1596 = vadd.f32 %v1592, %v1594
    %v1597 = vmax.f32 %v1596, 0.0
    %v1598 = vsel %vm1564, %v1440, 0
    %v1601 = vsel %vm1568, %v1597, 0
    %1603 = vmatpush.msra.mxu0 0.0
    %1604 = vmatpush.msra.mxu0 0.0
    %1605 = vmatpush.msra.mxu0 0.0
    %1606 = vmatpush.msra.mxu0 0.0
    %1607 = vmatpush.msra.mxu0 0.0
    %1608 = vmatpush.msra.mxu0 0.0
    %1609 = vmatpush.msra.mxu0 0.0
    %1610 = vmatpush.msra.mxu0 0.0
    %1611 = vmatpush.msra.mxu0 0.0
    %1612 = vmatpush.msra.mxu0 0.0
    %1613 = vmatpush.msra.mxu0 0.0
    %1614 = vmatpush.msra.mxu0 0.0
    %1615 = vmatpush.msra.mxu0 0.0
    %1616 = vmatpush.msra.mxu0 0.0
    %1617 = vmatpush.msra.mxu0 0.0
    %1618 = vmatpush.msra.mxu0 %v1601
    %1619 = vmatmul.f32.gmra.mxu0 %v1598
    %v1620 = vpop.f32.mrf.mxu0
    %v1621 = vadd.f32 0.0, %v1620
    %1622 = vdwg.mxu0
    %v1623 = vadd.f32 %v1301, %v1621
    %v1624 = vld [vmem:[#allocation6] sm:$0xff]
    %v1625 = vld [vmem:[#allocation6 + $0x8] sm:$0xff]
    %v1626 = vld [vmem:[#allocation6 + $0x10] sm:$0xff]
    %v1627 = vld [vmem:[#allocation6 + $0x18] sm:$0xff]
    %v1628 = vld [vmem:[#allocation6 + $0x20] sm:$0xff]
    %v1629 = vld [vmem:[#allocation6 + $0x28] sm:$0xff]
    %v1630 = vld [vmem:[%s8] sm:$0x1]
    %v1632 = vsel %vm258, %v1623, 0
    %1634 = vmatpush.msra.mxu0 0.0
    %1635 = vmatpush.msra.mxu0 0.0
    %1636 = vmatpush.msra.mxu0 0.0
    %1637 = vmatpush.msra.mxu0 0.0
    %1638 = vmatpush.msra.mxu0 0.0
    %1639 = vmatpush.msra.mxu0 0.0
    %1640 = vmatpush.msra.mxu0 0.0
    %1641 = vmatpush.msra.mxu0 0.0
    %1642 = vmatpush.msra.mxu0 0.0
    %1643 = vmatpush.msra.mxu0 0.0
    %1644 = vmatpush.msra.mxu0 %v1629
    %1645 = vmatpush.msra.mxu0 %v1628
    %1646 = vmatpush.msra.mxu0 %v1627
    %1647 = vmatpush.msra.mxu0 %v1626
    %1648 = vmatpush.msra.mxu0 %v1625
    %1649 = vmatpush.msra.mxu0 %v1624
    %1650 = vmatmul.f32.gmra.mxu0 %v1632
    %v1651 = vpop.f32.mrf.mxu0
    %v1652 = vadd.f32 0.0, %v1651
    %1653 = vdwg.mxu0
    %v1654 = vmul.f32 %v1244, %v1652
    %v1656 = vsel %vm540, %v1654, 0
    %1658 = vmatpush.msra.mxu0 0.0
    %1659 = vmatpush.msra.mxu0 0.0
    %1660 = vmatpush.msra.mxu0 0.0
    %1661 = vmatpush.msra.mxu0 0.0
    %1662 = vmatpush.msra.mxu0 0.0
    %1663 = vmatpush.msra.mxu0 0.0
    %1664 = vmatpush.msra.mxu0 0.0
    %1665 = vmatpush.msra.mxu0 0.0
    %1666 = vmatpush.msra.mxu0 0.0
    %1667 = vmatpush.msra.mxu0 0.0
    %1668 = vmatpush.msra.mxu0 0.0
    %1669 = vmatpush.msra.mxu0 0.0
    %1670 = vmatpush.msra.mxu0 0.0
    %1671 = vmatpush.msra.mxu0 0.0
    %1672 = vmatpush.msra.mxu0 0.0
    %1673 = vmatpush.msra.mxu0 %v1656
    %1674 = vmatmul.f32.gmra.mxu0 %v1271
    %v1675 = vpop.f32.mrf.mxu0
    %v1676 = vadd.f32 0.0, %v1675
    %1677 = vdwg.mxu0
    %v1678 = vmul.f32 %v1244, %v1676
    %v1680 = vperm.slane %v1630, 0
    %v1682 = vadd.f32 %v1678, %v1680
    %v1683 = vmax.f32 %v1682, 0.0
    %v1685 = vsel %vm1269, %v1142, 0
    %v1687 = vsel %vm1269, %v1143, 0
    %v1690 = vsel %vm540, %v1683, 0
    %1692 = vmatpush.msra.mxu0 0.0
    %1693 = vmatpush.msra.mxu0 0.0
    %1694 = vmatpush.msra.mxu0 0.0
    %1695 = vmatpush.msra.mxu0 0.0
    %1696 = vmatpush.msra.mxu0 0.0
    %1697 = vmatpush.msra.mxu0 0.0
    %1698 = vmatpush.msra.mxu0 0.0
    %1699 = vmatpush.msra.mxu0 0.0
    %1700 = vmatpush.msra.mxu0 0.0
    %1701 = vmatpush.msra.mxu0 0.0
    %1702 = vmatpush.msra.mxu0 0.0
    %1703 = vmatpush.msra.mxu0 0.0
    %1704 = vmatpush.msra.mxu0 0.0
    %1705 = vmatpush.msra.mxu0 0.0
    %1706 = vmatpush.msra.mxu0 0.0
    %1707 = vmatpush.msra.mxu0 %v1690
    %1708 = vmatmul.f32.gmra.mxu0 %v1685
    %v1709 = vpop.f32.mrf.mxu0
    %v1710 = vadd.f32 0.0, %v1709
    %1711 = vmatmul.f32.gmra.mxu0 %v1687
    %v1712 = vpop.f32.mrf.mxu0
    %v1713 = vadd.f32 0.0, %v1712
    %1714 = vdwg.mxu0
    %v1715 = vadd.f32 %v966, %v1710
    %v1716 = vadd.f32 %v967, %v1713
    %s1717 = scalar_lea.vmem [#allocation6], 48
    %v1718 = vld [vmem:[%s1717] sm:$0xff]
    %v1719 = vld [vmem:[%s1717 + $0x8] sm:$0xff]
    %v1720 = vld [vmem:[%s1717 + $0x10] sm:$0xff]
    %v1721 = vld [vmem:[%s1717 + $0x18] sm:$0xff]
    %v1722 = vld [vmem:[%s1717 + $0x20] sm:$0xff]
    %v1723 = vld [vmem:[%s1717 + $0x28] sm:$0xff]
    %s1724 = scalar_lea.vmem %s8, 1
    %v1725 = vld [vmem:[%s1724] sm:$0x1]
    %v1727 = vsel %vm258, %v1715, 0
    %v1730 = vsel %vm258, %v1716, 0
    %1732 = vmatpush.msra.mxu0 0.0
    %1733 = vmatpush.msra.mxu0 0.0
    %1734 = vmatpush.msra.mxu0 0.0
    %1735 = vmatpush.msra.mxu0 0.0
    %1736 = vmatpush.msra.mxu0 0.0
    %1737 = vmatpush.msra.mxu0 0.0
    %1738 = vmatpush.msra.mxu0 0.0
    %1739 = vmatpush.msra.mxu0 0.0
    %1740 = vmatpush.msra.mxu0 0.0
    %1741 = vmatpush.msra.mxu0 0.0
    %1742 = vmatpush.msra.mxu0 %v1723
    %1743 = vmatpush.msra.mxu0 %v1722
    %1744 = vmatpush.msra.mxu0 %v1721
    %1745 = vmatpush.msra.mxu0 %v1720
    %1746 = vmatpush.msra.mxu0 %v1719
    %1747 = vmatpush.msra.mxu0 %v1718
    %1748 = vmatmul.f32.gmra.mxu0 %v1727
    %v1749 = vpop.f32.mrf.mxu0
    %v1750 = vadd.f32 0.0, %v1749
    %1751 = vmatmul.f32.gmra.mxu0 %v1730
    %v1752 = vpop.f32.mrf.mxu0
    %v1753 = vadd.f32 0.0, %v1752
    %1754 = vdwg.mxu0
    %v1755 = vmul.f32 %v884, %v1750
    %v1756 = vmul.f32 %v894, %v1753
    %v1758 = vsel %vm932, %v1756, 0
    %1760 = vmatpush.msra.mxu0 0.0
    %1761 = vmatpush.msra.mxu0 0.0
    %1762 = vmatpush.msra.mxu0 0.0
    %1763 = vmatpush.msra.mxu0 0.0
    %1764 = vmatpush.msra.mxu0 0.0
    %1765 = vmatpush.msra.mxu0 0.0
    %1766 = vmatpush.msra.mxu0 0.0
    %1767 = vmatpush.msra.mxu0 0.0
    %1768 = vmatpush.msra.mxu0 0.0
    %1769 = vmatpush.msra.mxu0 0.0
    %1770 = vmatpush.msra.mxu0 0.0
    %1771 = vmatpush.msra.mxu0 0.0
    %1772 = vmatpush.msra.mxu0 0.0
    %1773 = vmatpush.msra.mxu0 0.0
    %1774 = vmatpush.msra.mxu0 %v1758
    %1775 = vmatpush.msra.mxu0 %v1755
    %1776 = vmatmul.f32.gmra.mxu0 %v927
    %v1777 = vpop.f32.mrf.mxu0
    %v1778 = vadd.f32 0.0, %v1777
    %1779 = vmatmul.f32.gmra.mxu0 %v930
    %v1780 = vpop.f32.mrf.mxu0
    %v1781 = vadd.f32 0.0, %v1780
    %1782 = vdwg.mxu0
    %v1783 = vmul.f32 %v884, %v1778
    %v1784 = vmul.f32 %v894, %v1781
    %v1786 = vperm.slane %v1725, 0
    %v1788 = vadd.f32 %v1783, %v1786
    %v1789 = vadd.f32 %v1784, %v1786
    %v1790 = vmax.f32 %v1788, 0.0
    %v1791 = vmax.f32 %v1789, 0.0
    %v1793 = vsel %vm867, %v762, 0
    %v1795 = vsel %vm867, %v763, 0
    %v1798 = vsel %vm932, %v1791, 0
    %1800 = vmatpush.msra.mxu0 0.0
    %1801 = vmatpush.msra.mxu0 0.0
    %1802 = vmatpush.msra.mxu0 0.0
    %1803 = vmatpush.msra.mxu0 0.0
    %1804 = vmatpush.msra.mxu0 0.0
    %1805 = vmatpush.msra.mxu0 0.0
    %1806 = vmatpush.msra.mxu0 0.0
    %1807 = vmatpush.msra.mxu0 0.0
    %1808 = vmatpush.msra.mxu0 0.0
    %1809 = vmatpush.msra.mxu0 0.0
    %1810 = vmatpush.msra.mxu0 0.0
    %1811 = vmatpush.msra.mxu0 0.0
    %1812 = vmatpush.msra.mxu0 0.0
    %1813 = vmatpush.msra.mxu0 0.0
    %1814 = vmatpush.msra.mxu0 %v1798
    %1815 = vmatpush.msra.mxu0 %v1790
    %1816 = vmatmul.f32.gmra.mxu0 %v1793
    %v1817 = vpop.f32.mrf.mxu0
    %v1818 = vadd.f32 0.0, %v1817
    %1819 = vmatmul.f32.gmra.mxu0 %v1795
    %v1820 = vpop.f32.mrf.mxu0
    %v1821 = vadd.f32 0.0, %v1820
    %1822 = vdwg.mxu0
    %v1823 = vadd.f32 %v574, %v1818
    %v1824 = vadd.f32 %v575, %v1821
    %s1825 = scalar_lea.vmem [#allocation6], 96
    %v1826 = vld [vmem:[%s1825] sm:$0xff]
    %v1827 = vld [vmem:[%s1825 + $0x8] sm:$0xff]
    %v1828 = vld [vmem:[%s1825 + $0x10] sm:$0xff]
    %v1829 = vld [vmem:[%s1825 + $0x18] sm:$0xff]
    %v1830 = vld [vmem:[%s1825 + $0x20] sm:$0xff]
    %v1831 = vld [vmem:[%s1825 + $0x28] sm:$0xff]
    %s1832 = scalar_lea.vmem %s8, 2
    %v1833 = vld [vmem:[%s1832] sm:$0x1]
    %v1835 = vsel %vm258, %v1823, 0
    %v1838 = vsel %vm258, %v1824, 0
    %1840 = vmatpush.msra.mxu0 0.0
    %1841 = vmatpush.msra.mxu0 0.0
    %1842 = vmatpush.msra.mxu0 0.0
    %1843 = vmatpush.msra.mxu0 0.0
    %1844 = vmatpush.msra.mxu0 0.0
    %1845 = vmatpush.msra.mxu0 0.0
    %1846 = vmatpush.msra.mxu0 0.0
    %1847 = vmatpush.msra.mxu0 0.0
    %1848 = vmatpush.msra.mxu0 0.0
    %1849 = vmatpush.msra.mxu0 0.0
    %1850 = vmatpush.msra.mxu0 %v1831
    %1851 = vmatpush.msra.mxu0 %v1830
    %1852 = vmatpush.msra.mxu0 %v1829
    %1853 = vmatpush.msra.mxu0 %v1828
    %1854 = vmatpush.msra.mxu0 %v1827
    %1855 = vmatpush.msra.mxu0 %v1826
    %1856 = vmatmul.f32.gmra.mxu0 %v1835
    %v1857 = vpop.f32.mrf.mxu0
    %v1858 = vadd.f32 0.0, %v1857
    %1859 = vmatmul.f32.gmra.mxu0 %v1838
    %v1860 = vpop.f32.mrf.mxu0
    %v1861 = vadd.f32 0.0, %v1860
    %1862 = vdwg.mxu0
    %v1863 = vmul.f32 %v492, %v1858
    %v1864 = vmul.f32 %v502, %v1861
    %v1866 = vsel %vm540, %v1864, 0
    %1868 = vmatpush.msra.mxu0 0.0
    %1869 = vmatpush.msra.mxu0 0.0
    %1870 = vmatpush.msra.mxu0 0.0
    %1871 = vmatpush.msra.mxu0 0.0
    %1872 = vmatpush.msra.mxu0 0.0
    %1873 = vmatpush.msra.mxu0 0.0
    %1874 = vmatpush.msra.mxu0 0.0
    %1875 = vmatpush.msra.mxu0 0.0
    %1876 = vmatpush.msra.mxu0 0.0
    %1877 = vmatpush.msra.mxu0 0.0
    %1878 = vmatpush.msra.mxu0 0.0
    %1879 = vmatpush.msra.mxu0 0.0
    %1880 = vmatpush.msra.mxu0 0.0
    %1881 = vmatpush.msra.mxu0 0.0
    %1882 = vmatpush.msra.mxu0 %v1866
    %1883 = vmatpush.msra.mxu0 %v1863
    %1884 = vmatmul.f32.gmra.mxu0 %v535
    %v1885 = vpop.f32.mrf.mxu0
    %v1886 = vadd.f32 0.0, %v1885
    %1887 = vmatmul.f32.gmra.mxu0 %v538
    %v1888 = vpop.f32.mrf.mxu0
    %v1889 = vadd.f32 0.0, %v1888
    %1890 = vdwg.mxu0
    %v1891 = vmul.f32 %v492, %v1886
    %v1892 = vmul.f32 %v502, %v1889
    %v1894 = vperm.slane %v1833, 0
    %v1896 = vadd.f32 %v1891, %v1894
    %v1897 = vadd.f32 %v1892, %v1894
    %v1898 = vmax.f32 %v1896, 0.0
    %v1899 = vmax.f32 %v1897, 0.0
    %v1901 = vsel %vm475, %v381, 0
    %v1904 = vsel %vm475, %v382, 0
    %v1907 = vsel %vm540, %v1899, 0
    %1909 = vmatpush.msra.mxu0 0.0
    %1910 = vmatpush.msra.mxu0 0.0
    %1911 = vmatpush.msra.mxu0 0.0
    %1912 = vmatpush.msra.mxu0 0.0
    %1913 = vmatpush.msra.mxu0 0.0
    %1914 = vmatpush.msra.mxu0 0.0
    %1915 = vmatpush.msra.mxu0 0.0
    %1916 = vmatpush.msra.mxu0 0.0
    %1917 = vmatpush.msra.mxu0 0.0
    %1918 = vmatpush.msra.mxu0 0.0
    %1919 = vmatpush.msra.mxu0 0.0
    %1920 = vmatpush.msra.mxu0 0.0
    %1921 = vmatpush.msra.mxu0 0.0
    %1922 = vmatpush.msra.mxu0 0.0
    %1923 = vmatpush.msra.mxu0 %v1907
    %1924 = vmatpush.msra.mxu0 %v1898
    %1925 = vmatmul.f32.gmra.mxu0 %v1901
    %v1926 = vpop.f32.mrf.mxu0
    %v1927 = vadd.f32 0.0, %v1926
    %1928 = vmatmul.f32.gmra.mxu0 %v1904
    %v1929 = vpop.f32.mrf.mxu0
    %v1930 = vadd.f32 0.0, %v1929
    %1931 = vdwg.mxu0
    %v1932 = vadd.f32 %v213, %v1927
    %v1933 = vadd.f32 %v214, %v1930
    %v1934 = vld [vmem:[#allocation7] sm:$0xff]
    %v1935 = vld [vmem:[#allocation7 + $0x8] sm:$0xff]
    %v1936 = vld [vmem:[#allocation7 + $0x10] sm:$0xff]
    %v1937 = vld [vmem:[#allocation7 + $0x18] sm:$0xff]
    %v1938 = vld [vmem:[#allocation7 + $0x20] sm:$0xff]
    %v1939 = vld [vmem:[#allocation7 + $0x28] sm:$0xff]
    %v1940 = vld [vmem:[%s10] sm:$0x1]
    %v1942 = vsel %vm258, %v1932, 0
    %v1945 = vsel %vm258, %v1933, 0
    %1947 = vmatpush.msra.mxu0 0.0
    %1948 = vmatpush.msra.mxu0 0.0
    %1949 = vmatpush.msra.mxu0 0.0
    %1950 = vmatpush.msra.mxu0 0.0
    %1951 = vmatpush.msra.mxu0 0.0
    %1952 = vmatpush.msra.mxu0 0.0
    %1953 = vmatpush.msra.mxu0 0.0
    %1954 = vmatpush.msra.mxu0 0.0
    %1955 = vmatpush.msra.mxu0 0.0
    %1956 = vmatpush.msra.mxu0 0.0
    %1957 = vmatpush.msra.mxu0 %v1939
    %1958 = vmatpush.msra.mxu0 %v1938
    %1959 = vmatpush.msra.mxu0 %v1937
    %1960 = vmatpush.msra.mxu0 %v1936
    %1961 = vmatpush.msra.mxu0 %v1935
    %1962 = vmatpush.msra.mxu0 %v1934
    %1963 = vmatmul.f32.gmra.mxu0 %v1942
    %v1964 = vpop.f32.mrf.mxu0
    %v1965 = vadd.f32 0.0, %v1964
    %1966 = vmatmul.f32.gmra.mxu0 %v1945
    %v1967 = vpop.f32.mrf.mxu0
    %v1968 = vadd.f32 0.0, %v1967
    %1969 = vdwg.mxu0
    %v1970 = vmul.f32 %v134, %v1965
    %v1971 = vmul.f32 %v144, %v1968
    %1972 = vmatpush.msra.mxu0 0.0
    %1973 = vmatpush.msra.mxu0 0.0
    %1974 = vmatpush.msra.mxu0 0.0
    %1975 = vmatpush.msra.mxu0 0.0
    %1976 = vmatpush.msra.mxu0 0.0
    %1977 = vmatpush.msra.mxu0 0.0
    %1978 = vmatpush.msra.mxu0 0.0
    %1979 = vmatpush.msra.mxu0 0.0
    %1980 = vmatpush.msra.mxu0 0.0
    %1981 = vmatpush.msra.mxu0 0.0
    %1982 = vmatpush.msra.mxu0 0.0
    %1983 = vmatpush.msra.mxu0 0.0
    %1984 = vmatpush.msra.mxu0 0.0
    %1985 = vmatpush.msra.mxu0 0.0
    %1986 = vmatpush.msra.mxu0 %v1971
    %1987 = vmatpush.msra.mxu0 %v1970
    %1988 = vmatmul.f32.gmra.mxu0 %v178
    %v1989 = vpop.f32.mrf.mxu0
    %v1990 = vadd.f32 0.0, %v1989
    %1991 = vmatmul.f32.gmra.mxu0 %v181
    %v1992 = vpop.f32.mrf.mxu0
    %v1993 = vadd.f32 0.0, %v1992
    %1994 = vdwg.mxu0
    %v1995 = vmul.f32 %v134, %v1990
    %v1996 = vmul.f32 %v144, %v1993
    %v1998 = vperm.slane %v1940, 0
    %v2000 = vadd.f32 %v1995, %v1998
    %v2001 = vadd.f32 %v1996, %v1998
    %2003 = vset.pattern.permute.xlu0 96
    %2004 = vperm.xlu0 %2003, %v2000
    %v2005 = vpop.permute.xlu0 %2004
    %2008 = vset.pattern.permute.xlu0 96
    %2009 = vperm.xlu0 %2008, %v2001
    %v2010 = vpop.permute.xlu0 %2009
    %v2012 = vmul.f32 %v112, %v2005
    %v2013 = vmul.f32 %v113, %v2010
    %2014 = vmatpush.msra.mxu0 0.0
    %2015 = vmatpush.msra.mxu0 0.0
    %2016 = vmatpush.msra.mxu0 0.0
    %2017 = vmatpush.msra.mxu0 0.0
    %2018 = vmatpush.msra.mxu0 0.0
    %2019 = vmatpush.msra.mxu0 0.0
    %2020 = vmatpush.msra.mxu0 0.0
    %2021 = vmatpush.msra.mxu0 0.0
    %2022 = vmatpush.msra.mxu0 0.0
    %2023 = vmatpush.msra.mxu0 0.0
    %2024 = vmatpush.msra.mxu0 0.0
    %2025 = vmatpush.msra.mxu0 0.0
    %2026 = vmatpush.msra.mxu0 0.0
    %2027 = vmatpush.msra.mxu0 0.0
    %2028 = vmatpush.msra.mxu0 %v2013
    %2029 = vmatpush.msra.mxu0 %v2012
    %2030 = vmatmul.f32.gmra.mxu0 %v303
    %v2031 = vpop.f32.mrf.mxu0
    %v2032 = vadd.f32 0.0, %v2031
    %2033 = vmatmul.f32.gmra.mxu0 %v303
    %v2034 = vpop.f32.mrf.mxu0
    %v2035 = vadd.f32 0.0, %v2034
    %2036 = vdwg.mxu0
    %vm2037 = vcmp.gt.f32.partialorder %v2032, %v2005
    %vm2038 = vcmp.gt.f32.partialorder %v2035, %v2010
    %vm2039 = vcmp.eq.f32.partialorder %v2032, %v2005
    %vm2040 = vcmp.eq.f32.partialorder %v2035, %v2010
    %vm2041 = vmand %vm2039, %vm332
    %vm2042 = vmand %vm2040, %vm333
    %vm2043 = vmor %vm2037, %vm2041
    %vm2044 = vmor %vm2038, %vm2042
    %v2045 = vsel %vm2043, 1.0, 0.0
    %v2046 = vsel %vm2044, 1.0, 0.0
    %v2047 = vsel %vm118, %v2045, 0.0
    %2048 = vadd.xlane.f32.xlu0 %v2047
    %v2049 = vpop.xlane.xlu0 %2048
    %v2050 = vsel %vm118, %v2046, 0.0
    %2051 = vadd.xlane.f32.xlu0 %v2050
    %v2052 = vpop.xlane.xlu0 %2051
    %v2053 = vmul.f32 %v112, %v2049
    %v2054 = vmul.f32 %v113, %v2052
    %2055 = vmatpush.msra.mxu0 0.0
    %2056 = vmatpush.msra.mxu0 0.0
    %2057 = vmatpush.msra.mxu0 0.0
    %2058 = vmatpush.msra.mxu0 0.0
    %2059 = vmatpush.msra.mxu0 0.0
    %2060 = vmatpush.msra.mxu0 0.0
    %2061 = vmatpush.msra.mxu0 0.0
    %2062 = vmatpush.msra.mxu0 0.0
    %2063 = vmatpush.msra.mxu0 0.0
    %2064 = vmatpush.msra.mxu0 0.0
    %2065 = vmatpush.msra.mxu0 0.0
    %2066 = vmatpush.msra.mxu0 0.0
    %2067 = vmatpush.msra.mxu0 0.0
    %2068 = vmatpush.msra.mxu0 0.0
    %2069 = vmatpush.msra.mxu0 %v2054
    %2070 = vmatpush.msra.mxu0 %v2053
    %2071 = vmatmul.f32.gmra.mxu0 %v303
    %v2072 = vpop.f32.mrf.mxu0
    %v2073 = vadd.f32 0.0, %v2072
    %2074 = vmatmul.f32.gmra.mxu0 %v303
    %v2075 = vpop.f32.mrf.mxu0
    %v2076 = vadd.f32 0.0, %v2075
    %2077 = vdwg.mxu0
    %v2078 = vcvt.f32.s32.to.zero.pseudo %v2073
    %v2079 = vcvt.f32.s32.to.zero.pseudo %v2076
    %v2080 = vmul.u32 %v106, 2
    %v2081 = vmul.u32 %v107, 2
    %vm2082 = vcmp.eq.s32.totalorder %v2078, %v2080
    %vm2083 = vcmp.eq.s32.totalorder %v2079, %v2081
    %v2084 = vsel %vm2082, 1.0, 0.0
    %v2085 = vsel %vm2083, 1.0, 0.0
    %v2086 = vadd.s32 %v2080, 1
    %v2087 = vadd.s32 %v2081, 1
    %vm2088 = vcmp.eq.s32.totalorder %v2078, %v2086
    %vm2089 = vcmp.eq.s32.totalorder %v2079, %v2087
    %v2090 = vsel %vm2088, 1.0, 0.0
    %v2091 = vsel %vm2089, 1.0, 0.0
    %v2093 = vsel %vm118, %v2084, 0
    %v2096 = vsel %vm118, %v2085, 0
    %2098 = vmatpush.msra.mxu0 0.0
    %2099 = vmatpush.msra.mxu0 0.0
    %2100 = vmatpush.msra.mxu0 0.0
    %2101 = vmatpush.msra.mxu0 0.0
    %2102 = vmatpush.msra.mxu0 0.0
    %2103 = vmatpush.msra.mxu0 0.0
    %2104 = vmatpush.msra.mxu0 0.0
    %2105 = vmatpush.msra.mxu0 0.0
    %2106 = vmatpush.msra.mxu0 0.0
    %2107 = vmatpush.msra.mxu0 0.0
    %2108 = vmatpush.msra.mxu0 0.0
    %2109 = vmatpush.msra.mxu0 0.0
    %2110 = vmatpush.msra.mxu0 0.0
    %2111 = vmatpush.msra.mxu0 0.0
    %2112 = vmatpush.msra.mxu0 %v2001
    %2113 = vmatpush.msra.mxu0 %v2000
    %2114 = vmatmul.f32.gmra.mxu0 %v2093
    %v2115 = vpop.f32.mrf.mxu0
    %v2116 = vadd.f32 0.0, %v2115
    %2117 = vmatmul.f32.gmra.mxu0 %v2096
    %v2118 = vpop.f32.mrf.mxu0
    %v2119 = vadd.f32 0.0, %v2118
    %2120 = vdwg.mxu0
    %2121 = vst [vmem:[%s11] sm:$0xff] %v2116
    %2122 = vst [vmem:[%s11 + $0x8] sm:$0x7f] %v2119
    %v2124 = vsel %vm118, %v2090, 0
    %v2127 = vsel %vm118, %v2091, 0
    %2129 = vmatpush.msra.mxu0 0.0
    %2130 = vmatpush.msra.mxu0 0.0
    %2131 = vmatpush.msra.mxu0 0.0
    %2132 = vmatpush.msra.mxu0 0.0
    %2133 = vmatpush.msra.mxu0 0.0
    %2134 = vmatpush.msra.mxu0 0.0
    %2135 = vmatpush.msra.mxu0 0.0
    %2136 = vmatpush.msra.mxu0 0.0
    %2137 = vmatpush.msra.mxu0 0.0
    %2138 = vmatpush.msra.mxu0 0.0
    %2139 = vmatpush.msra.mxu0 0.0
    %2140 = vmatpush.msra.mxu0 0.0
    %2141 = vmatpush.msra.mxu0 0.0
    %2142 = vmatpush.msra.mxu0 0.0
    %2143 = vmatpush.msra.mxu0 %v2001
    %2144 = vmatpush.msra.mxu0 %v2000
    %2145 = vmatmul.f32.gmra.mxu0 %v2124
    %v2146 = vpop.f32.mrf.mxu0
    %v2147 = vadd.f32 0.0, %v2146
    %2148 = vmatmul.f32.gmra.mxu0 %v2127
    %v2149 = vpop.f32.mrf.mxu0
    %v2150 = vadd.f32 0.0, %v2149
    %2151 = vdwg.mxu0
    %s2152 = scalar_lea.vmem %s11, 16
    %2153 = vst [vmem:[%s2152] sm:$0xff] %v2147
    %2154 = vst [vmem:[%s2152 + $0x8] sm:$0x7f] %v2150
    // Predicated region
    $region62: #{gunet_forward.4} parent=1 // pred_check
      _
    $region63: #{gunet_forward.4} parent=1 // pred_check_branch
      %2156 = sbr.rel (0) target = $region65
    $region64: #{gunet_forward.4} parent=1 // pred_region
      _
    $region65: #{gunet_forward.4} parent=1 // pred_fallthru
      _
    // Predicated region
    $region66: #{gunet_forward.4} parent=1 // pred_check
      _
    $region67: #{gunet_forward.4} parent=1 // pred_check_branch
      %2158 = sbr.rel (0) target = $region69
    $region68: #{gunet_forward.4} parent=1 // pred_region
      _
    $region69: #{gunet_forward.4} parent=1 // pred_fallthru
      _
    %2159 = vsyncpa [#allocation3], 1
    %2160 = vsyncpa [#allocation5], 1
    %2161 = vsyncpa [#allocation8], 1

// kernel: gunet_forward.3
$region0: #{gunet_forward.3}
  #allocation0 [shape = 'u32[]', space=smem, size = 0x4, offset = 0x4, fixed_abs, tag = 'smem constant byte address 0x4 - core index']
  #allocation1 [shape = 'u32[72,128]{1,0:T(1,128)}', space=vmem, size = 0x9000, scoped, tag = 'internal scratch']
  %s0 = inlined_call_operand.hbm [shape: f32[20,20], index: 0, kind: input, shape index: {}]
  %s1 = inlined_call_operand.vmem [shape: f32[20,8], index: 1, kind: input, shape index: {}]
  %s2 = inlined_call_operand.hbm [shape: f32[8,48], index: 2, kind: input, shape index: {}]
  %s3 = inlined_call_operand.vmem [shape: f32[1,48], index: 3, kind: input, shape index: {}]
  %s4 = inlined_call_operand.vmem [shape: f32[4,48,48], index: 4, kind: input, shape index: {}]
  %s5 = inlined_call_operand.vmem [shape: f32[4,1,48], index: 5, kind: input, shape index: {}]
  %s6 = inlined_call_operand.vmem [shape: f32[48,4], index: 6, kind: input, shape index: {}]
  %s7 = inlined_call_operand.hbm [shape: f32[3,48,48], index: 7, kind: input, shape index: {}]
  %s8 = inlined_call_operand.vmem [shape: f32[3,1,48], index: 8, kind: input, shape index: {}]
  %s9 = inlined_call_operand.hbm [shape: f32[48,128], index: 9, kind: input, shape index: {}]
  %s10 = inlined_call_operand.vmem [shape: f32[1,128], index: 10, kind: input, shape index: {}]
  %s11 = inlined_call_operand.vmem [shape: f32[2,15,128], index: 11, kind: output, shape index: {}]
  %s12 = sld [smem:[#allocation0]]
  $region70: #{gunet_forward.3} parent=0
    _
  %s14 = ssub.s32 1, %s12
  %s15 = scalar_select 0, %s14, %s12
  $region1: #{gunet_forward.3} parent=0
    #allocation2 [shape = 'u8[12288]{0}', space=vmem, size = 0x3000, scoped, tag = 'input window, operand 0, single buffered']
    #allocation3 [shape = 's32[1]{0}', space=sflag, size = 0x4, scoped, tag = 'scoped memory for gunet_forward.3']
    #allocation4 [shape = 'u8[4096]{0}', space=vmem, size = 0x1000, scoped, tag = 'input window, operand 2, single buffered']
    #allocation5 [shape = 's32[1]{0}', space=sflag, size = 0x4, scoped, tag = 'scoped memory for gunet_forward.3']
    #allocation6 [shape = 'u8[73728]{0}', space=vmem, size = 0x12000, scoped, tag = 'input window, operand 7, single buffered']
    #allocation7 [shape = 'u8[24576]{0}', space=vmem, size = 0x6000, scoped, tag = 'input window, operand 9, single buffered']
    #allocation8 [shape = 's32[1]{0}', space=sflag, size = 0x4, scoped, tag = 'scoped memory for gunet_forward.3']
    %16 = vsyncpa [#allocation3], 0
    %17 = vsyncpa [#allocation5], 0
    %18 = vsyncpa [#allocation8], 0
    // Predicated region
    $region2: #{gunet_forward.3} parent=1 // pred_check
      _
    $region3: #{gunet_forward.3} parent=1 // pred_check_branch
      %20 = sbr.rel (0) target = $region5
    $region4: #{gunet_forward.3} parent=1 // pred_region
      %22 = vsyncadd [#allocation3], 0
      %s23 = sshll.u32 %s0, 4
      %s24 = int_to_ptr.hbm [resolvable:$true] %s23
      %s25 = sshll.u32 [#allocation2], 4
      %s26 = int_to_ptr.vmem [resolvable:$true] %s25
      %31 = dma.hbm_to_vmem [thread:$0]  %s24, 384, %s26, [#allocation3], 128, 128, 8
    $region5: #{gunet_forward.3} parent=1 // pred_fallthru
      _
    // Predicated region
    $region6: #{gunet_forward.3} parent=1 // pred_check
      _
    $region7: #{gunet_forward.3} parent=1 // pred_check_branch
      %33 = sbr.rel (0) target = $region9
    $region8: #{gunet_forward.3} parent=1 // pred_region
      _
    $region9: #{gunet_forward.3} parent=1 // pred_fallthru
      _
    // Predicated region
    $region10: #{gunet_forward.3} parent=1 // pred_check
      _
    $region11: #{gunet_forward.3} parent=1 // pred_check_branch
      %35 = sbr.rel (0) target = $region13
    $region12: #{gunet_forward.3} parent=1 // pred_region
      %37 = vsyncadd [#allocation5], 0
      %s39 = sshll.u32 %s2, 4
      %s40 = int_to_ptr.hbm [resolvable:$true] %s39
      %s41 = sshll.u32 [#allocation4], 4
      %s42 = int_to_ptr.vmem [resolvable:$true] %s41
      %44 = dma.hbm_to_vmem [thread:$0]  %s40, 128, %s42, [#allocation5]
    $region13: #{gunet_forward.3} parent=1 // pred_fallthru
      _
    // Predicated region
    $region14: #{gunet_forward.3} parent=1 // pred_check
      _
    $region15: #{gunet_forward.3} parent=1 // pred_check_branch
      %46 = sbr.rel (0) target = $region17
    $region16: #{gunet_forward.3} parent=1 // pred_region
      _
    $region17: #{gunet_forward.3} parent=1 // pred_fallthru
      _
    // Predicated region
    $region18: #{gunet_forward.3} parent=1 // pred_check
      _
    $region19: #{gunet_forward.3} parent=1 // pred_check_branch
      %48 = sbr.rel (0) target = $region21
    $region20: #{gunet_forward.3} parent=1 // pred_region
      _
    $region21: #{gunet_forward.3} parent=1 // pred_fallthru
      _
    // Predicated region
    $region22: #{gunet_forward.3} parent=1 // pred_check
      _
    $region23: #{gunet_forward.3} parent=1 // pred_check_branch
      %50 = sbr.rel (0) target = $region25
    $region24: #{gunet_forward.3} parent=1 // pred_region
      _
    $region25: #{gunet_forward.3} parent=1 // pred_fallthru
      _
    // Predicated region
    $region26: #{gunet_forward.3} parent=1 // pred_check
      _
    $region27: #{gunet_forward.3} parent=1 // pred_check_branch
      %52 = sbr.rel (0) target = $region29
    $region28: #{gunet_forward.3} parent=1 // pred_region
      _
    $region29: #{gunet_forward.3} parent=1 // pred_fallthru
      _
    // Predicated region
    $region30: #{gunet_forward.3} parent=1 // pred_check
      _
    $region31: #{gunet_forward.3} parent=1 // pred_check_branch
      %54 = sbr.rel (0) target = $region33
    $region32: #{gunet_forward.3} parent=1 // pred_region
      %56 = vsyncadd [#allocation5], 0
      %s57 = sshll.u32 %s7, 4
      %s58 = int_to_ptr.hbm [resolvable:$true] %s57
      %s59 = sshll.u32 [#allocation6], 4
      %s60 = int_to_ptr.vmem [resolvable:$true] %s59
      %65 = dma.hbm_to_vmem [thread:$0]  %s58, 2304, %s60, [#allocation5], 128, 128, 8
    $region33: #{gunet_forward.3} parent=1 // pred_fallthru
      _
    // Predicated region
    $region34: #{gunet_forward.3} parent=1 // pred_check
      _
    $region35: #{gunet_forward.3} parent=1 // pred_check_branch
      %67 = sbr.rel (0) target = $region37
    $region36: #{gunet_forward.3} parent=1 // pred_region
      _
    $region37: #{gunet_forward.3} parent=1 // pred_fallthru
      _
    // Predicated region
    $region38: #{gunet_forward.3} parent=1 // pred_check
      _
    $region39: #{gunet_forward.3} parent=1 // pred_check_branch
      %69 = sbr.rel (0) target = $region41
    $region40: #{gunet_forward.3} parent=1 // pred_region
      %71 = vsyncadd [#allocation8], 0
      %s72 = sshll.u32 %s9, 4
      %s73 = int_to_ptr.hbm [resolvable:$true] %s72
      %s74 = sshll.u32 [#allocation7], 4
      %s75 = int_to_ptr.vmem [resolvable:$true] %s74
      %80 = dma.hbm_to_vmem [thread:$0]  %s73, 768, %s75, [#allocation8], 128, 128, 8
    $region41: #{gunet_forward.3} parent=1 // pred_fallthru
      _
    // Predicated region
    $region42: #{gunet_forward.3} parent=1 // pred_check
      _
    $region43: #{gunet_forward.3} parent=1 // pred_check_branch
      %82 = sbr.rel (0) target = $region45
    $region44: #{gunet_forward.3} parent=1 // pred_region
      _
    $region45: #{gunet_forward.3} parent=1 // pred_fallthru
      _
    // Predicated region
    $region46: #{gunet_forward.3} parent=1 // pred_check
      _
    $region47: #{gunet_forward.3} parent=1 // pred_check_branch
      %84 = sbr.rel (0) target = $region49
    $region48: #{gunet_forward.3} parent=1 // pred_region
      %86 = dma.done [#allocation3], 384
    $region49: #{gunet_forward.3} parent=1 // pred_fallthru
      _
    // Predicated region
    $region50: #{gunet_forward.3} parent=1 // pred_check
      _
    $region51: #{gunet_forward.3} parent=1 // pred_check_branch
      %88 = sbr.rel (0) target = $region53
    $region52: #{gunet_forward.3} parent=1 // pred_region
      %90 = dma.done [#allocation5], 128
    $region53: #{gunet_forward.3} parent=1 // pred_fallthru
      _
    // Predicated region
    $region54: #{gunet_forward.3} parent=1 // pred_check
      _
    $region55: #{gunet_forward.3} parent=1 // pred_check_branch
      %92 = sbr.rel (0) target = $region57
    $region56: #{gunet_forward.3} parent=1 // pred_region
      %94 = dma.done [#allocation5], 2304
    $region57: #{gunet_forward.3} parent=1 // pred_fallthru
      _
    // Predicated region
    $region58: #{gunet_forward.3} parent=1 // pred_check
      _
    $region59: #{gunet_forward.3} parent=1 // pred_check_branch
      %96 = sbr.rel (0) target = $region61
    $region60: #{gunet_forward.3} parent=1 // pred_region
      %98 = dma.done [#allocation8], 768
    $region61: #{gunet_forward.3} parent=1 // pred_fallthru
      _
    %v99 = vld [vmem:[#allocation2] sm:$0xff]
    %v100 = vld [vmem:[#allocation2 + $0x8] sm:$0xff]
    %v101 = vld [vmem:[#allocation2 + $0x10] sm:$0xf]
    %v102 = vld [vmem:[%s1] sm:$0xff]
    %v103 = vld [vmem:[%s1 + $0x8] sm:$0xff]
    %v104 = vld [vmem:[%s1 + $0x10] sm:$0xf]
    %v105 = vld [vmem:[#allocation4] sm:$0xff]
    %v106 = vld [vmem:[%s3] sm:$0x1]
    %v107 = vlaneseq
    %v108 = vshrl.u32 %v107, 7
    %v109 = vadd.s32 %v108, 8
    %v110 = vadd.s32 %v108, 16
    %v111 = vlaneseq
    %v112 = vand.u32 %v111, 127
    %vm113 = vcmp.eq.s32.totalorder %v108, %v112
    %vm114 = vcmp.eq.s32.totalorder %v109, %v112
    %vm115 = vcmp.eq.s32.totalorder %v110, %v112
    %v116 = vsel %vm113, 1.0, 0.0
    %v117 = vsel %vm114, 1.0, 0.0
    %v118 = vsel %vm115, 1.0, 0.0
    %v119 = vmul.f32 %v116, 2.0
    %v120 = vmul.f32 %v117, 2.0
    %v121 = vmul.f32 %v118, 2.0
    %v122 = vadd.f32 %v99, %v119
    %v123 = vadd.f32 %v100, %v120
    %v124 = vadd.f32 %v101, %v121
    %vm125 = vcmask 162816
    %v126 = vsel %vm125, %v122, 0.0
    %127 = vadd.xlane.f32.xlu0 %v126
    %v128 = vpop.xlane.xlu0 %127
    %v129 = vsel %vm125, %v123, 0.0
    %130 = vadd.xlane.f32.xlu0 %v129
    %v131 = vpop.xlane.xlu0 %130
    %vm132 = vcmask 158720
    %v133 = vsel %vm132, %v124, 0.0
    %134 = vadd.xlane.f32.xlu0 %v133
    %v135 = vpop.xlane.xlu0 %134
    %v136 = vrsqrt.pop %v128
    %v137 = vmul.f32 %v136, %v128
    %v138 = vmul.f32 %v137, %v136
    %v139 = vmul.f32 0.5, %v138
    %v140 = vsub.f32 1.5, %v139
    %v141 = vmul.f32 %v136, %v140
    %vm142 = vweird.f32 %v128
    %vm143 = vweird.f32 %v136
    %vm144 = vmor %vm142, %vm143
    %v145 = vsel %vm144, %v136, %v141
    %v146 = vrsqrt.pop %v131
    %v147 = vmul.f32 %v146, %v131
    %v148 = vmul.f32 %v147, %v146
    %v149 = vmul.f32 0.5, %v148
    %v150 = vsub.f32 1.5, %v149
    %v151 = vmul.f32 %v146, %v150
    %vm152 = vweird.f32 %v131
    %vm153 = vweird.f32 %v146
    %vm154 = vmor %vm152, %vm153
    %v155 = vsel %vm154, %v146, %v151
    %v156 = vrsqrt.pop %v135
    %v157 = vmul.f32 %v156, %v135
    %v158 = vmul.f32 %v157, %v156
    %v159 = vmul.f32 0.5, %v158
    %v160 = vsub.f32 1.5, %v159
    %v161 = vmul.f32 %v156, %v160
    %vm162 = vweird.f32 %v135
    %vm163 = vweird.f32 %v156
    %vm164 = vmor %vm162, %vm163
    %v165 = vsel %vm164, %v156, %v161
    %vm166 = vcmask 64512
    %v168 = vsel %vm166, %v102, 0
    %v171 = vsel %vm166, %v103, 0
    %v174 = vsel %vm166, %v104, 0
    %176 = vmatpush.msra.mxu0 0.0
    %177 = vmatpush.msra.mxu0 0.0
    %178 = vmatpush.msra.mxu0 0.0
    %179 = vmatpush.msra.mxu0 0.0
    %180 = vmatpush.msra.mxu0 0.0
    %181 = vmatpush.msra.mxu0 0.0
    %182 = vmatpush.msra.mxu0 0.0
    %183 = vmatpush.msra.mxu0 0.0
    %184 = vmatpush.msra.mxu0 0.0
    %185 = vmatpush.msra.mxu0 0.0
    %186 = vmatpush.msra.mxu0 0.0
    %187 = vmatpush.msra.mxu0 0.0
    %188 = vmatpush.msra.mxu0 0.0
    %189 = vmatpush.msra.mxu0 0.0
    %190 = vmatpush.msra.mxu0 0.0
    %191 = vmatpush.msra.mxu0 %v105
    %192 = vmatmul.f32.gmra.mxu0 %v168
    %v193 = vpop.f32.mrf.mxu0
    %v194 = vadd.f32 0.0, %v193
    %195 = vmatmul.f32.gmra.mxu0 %v171
    %v196 = vpop.f32.mrf.mxu0
    %v197 = vadd.f32 0.0, %v196
    %198 = vmatmul.f32.gmra.mxu0 %v174
    %v199 = vpop.f32.mrf.mxu0
    %v200 = vadd.f32 0.0, %v199
    %201 = vdwg.mxu0
    %v202 = vmul.f32 %v145, %v194
    %v203 = vmul.f32 %v155, %v197
    %v204 = vmul.f32 %v165, %v200
    %v206 = vsel %vm125, %v122, 0
    %v209 = vsel %vm125, %v123, 0
    %v212 = vsel %vm125, %v124, 0
    %vm214 = vcmask 1043456
    %v216 = vsel %vm214, %v204, 0
    %218 = vmatpush.msra.mxu0 0.0
    %219 = vmatpush.msra.mxu0 0.0
    %220 = vmatpush.msra.mxu0 0.0
    %221 = vmatpush.msra.mxu0 0.0
    %222 = vmatpush.msra.mxu0 0.0
    %223 = vmatpush.msra.mxu0 0.0
    %224 = vmatpush.msra.mxu0 0.0
    %225 = vmatpush.msra.mxu0 0.0
    %226 = vmatpush.msra.mxu0 0.0
    %227 = vmatpush.msra.mxu0 0.0
    %228 = vmatpush.msra.mxu0 0.0
    %229 = vmatpush.msra.mxu0 0.0
    %230 = vmatpush.msra.mxu0 0.0
    %231 = vmatpush.msra.mxu0 %v216
    %232 = vmatpush.msra.mxu0 %v203
    %233 = vmatpush.msra.mxu0 %v202
    %234 = vmatmul.f32.gmra.mxu0 %v206
    %v235 = vpop.f32.mrf.mxu0
    %v236 = vadd.f32 0.0, %v235
    %237 = vmatmul.f32.gmra.mxu0 %v209
    %v238 = vpop.f32.mrf.mxu0
    %v239 = vadd.f32 0.0, %v238
    %240 = vmatmul.f32.gmra.mxu0 %v212
    %v241 = vpop.f32.mrf.mxu0
    %v242 = vadd.f32 0.0, %v241
    %243 = vdwg.mxu0
    %v244 = vmul.f32 %v145, %v236
    %v245 = vmul.f32 %v155, %v239
    %v246 = vmul.f32 %v165, %v242
    %v248 = vperm.slane %v106, 0
    %v250 = vadd.f32 %v244, %v248
    %v251 = vadd.f32 %v245, %v248
    %v252 = vadd.f32 %v246, %v248
    %v253 = vmax.f32 %v250, 0.0
    %v254 = vmax.f32 %v251, 0.0
    %v255 = vmax.f32 %v252, 0.0
    %v256 = vsub.f32 1.0, %v116
    %v257 = vsub.f32 1.0, %v117
    %v258 = vsub.f32 1.0, %v118
    %v259 = vmul.f32 %v99, %v256
    %v260 = vmul.f32 %v100, %v257
    %v261 = vmul.f32 %v101, %v258
    %v262 = vadd.f32 %v259, %v116
    %v263 = vadd.f32 %v260, %v117
    %v264 = vadd.f32 %v261, %v118
    %v266 = vsel %vm125, %v262, 0
    %v269 = vsel %vm125, %v263, 0
    %v272 = vsel %vm125, %v264, 0
    %v274 = vsel %vm214, %v264, 0
    %276 = vmatpush.msra.mxu0 0.0
    %277 = vmatpush.msra.mxu0 0.0
    %278 = vmatpush.msra.mxu0 0.0
    %279 = vmatpush.msra.mxu0 0.0
    %280 = vmatpush.msra.mxu0 0.0
    %281 = vmatpush.msra.mxu0 0.0
    %282 = vmatpush.msra.mxu0 0.0
    %283 = vmatpush.msra.mxu0 0.0
    %284 = vmatpush.msra.mxu0 0.0
    %285 = vmatpush.msra.mxu0 0.0
    %286 = vmatpush.msra.mxu0 0.0
    %287 = vmatpush.msra.mxu0 0.0
    %288 = vmatpush.msra.mxu0 0.0
    %289 = vmatpush.msra.mxu0 %v274
    %290 = vmatpush.msra.mxu0 %v263
    %291 = vmatpush.msra.mxu0 %v262
    %292 = vmatmul.f32.gmra.mxu0 %v266
    %v293 = vpop.f32.mrf.mxu0
    %v294 = vadd.f32 0.0, %v293
    %295 = vmatmul.f32.gmra.mxu0 %v269
    %v296 = vpop.f32.mrf.mxu0
    %v297 = vadd.f32 0.0, %v296
    %298 = vmatmul.f32.gmra.mxu0 %v272
    %v299 = vpop.f32.mrf.mxu0
    %v300 = vadd.f32 0.0, %v299
    %301 = vdwg.mxu0
    %v302 = vmul.f32 %v294, %v256
    %v303 = vmul.f32 %v297, %v257
    %v304 = vmul.f32 %v300, %v258
    %v305 = vld [vmem:[%s6] sm:$0xff]
    %v306 = vld [vmem:[%s6 + $0x8] sm:$0xff]
    %v307 = vld [vmem:[%s6 + $0x10] sm:$0xff]
    %v308 = vld [vmem:[%s6 + $0x18] sm:$0xff]
    %v309 = vld [vmem:[%s6 + $0x20] sm:$0xff]
    %v310 = vld [vmem:[%s6 + $0x28] sm:$0xff]
    %vm311 = vcmask 392192
    %v313 = vsel %vm311, %v253, 0
    %v316 = vsel %vm311, %v254, 0
    %v319 = vsel %vm311, %v255, 0
    %321 = vmatpush.msra.mxu0 0.0
    %322 = vmatpush.msra.mxu0 0.0
    %323 = vmatpush.msra.mxu0 0.0
    %324 = vmatpush.msra.mxu0 0.0
    %325 = vmatpush.msra.mxu0 0.0
    %326 = vmatpush.msra.mxu0 0.0
    %327 = vmatpush.msra.mxu0 0.0
    %328 = vmatpush.msra.mxu0 0.0
    %329 = vmatpush.msra.mxu0 0.0
    %330 = vmatpush.msra.mxu0 0.0
    %331 = vmatpush.msra.mxu0 %v310
    %332 = vmatpush.msra.mxu0 %v309
    %333 = vmatpush.msra.mxu0 %v308
    %334 = vmatpush.msra.mxu0 %v307
    %335 = vmatpush.msra.mxu0 %v306
    %336 = vmatpush.msra.mxu0 %v305
    %337 = vmatmul.f32.gmra.mxu0 %v313
    %v338 = vpop.f32.mrf.mxu0
    %v339 = vadd.f32 0.0, %v338
    %340 = vmatmul.f32.gmra.mxu0 %v316
    %v341 = vpop.f32.mrf.mxu0
    %v342 = vadd.f32 0.0, %v341
    %343 = vmatmul.f32.gmra.mxu0 %v319
    %v344 = vpop.f32.mrf.mxu0
    %v345 = vadd.f32 0.0, %v344
    %346 = vdwg.mxu0
    %v347 = vtanh.pop %v339
    %v348 = vtanh.pop %v342
    %v349 = vtanh.pop %v345
    %351 = vset.pattern.permute.xlu0 0
    %352 = vperm.xlu0 %351, %v347
    %v353 = vpop.permute.xlu0 %352
    %356 = vset.pattern.permute.xlu0 0
    %357 = vperm.xlu0 %356, %v348
    %v358 = vpop.permute.xlu0 %357
    %361 = vset.pattern.permute.xlu0 0
    %362 = vperm.xlu0 %361, %v349
    %v363 = vpop.permute.xlu0 %362
    %v365 = vmul.f32 %v116, %v353
    %v366 = vmul.f32 %v117, %v358
    %v367 = vmul.f32 %v118, %v363
    %v369 = vsel %vm125, 1.0, 0
    %v372 = vsel %vm214, %v367, 0
    %374 = vmatpush.msra.mxu0 0.0
    %375 = vmatpush.msra.mxu0 0.0
    %376 = vmatpush.msra.mxu0 0.0
    %377 = vmatpush.msra.mxu0 0.0
    %378 = vmatpush.msra.mxu0 0.0
    %379 = vmatpush.msra.mxu0 0.0
    %380 = vmatpush.msra.mxu0 0.0
    %381 = vmatpush.msra.mxu0 0.0
    %382 = vmatpush.msra.mxu0 0.0
    %383 = vmatpush.msra.mxu0 0.0
    %384 = vmatpush.msra.mxu0 0.0
    %385 = vmatpush.msra.mxu0 0.0
    %386 = vmatpush.msra.mxu0 0.0
    %387 = vmatpush.msra.mxu0 %v372
    %388 = vmatpush.msra.mxu0 %v366
    %389 = vmatpush.msra.mxu0 %v365
    %390 = vmatmul.f32.gmra.mxu0 %v369
    %v391 = vpop.f32.mrf.mxu0
    %v392 = vadd.f32 0.0, %v391
    %393 = vmatmul.f32.gmra.mxu0 %v369
    %v394 = vpop.f32.mrf.mxu0
    %v395 = vadd.f32 0.0, %v394
    %396 = vmatmul.f32.gmra.mxu0 %v369
    %v397 = vpop.f32.mrf.mxu0
    %v398 = vadd.f32 0.0, %v397
    %399 = vdwg.mxu0
    %vm400 = vcmp.gt.f32.partialorder %v392, %v353
    %vm401 = vcmp.gt.f32.partialorder %v395, %v358
    %vm402 = vcmp.gt.f32.partialorder %v398, %v363
    %vm403 = vcmp.eq.f32.partialorder %v392, %v353
    %vm404 = vcmp.eq.f32.partialorder %v395, %v358
    %vm405 = vcmp.eq.f32.partialorder %v398, %v363
    %vm406 = vcmp.lt.s32.totalorder %v112, %v108
    %vm407 = vcmp.lt.s32.totalorder %v112, %v109
    %vm408 = vcmp.lt.s32.totalorder %v112, %v110
    %vm409 = vmand %vm403, %vm406
    %vm410 = vmand %vm404, %vm407
    %vm411 = vmand %vm405, %vm408
    %vm412 = vmor %vm400, %vm409
    %vm413 = vmor %vm401, %vm410
    %vm414 = vmor %vm402, %vm411
    %v415 = vsel %vm412, 1.0, 0.0
    %v416 = vsel %vm413, 1.0, 0.0
    %v417 = vsel %vm414, 1.0, 0.0
    %v418 = vsel %vm125, %v415, 0.0
    %419 = vadd.xlane.f32.xlu0 %v418
    %v420 = vpop.xlane.xlu0 %419
    %v421 = vsel %vm125, %v416, 0.0
    %422 = vadd.xlane.f32.xlu0 %v421
    %v423 = vpop.xlane.xlu0 %422
    %v424 = vsel %vm132, %v417, 0.0
    %425 = vadd.xlane.f32.xlu0 %v424
    %v426 = vpop.xlane.xlu0 %425
    %v427 = vmul.f32 %v116, %v420
    %v428 = vmul.f32 %v117, %v423
    %v429 = vmul.f32 %v118, %v426
    %v431 = vsel %vm214, %v429, 0
    %433 = vmatpush.msra.mxu0 0.0
    %434 = vmatpush.msra.mxu0 0.0
    %435 = vmatpush.msra.mxu0 0.0
    %436 = vmatpush.msra.mxu0 0.0
    %437 = vmatpush.msra.mxu0 0.0
    %438 = vmatpush.msra.mxu0 0.0
    %439 = vmatpush.msra.mxu0 0.0
    %440 = vmatpush.msra.mxu0 0.0
    %441 = vmatpush.msra.mxu0 0.0
    %442 = vmatpush.msra.mxu0 0.0
    %443 = vmatpush.msra.mxu0 0.0
    %444 = vmatpush.msra.mxu0 0.0
    %445 = vmatpush.msra.mxu0 0.0
    %446 = vmatpush.msra.mxu0 %v431
    %447 = vmatpush.msra.mxu0 %v428
    %448 = vmatpush.msra.mxu0 %v427
    %449 = vmatmul.f32.gmra.mxu0 %v369
    %v450 = vpop.f32.mrf.mxu0
    %v451 = vadd.f32 0.0, %v450
    %452 = vmatmul.f32.gmra.mxu0 %v369
    %v453 = vpop.f32.mrf.mxu0
    %v454 = vadd.f32 0.0, %v453
    %455 = vmatmul.f32.gmra.mxu0 %v369
    %v456 = vpop.f32.mrf.mxu0
    %v457 = vadd.f32 0.0, %v456
    %458 = vdwg.mxu0
    %v459 = vcvt.f32.s32.to.zero.pseudo %v451
    %v460 = vcvt.f32.s32.to.zero.pseudo %v454
    %v461 = vcvt.f32.s32.to.zero.pseudo %v457
    %vm462 = vcmp.eq.s32.totalorder %v459, %v108
    %vm463 = vcmp.eq.s32.totalorder %v460, %v109
    %vm464 = vcmp.eq.s32.totalorder %v461, %v110
    %v465 = vsel %vm462, 1.0, 0.0
    %v466 = vsel %vm463, 1.0, 0.0
    %v467 = vsel %vm464, 1.0, 0.0
    %v468 = vcvt.f32.s32.to.zero.pseudo %v420
    %v469 = vcvt.f32.s32.to.zero.pseudo %v423
    %v470 = vcvt.f32.s32.to.zero.pseudo %v426
    %vm471 = vcmp.eq.s32.totalorder %v468, %v112
    %vm472 = vcmp.eq.s32.totalorder %v469, %v112
    %vm473 = vcmp.eq.s32.totalorder %v470, %v112
    %v474 = vsel %vm471, 1.0, 0.0
    %v475 = vsel %vm472, 1.0, 0.0
    %v476 = vsel %vm473, 1.0, 0.0
    %v477 = vmul.f32 %v253, %v353
    %v478 = vmul.f32 %v254, %v358
    %v479 = vmul.f32 %v255, %v363
    %v481 = vsel %vm125, %v465, 0
    %v484 = vsel %vm125, %v466, 0
    %v487 = vsel %vm125, %v467, 0
    %v490 = vsel %vm214, %v479, 0
    %492 = vmatpush.msra.mxu0 0.0
    %493 = vmatpush.msra.mxu0 0.0
    %494 = vmatpush.msra.mxu0 0.0
    %495 = vmatpush.msra.mxu0 0.0
    %496 = vmatpush.msra.mxu0 0.0
    %497 = vmatpush.msra.mxu0 0.0
    %498 = vmatpush.msra.mxu0 0.0
    %499 = vmatpush.msra.mxu0 0.0
    %500 = vmatpush.msra.mxu0 0.0
    %501 = vmatpush.msra.mxu0 0.0
    %502 = vmatpush.msra.mxu0 0.0
    %503 = vmatpush.msra.mxu0 0.0
    %504 = vmatpush.msra.mxu0 0.0
    %505 = vmatpush.msra.mxu0 %v490
    %506 = vmatpush.msra.mxu0 %v478
    %507 = vmatpush.msra.mxu0 %v477
    %508 = vmatmul.f32.gmra.mxu0 %v481
    %v509 = vpop.f32.mrf.mxu0
    %v510 = vadd.f32 0.0, %v509
    %511 = vmatmul.f32.gmra.mxu0 %v484
    %v512 = vpop.f32.mrf.mxu0
    %v513 = vadd.f32 0.0, %v512
    %514 = vmatmul.f32.gmra.mxu0 %v487
    %v515 = vpop.f32.mrf.mxu0
    %v516 = vadd.f32 0.0, %v515
    %517 = vdwg.mxu0
    %v519 = vsel %vm214, %v304, 0
    %521 = vmatpush.msra.mxu0 0.0
    %522 = vmatpush.msra.mxu0 0.0
    %523 = vmatpush.msra.mxu0 0.0
    %524 = vmatpush.msra.mxu0 0.0
    %525 = vmatpush.msra.mxu0 0.0
    %526 = vmatpush.msra.mxu0 0.0
    %527 = vmatpush.msra.mxu0 0.0
    %528 = vmatpush.msra.mxu0 0.0
    %529 = vmatpush.msra.mxu0 0.0
    %530 = vmatpush.msra.mxu0 0.0
    %531 = vmatpush.msra.mxu0 0.0
    %532 = vmatpush.msra.mxu0 0.0
    %533 = vmatpush.msra.mxu0 0.0
    %534 = vmatpush.msra.mxu0 %v519
    %535 = vmatpush.msra.mxu0 %v303
    %536 = vmatpush.msra.mxu0 %v302
    %537 = vmatmul.f32.gmra.mxu0 %v481
    %v538 = vpop.f32.mrf.mxu0
    %v539 = vadd.f32 0.0, %v538
    %540 = vmatmul.f32.gmra.mxu0 %v484
    %v541 = vpop.f32.mrf.mxu0
    %v542 = vadd.f32 0.0, %v541
    %543 = vmatmul.f32.gmra.mxu0 %v487
    %v544 = vpop.f32.mrf.mxu0
    %v545 = vadd.f32 0.0, %v544
    %546 = vdwg.mxu0
    %v548 = vsel %vm125, %v539, 0
    %v551 = vsel %vm125, %v542, 0
    %v554 = vsel %vm125, %v545, 0
    %v557 = vsel %vm214, %v476, 0
    %559 = vmatpush.msra.mxu0 0.0
    %560 = vmatpush.msra.mxu0 0.0
    %561 = vmatpush.msra.mxu0 0.0
    %562 = vmatpush.msra.mxu0 0.0
    %563 = vmatpush.msra.mxu0 0.0
    %564 = vmatpush.msra.mxu0 0.0
    %565 = vmatpush.msra.mxu0 0.0
    %566 = vmatpush.msra.mxu0 0.0
    %567 = vmatpush.msra.mxu0 0.0
    %568 = vmatpush.msra.mxu0 0.0
    %569 = vmatpush.msra.mxu0 0.0
    %570 = vmatpush.msra.mxu0 0.0
    %571 = vmatpush.msra.mxu0 0.0
    %572 = vmatpush.msra.mxu0 %v557
    %573 = vmatpush.msra.mxu0 %v475
    %574 = vmatpush.msra.mxu0 %v474
    %575 = vmatmul.f32.gmra.mxu0 %v548
    %v576 = vpop.f32.mrf.mxu0
    %v577 = vadd.f32 0.0, %v576
    %578 = vmatmul.f32.gmra.mxu0 %v551
    %v579 = vpop.f32.mrf.mxu0
    %v580 = vadd.f32 0.0, %v579
    %581 = vmatmul.f32.gmra.mxu0 %v554
    %v582 = vpop.f32.mrf.mxu0
    %v583 = vadd.f32 0.0, %v582
    %584 = vdwg.mxu0
    %v585 = vld [vmem:[%s4] sm:$0xff]
    %v586 = vld [vmem:[%s4 + $0x8] sm:$0xff]
    %v587 = vld [vmem:[%s4 + $0x10] sm:$0xff]
    %v588 = vld [vmem:[%s4 + $0x18] sm:$0xff]
    %v589 = vld [vmem:[%s4 + $0x20] sm:$0xff]
    %v590 = vld [vmem:[%s4 + $0x28] sm:$0xff]
    %v591 = vld [vmem:[%s5] sm:$0x1]
    %v592 = vadd.f32 %v577, %v119
    %v593 = vadd.f32 %v580, %v120
    %v594 = vadd.f32 %v583, %v121
    %vm595 = vcmask 146432
    %v596 = vsel %vm595, %v592, 0.0
    %597 = vadd.xlane.f32.xlu0 %v596
    %v598 = vpop.xlane.xlu0 %597
    %v599 = vsel %vm595, %v593, 0.0
    %600 = vadd.xlane.f32.xlu0 %v599
    %v601 = vpop.xlane.xlu0 %600
    %vm602 = vcmask 140288
    %v603 = vsel %vm602, %v594, 0.0
    %604 = vadd.xlane.f32.xlu0 %v603
    %v605 = vpop.xlane.xlu0 %604
    %v606 = vrsqrt.pop %v598
    %v607 = vmul.f32 %v606, %v598
    %v608 = vmul.f32 %v607, %v606
    %v609 = vmul.f32 0.5, %v608
    %v610 = vsub.f32 1.5, %v609
    %v611 = vmul.f32 %v606, %v610
    %vm612 = vweird.f32 %v598
    %vm613 = vweird.f32 %v606
    %vm614 = vmor %vm612, %vm613
    %v615 = vsel %vm614, %v606, %v611
    %v616 = vrsqrt.pop %v601
    %v617 = vmul.f32 %v616, %v601
    %v618 = vmul.f32 %v617, %v616
    %v619 = vmul.f32 0.5, %v618
    %v620 = vsub.f32 1.5, %v619
    %v621 = vmul.f32 %v616, %v620
    %vm622 = vweird.f32 %v601
    %vm623 = vweird.f32 %v616
    %vm624 = vmor %vm622, %vm623
    %v625 = vsel %vm624, %v616, %v621
    %v626 = vrsqrt.pop %v605
    %v627 = vmul.f32 %v626, %v605
    %v628 = vmul.f32 %v627, %v626
    %v629 = vmul.f32 0.5, %v628
    %v630 = vsub.f32 1.5, %v629
    %v631 = vmul.f32 %v626, %v630
    %vm632 = vweird.f32 %v605
    %vm633 = vweird.f32 %v626
    %vm634 = vmor %vm632, %vm633
    %v635 = vsel %vm634, %v626, %v631
    %v637 = vsel %vm311, %v510, 0
    %v640 = vsel %vm311, %v513, 0
    %v643 = vsel %vm311, %v516, 0
    %645 = vmatpush.msra.mxu0 0.0
    %646 = vmatpush.msra.mxu0 0.0
    %647 = vmatpush.msra.mxu0 0.0
    %648 = vmatpush.msra.mxu0 0.0
    %649 = vmatpush.msra.mxu0 0.0
    %650 = vmatpush.msra.mxu0 0.0
    %651 = vmatpush.msra.mxu0 0.0
    %652 = vmatpush.msra.mxu0 0.0
    %653 = vmatpush.msra.mxu0 0.0
    %654 = vmatpush.msra.mxu0 0.0
    %655 = vmatpush.msra.mxu0 %v590
    %656 = vmatpush.msra.mxu0 %v589
    %657 = vmatpush.msra.mxu0 %v588
    %658 = vmatpush.msra.mxu0 %v587
    %659 = vmatpush.msra.mxu0 %v586
    %660 = vmatpush.msra.mxu0 %v585
    %661 = vmatmul.f32.gmra.mxu0 %v637
    %v662 = vpop.f32.mrf.mxu0
    %v663 = vadd.f32 0.0, %v662
    %664 = vmatmul.f32.gmra.mxu0 %v640
    %v665 = vpop.f32.mrf.mxu0
    %v666 = vadd.f32 0.0, %v665
    %667 = vmatmul.f32.gmra.mxu0 %v643
    %v668 = vpop.f32.mrf.mxu0
    %v669 = vadd.f32 0.0, %v668
    %670 = vdwg.mxu0
    %v671 = vmul.f32 %v615, %v663
    %v672 = vmul.f32 %v625, %v666
    %v673 = vmul.f32 %v635, %v669
    %v675 = vsel %vm595, %v592, 0
    %v678 = vsel %vm595, %v593, 0
    %v681 = vsel %vm595, %v594, 0
    %vm683 = vcmask 1041408
    %v685 = vsel %vm683, %v673, 0
    %687 = vmatpush.msra.mxu0 0.0
    %688 = vmatpush.msra.mxu0 0.0
    %689 = vmatpush.msra.mxu0 0.0
    %690 = vmatpush.msra.mxu0 0.0
    %691 = vmatpush.msra.mxu0 0.0
    %692 = vmatpush.msra.mxu0 0.0
    %693 = vmatpush.msra.mxu0 0.0
    %694 = vmatpush.msra.mxu0 0.0
    %695 = vmatpush.msra.mxu0 0.0
    %696 = vmatpush.msra.mxu0 0.0
    %697 = vmatpush.msra.mxu0 0.0
    %698 = vmatpush.msra.mxu0 0.0
    %699 = vmatpush.msra.mxu0 0.0
    %700 = vmatpush.msra.mxu0 %v685
    %701 = vmatpush.msra.mxu0 %v672
    %702 = vmatpush.msra.mxu0 %v671
    %703 = vmatmul.f32.gmra.mxu0 %v675
    %v704 = vpop.f32.mrf.mxu0
    %v705 = vadd.f32 0.0, %v704
    %706 = vmatmul.f32.gmra.mxu0 %v678
    %v707 = vpop.f32.mrf.mxu0
    %v708 = vadd.f32 0.0, %v707
    %709 = vmatmul.f32.gmra.mxu0 %v681
    %v710 = vpop.f32.mrf.mxu0
    %v711 = vadd.f32 0.0, %v710
    %712 = vdwg.mxu0
    %v713 = vmul.f32 %v615, %v705
    %v714 = vmul.f32 %v625, %v708
    %v715 = vmul.f32 %v635, %v711
    %v717 = vperm.slane %v591, 0
    %v719 = vadd.f32 %v713, %v717
    %v720 = vadd.f32 %v714, %v717
    %v721 = vadd.f32 %v715, %v717
    %v722 = vmax.f32 %v719, 0.0
    %v723 = vmax.f32 %v720, 0.0
    %v724 = vmax.f32 %v721, 0.0
    %v725 = vmul.f32 %v577, %v256
    %v726 = vmul.f32 %v580, %v257
    %v727 = vmul.f32 %v583, %v258
    %v728 = vadd.f32 %v725, %v116
    %v729 = vadd.f32 %v726, %v117
    %v730 = vadd.f32 %v727, %v118
    %v732 = vsel %vm595, %v728, 0
    %v735 = vsel %vm595, %v729, 0
    %v738 = vsel %vm595, %v730, 0
    %v740 = vsel %vm683, %v730, 0
    %742 = vmatpush.msra.mxu0 0.0
    %743 = vmatpush.msra.mxu0 0.0
    %744 = vmatpush.msra.mxu0 0.0
    %745 = vmatpush.msra.mxu0 0.0
    %746 = vmatpush.msra.mxu0 0.0
    %747 = vmatpush.msra.mxu0 0.0
    %748 = vmatpush.msra.mxu0 0.0
    %749 = vmatpush.msra.mxu0 0.0
    %750 = vmatpush.msra.mxu0 0.0
    %751 = vmatpush.msra.mxu0 0.0
    %752 = vmatpush.msra.mxu0 0.0
    %753 = vmatpush.msra.mxu0 0.0
    %754 = vmatpush.msra.mxu0 0.0
    %755 = vmatpush.msra.mxu0 %v740
    %756 = vmatpush.msra.mxu0 %v729
    %757 = vmatpush.msra.mxu0 %v728
    %758 = vmatmul.f32.gmra.mxu0 %v732
    %v759 = vpop.f32.mrf.mxu0
    %v760 = vadd.f32 0.0, %v759
    %761 = vmatmul.f32.gmra.mxu0 %v735
    %v762 = vpop.f32.mrf.mxu0
    %v763 = vadd.f32 0.0, %v762
    %764 = vmatmul.f32.gmra.mxu0 %v738
    %v765 = vpop.f32.mrf.mxu0
    %v766 = vadd.f32 0.0, %v765
    %767 = vdwg.mxu0
    %v768 = vmul.f32 %v760, %v256
    %v769 = vmul.f32 %v763, %v257
    %v770 = vmul.f32 %v766, %v258
    %777 = vrot.lane.b32.xlu0 %v305, 127
    %v778 = vpop.permute.xlu0 %777
    %779 = vrot.lane.b32.xlu0 %v306, 127
    %v780 = vpop.permute.xlu0 %779
    %781 = vrot.lane.b32.xlu0 %v307, 127
    %v782 = vpop.permute.xlu0 %781
    %783 = vrot.lane.b32.xlu0 %v308, 127
    %v784 = vpop.permute.xlu0 %783
    %785 = vrot.lane.b32.xlu0 %v309, 127
    %v786 = vpop.permute.xlu0 %785
    %787 = vrot.lane.b32.xlu0 %v310, 127
    %v788 = vpop.permute.xlu0 %787
    %v796 = vsel %vm311, %v722, 0
    %v799 = vsel %vm311, %v723, 0
    %v802 = vsel %vm311, %v724, 0
    %804 = vmatpush.msra.mxu0 0.0
    %805 = vmatpush.msra.mxu0 0.0
    %806 = vmatpush.msra.mxu0 0.0
    %807 = vmatpush.msra.mxu0 0.0
    %808 = vmatpush.msra.mxu0 0.0
    %809 = vmatpush.msra.mxu0 0.0
    %810 = vmatpush.msra.mxu0 0.0
    %811 = vmatpush.msra.mxu0 0.0
    %812 = vmatpush.msra.mxu0 0.0
    %813 = vmatpush.msra.mxu0 0.0
    %814 = vmatpush.msra.mxu0 %v788
    %815 = vmatpush.msra.mxu0 %v786
    %816 = vmatpush.msra.mxu0 %v784
    %817 = vmatpush.msra.mxu0 %v782
    %818 = vmatpush.msra.mxu0 %v780
    %819 = vmatpush.msra.mxu0 %v778
    %820 = vmatmul.f32.gmra.mxu0 %v796
    %v821 = vpop.f32.mrf.mxu0
    %v822 = vadd.f32 0.0, %v821
    %823 = vmatmul.f32.gmra.mxu0 %v799
    %v824 = vpop.f32.mrf.mxu0
    %v825 = vadd.f32 0.0, %v824
    %826 = vmatmul.f32.gmra.mxu0 %v802
    %v827 = vpop.f32.mrf.mxu0
    %v828 = vadd.f32 0.0, %v827
    %829 = vdwg.mxu0
    %v830 = vtanh.pop %v822
    %v831 = vtanh.pop %v825
    %v832 = vtanh.pop %v828
    %834 = vset.pattern.permute.xlu0 0
    %835 = vperm.xlu0 %834, %v830
    %v836 = vpop.permute.xlu0 %835
    %839 = vset.pattern.permute.xlu0 0
    %840 = vperm.xlu0 %839, %v831
    %v841 = vpop.permute.xlu0 %840
    %844 = vset.pattern.permute.xlu0 0
    %845 = vperm.xlu0 %844, %v832
    %v846 = vpop.permute.xlu0 %845
    %v848 = vmul.f32 %v116, %v836
    %v849 = vmul.f32 %v117, %v841
    %v850 = vmul.f32 %v118, %v846
    %v851 = vsel %vm595, 1.0, 0
    %v854 = vsel %vm683, %v850, 0
    %856 = vmatpush.msra.mxu0 0.0
    %857 = vmatpush.msra.mxu0 0.0
    %858 = vmatpush.msra.mxu0 0.0
    %859 = vmatpush.msra.mxu0 0.0
    %860 = vmatpush.msra.mxu0 0.0
    %861 = vmatpush.msra.mxu0 0.0
    %862 = vmatpush.msra.mxu0 0.0
    %863 = vmatpush.msra.mxu0 0.0
    %864 = vmatpush.msra.mxu0 0.0
    %865 = vmatpush.msra.mxu0 0.0
    %866 = vmatpush.msra.mxu0 0.0
    %867 = vmatpush.msra.mxu0 0.0
    %868 = vmatpush.msra.mxu0 0.0
    %869 = vmatpush.msra.mxu0 %v854
    %870 = vmatpush.msra.mxu0 %v849
    %871 = vmatpush.msra.mxu0 %v848
    %872 = vmatmul.f32.gmra.mxu0 %v851
    %v873 = vpop.f32.mrf.mxu0
    %v874 = vadd.f32 0.0, %v873
    %875 = vmatmul.f32.gmra.mxu0 %v851
    %v876 = vpop.f32.mrf.mxu0
    %v877 = vadd.f32 0.0, %v876
    %878 = vmatmul.f32.gmra.mxu0 %v851
    %v879 = vpop.f32.mrf.mxu0
    %v880 = vadd.f32 0.0, %v879
    %881 = vdwg.mxu0
    %vm882 = vcmp.gt.f32.partialorder %v874, %v836
    %vm883 = vcmp.gt.f32.partialorder %v877, %v841
    %vm884 = vcmp.gt.f32.partialorder %v880, %v846
    %vm885 = vcmp.eq.f32.partialorder %v874, %v836
    %vm886 = vcmp.eq.f32.partialorder %v877, %v841
    %vm887 = vcmp.eq.f32.partialorder %v880, %v846
    %vm888 = vmand %vm885, %vm406
    %vm889 = vmand %vm886, %vm407
    %vm890 = vmand %vm887, %vm408
    %vm891 = vmor %vm882, %vm888
    %vm892 = vmor %vm883, %vm889
    %vm893 = vmor %vm884, %vm890
    %v894 = vsel %vm891, 1.0, 0.0
    %v895 = vsel %vm892, 1.0, 0.0
    %v896 = vsel %vm893, 1.0, 0.0
    %v897 = vsel %vm595, %v894, 0.0
    %898 = vadd.xlane.f32.xlu0 %v897
    %v899 = vpop.xlane.xlu0 %898
    %v900 = vsel %vm595, %v895, 0.0
    %901 = vadd.xlane.f32.xlu0 %v900
    %v902 = vpop.xlane.xlu0 %901
    %v903 = vsel %vm602, %v896, 0.0
    %904 = vadd.xlane.f32.xlu0 %v903
    %v905 = vpop.xlane.xlu0 %904
    %v906 = vmul.f32 %v116, %v899
    %v907 = vmul.f32 %v117, %v902
    %v908 = vmul.f32 %v118, %v905
    %v910 = vsel %vm683, %v908, 0
    %912 = vmatpush.msra.mxu0 0.0
    %913 = vmatpush.msra.mxu0 0.0
    %914 = vmatpush.msra.mxu0 0.0
    %915 = vmatpush.msra.mxu0 0.0
    %916 = vmatpush.msra.mxu0 0.0
    %917 = vmatpush.msra.mxu0 0.0
    %918 = vmatpush.msra.mxu0 0.0
    %919 = vmatpush.msra.mxu0 0.0
    %920 = vmatpush.msra.mxu0 0.0
    %921 = vmatpush.msra.mxu0 0.0
    %922 = vmatpush.msra.mxu0 0.0
    %923 = vmatpush.msra.mxu0 0.0
    %924 = vmatpush.msra.mxu0 0.0
    %925 = vmatpush.msra.mxu0 %v910
    %926 = vmatpush.msra.mxu0 %v907
    %927 = vmatpush.msra.mxu0 %v906
    %928 = vmatmul.f32.gmra.mxu0 %v851
    %v929 = vpop.f32.mrf.mxu0
    %v930 = vadd.f32 0.0, %v929
    %931 = vmatmul.f32.gmra.mxu0 %v851
    %v932 = vpop.f32.mrf.mxu0
    %v933 = vadd.f32 0.0, %v932
    %934 = vdwg.mxu0
    %v935 = vcvt.f32.s32.to.zero.pseudo %v930
    %v936 = vcvt.f32.s32.to.zero.pseudo %v933
    %vm937 = vcmp.eq.s32.totalorder %v935, %v108
    %vm938 = vcmp.eq.s32.totalorder %v936, %v109
    %v939 = vsel %vm937, 1.0, 0.0
    %v940 = vsel %vm938, 1.0, 0.0
    %v941 = vcvt.f32.s32.to.zero.pseudo %v899
    %v942 = vcvt.f32.s32.to.zero.pseudo %v902
    %v943 = vcvt.f32.s32.to.zero.pseudo %v905
    %vm944 = vcmp.eq.s32.totalorder %v941, %v112
    %vm945 = vcmp.eq.s32.totalorder %v942, %v112
    %vm946 = vcmp.eq.s32.totalorder %v943, %v112
    %v947 = vsel %vm944, 1.0, 0.0
    %v948 = vsel %vm945, 1.0, 0.0
    %v949 = vsel %vm946, 1.0, 0.0
    %v950 = vmul.f32 %v722, %v836
    %v951 = vmul.f32 %v723, %v841
    %v952 = vmul.f32 %v724, %v846
    %v954 = vsel %vm595, %v939, 0
    %v957 = vsel %vm595, %v940, 0
    %v960 = vsel %vm683, %v952, 0
    %962 = vmatpush.msra.mxu0 0.0
    %963 = vmatpush.msra.mxu0 0.0
    %964 = vmatpush.msra.mxu0 0.0
    %965 = vmatpush.msra.mxu0 0.0
    %966 = vmatpush.msra.mxu0 0.0
    %967 = vmatpush.msra.mxu0 0.0
    %968 = vmatpush.msra.mxu0 0.0
    %969 = vmatpush.msra.mxu0 0.0
    %970 = vmatpush.msra.mxu0 0.0
    %971 = vmatpush.msra.mxu0 0.0
    %972 = vmatpush.msra.mxu0 0.0
    %973 = vmatpush.msra.mxu0 0.0
    %974 = vmatpush.msra.mxu0 0.0
    %975 = vmatpush.msra.mxu0 %v960
    %976 = vmatpush.msra.mxu0 %v951
    %977 = vmatpush.msra.mxu0 %v950
    %978 = vmatmul.f32.gmra.mxu0 %v954
    %v979 = vpop.f32.mrf.mxu0
    %v980 = vadd.f32 0.0, %v979
    %981 = vmatmul.f32.gmra.mxu0 %v957
    %v982 = vpop.f32.mrf.mxu0
    %v983 = vadd.f32 0.0, %v982
    %984 = vdwg.mxu0
    %v986 = vsel %vm683, %v770, 0
    %988 = vmatpush.msra.mxu0 0.0
    %989 = vmatpush.msra.mxu0 0.0
    %990 = vmatpush.msra.mxu0 0.0
    %991 = vmatpush.msra.mxu0 0.0
    %992 = vmatpush.msra.mxu0 0.0
    %993 = vmatpush.msra.mxu0 0.0
    %994 = vmatpush.msra.mxu0 0.0
    %995 = vmatpush.msra.mxu0 0.0
    %996 = vmatpush.msra.mxu0 0.0
    %997 = vmatpush.msra.mxu0 0.0
    %998 = vmatpush.msra.mxu0 0.0
    %999 = vmatpush.msra.mxu0 0.0
    %1000 = vmatpush.msra.mxu0 0.0
    %1001 = vmatpush.msra.mxu0 %v986
    %1002 = vmatpush.msra.mxu0 %v769
    %1003 = vmatpush.msra.mxu0 %v768
    %1004 = vmatmul.f32.gmra.mxu0 %v954
    %v1005 = vpop.f32.mrf.mxu0
    %v1006 = vadd.f32 0.0, %v1005
    %1007 = vmatmul.f32.gmra.mxu0 %v957
    %v1008 = vpop.f32.mrf.mxu0
    %v1009 = vadd.f32 0.0, %v1008
    %1010 = vdwg.mxu0
    %v1012 = vsel %vm595, %v1006, 0
    %v1015 = vsel %vm595, %v1009, 0
    %v1018 = vsel %vm683, %v949, 0
    %1020 = vmatpush.msra.mxu0 0.0
    %1021 = vmatpush.msra.mxu0 0.0
    %1022 = vmatpush.msra.mxu0 0.0
    %1023 = vmatpush.msra.mxu0 0.0
    %1024 = vmatpush.msra.mxu0 0.0
    %1025 = vmatpush.msra.mxu0 0.0
    %1026 = vmatpush.msra.mxu0 0.0
    %1027 = vmatpush.msra.mxu0 0.0
    %1028 = vmatpush.msra.mxu0 0.0
    %1029 = vmatpush.msra.mxu0 0.0
    %1030 = vmatpush.msra.mxu0 0.0
    %1031 = vmatpush.msra.mxu0 0.0
    %1032 = vmatpush.msra.mxu0 0.0
    %1033 = vmatpush.msra.mxu0 %v1018
    %1034 = vmatpush.msra.mxu0 %v948
    %1035 = vmatpush.msra.mxu0 %v947
    %1036 = vmatmul.f32.gmra.mxu0 %v1012
    %v1037 = vpop.f32.mrf.mxu0
    %v1038 = vadd.f32 0.0, %v1037
    %1039 = vmatmul.f32.gmra.mxu0 %v1015
    %v1040 = vpop.f32.mrf.mxu0
    %v1041 = vadd.f32 0.0, %v1040
    %1042 = vdwg.mxu0
    %s1043 = scalar_lea.vmem %s4, 48
    %v1044 = vld [vmem:[%s1043] sm:$0xff]
    %v1045 = vld [vmem:[%s1043 + $0x8] sm:$0xff]
    %v1046 = vld [vmem:[%s1043 + $0x10] sm:$0xff]
    %v1047 = vld [vmem:[%s1043 + $0x18] sm:$0xff]
    %v1048 = vld [vmem:[%s1043 + $0x20] sm:$0xff]
    %v1049 = vld [vmem:[%s1043 + $0x28] sm:$0xff]
    %s1050 = scalar_lea.vmem %s5, 1
    %v1051 = vld [vmem:[%s1050] sm:$0x1]
    %v1052 = vadd.f32 %v1038, %v119
    %v1053 = vadd.f32 %v1041, %v120
    %vm1054 = vcmask 105472
    %v1055 = vsel %vm1054, %v1052, 0.0
    %1056 = vadd.xlane.f32.xlu0 %v1055
    %v1057 = vpop.xlane.xlu0 %1056
    %vm1058 = vcmask 102400
    %v1059 = vsel %vm1058, %v1053, 0.0
    %1060 = vadd.xlane.f32.xlu0 %v1059
    %v1061 = vpop.xlane.xlu0 %1060
    %v1062 = vrsqrt.pop %v1057
    %v1063 = vmul.f32 %v1062, %v1057
    %v1064 = vmul.f32 %v1063, %v1062
    %v1065 = vmul.f32 0.5, %v1064
    %v1066 = vsub.f32 1.5, %v1065
    %v1067 = vmul.f32 %v1062, %v1066
    %vm1068 = vweird.f32 %v1057
    %vm1069 = vweird.f32 %v1062
    %vm1070 = vmor %vm1068, %vm1069
    %v1071 = vsel %vm1070, %v1062, %v1067
    %v1072 = vrsqrt.pop %v1061
    %v1073 = vmul.f32 %v1072, %v1061
    %v1074 = vmul.f32 %v1073, %v1072
    %v1075 = vmul.f32 0.5, %v1074
    %v1076 = vsub.f32 1.5, %v1075
    %v1077 = vmul.f32 %v1072, %v1076
    %vm1078 = vweird.f32 %v1061
    %vm1079 = vweird.f32 %v1072
    %vm1080 = vmor %vm1078, %vm1079
    %v1081 = vsel %vm1080, %v1072, %v1077
    %v1083 = vsel %vm311, %v980, 0
    %v1086 = vsel %vm311, %v983, 0
    %1088 = vmatpush.msra.mxu0 0.0
    %1089 = vmatpush.msra.mxu0 0.0
    %1090 = vmatpush.msra.mxu0 0.0
    %1091 = vmatpush.msra.mxu0 0.0
    %1092 = vmatpush.msra.mxu0 0.0
    %1093 = vmatpush.msra.mxu0 0.0
    %1094 = vmatpush.msra.mxu0 0.0
    %1095 = vmatpush.msra.mxu0 0.0
    %1096 = vmatpush.msra.mxu0 0.0
    %1097 = vmatpush.msra.mxu0 0.0
    %1098 = vmatpush.msra.mxu0 %v1049
    %1099 = vmatpush.msra.mxu0 %v1048
    %1100 = vmatpush.msra.mxu0 %v1047
    %1101 = vmatpush.msra.mxu0 %v1046
    %1102 = vmatpush.msra.mxu0 %v1045
    %1103 = vmatpush.msra.mxu0 %v1044
    %1104 = vmatmul.f32.gmra.mxu0 %v1083
    %v1105 = vpop.f32.mrf.mxu0
    %v1106 = vadd.f32 0.0, %v1105
    %1107 = vmatmul.f32.gmra.mxu0 %v1086
    %v1108 = vpop.f32.mrf.mxu0
    %v1109 = vadd.f32 0.0, %v1108
    %1110 = vdwg.mxu0
    %v1111 = vmul.f32 %v1071, %v1106
    %v1112 = vmul.f32 %v1081, %v1109
    %v1114 = vsel %vm1054, %v1052, 0
    %v1117 = vsel %vm1054, %v1053, 0
    %vm1119 = vcmask 1044480
    %v1121 = vsel %vm1119, %v1112, 0
    %1123 = vmatpush.msra.mxu0 0.0
    %1124 = vmatpush.msra.mxu0 0.0
    %1125 = vmatpush.msra.mxu0 0.0
    %1126 = vmatpush.msra.mxu0 0.0
    %1127 = vmatpush.msra.mxu0 0.0
    %1128 = vmatpush.msra.mxu0 0.0
    %1129 = vmatpush.msra.mxu0 0.0
    %1130 = vmatpush.msra.mxu0 0.0
    %1131 = vmatpush.msra.mxu0 0.0
    %1132 = vmatpush.msra.mxu0 0.0
    %1133 = vmatpush.msra.mxu0 0.0
    %1134 = vmatpush.msra.mxu0 0.0
    %1135 = vmatpush.msra.mxu0 0.0
    %1136 = vmatpush.msra.mxu0 0.0
    %1137 = vmatpush.msra.mxu0 %v1121
    %1138 = vmatpush.msra.mxu0 %v1111
    %1139 = vmatmul.f32.gmra.mxu0 %v1114
    %v1140 = vpop.f32.mrf.mxu0
    %v1141 = vadd.f32 0.0, %v1140
    %1142 = vmatmul.f32.gmra.mxu0 %v1117
    %v1143 = vpop.f32.mrf.mxu0
    %v1144 = vadd.f32 0.0, %v1143
    %1145 = vdwg.mxu0
    %v1146 = vmul.f32 %v1071, %v1141
    %v1147 = vmul.f32 %v1081, %v1144
    %v1149 = vperm.slane %v1051, 0
    %v1151 = vadd.f32 %v1146, %v1149
    %v1152 = vadd.f32 %v1147, %v1149
    %v1153 = vmax.f32 %v1151, 0.0
    %v1154 = vmax.f32 %v1152, 0.0
    %v1155 = vmul.f32 %v1038, %v256
    %v1156 = vmul.f32 %v1041, %v257
    %v1157 = vadd.f32 %v1155, %v116
    %v1158 = vadd.f32 %v1156, %v117
    %v1160 = vsel %vm1054, %v1157, 0
    %v1163 = vsel %vm1054, %v1158, 0
    %v1165 = vsel %vm1119, %v1158, 0
    %1167 = vmatpush.msra.mxu0 0.0
    %1168 = vmatpush.msra.mxu0 0.0
    %1169 = vmatpush.msra.mxu0 0.0
    %1170 = vmatpush.msra.mxu0 0.0
    %1171 = vmatpush.msra.mxu0 0.0
    %1172 = vmatpush.msra.mxu0 0.0
    %1173 = vmatpush.msra.mxu0 0.0
    %1174 = vmatpush.msra.mxu0 0.0
    %1175 = vmatpush.msra.mxu0 0.0
    %1176 = vmatpush.msra.mxu0 0.0
    %1177 = vmatpush.msra.mxu0 0.0
    %1178 = vmatpush.msra.mxu0 0.0
    %1179 = vmatpush.msra.mxu0 0.0
    %1180 = vmatpush.msra.mxu0 0.0
    %1181 = vmatpush.msra.mxu0 %v1165
    %1182 = vmatpush.msra.mxu0 %v1157
    %1183 = vmatmul.f32.gmra.mxu0 %v1160
    %v1184 = vpop.f32.mrf.mxu0
    %v1185 = vadd.f32 0.0, %v1184
    %1186 = vmatmul.f32.gmra.mxu0 %v1163
    %v1187 = vpop.f32.mrf.mxu0
    %v1188 = vadd.f32 0.0, %v1187
    %1189 = vdwg.mxu0
    %v1190 = vmul.f32 %v1185, %v256
    %v1191 = vmul.f32 %v1188, %v257
    %1192 = vrot.lane.b32.xlu0 %v305, 126
    %v1193 = vpop.permute.xlu0 %1192
    %1194 = vrot.lane.b32.xlu0 %v306, 126
    %v1195 = vpop.permute.xlu0 %1194
    %1196 = vrot.lane.b32.xlu0 %v307, 126
    %v1197 = vpop.permute.xlu0 %1196
    %1198 = vrot.lane.b32.xlu0 %v308, 126
    %v1199 = vpop.permute.xlu0 %1198
    %1200 = vrot.lane.b32.xlu0 %v309, 126
    %v1201 = vpop.permute.xlu0 %1200
    %1202 = vrot.lane.b32.xlu0 %v310, 126
    %v1203 = vpop.permute.xlu0 %1202
    %v1211 = vsel %vm311, %v1153, 0
    %v1214 = vsel %vm311, %v1154, 0
    %1216 = vmatpush.msra.mxu0 0.0
    %1217 = vmatpush.msra.mxu0 0.0
    %1218 = vmatpush.msra.mxu0 0.0
    %1219 = vmatpush.msra.mxu0 0.0
    %1220 = vmatpush.msra.mxu0 0.0
    %1221 = vmatpush.msra.mxu0 0.0
    %1222 = vmatpush.msra.mxu0 0.0
    %1223 = vmatpush.msra.mxu0 0.0
    %1224 = vmatpush.msra.mxu0 0.0
    %1225 = vmatpush.msra.mxu0 0.0
    %1226 = vmatpush.msra.mxu0 %v1203
    %1227 = vmatpush.msra.mxu0 %v1201
    %1228 = vmatpush.msra.mxu0 %v1199
    %1229 = vmatpush.msra.mxu0 %v1197
    %1230 = vmatpush.msra.mxu0 %v1195
    %1231 = vmatpush.msra.mxu0 %v1193
    %1232 = vmatmul.f32.gmra.mxu0 %v1211
    %v1233 = vpop.f32.mrf.mxu0
    %v1234 = vadd.f32 0.0, %v1233
    %1235 = vmatmul.f32.gmra.mxu0 %v1214
    %v1236 = vpop.f32.mrf.mxu0
    %v1237 = vadd.f32 0.0, %v1236
    %1238 = vdwg.mxu0
    %v1239 = vtanh.pop %v1234
    %v1240 = vtanh.pop %v1237
    %1242 = vset.pattern.permute.xlu0 0
    %1243 = vperm.xlu0 %1242, %v1239
    %v1244 = vpop.permute.xlu0 %1243
    %1247 = vset.pattern.permute.xlu0 0
    %1248 = vperm.xlu0 %1247, %v1240
    %v1249 = vpop.permute.xlu0 %1248
    %v1251 = vmul.f32 %v116, %v1244
    %v1252 = vmul.f32 %v117, %v1249
    %v1253 = vsel %vm1054, 1.0, 0
    %v1256 = vsel %vm1119, %v1252, 0
    %1258 = vmatpush.msra.mxu0 0.0
    %1259 = vmatpush.msra.mxu0 0.0
    %1260 = vmatpush.msra.mxu0 0.0
    %1261 = vmatpush.msra.mxu0 0.0
    %1262 = vmatpush.msra.mxu0 0.0
    %1263 = vmatpush.msra.mxu0 0.0
    %1264 = vmatpush.msra.mxu0 0.0
    %1265 = vmatpush.msra.mxu0 0.0
    %1266 = vmatpush.msra.mxu0 0.0
    %1267 = vmatpush.msra.mxu0 0.0
    %1268 = vmatpush.msra.mxu0 0.0
    %1269 = vmatpush.msra.mxu0 0.0
    %1270 = vmatpush.msra.mxu0 0.0
    %1271 = vmatpush.msra.mxu0 0.0
    %1272 = vmatpush.msra.mxu0 %v1256
    %1273 = vmatpush.msra.mxu0 %v1251
    %1274 = vmatmul.f32.gmra.mxu0 %v1253
    %v1275 = vpop.f32.mrf.mxu0
    %v1276 = vadd.f32 0.0, %v1275
    %1277 = vmatmul.f32.gmra.mxu0 %v1253
    %v1278 = vpop.f32.mrf.mxu0
    %v1279 = vadd.f32 0.0, %v1278
    %1280 = vdwg.mxu0
    %vm1281 = vcmp.gt.f32.partialorder %v1276, %v1244
    %vm1282 = vcmp.gt.f32.partialorder %v1279, %v1249
    %vm1283 = vcmp.eq.f32.partialorder %v1276, %v1244
    %vm1284 = vcmp.eq.f32.partialorder %v1279, %v1249
    %vm1285 = vmand %vm1283, %vm406
    %vm1286 = vmand %vm1284, %vm407
    %vm1287 = vmor %vm1281, %vm1285
    %vm1288 = vmor %vm1282, %vm1286
    %v1289 = vsel %vm1287, 1.0, 0.0
    %v1290 = vsel %vm1288, 1.0, 0.0
    %v1291 = vsel %vm1054, %v1289, 0.0
    %1292 = vadd.xlane.f32.xlu0 %v1291
    %v1293 = vpop.xlane.xlu0 %1292
    %v1294 = vsel %vm1058, %v1290, 0.0
    %1295 = vadd.xlane.f32.xlu0 %v1294
    %v1296 = vpop.xlane.xlu0 %1295
    %v1297 = vmul.f32 %v116, %v1293
    %v1298 = vmul.f32 %v117, %v1296
    %v1300 = vsel %vm1119, %v1298, 0
    %1302 = vmatpush.msra.mxu0 0.0
    %1303 = vmatpush.msra.mxu0 0.0
    %1304 = vmatpush.msra.mxu0 0.0
    %1305 = vmatpush.msra.mxu0 0.0
    %1306 = vmatpush.msra.mxu0 0.0
    %1307 = vmatpush.msra.mxu0 0.0
    %1308 = vmatpush.msra.mxu0 0.0
    %1309 = vmatpush.msra.mxu0 0.0
    %1310 = vmatpush.msra.mxu0 0.0
    %1311 = vmatpush.msra.mxu0 0.0
    %1312 = vmatpush.msra.mxu0 0.0
    %1313 = vmatpush.msra.mxu0 0.0
    %1314 = vmatpush.msra.mxu0 0.0
    %1315 = vmatpush.msra.mxu0 0.0
    %1316 = vmatpush.msra.mxu0 %v1300
    %1317 = vmatpush.msra.mxu0 %v1297
    %1318 = vmatmul.f32.gmra.mxu0 %v1253
    %v1319 = vpop.f32.mrf.mxu0
    %v1320 = vadd.f32 0.0, %v1319
    %1321 = vdwg.mxu0
    %v1322 = vcvt.f32.s32.to.zero.pseudo %v1320
    %vm1323 = vcmp.eq.s32.totalorder %v1322, %v108
    %v1324 = vsel %vm1323, 1.0, 0.0
    %v1325 = vcvt.f32.s32.to.zero.pseudo %v1293
    %v1326 = vcvt.f32.s32.to.zero.pseudo %v1296
    %vm1327 = vcmp.eq.s32.totalorder %v1325, %v112
    %vm1328 = vcmp.eq.s32.totalorder %v1326, %v112
    %v1329 = vsel %vm1327, 1.0, 0.0
    %v1330 = vsel %vm1328, 1.0, 0.0
    %v1331 = vmul.f32 %v1153, %v1244
    %v1332 = vmul.f32 %v1154, %v1249
    %v1334 = vsel %vm1054, %v1324, 0
    %v1337 = vsel %vm1119, %v1332, 0
    %1339 = vmatpush.msra.mxu0 0.0
    %1340 = vmatpush.msra.mxu0 0.0
    %1341 = vmatpush.msra.mxu0 0.0
    %1342 = vmatpush.msra.mxu0 0.0
    %1343 = vmatpush.msra.mxu0 0.0
    %1344 = vmatpush.msra.mxu0 0.0
    %1345 = vmatpush.msra.mxu0 0.0
    %1346 = vmatpush.msra.mxu0 0.0
    %1347 = vmatpush.msra.mxu0 0.0
    %1348 = vmatpush.msra.mxu0 0.0
    %1349 = vmatpush.msra.mxu0 0.0
    %1350 = vmatpush.msra.mxu0 0.0
    %1351 = vmatpush.msra.mxu0 0.0
    %1352 = vmatpush.msra.mxu0 0.0
    %1353 = vmatpush.msra.mxu0 %v1337
    %1354 = vmatpush.msra.mxu0 %v1331
    %1355 = vmatmul.f32.gmra.mxu0 %v1334
    %v1356 = vpop.f32.mrf.mxu0
    %v1357 = vadd.f32 0.0, %v1356
    %1358 = vdwg.mxu0
    %v1360 = vsel %vm1119, %v1191, 0
    %1362 = vmatpush.msra.mxu0 0.0
    %1363 = vmatpush.msra.mxu0 0.0
    %1364 = vmatpush.msra.mxu0 0.0
    %1365 = vmatpush.msra.mxu0 0.0
    %1366 = vmatpush.msra.mxu0 0.0
    %1367 = vmatpush.msra.mxu0 0.0
    %1368 = vmatpush.msra.mxu0 0.0
    %1369 = vmatpush.msra.mxu0 0.0
    %1370 = vmatpush.msra.mxu0 0.0
    %1371 = vmatpush.msra.mxu0 0.0
    %1372 = vmatpush.msra.mxu0 0.0
    %1373 = vmatpush.msra.mxu0 0.0
    %1374 = vmatpush.msra.mxu0 0.0
    %1375 = vmatpush.msra.mxu0 0.0
    %1376 = vmatpush.msra.mxu0 %v1360
    %1377 = vmatpush.msra.mxu0 %v1190
    %1378 = vmatmul.f32.gmra.mxu0 %v1334
    %v1379 = vpop.f32.mrf.mxu0
    %v1380 = vadd.f32 0.0, %v1379
    %1381 = vdwg.mxu0
    %v1383 = vsel %vm1054, %v1380, 0
    %v1386 = vsel %vm1119, %v1330, 0
    %1388 = vmatpush.msra.mxu0 0.0
    %1389 = vmatpush.msra.mxu0 0.0
    %1390 = vmatpush.msra.mxu0 0.0
    %1391 = vmatpush.msra.mxu0 0.0
    %1392 = vmatpush.msra.mxu0 0.0
    %1393 = vmatpush.msra.mxu0 0.0
    %1394 = vmatpush.msra.mxu0 0.0
    %1395 = vmatpush.msra.mxu0 0.0
    %1396 = vmatpush.msra.mxu0 0.0
    %1397 = vmatpush.msra.mxu0 0.0
    %1398 = vmatpush.msra.mxu0 0.0
    %1399 = vmatpush.msra.mxu0 0.0
    %1400 = vmatpush.msra.mxu0 0.0
    %1401 = vmatpush.msra.mxu0 0.0
    %1402 = vmatpush.msra.mxu0 %v1386
    %1403 = vmatpush.msra.mxu0 %v1329
    %1404 = vmatmul.f32.gmra.mxu0 %v1383
    %v1405 = vpop.f32.mrf.mxu0
    %v1406 = vadd.f32 0.0, %v1405
    %1407 = vdwg.mxu0
    %s1408 = scalar_lea.vmem %s4, 96
    %v1409 = vld [vmem:[%s1408] sm:$0xff]
    %v1410 = vld [vmem:[%s1408 + $0x8] sm:$0xff]
    %v1411 = vld [vmem:[%s1408 + $0x10] sm:$0xff]
    %v1412 = vld [vmem:[%s1408 + $0x18] sm:$0xff]
    %v1413 = vld [vmem:[%s1408 + $0x20] sm:$0xff]
    %v1414 = vld [vmem:[%s1408 + $0x28] sm:$0xff]
    %s1415 = scalar_lea.vmem %s5, 2
    %v1416 = vld [vmem:[%s1415] sm:$0x1]
    %v1417 = vadd.f32 %v1406, %v119
    %v1418 = vsel %vm166, %v1417, 0.0
    %1419 = vadd.xlane.f32.xlu0 %v1418
    %v1420 = vpop.xlane.xlu0 %1419
    %v1421 = vrsqrt.pop %v1420
    %v1422 = vmul.f32 %v1421, %v1420
    %v1423 = vmul.f32 %v1422, %v1421
    %v1424 = vmul.f32 0.5, %v1423
    %v1425 = vsub.f32 1.5, %v1424
    %v1426 = vmul.f32 %v1421, %v1425
    %vm1427 = vweird.f32 %v1420
    %vm1428 = vweird.f32 %v1421
    %vm1429 = vmor %vm1427, %vm1428
    %v1430 = vsel %vm1429, %v1421, %v1426
    %v1432 = vsel %vm311, %v1357, 0
    %1434 = vmatpush.msra.mxu0 0.0
    %1435 = vmatpush.msra.mxu0 0.0
    %1436 = vmatpush.msra.mxu0 0.0
    %1437 = vmatpush.msra.mxu0 0.0
    %1438 = vmatpush.msra.mxu0 0.0
    %1439 = vmatpush.msra.mxu0 0.0
    %1440 = vmatpush.msra.mxu0 0.0
    %1441 = vmatpush.msra.mxu0 0.0
    %1442 = vmatpush.msra.mxu0 0.0
    %1443 = vmatpush.msra.mxu0 0.0
    %1444 = vmatpush.msra.mxu0 %v1414
    %1445 = vmatpush.msra.mxu0 %v1413
    %1446 = vmatpush.msra.mxu0 %v1412
    %1447 = vmatpush.msra.mxu0 %v1411
    %1448 = vmatpush.msra.mxu0 %v1410
    %1449 = vmatpush.msra.mxu0 %v1409
    %1450 = vmatmul.f32.gmra.mxu0 %v1432
    %v1451 = vpop.f32.mrf.mxu0
    %v1452 = vadd.f32 0.0, %v1451
    %1453 = vdwg.mxu0
    %v1454 = vmul.f32 %v1430, %v1452
    %v1456 = vsel %vm166, %v1417, 0
    %1458 = vmatpush.msra.mxu0 0.0
    %1459 = vmatpush.msra.mxu0 0.0
    %1460 = vmatpush.msra.mxu0 0.0
    %1461 = vmatpush.msra.mxu0 0.0
    %1462 = vmatpush.msra.mxu0 0.0
    %1463 = vmatpush.msra.mxu0 0.0
    %1464 = vmatpush.msra.mxu0 0.0
    %1465 = vmatpush.msra.mxu0 0.0
    %1466 = vmatpush.msra.mxu0 0.0
    %1467 = vmatpush.msra.mxu0 0.0
    %1468 = vmatpush.msra.mxu0 0.0
    %1469 = vmatpush.msra.mxu0 0.0
    %1470 = vmatpush.msra.mxu0 0.0
    %1471 = vmatpush.msra.mxu0 0.0
    %1472 = vmatpush.msra.mxu0 0.0
    %1473 = vmatpush.msra.mxu0 %v1454
    %1474 = vmatmul.f32.gmra.mxu0 %v1456
    %v1475 = vpop.f32.mrf.mxu0
    %v1476 = vadd.f32 0.0, %v1475
    %1477 = vdwg.mxu0
    %v1478 = vmul.f32 %v1430, %v1476
    %v1480 = vperm.slane %v1416, 0
    %v1482 = vadd.f32 %v1478, %v1480
    %v1483 = vmax.f32 %v1482, 0.0
    %v1484 = vmul.f32 %v1406, %v256
    %v1485 = vadd.f32 %v1484, %v116
    %v1487 = vsel %vm166, %v1485, 0
    %1489 = vmatpush.msra.mxu0 0.0
    %1490 = vmatpush.msra.mxu0 0.0
    %1491 = vmatpush.msra.mxu0 0.0
    %1492 = vmatpush.msra.mxu0 0.0
    %1493 = vmatpush.msra.mxu0 0.0
    %1494 = vmatpush.msra.mxu0 0.0
    %1495 = vmatpush.msra.mxu0 0.0
    %1496 = vmatpush.msra.mxu0 0.0
    %1497 = vmatpush.msra.mxu0 0.0
    %1498 = vmatpush.msra.mxu0 0.0
    %1499 = vmatpush.msra.mxu0 0.0
    %1500 = vmatpush.msra.mxu0 0.0
    %1501 = vmatpush.msra.mxu0 0.0
    %1502 = vmatpush.msra.mxu0 0.0
    %1503 = vmatpush.msra.mxu0 0.0
    %1504 = vmatpush.msra.mxu0 %v1485
    %1505 = vmatmul.f32.gmra.mxu0 %v1487
    %v1506 = vpop.f32.mrf.mxu0
    %v1507 = vadd.f32 0.0, %v1506
    %1508 = vdwg.mxu0
    %v1509 = vmul.f32 %v1507, %v256
    %1510 = vrot.lane.b32.xlu0 %v305, 125
    %v1511 = vpop.permute.xlu0 %1510
    %1512 = vrot.lane.b32.xlu0 %v306, 125
    %v1513 = vpop.permute.xlu0 %1512
    %1514 = vrot.lane.b32.xlu0 %v307, 125
    %v1515 = vpop.permute.xlu0 %1514
    %1516 = vrot.lane.b32.xlu0 %v308, 125
    %v1517 = vpop.permute.xlu0 %1516
    %1518 = vrot.lane.b32.xlu0 %v309, 125
    %v1519 = vpop.permute.xlu0 %1518
    %1520 = vrot.lane.b32.xlu0 %v310, 125
    %v1521 = vpop.permute.xlu0 %1520
    %v1529 = vsel %vm311, %v1483, 0
    %1531 = vmatpush.msra.mxu0 0.0
    %1532 = vmatpush.msra.mxu0 0.0
    %1533 = vmatpush.msra.mxu0 0.0
    %1534 = vmatpush.msra.mxu0 0.0
    %1535 = vmatpush.msra.mxu0 0.0
    %1536 = vmatpush.msra.mxu0 0.0
    %1537 = vmatpush.msra.mxu0 0.0
    %1538 = vmatpush.msra.mxu0 0.0
    %1539 = vmatpush.msra.mxu0 0.0
    %1540 = vmatpush.msra.mxu0 0.0
    %1541 = vmatpush.msra.mxu0 %v1521
    %1542 = vmatpush.msra.mxu0 %v1519
    %1543 = vmatpush.msra.mxu0 %v1517
    %1544 = vmatpush.msra.mxu0 %v1515
    %1545 = vmatpush.msra.mxu0 %v1513
    %1546 = vmatpush.msra.mxu0 %v1511
    %1547 = vmatmul.f32.gmra.mxu0 %v1529
    %v1548 = vpop.f32.mrf.mxu0
    %v1549 = vadd.f32 0.0, %v1548
    %1550 = vdwg.mxu0
    %v1551 = vtanh.pop %v1549
    %1553 = vset.pattern.permute.xlu0 0
    %1554 = vperm.xlu0 %1553, %v1551
    %v1555 = vpop.permute.xlu0 %1554
    %v1557 = vmul.f32 %v116, %v1555
    %v1558 = vsel %vm166, 1.0, 0
    %1560 = vmatpush.msra.mxu0 0.0
    %1561 = vmatpush.msra.mxu0 0.0
    %1562 = vmatpush.msra.mxu0 0.0
    %1563 = vmatpush.msra.mxu0 0.0
    %1564 = vmatpush.msra.mxu0 0.0
    %1565 = vmatpush.msra.mxu0 0.0
    %1566 = vmatpush.msra.mxu0 0.0
    %1567 = vmatpush.msra.mxu0 0.0
    %1568 = vmatpush.msra.mxu0 0.0
    %1569 = vmatpush.msra.mxu0 0.0
    %1570 = vmatpush.msra.mxu0 0.0
    %1571 = vmatpush.msra.mxu0 0.0
    %1572 = vmatpush.msra.mxu0 0.0
    %1573 = vmatpush.msra.mxu0 0.0
    %1574 = vmatpush.msra.mxu0 0.0
    %1575 = vmatpush.msra.mxu0 %v1557
    %1576 = vmatmul.f32.gmra.mxu0 %v1558
    %v1577 = vpop.f32.mrf.mxu0
    %v1578 = vadd.f32 0.0, %v1577
    %1579 = vdwg.mxu0
    %vm1580 = vcmp.gt.f32.partialorder %v1578, %v1555
    %vm1581 = vcmp.eq.f32.partialorder %v1578, %v1555
    %vm1582 = vmand %vm1581, %vm406
    %vm1583 = vmor %vm1580, %vm1582
    %v1584 = vsel %vm1583, 1.0, 0.0
    %v1585 = vsel %vm166, %v1584, 0.0
    %1586 = vadd.xlane.f32.xlu0 %v1585
    %v1587 = vpop.xlane.xlu0 %1586
    %v1588 = vmul.f32 %v116, %v1587
    %1589 = vmatpush.msra.mxu0 0.0
    %1590 = vmatpush.msra.mxu0 0.0
    %1591 = vmatpush.msra.mxu0 0.0
    %1592 = vmatpush.msra.mxu0 0.0
    %1593 = vmatpush.msra.mxu0 0.0
    %1594 = vmatpush.msra.mxu0 0.0
    %1595 = vmatpush.msra.mxu0 0.0
    %1596 = vmatpush.msra.mxu0 0.0
    %1597 = vmatpush.msra.mxu0 0.0
    %1598 = vmatpush.msra.mxu0 0.0
    %1599 = vmatpush.msra.mxu0 0.0
    %1600 = vmatpush.msra.mxu0 0.0
    %1601 = vmatpush.msra.mxu0 0.0
    %1602 = vmatpush.msra.mxu0 0.0
    %1603 = vmatpush.msra.mxu0 0.0
    %1604 = vmatpush.msra.mxu0 %v1588
    %1605 = vmatmul.f32.gmra.mxu0 %v1558
    %v1606 = vpop.f32.mrf.mxu0
    %v1607 = vadd.f32 0.0, %v1606
    %1608 = vdwg.mxu0
    %v1609 = vcvt.f32.s32.to.zero.pseudo %v1607
    %vm1610 = vcmp.eq.s32.totalorder %v1609, %v108
    %v1611 = vsel %vm1610, 1.0, 0.0
    %v1612 = vcvt.f32.s32.to.zero.pseudo %v1587
    %vm1613 = vcmp.eq.s32.totalorder %v1612, %v112
    %v1614 = vsel %vm1613, 1.0, 0.0
    %v1615 = vmul.f32 %v1483, %v1555
    %v1617 = vsel %vm166, %v1611, 0
    %1619 = vmatpush.msra.mxu0 0.0
    %1620 = vmatpush.msra.mxu0 0.0
    %1621 = vmatpush.msra.mxu0 0.0
    %1622 = vmatpush.msra.mxu0 0.0
    %1623 = vmatpush.msra.mxu0 0.0
    %1624 = vmatpush.msra.mxu0 0.0
    %1625 = vmatpush.msra.mxu0 0.0
    %1626 = vmatpush.msra.mxu0 0.0
    %1627 = vmatpush.msra.mxu0 0.0
    %1628 = vmatpush.msra.mxu0 0.0
    %1629 = vmatpush.msra.mxu0 0.0
    %1630 = vmatpush.msra.mxu0 0.0
    %1631 = vmatpush.msra.mxu0 0.0
    %1632 = vmatpush.msra.mxu0 0.0
    %1633 = vmatpush.msra.mxu0 0.0
    %1634 = vmatpush.msra.mxu0 %v1615
    %1635 = vmatmul.f32.gmra.mxu0 %v1617
    %v1636 = vpop.f32.mrf.mxu0
    %v1637 = vadd.f32 0.0, %v1636
    %1638 = vdwg.mxu0
    %1639 = vmatpush.msra.mxu0 0.0
    %1640 = vmatpush.msra.mxu0 0.0
    %1641 = vmatpush.msra.mxu0 0.0
    %1642 = vmatpush.msra.mxu0 0.0
    %1643 = vmatpush.msra.mxu0 0.0
    %1644 = vmatpush.msra.mxu0 0.0
    %1645 = vmatpush.msra.mxu0 0.0
    %1646 = vmatpush.msra.mxu0 0.0
    %1647 = vmatpush.msra.mxu0 0.0
    %1648 = vmatpush.msra.mxu0 0.0
    %1649 = vmatpush.msra.mxu0 0.0
    %1650 = vmatpush.msra.mxu0 0.0
    %1651 = vmatpush.msra.mxu0 0.0
    %1652 = vmatpush.msra.mxu0 0.0
    %1653 = vmatpush.msra.mxu0 0.0
    %1654 = vmatpush.msra.mxu0 %v1509
    %1655 = vmatmul.f32.gmra.mxu0 %v1617
    %v1656 = vpop.f32.mrf.mxu0
    %v1657 = vadd.f32 0.0, %v1656
    %1658 = vdwg.mxu0
    %s1659 = scalar_lea.vmem %s4, 144
    %v1660 = vld [vmem:[%s1659] sm:$0xff]
    %v1661 = vld [vmem:[%s1659 + $0x8] sm:$0xff]
    %v1662 = vld [vmem:[%s1659 + $0x10] sm:$0xff]
    %v1663 = vld [vmem:[%s1659 + $0x18] sm:$0xff]
    %v1664 = vld [vmem:[%s1659 + $0x20] sm:$0xff]
    %v1665 = vld [vmem:[%s1659 + $0x28] sm:$0xff]
    %s1666 = scalar_lea.vmem %s5, 3
    %v1667 = vld [vmem:[%s1666] sm:$0x1]
    %v1669 = vsel %vm166, %v1657, 0
    %1671 = vmatpush.msra.mxu0 0.0
    %1672 = vmatpush.msra.mxu0 0.0
    %1673 = vmatpush.msra.mxu0 0.0
    %1674 = vmatpush.msra.mxu0 0.0
    %1675 = vmatpush.msra.mxu0 0.0
    %1676 = vmatpush.msra.mxu0 0.0
    %1677 = vmatpush.msra.mxu0 0.0
    %1678 = vmatpush.msra.mxu0 0.0
    %1679 = vmatpush.msra.mxu0 0.0
    %1680 = vmatpush.msra.mxu0 0.0
    %1681 = vmatpush.msra.mxu0 0.0
    %1682 = vmatpush.msra.mxu0 0.0
    %1683 = vmatpush.msra.mxu0 0.0
    %1684 = vmatpush.msra.mxu0 0.0
    %1685 = vmatpush.msra.mxu0 0.0
    %1686 = vmatpush.msra.mxu0 %v1614
    %1687 = vmatmul.f32.gmra.mxu0 %v1669
    %v1688 = vpop.f32.mrf.mxu0
    %v1689 = vadd.f32 %v119, %v1688
    %1690 = vdwg.mxu0
    %vm1691 = vcmask 27648
    %v1692 = vsel %vm1691, %v1689, 0.0
    %1693 = vadd.xlane.f32.xlu0 %v1692
    %v1694 = vpop.xlane.xlu0 %1693
    %v1695 = vrsqrt.pop %v1694
    %v1696 = vmul.f32 %v1695, %v1694
    %v1697 = vmul.f32 %v1696, %v1695
    %v1698 = vmul.f32 0.5, %v1697
    %v1699 = vsub.f32 1.5, %v1698
    %v1700 = vmul.f32 %v1695, %v1699
    %vm1701 = vweird.f32 %v1694
    %vm1702 = vweird.f32 %v1695
    %vm1703 = vmor %vm1701, %vm1702
    %v1704 = vsel %vm1703, %v1695, %v1700
    %v1706 = vsel %vm311, %v1637, 0
    %1708 = vmatpush.msra.mxu0 0.0
    %1709 = vmatpush.msra.mxu0 0.0
    %1710 = vmatpush.msra.mxu0 0.0
    %1711 = vmatpush.msra.mxu0 0.0
    %1712 = vmatpush.msra.mxu0 0.0
    %1713 = vmatpush.msra.mxu0 0.0
    %1714 = vmatpush.msra.mxu0 0.0
    %1715 = vmatpush.msra.mxu0 0.0
    %1716 = vmatpush.msra.mxu0 0.0
    %1717 = vmatpush.msra.mxu0 0.0
    %1718 = vmatpush.msra.mxu0 %v1665
    %1719 = vmatpush.msra.mxu0 %v1664
    %1720 = vmatpush.msra.mxu0 %v1663
    %1721 = vmatpush.msra.mxu0 %v1662
    %1722 = vmatpush.msra.mxu0 %v1661
    %1723 = vmatpush.msra.mxu0 %v1660
    %1724 = vmatmul.f32.gmra.mxu0 %v1706
    %v1725 = vpop.f32.mrf.mxu0
    %v1726 = vadd.f32 0.0, %v1725
    %1727 = vdwg.mxu0
    %v1728 = vmul.f32 %v1704, %v1726
    %vm1729 = vcmask 31744
    %v1731 = vsel %vm1729, %v1689, 0
    %v1734 = vsel %vm214, %v1728, 0
    %1736 = vmatpush.msra.mxu0 0.0
    %1737 = vmatpush.msra.mxu0 0.0
    %1738 = vmatpush.msra.mxu0 0.0
    %1739 = vmatpush.msra.mxu0 0.0
    %1740 = vmatpush.msra.mxu0 0.0
    %1741 = vmatpush.msra.mxu0 0.0
    %1742 = vmatpush.msra.mxu0 0.0
    %1743 = vmatpush.msra.mxu0 0.0
    %1744 = vmatpush.msra.mxu0 0.0
    %1745 = vmatpush.msra.mxu0 0.0
    %1746 = vmatpush.msra.mxu0 0.0
    %1747 = vmatpush.msra.mxu0 0.0
    %1748 = vmatpush.msra.mxu0 0.0
    %1749 = vmatpush.msra.mxu0 0.0
    %1750 = vmatpush.msra.mxu0 0.0
    %1751 = vmatpush.msra.mxu0 %v1734
    %1752 = vmatmul.f32.gmra.mxu0 %v1731
    %v1753 = vpop.f32.mrf.mxu0
    %v1754 = vadd.f32 0.0, %v1753
    %1755 = vdwg.mxu0
    %v1756 = vmul.f32 %v1704, %v1754
    %v1758 = vperm.slane %v1667, 0
    %v1760 = vadd.f32 %v1756, %v1758
    %v1761 = vmax.f32 %v1760, 0.0
    %v1763 = vsel %vm1729, %v1614, 0
    %v1766 = vsel %vm214, %v1761, 0
    %1768 = vmatpush.msra.mxu0 0.0
    %1769 = vmatpush.msra.mxu0 0.0
    %1770 = vmatpush.msra.mxu0 0.0
    %1771 = vmatpush.msra.mxu0 0.0
    %1772 = vmatpush.msra.mxu0 0.0
    %1773 = vmatpush.msra.mxu0 0.0
    %1774 = vmatpush.msra.mxu0 0.0
    %1775 = vmatpush.msra.mxu0 0.0
    %1776 = vmatpush.msra.mxu0 0.0
    %1777 = vmatpush.msra.mxu0 0.0
    %1778 = vmatpush.msra.mxu0 0.0
    %1779 = vmatpush.msra.mxu0 0.0
    %1780 = vmatpush.msra.mxu0 0.0
    %1781 = vmatpush.msra.mxu0 0.0
    %1782 = vmatpush.msra.mxu0 0.0
    %1783 = vmatpush.msra.mxu0 %v1766
    %1784 = vmatmul.f32.gmra.mxu0 %v1763
    %v1785 = vpop.f32.mrf.mxu0
    %v1786 = vadd.f32 0.0, %v1785
    %1787 = vdwg.mxu0
    %v1788 = vadd.f32 %v1483, %v1786
    %v1789 = vld [vmem:[#allocation6] sm:$0xff]
    %v1790 = vld [vmem:[#allocation6 + $0x8] sm:$0xff]
    %v1791 = vld [vmem:[#allocation6 + $0x10] sm:$0xff]
    %v1792 = vld [vmem:[#allocation6 + $0x18] sm:$0xff]
    %v1793 = vld [vmem:[#allocation6 + $0x20] sm:$0xff]
    %v1794 = vld [vmem:[#allocation6 + $0x28] sm:$0xff]
    %v1795 = vld [vmem:[%s8] sm:$0x1]
    %v1797 = vsel %vm311, %v1788, 0
    %1799 = vmatpush.msra.mxu0 0.0
    %1800 = vmatpush.msra.mxu0 0.0
    %1801 = vmatpush.msra.mxu0 0.0
    %1802 = vmatpush.msra.mxu0 0.0
    %1803 = vmatpush.msra.mxu0 0.0
    %1804 = vmatpush.msra.mxu0 0.0
    %1805 = vmatpush.msra.mxu0 0.0
    %1806 = vmatpush.msra.mxu0 0.0
    %1807 = vmatpush.msra.mxu0 0.0
    %1808 = vmatpush.msra.mxu0 0.0
    %1809 = vmatpush.msra.mxu0 %v1794
    %1810 = vmatpush.msra.mxu0 %v1793
    %1811 = vmatpush.msra.mxu0 %v1792
    %1812 = vmatpush.msra.mxu0 %v1791
    %1813 = vmatpush.msra.mxu0 %v1790
    %1814 = vmatpush.msra.mxu0 %v1789
    %1815 = vmatmul.f32.gmra.mxu0 %v1797
    %v1816 = vpop.f32.mrf.mxu0
    %v1817 = vadd.f32 0.0, %v1816
    %1818 = vdwg.mxu0
    %v1819 = vmul.f32 %v1430, %v1817
    %1820 = vmatpush.msra.mxu0 0.0
    %1821 = vmatpush.msra.mxu0 0.0
    %1822 = vmatpush.msra.mxu0 0.0
    %1823 = vmatpush.msra.mxu0 0.0
    %1824 = vmatpush.msra.mxu0 0.0
    %1825 = vmatpush.msra.mxu0 0.0
    %1826 = vmatpush.msra.mxu0 0.0
    %1827 = vmatpush.msra.mxu0 0.0
    %1828 = vmatpush.msra.mxu0 0.0
    %1829 = vmatpush.msra.mxu0 0.0
    %1830 = vmatpush.msra.mxu0 0.0
    %1831 = vmatpush.msra.mxu0 0.0
    %1832 = vmatpush.msra.mxu0 0.0
    %1833 = vmatpush.msra.mxu0 0.0
    %1834 = vmatpush.msra.mxu0 0.0
    %1835 = vmatpush.msra.mxu0 %v1819
    %1836 = vmatmul.f32.gmra.mxu0 %v1456
    %v1837 = vpop.f32.mrf.mxu0
    %v1838 = vadd.f32 0.0, %v1837
    %1839 = vdwg.mxu0
    %v1840 = vmul.f32 %v1430, %v1838
    %v1842 = vperm.slane %v1795, 0
    %v1844 = vadd.f32 %v1840, %v1842
    %v1845 = vmax.f32 %v1844, 0.0
    %v1847 = vsel %vm166, %v1329, 0
    %v1849 = vsel %vm166, %v1330, 0
    %1851 = vmatpush.msra.mxu0 0.0
    %1852 = vmatpush.msra.mxu0 0.0
    %1853 = vmatpush.msra.mxu0 0.0
    %1854 = vmatpush.msra.mxu0 0.0
    %1855 = vmatpush.msra.mxu0 0.0
    %1856 = vmatpush.msra.mxu0 0.0
    %1857 = vmatpush.msra.mxu0 0.0
    %1858 = vmatpush.msra.mxu0 0.0
    %1859 = vmatpush.msra.mxu0 0.0
    %1860 = vmatpush.msra.mxu0 0.0
    %1861 = vmatpush.msra.mxu0 0.0
    %1862 = vmatpush.msra.mxu0 0.0
    %1863 = vmatpush.msra.mxu0 0.0
    %1864 = vmatpush.msra.mxu0 0.0
    %1865 = vmatpush.msra.mxu0 0.0
    %1866 = vmatpush.msra.mxu0 %v1845
    %1867 = vmatmul.f32.gmra.mxu0 %v1847
    %v1868 = vpop.f32.mrf.mxu0
    %v1869 = vadd.f32 0.0, %v1868
    %1870 = vmatmul.f32.gmra.mxu0 %v1849
    %v1871 = vpop.f32.mrf.mxu0
    %v1872 = vadd.f32 0.0, %v1871
    %1873 = vdwg.mxu0
    %v1874 = vadd.f32 %v1153, %v1869
    %v1875 = vadd.f32 %v1154, %v1872
    %s1876 = scalar_lea.vmem [#allocation6], 48
    %v1877 = vld [vmem:[%s1876] sm:$0xff]
    %v1878 = vld [vmem:[%s1876 + $0x8] sm:$0xff]
    %v1879 = vld [vmem:[%s1876 + $0x10] sm:$0xff]
    %v1880 = vld [vmem:[%s1876 + $0x18] sm:$0xff]
    %v1881 = vld [vmem:[%s1876 + $0x20] sm:$0xff]
    %v1882 = vld [vmem:[%s1876 + $0x28] sm:$0xff]
    %s1883 = scalar_lea.vmem %s8, 1
    %v1884 = vld [vmem:[%s1883] sm:$0x1]
    %v1886 = vsel %vm311, %v1874, 0
    %v1889 = vsel %vm311, %v1875, 0
    %1891 = vmatpush.msra.mxu0 0.0
    %1892 = vmatpush.msra.mxu0 0.0
    %1893 = vmatpush.msra.mxu0 0.0
    %1894 = vmatpush.msra.mxu0 0.0
    %1895 = vmatpush.msra.mxu0 0.0
    %1896 = vmatpush.msra.mxu0 0.0
    %1897 = vmatpush.msra.mxu0 0.0
    %1898 = vmatpush.msra.mxu0 0.0
    %1899 = vmatpush.msra.mxu0 0.0
    %1900 = vmatpush.msra.mxu0 0.0
    %1901 = vmatpush.msra.mxu0 %v1882
    %1902 = vmatpush.msra.mxu0 %v1881
    %1903 = vmatpush.msra.mxu0 %v1880
    %1904 = vmatpush.msra.mxu0 %v1879
    %1905 = vmatpush.msra.mxu0 %v1878
    %1906 = vmatpush.msra.mxu0 %v1877
    %1907 = vmatmul.f32.gmra.mxu0 %v1886
    %v1908 = vpop.f32.mrf.mxu0
    %v1909 = vadd.f32 0.0, %v1908
    %1910 = vmatmul.f32.gmra.mxu0 %v1889
    %v1911 = vpop.f32.mrf.mxu0
    %v1912 = vadd.f32 0.0, %v1911
    %1913 = vdwg.mxu0
    %v1914 = vmul.f32 %v1071, %v1909
    %v1915 = vmul.f32 %v1081, %v1912
    %v1917 = vsel %vm1119, %v1915, 0
    %1919 = vmatpush.msra.mxu0 0.0
    %1920 = vmatpush.msra.mxu0 0.0
    %1921 = vmatpush.msra.mxu0 0.0
    %1922 = vmatpush.msra.mxu0 0.0
    %1923 = vmatpush.msra.mxu0 0.0
    %1924 = vmatpush.msra.mxu0 0.0
    %1925 = vmatpush.msra.mxu0 0.0
    %1926 = vmatpush.msra.mxu0 0.0
    %1927 = vmatpush.msra.mxu0 0.0
    %1928 = vmatpush.msra.mxu0 0.0
    %1929 = vmatpush.msra.mxu0 0.0
    %1930 = vmatpush.msra.mxu0 0.0
    %1931 = vmatpush.msra.mxu0 0.0
    %1932 = vmatpush.msra.mxu0 0.0
    %1933 = vmatpush.msra.mxu0 %v1917
    %1934 = vmatpush.msra.mxu0 %v1914
    %1935 = vmatmul.f32.gmra.mxu0 %v1114
    %v1936 = vpop.f32.mrf.mxu0
    %v1937 = vadd.f32 0.0, %v1936
    %1938 = vmatmul.f32.gmra.mxu0 %v1117
    %v1939 = vpop.f32.mrf.mxu0
    %v1940 = vadd.f32 0.0, %v1939
    %1941 = vdwg.mxu0
    %v1942 = vmul.f32 %v1071, %v1937
    %v1943 = vmul.f32 %v1081, %v1940
    %v1945 = vperm.slane %v1884, 0
    %v1947 = vadd.f32 %v1942, %v1945
    %v1948 = vadd.f32 %v1943, %v1945
    %v1949 = vmax.f32 %v1947, 0.0
    %v1950 = vmax.f32 %v1948, 0.0
    %v1952 = vsel %vm1054, %v947, 0
    %v1955 = vsel %vm1054, %v948, 0
    %v1957 = vsel %vm1054, %v949, 0
    %v1960 = vsel %vm1119, %v1950, 0
    %1962 = vmatpush.msra.mxu0 0.0
    %1963 = vmatpush.msra.mxu0 0.0
    %1964 = vmatpush.msra.mxu0 0.0
    %1965 = vmatpush.msra.mxu0 0.0
    %1966 = vmatpush.msra.mxu0 0.0
    %1967 = vmatpush.msra.mxu0 0.0
    %1968 = vmatpush.msra.mxu0 0.0
    %1969 = vmatpush.msra.mxu0 0.0
    %1970 = vmatpush.msra.mxu0 0.0
    %1971 = vmatpush.msra.mxu0 0.0
    %1972 = vmatpush.msra.mxu0 0.0
    %1973 = vmatpush.msra.mxu0 0.0
    %1974 = vmatpush.msra.mxu0 0.0
    %1975 = vmatpush.msra.mxu0 0.0
    %1976 = vmatpush.msra.mxu0 %v1960
    %1977 = vmatpush.msra.mxu0 %v1949
    %1978 = vmatmul.f32.gmra.mxu0 %v1952
    %v1979 = vpop.f32.mrf.mxu0
    %v1980 = vadd.f32 0.0, %v1979
    %1981 = vmatmul.f32.gmra.mxu0 %v1955
    %v1982 = vpop.f32.mrf.mxu0
    %v1983 = vadd.f32 0.0, %v1982
    %1984 = vmatmul.f32.gmra.mxu0 %v1957
    %v1985 = vpop.f32.mrf.mxu0
    %v1986 = vadd.f32 0.0, %v1985
    %1987 = vdwg.mxu0
    %v1988 = vadd.f32 %v722, %v1980
    %v1989 = vadd.f32 %v723, %v1983
    %v1990 = vadd.f32 %v724, %v1986
    %s1991 = scalar_lea.vmem [#allocation6], 96
    %v1992 = vld [vmem:[%s1991] sm:$0xff]
    %v1993 = vld [vmem:[%s1991 + $0x8] sm:$0xff]
    %v1994 = vld [vmem:[%s1991 + $0x10] sm:$0xff]
    %v1995 = vld [vmem:[%s1991 + $0x18] sm:$0xff]
    %v1996 = vld [vmem:[%s1991 + $0x20] sm:$0xff]
    %v1997 = vld [vmem:[%s1991 + $0x28] sm:$0xff]
    %s1998 = scalar_lea.vmem %s8, 2
    %v1999 = vld [vmem:[%s1998] sm:$0x1]
    %v2001 = vsel %vm311, %v1988, 0
    %v2004 = vsel %vm311, %v1989, 0
    %v2007 = vsel %vm311, %v1990, 0
    %2009 = vmatpush.msra.mxu0 0.0
    %2010 = vmatpush.msra.mxu0 0.0
    %2011 = vmatpush.msra.mxu0 0.0
    %2012 = vmatpush.msra.mxu0 0.0
    %2013 = vmatpush.msra.mxu0 0.0
    %2014 = vmatpush.msra.mxu0 0.0
    %2015 = vmatpush.msra.mxu0 0.0
    %2016 = vmatpush.msra.mxu0 0.0
    %2017 = vmatpush.msra.mxu0 0.0
    %2018 = vmatpush.msra.mxu0 0.0
    %2019 = vmatpush.msra.mxu0 %v1997
    %2020 = vmatpush.msra.mxu0 %v1996
    %2021 = vmatpush.msra.mxu0 %v1995
    %2022 = vmatpush.msra.mxu0 %v1994
    %2023 = vmatpush.msra.mxu0 %v1993
    %2024 = vmatpush.msra.mxu0 %v1992
    %2025 = vmatmul.f32.gmra.mxu0 %v2001
    %v2026 = vpop.f32.mrf.mxu0
    %v2027 = vadd.f32 0.0, %v2026
    %2028 = vmatmul.f32.gmra.mxu0 %v2004
    %v2029 = vpop.f32.mrf.mxu0
    %v2030 = vadd.f32 0.0, %v2029
    %2031 = vmatmul.f32.gmra.mxu0 %v2007
    %v2032 = vpop.f32.mrf.mxu0
    %v2033 = vadd.f32 0.0, %v2032
    %2034 = vdwg.mxu0
    %v2035 = vmul.f32 %v615, %v2027
    %v2036 = vmul.f32 %v625, %v2030
    %v2037 = vmul.f32 %v635, %v2033
    %v2039 = vsel %vm683, %v2037, 0
    %2041 = vmatpush.msra.mxu0 0.0
    %2042 = vmatpush.msra.mxu0 0.0
    %2043 = vmatpush.msra.mxu0 0.0
    %2044 = vmatpush.msra.mxu0 0.0
    %2045 = vmatpush.msra.mxu0 0.0
    %2046 = vmatpush.msra.mxu0 0.0
    %2047 = vmatpush.msra.mxu0 0.0
    %2048 = vmatpush.msra.mxu0 0.0
    %2049 = vmatpush.msra.mxu0 0.0
    %2050 = vmatpush.msra.mxu0 0.0
    %2051 = vmatpush.msra.mxu0 0.0
    %2052 = vmatpush.msra.mxu0 0.0
    %2053 = vmatpush.msra.mxu0 0.0
    %2054 = vmatpush.msra.mxu0 %v2039
    %2055 = vmatpush.msra.mxu0 %v2036
    %2056 = vmatpush.msra.mxu0 %v2035
    %2057 = vmatmul.f32.gmra.mxu0 %v675
    %v2058 = vpop.f32.mrf.mxu0
    %v2059 = vadd.f32 0.0, %v2058
    %2060 = vmatmul.f32.gmra.mxu0 %v678
    %v2061 = vpop.f32.mrf.mxu0
    %v2062 = vadd.f32 0.0, %v2061
    %2063 = vmatmul.f32.gmra.mxu0 %v681
    %v2064 = vpop.f32.mrf.mxu0
    %v2065 = vadd.f32 0.0, %v2064
    %2066 = vdwg.mxu0
    %v2067 = vmul.f32 %v615, %v2059
    %v2068 = vmul.f32 %v625, %v2062
    %v2069 = vmul.f32 %v635, %v2065
    %v2071 = vperm.slane %v1999, 0
    %v2073 = vadd.f32 %v2067, %v2071
    %v2074 = vadd.f32 %v2068, %v2071
    %v2075 = vadd.f32 %v2069, %v2071
    %v2076 = vmax.f32 %v2073, 0.0
    %v2077 = vmax.f32 %v2074, 0.0
    %v2078 = vmax.f32 %v2075, 0.0
    %v2080 = vsel %vm595, %v474, 0
    %v2083 = vsel %vm595, %v475, 0
    %v2085 = vsel %vm595, %v476, 0
    %v2088 = vsel %vm683, %v2078, 0
    %2090 = vmatpush.msra.mxu0 0.0
    %2091 = vmatpush.msra.mxu0 0.0
    %2092 = vmatpush.msra.mxu0 0.0
    %2093 = vmatpush.msra.mxu0 0.0
    %2094 = vmatpush.msra.mxu0 0.0
    %2095 = vmatpush.msra.mxu0 0.0
    %2096 = vmatpush.msra.mxu0 0.0
    %2097 = vmatpush.msra.mxu0 0.0
    %2098 = vmatpush.msra.mxu0 0.0
    %2099 = vmatpush.msra.mxu0 0.0
    %2100 = vmatpush.msra.mxu0 0.0
    %2101 = vmatpush.msra.mxu0 0.0
    %2102 = vmatpush.msra.mxu0 0.0
    %2103 = vmatpush.msra.mxu0 %v2088
    %2104 = vmatpush.msra.mxu0 %v2077
    %2105 = vmatpush.msra.mxu0 %v2076
    %2106 = vmatmul.f32.gmra.mxu0 %v2080
    %v2107 = vpop.f32.mrf.mxu0
    %v2108 = vadd.f32 0.0, %v2107
    %2109 = vmatmul.f32.gmra.mxu0 %v2083
    %v2110 = vpop.f32.mrf.mxu0
    %v2111 = vadd.f32 0.0, %v2110
    %2112 = vmatmul.f32.gmra.mxu0 %v2085
    %v2113 = vpop.f32.mrf.mxu0
    %v2114 = vadd.f32 0.0, %v2113
    %2115 = vdwg.mxu0
    %v2116 = vadd.f32 %v253, %v2108
    %v2117 = vadd.f32 %v254, %v2111
    %v2118 = vadd.f32 %v255, %v2114
    %v2119 = vld [vmem:[#allocation7] sm:$0xff]
    %v2120 = vld [vmem:[#allocation7 + $0x8] sm:$0xff]
    %v2121 = vld [vmem:[#allocation7 + $0x10] sm:$0xff]
    %v2122 = vld [vmem:[#allocation7 + $0x18] sm:$0xff]
    %v2123 = vld [vmem:[#allocation7 + $0x20] sm:$0xff]
    %v2124 = vld [vmem:[#allocation7 + $0x28] sm:$0xff]
    %v2125 = vld [vmem:[%s10] sm:$0x1]
    %v2127 = vsel %vm311, %v2116, 0
    %v2130 = vsel %vm311, %v2117, 0
    %v2133 = vsel %vm311, %v2118, 0
    %2135 = vmatpush.msra.mxu0 0.0
    %2136 = vmatpush.msra.mxu0 0.0
    %2137 = vmatpush.msra.mxu0 0.0
    %2138 = vmatpush.msra.mxu0 0.0
    %2139 = vmatpush.msra.mxu0 0.0
    %2140 = vmatpush.msra.mxu0 0.0
    %2141 = vmatpush.msra.mxu0 0.0
    %2142 = vmatpush.msra.mxu0 0.0
    %2143 = vmatpush.msra.mxu0 0.0
    %2144 = vmatpush.msra.mxu0 0.0
    %2145 = vmatpush.msra.mxu0 %v2124
    %2146 = vmatpush.msra.mxu0 %v2123
    %2147 = vmatpush.msra.mxu0 %v2122
    %2148 = vmatpush.msra.mxu0 %v2121
    %2149 = vmatpush.msra.mxu0 %v2120
    %2150 = vmatpush.msra.mxu0 %v2119
    %2151 = vmatmul.f32.gmra.mxu0 %v2127
    %v2152 = vpop.f32.mrf.mxu0
    %v2153 = vadd.f32 0.0, %v2152
    %2154 = vmatmul.f32.gmra.mxu0 %v2130
    %v2155 = vpop.f32.mrf.mxu0
    %v2156 = vadd.f32 0.0, %v2155
    %2157 = vmatmul.f32.gmra.mxu0 %v2133
    %v2158 = vpop.f32.mrf.mxu0
    %v2159 = vadd.f32 0.0, %v2158
    %2160 = vdwg.mxu0
    %v2161 = vmul.f32 %v145, %v2153
    %v2162 = vmul.f32 %v155, %v2156
    %v2163 = vmul.f32 %v165, %v2159
    %v2165 = vsel %vm214, %v2163, 0
    %2167 = vmatpush.msra.mxu0 0.0
    %2168 = vmatpush.msra.mxu0 0.0
    %2169 = vmatpush.msra.mxu0 0.0
    %2170 = vmatpush.msra.mxu0 0.0
    %2171 = vmatpush.msra.mxu0 0.0
    %2172 = vmatpush.msra.mxu0 0.0
    %2173 = vmatpush.msra.mxu0 0.0
    %2174 = vmatpush.msra.mxu0 0.0
    %2175 = vmatpush.msra.mxu0 0.0
    %2176 = vmatpush.msra.mxu0 0.0
    %2177 = vmatpush.msra.mxu0 0.0
    %2178 = vmatpush.msra.mxu0 0.0
    %2179 = vmatpush.msra.mxu0 0.0
    %2180 = vmatpush.msra.mxu0 %v2165
    %2181 = vmatpush.msra.mxu0 %v2162
    %2182 = vmatpush.msra.mxu0 %v2161
    %2183 = vmatmul.f32.gmra.mxu0 %v206
    %v2184 = vpop.f32.mrf.mxu0
    %v2185 = vadd.f32 0.0, %v2184
    %2186 = vmatmul.f32.gmra.mxu0 %v209
    %v2187 = vpop.f32.mrf.mxu0
    %v2188 = vadd.f32 0.0, %v2187
    %2189 = vmatmul.f32.gmra.mxu0 %v212
    %v2190 = vpop.f32.mrf.mxu0
    %v2191 = vadd.f32 0.0, %v2190
    %2192 = vdwg.mxu0
    %v2193 = vmul.f32 %v145, %v2185
    %v2194 = vmul.f32 %v155, %v2188
    %v2195 = vmul.f32 %v165, %v2191
    %v2197 = vperm.slane %v2125, 0
    %v2199 = vadd.f32 %v2193, %v2197
    %v2200 = vadd.f32 %v2194, %v2197
    %v2201 = vadd.f32 %v2195, %v2197
    %2203 = vset.pattern.permute.xlu0 96
    %2204 = vperm.xlu0 %2203, %v2199
    %v2205 = vpop.permute.xlu0 %2204
    %2208 = vset.pattern.permute.xlu0 96
    %2209 = vperm.xlu0 %2208, %v2200
    %v2210 = vpop.permute.xlu0 %2209
    %2213 = vset.pattern.permute.xlu0 96
    %2214 = vperm.xlu0 %2213, %v2201
    %v2215 = vpop.permute.xlu0 %2214
    %v2217 = vmul.f32 %v116, %v2205
    %v2218 = vmul.f32 %v117, %v2210
    %v2219 = vmul.f32 %v118, %v2215
    %v2221 = vsel %vm214, %v2219, 0
    %2223 = vmatpush.msra.mxu0 0.0
    %2224 = vmatpush.msra.mxu0 0.0
    %2225 = vmatpush.msra.mxu0 0.0
    %2226 = vmatpush.msra.mxu0 0.0
    %2227 = vmatpush.msra.mxu0 0.0
    %2228 = vmatpush.msra.mxu0 0.0
    %2229 = vmatpush.msra.mxu0 0.0
    %2230 = vmatpush.msra.mxu0 0.0
    %2231 = vmatpush.msra.mxu0 0.0
    %2232 = vmatpush.msra.mxu0 0.0
    %2233 = vmatpush.msra.mxu0 0.0
    %2234 = vmatpush.msra.mxu0 0.0
    %2235 = vmatpush.msra.mxu0 0.0
    %2236 = vmatpush.msra.mxu0 %v2221
    %2237 = vmatpush.msra.mxu0 %v2218
    %2238 = vmatpush.msra.mxu0 %v2217
    %2239 = vmatmul.f32.gmra.mxu0 %v369
    %v2240 = vpop.f32.mrf.mxu0
    %v2241 = vadd.f32 0.0, %v2240
    %2242 = vmatmul.f32.gmra.mxu0 %v369
    %v2243 = vpop.f32.mrf.mxu0
    %v2244 = vadd.f32 0.0, %v2243
    %2245 = vmatmul.f32.gmra.mxu0 %v369
    %v2246 = vpop.f32.mrf.mxu0
    %v2247 = vadd.f32 0.0, %v2246
    %2248 = vdwg.mxu0
    %vm2249 = vcmp.gt.f32.partialorder %v2241, %v2205
    %vm2250 = vcmp.gt.f32.partialorder %v2244, %v2210
    %vm2251 = vcmp.gt.f32.partialorder %v2247, %v2215
    %vm2252 = vcmp.eq.f32.partialorder %v2241, %v2205
    %vm2253 = vcmp.eq.f32.partialorder %v2244, %v2210
    %vm2254 = vcmp.eq.f32.partialorder %v2247, %v2215
    %vm2255 = vmand %vm2252, %vm406
    %vm2256 = vmand %vm2253, %vm407
    %vm2257 = vmand %vm2254, %vm408
    %vm2258 = vmor %vm2249, %vm2255
    %vm2259 = vmor %vm2250, %vm2256
    %vm2260 = vmor %vm2251, %vm2257
    %v2261 = vsel %vm2258, 1.0, 0.0
    %v2262 = vsel %vm2259, 1.0, 0.0
    %v2263 = vsel %vm2260, 1.0, 0.0
    %v2264 = vsel %vm125, %v2261, 0.0
    %2265 = vadd.xlane.f32.xlu0 %v2264
    %v2266 = vpop.xlane.xlu0 %2265
    %v2267 = vsel %vm125, %v2262, 0.0
    %2268 = vadd.xlane.f32.xlu0 %v2267
    %v2269 = vpop.xlane.xlu0 %2268
    %v2270 = vsel %vm132, %v2263, 0.0
    %2271 = vadd.xlane.f32.xlu0 %v2270
    %v2272 = vpop.xlane.xlu0 %2271
    %v2273 = vmul.f32 %v116, %v2266
    %v2274 = vmul.f32 %v117, %v2269
    %v2275 = vmul.f32 %v118, %v2272
    %v2277 = vsel %vm214, %v2275, 0
    %2279 = vmatpush.msra.mxu0 0.0
    %2280 = vmatpush.msra.mxu0 0.0
    %2281 = vmatpush.msra.mxu0 0.0
    %2282 = vmatpush.msra.mxu0 0.0
    %2283 = vmatpush.msra.mxu0 0.0
    %2284 = vmatpush.msra.mxu0 0.0
    %2285 = vmatpush.msra.mxu0 0.0
    %2286 = vmatpush.msra.mxu0 0.0
    %2287 = vmatpush.msra.mxu0 0.0
    %2288 = vmatpush.msra.mxu0 0.0
    %2289 = vmatpush.msra.mxu0 0.0
    %2290 = vmatpush.msra.mxu0 0.0
    %2291 = vmatpush.msra.mxu0 0.0
    %2292 = vmatpush.msra.mxu0 %v2277
    %2293 = vmatpush.msra.mxu0 %v2274
    %2294 = vmatpush.msra.mxu0 %v2273
    %2295 = vmatmul.f32.gmra.mxu0 %v369
    %v2296 = vpop.f32.mrf.mxu0
    %v2297 = vadd.f32 0.0, %v2296
    %2298 = vmatmul.f32.gmra.mxu0 %v369
    %v2299 = vpop.f32.mrf.mxu0
    %v2300 = vadd.f32 0.0, %v2299
    %2301 = vdwg.mxu0
    %v2302 = vcvt.f32.s32.to.zero.pseudo %v2297
    %v2303 = vcvt.f32.s32.to.zero.pseudo %v2300
    %v2304 = vmul.u32 %v108, 2
    %v2305 = vmul.u32 %v109, 2
    %vm2306 = vcmp.eq.s32.totalorder %v2302, %v2304
    %vm2307 = vcmp.eq.s32.totalorder %v2303, %v2305
    %v2308 = vsel %vm2306, 1.0, 0.0
    %v2309 = vsel %vm2307, 1.0, 0.0
    %v2310 = vadd.s32 %v2304, 1
    %v2311 = vadd.s32 %v2305, 1
    %vm2312 = vcmp.eq.s32.totalorder %v2302, %v2310
    %vm2313 = vcmp.eq.s32.totalorder %v2303, %v2311
    %v2314 = vsel %vm2312, 1.0, 0.0
    %v2315 = vsel %vm2313, 1.0, 0.0
    %v2317 = vsel %vm125, %v2308, 0
    %v2320 = vsel %vm125, %v2309, 0
    %v2322 = vsel %vm214, %v2201, 0
    %2324 = vmatpush.msra.mxu0 0.0
    %2325 = vmatpush.msra.mxu0 0.0
    %2326 = vmatpush.msra.mxu0 0.0
    %2327 = vmatpush.msra.mxu0 0.0
    %2328 = vmatpush.msra.mxu0 0.0
    %2329 = vmatpush.msra.mxu0 0.0
    %2330 = vmatpush.msra.mxu0 0.0
    %2331 = vmatpush.msra.mxu0 0.0
    %2332 = vmatpush.msra.mxu0 0.0
    %2333 = vmatpush.msra.mxu0 0.0
    %2334 = vmatpush.msra.mxu0 0.0
    %2335 = vmatpush.msra.mxu0 0.0
    %2336 = vmatpush.msra.mxu0 0.0
    %2337 = vmatpush.msra.mxu0 %v2322
    %2338 = vmatpush.msra.mxu0 %v2200
    %2339 = vmatpush.msra.mxu0 %v2199
    %2340 = vmatmul.f32.gmra.mxu0 %v2317
    %v2341 = vpop.f32.mrf.mxu0
    %v2342 = vadd.f32 0.0, %v2341
    %2343 = vmatmul.f32.gmra.mxu0 %v2320
    %v2344 = vpop.f32.mrf.mxu0
    %v2345 = vadd.f32 0.0, %v2344
    %2346 = vdwg.mxu0
    %2347 = vst [vmem:[%s11] sm:$0xff] %v2342
    %2348 = vst [vmem:[%s11 + $0x8] sm:$0x7f] %v2345
    %v2350 = vsel %vm125, %v2314, 0
    %v2353 = vsel %vm125, %v2315, 0
    %2355 = vmatpush.msra.mxu0 0.0
    %2356 = vmatpush.msra.mxu0 0.0
    %2357 = vmatpush.msra.mxu0 0.0
    %2358 = vmatpush.msra.mxu0 0.0
    %2359 = vmatpush.msra.mxu0 0.0
    %2360 = vmatpush.msra.mxu0 0.0
    %2361 = vmatpush.msra.mxu0 0.0
    %2362 = vmatpush.msra.mxu0 0.0
    %2363 = vmatpush.msra.mxu0 0.0
    %2364 = vmatpush.msra.mxu0 0.0
    %2365 = vmatpush.msra.mxu0 0.0
    %2366 = vmatpush.msra.mxu0 0.0
    %2367 = vmatpush.msra.mxu0 0.0
    %2368 = vmatpush.msra.mxu0 %v2322
    %2369 = vmatpush.msra.mxu0 %v2200
    %2370 = vmatpush.msra.mxu0 %v2199
    %2371 = vmatmul.f32.gmra.mxu0 %v2350
    %v2372 = vpop.f32.mrf.mxu0
    %v2373 = vadd.f32 0.0, %v2372
    %2374 = vmatmul.f32.gmra.mxu0 %v2353
    %v2375 = vpop.f32.mrf.mxu0
    %v2376 = vadd.f32 0.0, %v2375
    %2377 = vdwg.mxu0
    %s2378 = scalar_lea.vmem %s11, 16
    %2379 = vst [vmem:[%s2378] sm:$0xff] %v2373
    %2380 = vst [vmem:[%s2378 + $0x8] sm:$0x7f] %v2376
    // Predicated region
    $region62: #{gunet_forward.3} parent=1 // pred_check
      _
    $region63: #{gunet_forward.3} parent=1 // pred_check_branch
      %2382 = sbr.rel (0) target = $region65
    $region64: #{gunet_forward.3} parent=1 // pred_region
      _
    $region65: #{gunet_forward.3} parent=1 // pred_fallthru
      _
    // Predicated region
    $region66: #{gunet_forward.3} parent=1 // pred_check
      _
    $region67: #{gunet_forward.3} parent=1 // pred_check_branch
      %2384 = sbr.rel (0) target = $region69
    $region68: #{gunet_forward.3} parent=1 // pred_region
      _
    $region69: #{gunet_forward.3} parent=1 // pred_fallthru
      _
    %2385 = vsyncpa [#allocation3], 1
    %2386 = vsyncpa [#allocation5], 1
    %2387 = vsyncpa [#allocation8], 1

</llo_original>
